<compile_context>
chip_gen: v7x
topology: tpu7x:2x2x1
jax: 0.10.0
libtpu: 0.0.40
codegen_flags: <defaults>
</compile_context>

<pallas_src>
import functools
import math

import jax
import jax.numpy as jnp
from jax.experimental import pallas as pl
from jax.experimental.pallas import tpu as pltpu

VMEM = pltpu.MemorySpace.VMEM
MATMUL_DTYPE = jnp.bfloat16        # MXU operand dtype; accumulation stays f32


# --------------------------- small helpers ---------------------------

def _same_pad(h, w, k, s):
    """TF-style 'SAME' padding used by get_same_padding_conv2d."""
    oh, ow = -(-h // s), -(-w // s)
    ph = max((oh - 1) * s + k - h, 0)
    pw = max((ow - 1) * s + k - w, 0)
    return (ph // 2, ph - ph // 2), (pw // 2, pw - pw // 2), oh, ow


# --------------------------- Pallas kernels ---------------------------

def _stem_kernel(p_ref, w_ref, shift_ref, o_ref):
    """Stem conv as a single matmul over im2col patches + folded-BN shift + swish."""
    y = jnp.dot(p_ref[...].astype(w_ref.dtype), w_ref[...],
                preferred_element_type=jnp.float32) + shift_ref[...]
    o_ref[...] = y * jax.nn.sigmoid(y)


def _head_kernel(x_ref, w_ref, shift_ref, o_ref, *, inv_n):
    """Head 1x1 conv + BN + swish fused with global average pooling (one batch item)."""
    y = jnp.dot(x_ref[...].astype(w_ref.dtype), w_ref[...],
                preferred_element_type=jnp.float32) + shift_ref[...]
    y = y * jax.nn.sigmoid(y)
    o_ref[...] = jnp.sum(y, axis=0, keepdims=True) * inv_n


def _mbconv_kernel(*refs, k, s, H, W, Ho, Wo, pt, pwl,
                   has_expand, has_se, has_skip):
    """Fully fused MBConv block for one batch item.

    refs = [x, (expand_w, bn0_shift)?, dw_w, bn1_shift, (se_w1,b1,w2,b2)?, proj_w,
            bn2_shift, o_ref, pad_scratch, flat_scratch]
    All intermediates live in VMEM; nothing round-trips HBM.
    """
    ins = refs[:-3]
    o_ref, pad_ref, flat_ref = refs[-3], refs[-2], refs[-1]

    i = 0
    x_ref = ins[i]; i += 1
    if has_expand:
        exp_w_ref, bn0_ref = ins[i], ins[i + 1]; i += 2
    dw_w_ref, bn1_ref = ins[i], ins[i + 1]; i += 2
    if has_se:
        se_w1_ref, se_b1_ref, se_w2_ref, se_b2_ref = ins[i:i + 4]; i += 4
    proj_w_ref, bn2_ref = ins[i], ins[i + 1]

    # Zero the padded scratch (SAME-padding border must be exactly 0).
    pad_ref[...] = jnp.zeros(pad_ref.shape, pad_ref.dtype)

    x = x_ref[...]                                           # (H*W, Cin) f32
    if has_expand:
        y = jnp.dot(x.astype(exp_w_ref.dtype), exp_w_ref[...],
                    preferred_element_type=jnp.float32) + bn0_ref[...]
        y = y * jax.nn.sigmoid(y)                            # swish(bn0(expand(x)))
    else:
        y = x
    # Scatter the (H*W, Coup) rows into the zero-padded (Hpad, Wpad, Coup) scratch.
    for h in range(H):
        pad_ref[pt + h, pwl:pwl + W, :] = y[h * W:(h + 1) * W, :]

    # Depthwise KxK conv, taps grouped by W-offset: one sublane slice per dx.
    w_dw = dw_w_ref[...]                                     # (k*k, Coup) f32
    coup = w_dw.shape[-1]
    acc = jnp.zeros((Ho, Wo, coup), jnp.float32)
    for dx in range(k):
        if s == 1:
            col = pad_ref[:, pl.ds(dx, Wo), :]               # (Hpad, Wo, Coup)
        else:
            col = pad_ref[:, pl.ds(dx, Wo, stride=s), :]     # strided sublane ref load
        for dy in range(k):
            if s == 1:
                tap = col[dy:dy + Ho]                        # leading-dim slice (free)
            else:
                tap = jnp.stack([col[dy + r * s] for r in range(Ho)], axis=0)
            acc = acc + tap * w_dw[dy * k + dx]
    yd = acc + bn1_ref[...]
    yd = yd * jax.nn.sigmoid(yd)                             # swish(bn1(dwconv(.)))

    # Flatten spatial dims via row stores into a second scratch (no in-kernel reshape).
    for ho in range(Ho):
        flat_ref[ho * Wo:(ho + 1) * Wo, :] = yd[ho]
    yf = flat_ref[...]                                       # (Ho*Wo, Coup) f32

    if has_se:                                               # fused squeeze-and-excite
        sq = jnp.sum(yf, axis=0, keepdims=True) * (1.0 / (Ho * Wo))   # (1, Coup)
        h1 = jnp.dot(sq, se_w1_ref[...],
                     preferred_element_type=jnp.float32) + se_b1_ref[...]
        h1 = h1 * jax.nn.sigmoid(h1)
        gate = jax.nn.sigmoid(jnp.dot(h1, se_w2_ref[...],
                                      preferred_element_type=jnp.float32)
                              + se_b2_ref[...])              # (1, Coup)
        yf = yf * gate

    z = jnp.dot(yf.astype(proj_w_ref.dtype), proj_w_ref[...],
                preferred_element_type=jnp.float32) + bn2_ref[...]    # bn2(project(.))
    if has_skip:
        z = z + x                                            # residual (drop_connect rate=0)
    o_ref[...] = z


# --------------------------- kernel wrappers ---------------------------

def stem_forward(x_nhwc, w, shift, k=3, s=2):
    """Stem conv + BN + swish. Im2col in XLA, one MXU matmul in Pallas (batch folded)."""
    B, H, W, Cin = x_nhwc.shape
    (pt, pb), (pwl, pwr), Ho, Wo = _same_pad(H, W, k, s)
    need_h = (Ho - 1) * s + k
    need_w = (Wo - 1) * s + k
    xp = jnp.pad(x_nhwc, ((0, 0),
                          (pt, max(pb, need_h - H - pt)),
                          (pwl, max(pwr, need_w - W - pwl)),
                          (0, 0)))
    patches = jnp.concatenate(
        [xp[:, dy:dy + (Ho - 1) * s + 1:s, dx:dx + (Wo - 1) * s + 1:s, :]
         for dy in range(k) for dx in range(k)], axis=-1)    # (B, Ho, Wo, k*k*Cin)
    pmat = patches.reshape(B * Ho * Wo, k * k * Cin)
    cout = w.shape[-1]
    out = pl.pallas_call(
        _stem_kernel,
        out_shape=jax.ShapeDtypeStruct((B * Ho * Wo, cout), jnp.float32),
        in_specs=[pl.BlockSpec(memory_space=VMEM)] * 3,
        out_specs=pl.BlockSpec(memory_space=VMEM),
    )(pmat, w, shift)
    return out.reshape(B, Ho * Wo, cout), Ho, Wo


def mbconv_block(x3, H, W, p, ba):
    """One fully fused MBConv block. x3: (B, H*W, Cin) f32. Returns ((B, Ho*Wo, Cout), Ho, Wo)."""
    B, N, Cin = x3.shape
    k, s = ba["kernel_size"], ba["stride"]
    has_expand = ba["expand_ratio"] != 1
    coup = p["dw_w"].shape[1]
    cout = ba["output_filters"]
    (pt, pb), (pwl, pwr), Ho, Wo = _same_pad(H, W, k, s)
    Hpad = max(H + pt + pb, (Ho - 1) * s + k)
    Wpad = max(W + pwl + pwr, (Wo - 1) * s + k)
    has_se = "se_w1" in p
    has_skip = (ba["id_skip"] and s == 1
                and ba["input_filters"] == ba["output_filters"])

    args = [x3]
    specs = [pl.BlockSpec((None, N, Cin), lambda b: (b, 0, 0))]

    def full(a):                                  # whole-array (weight) operand
        args.append(a)
        specs.append(pl.BlockSpec(a.shape, lambda b: (0,) * a.ndim))

    if has_expand:
        full(p["expand_w"]); full(p["bn0_shift"])
    full(p["dw_w"]); full(p["bn1_shift"])
    if has_se:
        full(p["se_w1"]); full(p["se_b1"]); full(p["se_w2"]); full(p["se_b2"])
    full(p["proj_w"]); full(p["bn2_shift"])

    out = pl.pallas_call(
        functools.partial(_mbconv_kernel, k=k, s=s, H=H, W=W, Ho=Ho, Wo=Wo,
                          pt=pt, pwl=pwl, has_expand=has_expand,
                          has_se=has_se, has_skip=has_skip),
        grid=(B,),
        out_shape=jax.ShapeDtypeStruct((B, Ho * Wo, cout), jnp.float32),
        in_specs=specs,
        out_specs=pl.BlockSpec((None, Ho * Wo, cout), lambda b: (b, 0, 0)),
        scratch_shapes=[pltpu.VMEM((Hpad, Wpad, coup), jnp.float32),
                        pltpu.VMEM((Ho * Wo, coup), jnp.float32)],
        compiler_params=pltpu.CompilerParams(dimension_semantics=("parallel",)),
    )(*args)
    return out, Ho, Wo


def head_forward(x3, w, shift):
    """Head 1x1 conv + BN + swish fused with adaptive_avg_pool2d(.,1) + squeezes."""
    B, N, Cin = x3.shape
    cout = w.shape[-1]
    out = pl.pallas_call(
        functools.partial(_head_kernel, inv_n=1.0 / N),
        grid=(B,),
        out_shape=jax.ShapeDtypeStruct((B, 1, cout), jnp.float32),
        in_specs=[pl.BlockSpec((None, N, Cin), lambda b: (b, 0, 0)),
                  pl.BlockSpec((Cin, cout), lambda b: (0, 0)),
                  pl.BlockSpec((1, cout), lambda b: (0, 0))],
        out_specs=pl.BlockSpec((None, 1, cout), lambda b: (b, 0, 0)),
        compiler_params=pltpu.CompilerParams(dimension_semantics=("parallel",)),
    )(x3, w, shift)
    return out.reshape(B, cout)


# --------------------------- model configuration ---------------------------

GLOBAL_PARAMS = dict(
    batch_norm_momentum=0.99,
    batch_norm_epsilon=1e-3,
    drop_connect_rate=0.0,       # -> drop_connect path is skipped, as in the reference
    width_coefficient=0.25,
    depth_coefficient=None,
    depth_divisor=8,
    min_depth=None,
    image_size=16,
)

BLOCKS_ARGS = [
    dict(kernel_size=3, num_repeat=1, input_filters=32, output_filters=16,
         expand_ratio=1, id_skip=True, stride=1, se_ratio=0.25),
    dict(kernel_size=5, num_repeat=2, input_filters=16, output_filters=24,
         expand_ratio=6, id_skip=True, stride=2, se_ratio=0.25),
]


def round_filters(filters, gp):
    multiplier = gp["width_coefficient"]
    if not multiplier:
        return filters
    divisor = gp["depth_divisor"]
    min_depth = gp["min_depth"]
    filters *= multiplier
    min_depth = min_depth or divisor
    new_filters = max(min_depth, int(filters + divisor / 2) // divisor * divisor)
    if new_filters < 0.9 * filters:
        new_filters += divisor
    return int(new_filters)


def round_repeats(repeats, gp):
    multiplier = gp["depth_coefficient"]
    if not multiplier:
        return repeats
    return int(math.ceil(multiplier * repeats))


# --------------------------- parameter init (BN scale folded into weights) ---------------------------

class KeyGen:
    def __init__(self, key):
        self.key = key

    def next(self):
        self.key, sub = jax.random.split(self.key)
        return sub


def init_conv(kg, k, cin, cout):
    return 0.1 * jax.random.normal(kg.next(), (k, k, cin, cout), jnp.float32)


def init_dw(kg, k, c):
    return 0.1 * jax.random.normal(kg.next(), (k, k, c), jnp.float32)


def init_bn(kg, c, eps):
    gamma = 1.0 + 0.1 * jax.random.normal(kg.next(), (c,), jnp.float32)
    beta = 0.1 * jax.random.normal(kg.next(), (c,), jnp.float32)
    mean = 0.1 * jax.random.normal(kg.next(), (c,), jnp.float32)
    var = 1.0 + 0.1 * jax.random.uniform(kg.next(), (c,), jnp.float32)
    scale = gamma / jnp.sqrt(var + eps)
    shift = beta - mean * scale
    return scale, shift


def build_block_params(kg, ba, gp):
    eps = gp["batch_norm_epsilon"]
    inp = ba["input_filters"]
    oup = inp * ba["expand_ratio"]
    k = ba["kernel_size"]
    p = {}
    if ba["expand_ratio"] != 1:
        w = init_conv(kg, 1, inp, oup)[0, 0]
        sc, sh = init_bn(kg, oup, eps)
        p["expand_w"] = (w * sc[None, :]).astype(MATMUL_DTYPE)
        p["bn0_shift"] = sh.reshape(1, oup)
    dw = init_dw(kg, k, oup)
    sc, sh = init_bn(kg, oup, eps)
    p["dw_w"] = (dw * sc[None, None, :]).reshape(k * k, oup)     # f32 (VPU MAC path)
    p["bn1_shift"] = sh.reshape(1, oup)
    if ba["se_ratio"] is not None and 0 < ba["se_ratio"] <= 1:
        nsq = max(1, int(inp * ba["se_ratio"]))
        p["se_w1"] = init_conv(kg, 1, oup, nsq)[0, 0]
        p["se_b1"] = (0.1 * jax.random.normal(kg.next(), (nsq,), jnp.float32)).reshape(1, nsq)
        p["se_w2"] = init_conv(kg, 1, nsq, oup)[0, 0]
        p["se_b2"] = (0.1 * jax.random.normal(kg.next(), (oup,), jnp.float32)).reshape(1, oup)
    w = init_conv(kg, 1, oup, ba["output_filters"])[0, 0]
    sc, sh = init_bn(kg, ba["output_filters"], eps)
    p["proj_w"] = (w * sc[None, :]).astype(MATMUL_DTYPE)
    p["bn2_shift"] = sh.reshape(1, ba["output_filters"])
    return p


def build_model_params(key, blocks_args, gp):
    kg = KeyGen(key)
    eps = gp["batch_norm_epsilon"]
    params = {}
    stem_out = round_filters(32, gp)
    w = init_conv(kg, 3, 3, stem_out)                            # (3, 3, 3, Cout)
    sc, sh = init_bn(kg, stem_out, eps)
    params["stem_w"] = (w * sc[None, None, None, :]).reshape(9 * 3, stem_out).astype(MATMUL_DTYPE)
    params["stem_shift"] = sh.reshape(1, stem_out)
    block_params, block_args_list = [], []
    for ba in blocks_args:
        ba = dict(ba)
        ba["input_filters"] = round_filters(ba["input_filters"], gp)
        ba["output_filters"] = round_filters(ba["output_filters"], gp)
        ba["num_repeat"] = round_repeats(ba["num_repeat"], gp)
        block_params.append(build_block_params(kg, ba, gp))
        block_args_list.append(dict(ba))
        if ba["num_repeat"] > 1:
            ba["input_filters"] = ba["output_filters"]
            ba["stride"] = 1
        for _ in range(ba["num_repeat"] - 1):
            block_params.append(build_block_params(kg, ba, gp))
            block_args_list.append(dict(ba))
    params["blocks"] = block_params
    head_in = block_args_list[-1]["output_filters"]
    head_out = round_filters(1280, gp)
    w = init_conv(kg, 1, head_in, head_out)[0, 0]
    sc, sh = init_bn(kg, head_out, eps)
    params["head_w"] = (w * sc[None, :]).astype(MATMUL_DTYPE)
    params["head_shift"] = sh.reshape(1, head_out)
    return params, block_args_list


# --------------------------- forward ---------------------------

def efficientnet_forward(params, block_args_list, gp, x_nchw):
    x = jnp.transpose(x_nchw, (0, 2, 3, 1))                      # NCHW -> NHWC (C -> lanes)
    x3, H, W = stem_forward(x, params["stem_w"], params["stem_shift"], k=3, s=2)
    for p, ba in zip(params["blocks"], block_args_list):
        # drop_connect_rate == 0.0 -> `if drop_connect_rate:` is False in the reference
        x3, H, W = mbconv_block(x3, H, W, p, ba)
    # head conv + BN + swish fused with adaptive_avg_pool2d(x, 1) + squeezes
    return head_forward(x3, params["head_w"], params["head_shift"])   # (B, feat_dim)


if __name__ == "__main__":
    key = jax.random.PRNGKey(0)
    kp, kx = jax.random.split(key)
    params, bargs = build_model_params(kp, BLOCKS_ARGS, GLOBAL_PARAMS)
    x = jax.random.normal(kx, (2, 3, 16, 16), jnp.float32)       # NCHW like PyTorch
    fwd = jax.jit(lambda prm, inp: efficientnet_forward(prm, bargs, GLOBAL_PARAMS, inp))
    out = jax.block_until_ready(fwd(params, x))
    assert out.shape == (2, round_filters(1280, GLOBAL_PARAMS)) and out.dtype == jnp.float32
    assert bool(jnp.all(jnp.isfinite(out)))
    print("KERNEL_OK")
</pallas_src>

<mosaic_0001>
module attributes {stable_mosaic.version = 11 : i64} {
  func.func @_stem_kernel(%arg0: memref<128x27xf32, #tpu.memory_space<vmem>>, %arg1: memref<27x8xbf16, #tpu.memory_space<vmem>>, %arg2: memref<1x8xf32, #tpu.memory_space<vmem>>, %arg3: memref<128x8xf32, #tpu.memory_space<vmem>>) attributes {dimension_semantics = [], scalar_prefetch = 0 : i64, scratch_operands = 0 : i64, tpu.core_type = #tpu.core_type<tc>} {
    %c0 = arith.constant 0 : index
    %c0_0 = arith.constant 0 : index
    %0 = vector.load %arg0[%c0, %c0_0] : memref<128x27xf32, #tpu.memory_space<vmem>>, vector<128x27xf32>
    %1 = arith.truncf %0 : vector<128x27xf32> to vector<128x27xbf16>
    %c0_1 = arith.constant 0 : index
    %c0_2 = arith.constant 0 : index
    %2 = vector.load %arg1[%c0_1, %c0_2] : memref<27x8xbf16, #tpu.memory_space<vmem>>, vector<27x8xbf16>
    %cst = arith.constant dense<0.000000e+00> : vector<128x8xf32>
    %3 = tpu.matmul %1, %2, %cst {dimension_numbers = #tpu.dot_dimension_numbers<[1], [0], [0], [1], [0, 0, 1, 1], [], []>} : vector<128x27xbf16>, vector<27x8xbf16>, vector<128x8xf32> -> vector<128x8xf32>
    %c0_3 = arith.constant 0 : index
    %c0_4 = arith.constant 0 : index
    %4 = vector.load %arg2[%c0_3, %c0_4] : memref<1x8xf32, #tpu.memory_space<vmem>>, vector<1x8xf32>
    %5 = vector.broadcast %4 : vector<1x8xf32> to vector<128x8xf32>
    %6 = arith.addf %3, %5 : vector<128x8xf32>
    %7 = arith.negf %6 : vector<128x8xf32>
    %8 = math.exp %7 : vector<128x8xf32>
    %cst_5 = arith.constant 1.000000e+00 : f32
    %9 = vector.broadcast %cst_5 : f32 to vector<128x8xf32>
    %10 = arith.addf %9, %8 : vector<128x8xf32>
    %11 = arith.divf %9, %10 : vector<128x8xf32>
    %12 = arith.mulf %6, %11 : vector<128x8xf32>
    %c0_6 = arith.constant 0 : index
    %c0_7 = arith.constant 0 : index
    %13 = vector.load %arg3[%c0_6, %c0_7] : memref<128x8xf32, #tpu.memory_space<vmem>>, vector<128x8xf32>
    tpu.vector_store %arg3[%c0_6, %c0_7], %12 {strides = array<i32>} : memref<128x8xf32, #tpu.memory_space<vmem>>, vector<128x8xf32>,
    return
  }
}

module attributes {stable_mosaic.version = 11 : i64} {
  func.func @_mbconv_kernel(%arg0: i32, %arg1: memref<1x64x8xf32, #tpu.memory_space<vmem>>, %arg2: memref<9x8xf32, #tpu.memory_space<vmem>>, %arg3: memref<1x8xf32, #tpu.memory_space<vmem>>, %arg4: memref<8x2xf32, #tpu.memory_space<vmem>>, %arg5: memref<1x2xf32, #tpu.memory_space<vmem>>, %arg6: memref<2x8xf32, #tpu.memory_space<vmem>>, %arg7: memref<1x8xf32, #tpu.memory_space<vmem>>, %arg8: memref<8x8xbf16, #tpu.memory_space<vmem>>, %arg9: memref<1x8xf32, #tpu.memory_space<vmem>>, %arg10: memref<1x64x8xf32, #tpu.memory_space<vmem>>, %arg11: memref<10x10x8xf32, #tpu.memory_space<vmem>>, %arg12: memref<64x8xf32, #tpu.memory_space<vmem>>) attributes {dimension_semantics = [#tpu.dimension_semantics<parallel>], iteration_bounds = array<i64: 2>, scalar_prefetch = 0 : i64, scratch_operands = 2 : i64, tpu.core_type = #tpu.core_type<tc>, window_params = [{transform_indices = @transform_0, window_bounds = array<i64: 1, 64, 8>}, {pipeline_mode = #tpu.pipeline_mode<synchronous>, transform_indices = @transform_1, window_bounds = array<i64: 9, 8>}, {pipeline_mode = #tpu.pipeline_mode<synchronous>, transform_indices = @transform_2, window_bounds = array<i64: 1, 8>}, {pipeline_mode = #tpu.pipeline_mode<synchronous>, transform_indices = @transform_3, window_bounds = array<i64: 8, 2>}, {pipeline_mode = #tpu.pipeline_mode<synchronous>, transform_indices = @transform_4, window_bounds = array<i64: 1, 2>}, {pipeline_mode = #tpu.pipeline_mode<synchronous>, transform_indices = @transform_5, window_bounds = array<i64: 2, 8>}, {pipeline_mode = #tpu.pipeline_mode<synchronous>, transform_indices = @transform_6, window_bounds = array<i64: 1, 8>}, {pipeline_mode = #tpu.pipeline_mode<synchronous>, transform_indices = @transform_7, window_bounds = array<i64: 8, 8>}, {pipeline_mode = #tpu.pipeline_mode<synchronous>, transform_indices = @transform_8, window_bounds = array<i64: 1, 8>}, {transform_indices = @transform_9, window_bounds = array<i64: 1, 64, 8>}]} {
    %cst = arith.constant 0.000000e+00 : f32
    %0 = vector.broadcast %cst : f32 to vector<10x10x8xf32>
    %c0 = arith.constant 0 : index
    %c0_0 = arith.constant 0 : index
    %c0_1 = arith.constant 0 : index
    %1 = vector.load %arg11[%c0, %c0_0, %c0_1] : memref<10x10x8xf32, #tpu.memory_space<vmem>>, vector<10x10x8xf32>
    tpu.vector_store %arg11[%c0, %c0_0, %c0_1], %0 {strides = array<i32>} : memref<10x10x8xf32, #tpu.memory_space<vmem>>, vector<10x10x8xf32>,
    %c0_2 = arith.constant 0 : index
    %c0_3 = arith.constant 0 : index
    %c0_4 = arith.constant 0 : index
    %2 = vector.load %arg1[%c0_2, %c0_3, %c0_4] : memref<1x64x8xf32, #tpu.memory_space<vmem>>, vector<1x64x8xf32>
    %3 = vector.shape_cast %2 : vector<1x64x8xf32> to vector<64x8xf32>
    %4 = vector.extract_strided_slice %3 {offsets = [0, 0], sizes = [8, 8], strides = [1, 1]} : vector<64x8xf32> to vector<8x8xf32>
    %c1 = arith.constant 1 : index
    %c1_5 = arith.constant 1 : index
    %c0_6 = arith.constant 0 : index
    %5 = vector.load %arg11[%c1, %c1_5, %c0_6] : memref<10x10x8xf32, #tpu.memory_space<vmem>>, vector<1x8x8xf32>
    %6 = vector.shape_cast %5 : vector<1x8x8xf32> to vector<8x8xf32>
    %7 = vector.shape_cast %4 : vector<8x8xf32> to vector<1x8x8xf32>
    tpu.vector_store %arg11[%c1, %c1_5, %c0_6], %7 {strides = array<i32>} : memref<10x10x8xf32, #tpu.memory_space<vmem>>, vector<1x8x8xf32>,
    %8 = vector.extract_strided_slice %3 {offsets = [8, 0], sizes = [8, 8], strides = [1, 1]} : vector<64x8xf32> to vector<8x8xf32>
    %c2 = arith.constant 2 : index
    %c1_7 = arith.constant 1 : index
    %c0_8 = arith.constant 0 : index
    %9 = vector.load %arg11[%c2, %c1_7, %c0_8] : memref<10x10x8xf32, #tpu.memory_space<vmem>>, vector<1x8x8xf32>
    %10 = vector.shape_cast %9 : vector<1x8x8xf32> to vector<8x8xf32>
    %11 = vector.shape_cast %8 : vector<8x8xf32> to vector<1x8x8xf32>
    tpu.vector_store %arg11[%c2, %c1_7, %c0_8], %11 {strides = array<i32>} : memref<10x10x8xf32, #tpu.memory_space<vmem>>, vector<1x8x8xf32>,
    %12 = vector.extract_strided_slice %3 {offsets = [16, 0], sizes = [8, 8], strides = [1, 1]} : vector<64x8xf32> to vector<8x8xf32>
    %c3 = arith.constant 3 : index
    %c1_9 = arith.constant 1 : index
    %c0_10 = arith.constant 0 : index
    %13 = vector.load %arg11[%c3, %c1_9, %c0_10] : memref<10x10x8xf32, #tpu.memory_space<vmem>>, vector<1x8x8xf32>
    %14 = vector.shape_cast %13 : vector<1x8x8xf32> to vector<8x8xf32>
    %15 = vector.shape_cast %12 : vector<8x8xf32> to vector<1x8x8xf32>
    tpu.vector_store %arg11[%c3, %c1_9, %c0_10], %15 {strides = array<i32>} : memref<10x10x8xf32, #tpu.memory_space<vmem>>, vector<1x8x8xf32>,
    %16 = vector.extract_strided_slice %3 {offsets = [24, 0], sizes = [8, 8], strides = [1, 1]} : vector<64x8xf32> to vector<8x8xf32>
    %c4 = arith.constant 4 : index
    %c1_11 = arith.constant 1 : index
    %c0_12 = arith.constant 0 : index
    %17 = vector.load %arg11[%c4, %c1_11, %c0_12] : memref<10x10x8xf32, #tpu.memory_space<vmem>>, vector<1x8x8xf32>
    %18 = vector.shape_cast %17 : vector<1x8x8xf32> to vector<8x8xf32>
    %19 = vector.shape_cast %16 : vector<8x8xf32> to vector<1x8x8xf32>
    tpu.vector_store %arg11[%c4, %c1_11, %c0_12], %19 {strides = array<i32>} : memref<10x10x8xf32, #tpu.memory_space<vmem>>, vector<1x8x8xf32>,
    %20 = vector.extract_strided_slice %3 {offsets = [32, 0], sizes = [8, 8], strides = [1, 1]} : vector<64x8xf32> to vector<8x8xf32>
    %c5 = arith.constant 5 : index
    %c1_13 = arith.constant 1 : index
    %c0_14 = arith.constant 0 : index
    %21 = vector.load %arg11[%c5, %c1_13, %c0_14] : memref<10x10x8xf32, #tpu.memory_space<vmem>>, vector<1x8x8xf32>
    %22 = vector.shape_cast %21 : vector<1x8x8xf32> to vector<8x8xf32>
    %23 = vector.shape_cast %20 : vector<8x8xf32> to vector<1x8x8xf32>
    tpu.vector_store %arg11[%c5, %c1_13, %c0_14], %23 {strides = array<i32>} : memref<10x10x8xf32, #tpu.memory_space<vmem>>, vector<1x8x8xf32>,
    %24 = vector.extract_strided_slice %3 {offsets = [40, 0], sizes = [8, 8], strides = [1, 1]} : vector<64x8xf32> to vector<8x8xf32>
    %c6 = arith.constant 6 : index
    %c1_15 = arith.constant 1 : index
    %c0_16 = arith.constant 0 : index
    %25 = vector.load %arg11[%c6, %c1_15, %c0_16] : memref<10x10x8xf32, #tpu.memory_space<vmem>>, vector<1x8x8xf32>
    %26 = vector.shape_cast %25 : vector<1x8x8xf32> to vector<8x8xf32>
    %27 = vector.shape_cast %24 : vector<8x8xf32> to vector<1x8x8xf32>
    tpu.vector_store %arg11[%c6, %c1_15, %c0_16], %27 {strides = array<i32>} : memref<10x10x8xf32, #tpu.memory_space<vmem>>, vector<1x8x8xf32>,
    %28 = vector.extract_strided_slice %3 {offsets = [48, 0], sizes = [8, 8], strides = [1, 1]} : vector<64x8xf32> to vector<8x8xf32>
    %c7 = arith.constant 7 : index
    %c1_17 = arith.constant 1 : index
    %c0_18 = arith.constant 0 : index
    %29 = vector.load %arg11[%c7, %c1_17, %c0_18] : memref<10x10x8xf32, #tpu.memory_space<vmem>>, vector<1x8x8xf32>
    %30 = vector.shape_cast %29 : vector<1x8x8xf32> to vector<8x8xf32>
    %31 = vector.shape_cast %28 : vector<8x8xf32> to vector<1x8x8xf32>
    tpu.vector_store %arg11[%c7, %c1_17, %c0_18], %31 {strides = array<i32>} : memref<10x10x8xf32, #tpu.memory_space<vmem>>, vector<1x8x8xf32>,
    %32 = vector.extract_strided_slice %3 {offsets = [56, 0], sizes = [8, 8], strides = [1, 1]} : vector<64x8xf32> to vector<8x8xf32>
    %c8 = arith.constant 8 : index
    %c1_19 = arith.constant 1 : index
    %c0_20 = arith.constant 0 : index
    %33 = vector.load %arg11[%c8, %c1_19, %c0_20] : memref<10x10x8xf32, #tpu.memory_space<vmem>>, vector<1x8x8xf32>
    %34 = vector.shape_cast %33 : vector<1x8x8xf32> to vector<8x8xf32>
    %35 = vector.shape_cast %32 : vector<8x8xf32> to vector<1x8x8xf32>
    tpu.vector_store %arg11[%c8, %c1_19, %c0_20], %35 {strides = array<i32>} : memref<10x10x8xf32, #tpu.memory_space<vmem>>, vector<1x8x8xf32>,
    %c0_21 = arith.constant 0 : index
    %c0_22 = arith.constant 0 : index
    %36 = vector.load %arg2[%c0_21, %c0_22] : memref<9x8xf32, #tpu.memory_space<vmem>>, vector<9x8xf32>
    %cst_23 = arith.constant 0.000000e+00 : f32
    %37 = vector.broadcast %cst_23 : f32 to vector<8x8x8xf32>
    %c0_24 = arith.constant 0 : index
    %c0_25 = arith.constant 0 : index
    %c0_26 = arith.constant 0 : index
    %38 = vector.load %arg11[%c0_24, %c0_25, %c0_26] : memref<10x10x8xf32, #tpu.memory_space<vmem>>, vector<10x8x8xf32>
    %39 = vector.extract_strided_slice %38 {offsets = [0, 0, 0], sizes = [8, 8, 8], strides = [1, 1, 1]} : vector<10x8x8xf32> to vector<8x8x8xf32>
    %40 = vector.extract_strided_slice %36 {offsets = [0, 0], sizes = [1, 8], strides = [1, 1]} : vector<9x8xf32> to vector<1x8xf32>
    %41 = vector.shape_cast %40 : vector<1x8xf32> to vector<8xf32>
    %42 = vector.shape_cast %41 : vector<8xf32> to vector<1x1x8xf32>
    %43 = vector.broadcast %42 : vector<1x1x8xf32> to vector<8x8x8xf32>
    %44 = arith.mulf %39, %43 : vector<8x8x8xf32>
    %45 = arith.addf %37, %44 : vector<8x8x8xf32>
    %46 = vector.extract_strided_slice %38 {offsets = [1, 0, 0], sizes = [8, 8, 8], strides = [1, 1, 1]} : vector<10x8x8xf32> to vector<8x8x8xf32>
    %47 = vector.extract_strided_slice %36 {offsets = [3, 0], sizes = [1, 8], strides = [1, 1]} : vector<9x8xf32> to vector<1x8xf32>
    %48 = vector.shape_cast %47 : vector<1x8xf32> to vector<8xf32>
    %49 = vector.shape_cast %48 : vector<8xf32> to vector<1x1x8xf32>
    %50 = vector.broadcast %49 : vector<1x1x8xf32> to vector<8x8x8xf32>
    %51 = arith.mulf %46, %50 : vector<8x8x8xf32>
    %52 = arith.addf %45, %51 : vector<8x8x8xf32>
    %53 = vector.extract_strided_slice %38 {offsets = [2, 0, 0], sizes = [8, 8, 8], strides = [1, 1, 1]} : vector<10x8x8xf32> to vector<8x8x8xf32>
    %54 = vector.extract_strided_slice %36 {offsets = [6, 0], sizes = [1, 8], strides = [1, 1]} : vector<9x8xf32> to vector<1x8xf32>
    %55 = vector.shape_cast %54 : vector<1x8xf32> to vector<8xf32>
    %56 = vector.shape_cast %55 : vector<8xf32> to vector<1x1x8xf32>
    %57 = vector.broadcast %56 : vector<1x1x8xf32> to vector<8x8x8xf32>
    %58 = arith.mulf %53, %57 : vector<8x8x8xf32>
    %59 = arith.addf %52, %58 : vector<8x8x8xf32>
    %c0_27 = arith.constant 0 : index
    %c1_28 = arith.constant 1 : index
    %c0_29 = arith.constant 0 : index
    %60 = vector.load %arg11[%c0_27, %c1_28, %c0_29] : memref<10x10x8xf32, #tpu.memory_space<vmem>>, vector<10x8x8xf32>
    %61 = vector.extract_strided_slice %60 {offsets = [0, 0, 0], sizes = [8, 8, 8], strides = [1, 1, 1]} : vector<10x8x8xf32> to vector<8x8x8xf32>
    %62 = vector.extract_strided_slice %36 {offsets = [1, 0], sizes = [1, 8], strides = [1, 1]} : vector<9x8xf32> to vector<1x8xf32>
    %63 = vector.shape_cast %62 : vector<1x8xf32> to vector<8xf32>
    %64 = vector.shape_cast %63 : vector<8xf32> to vector<1x1x8xf32>
    %65 = vector.broadcast %64 : vector<1x1x8xf32> to vector<8x8x8xf32>
    %66 = arith.mulf %61, %65 : vector<8x8x8xf32>
    %67 = arith.addf %59, %66 : vector<8x8x8xf32>
    %68 = vector.extract_strided_slice %60 {offsets = [1, 0, 0], sizes = [8, 8, 8], strides = [1, 1, 1]} : vector<10x8x8xf32> to vector<8x8x8xf32>
    %69 = vector.extract_strided_slice %36 {offsets = [4, 0], sizes = [1, 8], strides = [1, 1]} : vector<9x8xf32> to vector<1x8xf32>
    %70 = vector.shape_cast %69 : vector<1x8xf32> to vector<8xf32>
    %71 = vector.shape_cast %70 : vector<8xf32> to vector<1x1x8xf32>
    %72 = vector.broadcast %71 : vector<1x1x8xf32> to vector<8x8x8xf32>
    %73 = arith.mulf %68, %72 : vector<8x8x8xf32>
    %74 = arith.addf %67, %73 : vector<8x8x8xf32>
    %75 = vector.extract_strided_slice %60 {offsets = [2, 0, 0], sizes = [8, 8, 8], strides = [1, 1, 1]} : vector<10x8x8xf32> to vector<8x8x8xf32>
    %76 = vector.extract_strided_slice %36 {offsets = [7, 0], sizes = [1, 8], strides = [1, 1]} : vector<9x8xf32> to vector<1x8xf32>
    %77 = vector.shape_cast %76 : vector<1x8xf32> to vector<8xf32>
    %78 = vector.shape_cast %77 : vector<8xf32> to vector<1x1x8xf32>
    %79 = vector.broadcast %78 : vector<1x1x8xf32> to vector<8x8x8xf32>
    %80 = arith.mulf %75, %79 : vector<8x8x8xf32>
    %81 = arith.addf %74, %80 : vector<8x8x8xf32>
    %c0_30 = arith.constant 0 : index
    %c2_31 = arith.constant 2 : index
    %c0_32 = arith.constant 0 : index
    %82 = vector.load %arg11[%c0_30, %c2_31, %c0_32] : memref<10x10x8xf32, #tpu.memory_space<vmem>>, vector<10x8x8xf32>
    %83 = vector.extract_strided_slice %82 {offsets = [0, 0, 0], sizes = [8, 8, 8], strides = [1, 1, 1]} : vector<10x8x8xf32> to vector<8x8x8xf32>
    %84 = vector.extract_strided_slice %36 {offsets = [2, 0], sizes = [1, 8], strides = [1, 1]} : vector<9x8xf32> to vector<1x8xf32>
    %85 = vector.shape_cast %84 : vector<1x8xf32> to vector<8xf32>
    %86 = vector.shape_cast %85 : vector<8xf32> to vector<1x1x8xf32>
    %87 = vector.broadcast %86 : vector<1x1x8xf32> to vector<8x8x8xf32>
    %88 = arith.mulf %83, %87 : vector<8x8x8xf32>
    %89 = arith.addf %81, %88 : vector<8x8x8xf32>
    %90 = vector.extract_strided_slice %82 {offsets = [1, 0, 0], sizes = [8, 8, 8], strides = [1, 1, 1]} : vector<10x8x8xf32> to vector<8x8x8xf32>
    %91 = vector.extract_strided_slice %36 {offsets = [5, 0], sizes = [1, 8], strides = [1, 1]} : vector<9x8xf32> to vector<1x8xf32>
    %92 = vector.shape_cast %91 : vector<1x8xf32> to vector<8xf32>
    %93 = vector.shape_cast %92 : vector<8xf32> to vector<1x1x8xf32>
    %94 = vector.broadcast %93 : vector<1x1x8xf32> to vector<8x8x8xf32>
    %95 = arith.mulf %90, %94 : vector<8x8x8xf32>
    %96 = arith.addf %89, %95 : vector<8x8x8xf32>
    %97 = vector.extract_strided_slice %82 {offsets = [2, 0, 0], sizes = [8, 8, 8], strides = [1, 1, 1]} : vector<10x8x8xf32> to vector<8x8x8xf32>
    %98 = vector.extract_strided_slice %36 {offsets = [8, 0], sizes = [1, 8], strides = [1, 1]} : vector<9x8xf32> to vector<1x8xf32>
    %99 = vector.shape_cast %98 : vector<1x8xf32> to vector<8xf32>
    %100 = vector.shape_cast %99 : vector<8xf32> to vector<1x1x8xf32>
    %101 = vector.broadcast %100 : vector<1x1x8xf32> to vector<8x8x8xf32>
    %102 = arith.mulf %97, %101 : vector<8x8x8xf32>
    %103 = arith.addf %96, %102 : vector<8x8x8xf32>
    %c0_33 = arith.constant 0 : index
    %c0_34 = arith.constant 0 : index
    %104 = vector.load %arg3[%c0_33, %c0_34] : memref<1x8xf32, #tpu.memory_space<vmem>>, vector<1x8xf32>
    %105 = vector.shape_cast %104 : vector<1x8xf32> to vector<1x1x8xf32>
    %106 = vector.broadcast %105 : vector<1x1x8xf32> to vector<8x8x8xf32>
    %107 = arith.addf %103, %106 : vector<8x8x8xf32>
    %108 = arith.negf %107 : vector<8x8x8xf32>
    %109 = math.exp %108 : vector<8x8x8xf32>
    %cst_35 = arith.constant 1.000000e+00 : f32
    %110 = vector.broadcast %cst_35 : f32 to vector<8x8x8xf32>
    %111 = arith.addf %110, %109 : vector<8x8x8xf32>
    %112 = arith.divf %110, %111 : vector<8x8x8xf32>
    %113 = arith.mulf %107, %112 : vector<8x8x8xf32>
    %114 = vector.extract_strided_slice %113 {offsets = [0, 0, 0], sizes = [1, 8, 8], strides = [1, 1, 1]} : vector<8x8x8xf32> to vector<1x8x8xf32>
    %115 = vector.shape_cast %114 : vector<1x8x8xf32> to vector<8x8xf32>
    %c0_36 = arith.constant 0 : index
    %c0_37 = arith.constant 0 : index
    %116 = vector.load %arg12[%c0_36, %c0_37] : memref<64x8xf32, #tpu.memory_space<vmem>>, vector<8x8xf32>
    tpu.vector_store %arg12[%c0_36, %c0_37], %115 {strides = array<i32>} : memref<64x8xf32, #tpu.memory_space<vmem>>, vector<8x8xf32>,
    %117 = vector.extract_strided_slice %113 {offsets = [1, 0, 0], sizes = [1, 8, 8], strides = [1, 1, 1]} : vector<8x8x8xf32> to vector<1x8x8xf32>
    %118 = vector.shape_cast %117 : vector<1x8x8xf32> to vector<8x8xf32>
    %c8_38 = arith.constant 8 : index
    %c0_39 = arith.constant 0 : index
    %119 = vector.load %arg12[%c8_38, %c0_39] : memref<64x8xf32, #tpu.memory_space<vmem>>, vector<8x8xf32>
    tpu.vector_store %arg12[%c8_38, %c0_39], %118 {strides = array<i32>} : memref<64x8xf32, #tpu.memory_space<vmem>>, vector<8x8xf32>,
    %120 = vector.extract_strided_slice %113 {offsets = [2, 0, 0], sizes = [1, 8, 8], strides = [1, 1, 1]} : vector<8x8x8xf32> to vector<1x8x8xf32>
    %121 = vector.shape_cast %120 : vector<1x8x8xf32> to vector<8x8xf32>
    %c16 = arith.constant 16 : index
    %c0_40 = arith.constant 0 : index
    %122 = vector.load %arg12[%c16, %c0_40] : memref<64x8xf32, #tpu.memory_space<vmem>>, vector<8x8xf32>
    tpu.vector_store %arg12[%c16, %c0_40], %121 {strides = array<i32>} : memref<64x8xf32, #tpu.memory_space<vmem>>, vector<8x8xf32>,
    %123 = vector.extract_strided_slice %113 {offsets = [3, 0, 0], sizes = [1, 8, 8], strides = [1, 1, 1]} : vector<8x8x8xf32> to vector<1x8x8xf32>
    %124 = vector.shape_cast %123 : vector<1x8x8xf32> to vector<8x8xf32>
    %c24 = arith.constant 24 : index
    %c0_41 = arith.constant 0 : index
    %125 = vector.load %arg12[%c24, %c0_41] : memref<64x8xf32, #tpu.memory_space<vmem>>, vector<8x8xf32>
    tpu.vector_store %arg12[%c24, %c0_41], %124 {strides = array<i32>} : memref<64x8xf32, #tpu.memory_space<vmem>>, vector<8x8xf32>,
    %126 = vector.extract_strided_slice %113 {offsets = [4, 0, 0], sizes = [1, 8, 8], strides = [1, 1, 1]} : vector<8x8x8xf32> to vector<1x8x8xf32>
    %127 = vector.shape_cast %126 : vector<1x8x8xf32> to vector<8x8xf32>
    %c32 = arith.constant 32 : index
    %c0_42 = arith.constant 0 : index
    %128 = vector.load %arg12[%c32, %c0_42] : memref<64x8xf32, #tpu.memory_space<vmem>>, vector<8x8xf32>
    tpu.vector_store %arg12[%c32, %c0_42], %127 {strides = array<i32>} : memref<64x8xf32, #tpu.memory_space<vmem>>, vector<8x8xf32>,
    %129 = vector.extract_strided_slice %113 {offsets = [5, 0, 0], sizes = [1, 8, 8], strides = [1, 1, 1]} : vector<8x8x8xf32> to vector<1x8x8xf32>
    %130 = vector.shape_cast %129 : vector<1x8x8xf32> to vector<8x8xf32>
    %c40 = arith.constant 40 : index
    %c0_43 = arith.constant 0 : index
    %131 = vector.load %arg12[%c40, %c0_43] : memref<64x8xf32, #tpu.memory_space<vmem>>, vector<8x8xf32>
    tpu.vector_store %arg12[%c40, %c0_43], %130 {strides = array<i32>} : memref<64x8xf32, #tpu.memory_space<vmem>>, vector<8x8xf32>,
    %132 = vector.extract_strided_slice %113 {offsets = [6, 0, 0], sizes = [1, 8, 8], strides = [1, 1, 1]} : vector<8x8x8xf32> to vector<1x8x8xf32>
    %133 = vector.shape_cast %132 : vector<1x8x8xf32> to vector<8x8xf32>
    %c48 = arith.constant 48 : index
    %c0_44 = arith.constant 0 : index
    %134 = vector.load %arg12[%c48, %c0_44] : memref<64x8xf32, #tpu.memory_space<vmem>>, vector<8x8xf32>
    tpu.vector_store %arg12[%c48, %c0_44], %133 {strides = array<i32>} : memref<64x8xf32, #tpu.memory_space<vmem>>, vector<8x8xf32>,
    %135 = vector.extract_strided_slice %113 {offsets = [7, 0, 0], sizes = [1, 8, 8], strides = [1, 1, 1]} : vector<8x8x8xf32> to vector<1x8x8xf32>
    %136 = vector.shape_cast %135 : vector<1x8x8xf32> to vector<8x8xf32>
    %c56 = arith.constant 56 : index
    %c0_45 = arith.constant 0 : index
    %137 = vector.load %arg12[%c56, %c0_45] : memref<64x8xf32, #tpu.memory_space<vmem>>, vector<8x8xf32>
    tpu.vector_store %arg12[%c56, %c0_45], %136 {strides = array<i32>} : memref<64x8xf32, #tpu.memory_space<vmem>>, vector<8x8xf32>,
    %c0_46 = arith.constant 0 : index
    %c0_47 = arith.constant 0 : index
    %138 = vector.load %arg12[%c0_46, %c0_47] : memref<64x8xf32, #tpu.memory_space<vmem>>, vector<64x8xf32>
    %cst_48 = arith.constant dense<0.000000e+00> : vector<8xf32>
    %139 = vector.multi_reduction <add>, %138, %cst_48 [0] : vector<64x8xf32> to vector<8xf32>
    %140 = vector.shape_cast %139 : vector<8xf32> to vector<1x8xf32>
    %cst_49 = arith.constant 1.562500e-02 : f32
    %141 = vector.broadcast %cst_49 : f32 to vector<1x8xf32>
    %142 = arith.mulf %140, %141 : vector<1x8xf32>
    %c0_50 = arith.constant 0 : index
    %c0_51 = arith.constant 0 : index
    %143 = vector.load %arg4[%c0_50, %c0_51] : memref<8x2xf32, #tpu.memory_space<vmem>>, vector<8x2xf32>
    %cst_52 = arith.constant dense<0.000000e+00> : vector<1x2xf32>
    %144 = tpu.matmul %142, %143, %cst_52 {dimension_numbers = #tpu.dot_dimension_numbers<[1], [0], [0], [1], [0, 0, 1, 1], [], []>} : vector<1x8xf32>, vector<8x2xf32>, vector<1x2xf32> -> vector<1x2xf32>
    %c0_53 = arith.constant 0 : index
    %c0_54 = arith.constant 0 : index
    %145 = vector.load %arg5[%c0_53, %c0_54] : memref<1x2xf32, #tpu.memory_space<vmem>>, vector<1x2xf32>
    %146 = arith.addf %144, %145 : vector<1x2xf32>
    %147 = arith.negf %146 : vector<1x2xf32>
    %148 = math.exp %147 : vector<1x2xf32>
    %cst_55 = arith.constant 1.000000e+00 : f32
    %149 = vector.broadcast %cst_55 : f32 to vector<1x2xf32>
    %150 = arith.addf %149, %148 : vector<1x2xf32>
    %151 = arith.divf %149, %150 : vector<1x2xf32>
    %152 = arith.mulf %146, %151 : vector<1x2xf32>
    %c0_56 = arith.constant 0 : index
    %c0_57 = arith.constant 0 : index
    %153 = vector.load %arg6[%c0_56, %c0_57] : memref<2x8xf32, #tpu.memory_space<vmem>>, vector<2x8xf32>
    %cst_58 = arith.constant dense<0.000000e+00> : vector<1x8xf32>
    %154 = tpu.matmul %152, %153, %cst_58 {dimension_numbers = #tpu.dot_dimension_numbers<[1], [0], [0], [1], [0, 0, 1, 1], [], []>} : vector<1x2xf32>, vector<2x8xf32>, vector<1x8xf32> -> vector<1x8xf32>
    %c0_59 = arith.constant 0 : index
    %c0_60 = arith.constant 0 : index
    %155 = vector.load %arg7[%c0_59, %c0_60] : memref<1x8xf32, #tpu.memory_space<vmem>>, vector<1x8xf32>
    %156 = arith.addf %154, %155 : vector<1x8xf32>
    %157 = arith.negf %156 : vector<1x8xf32>
    %158 = math.exp %157 : vector<1x8xf32>
    %cst_61 = arith.constant 1.000000e+00 : f32
    %159 = vector.broadcast %cst_61 : f32 to vector<1x8xf32>
    %160 = arith.addf %159, %158 : vector<1x8xf32>
    %161 = arith.divf %159, %160 : vector<1x8xf32>
    %162 = vector.broadcast %161 : vector<1x8xf32> to vector<64x8xf32>
    %163 = arith.mulf %138, %162 : vector<64x8xf32>
    %164 = arith.truncf %163 : vector<64x8xf32> to vector<64x8xbf16>
    %c0_62 = arith.constant 0 : index
    %c0_63 = arith.constant 0 : index
    %165 = vector.load %arg8[%c0_62, %c0_63] : memref<8x8xbf16, #tpu.memory_space<vmem>>, vector<8x8xbf16>
    %cst_64 = arith.constant dense<0.000000e+00> : vector<64x8xf32>
    %166 = tpu.matmul %164, %165, %cst_64 {dimension_numbers = #tpu.dot_dimension_numbers<[1], [0], [0], [1], [0, 0, 1, 1], [], []>} : vector<64x8xbf16>, vector<8x8xbf16>, vector<64x8xf32> -> vector<64x8xf32>
    %c0_65 = arith.constant 0 : index
    %c0_66 = arith.constant 0 : index
    %167 = vector.load %arg9[%c0_65, %c0_66] : memref<1x8xf32, #tpu.memory_space<vmem>>, vector<1x8xf32>
    %168 = vector.broadcast %167 : vector<1x8xf32> to vector<64x8xf32>
    %169 = arith.addf %166, %168 : vector<64x8xf32>
    %170 = arith.addf %169, %3 : vector<64x8xf32>
    %c0_67 = arith.constant 0 : index
    %c0_68 = arith.constant 0 : index
    %c0_69 = arith.constant 0 : index
    %171 = vector.load %arg10[%c0_67, %c0_68, %c0_69] : memref<1x64x8xf32, #tpu.memory_space<vmem>>, vector<1x64x8xf32>
    %172 = vector.shape_cast %171 : vector<1x64x8xf32> to vector<64x8xf32>
    %173 = vector.shape_cast %170 : vector<64x8xf32> to vector<1x64x8xf32>
    tpu.vector_store %arg10[%c0_67, %c0_68, %c0_69], %173 {strides = array<i32>} : memref<1x64x8xf32, #tpu.memory_space<vmem>>, vector<1x64x8xf32>,
    return
  }
  func.func @transform_0(%arg0: i32) -> (i32, i32, i32) {
    %c0_i32 = arith.constant 0 : i32
    %c0_i32_0 = arith.constant 0 : i32
    %c0_i32_1 = arith.constant 0 : i32
    return %arg0, %c0_i32, %c0_i32_0 : i32, i32, i32
  }
  func.func @transform_1(%arg0: i32) -> (i32, i32) {
    %c0_i32 = arith.constant 0 : i32
    %c0_i32_0 = arith.constant 0 : i32
    %c0_i32_1 = arith.constant 0 : i32
    return %c0_i32, %c0_i32_0 : i32, i32
  }
  func.func @transform_2(%arg0: i32) -> (i32, i32) {
    %c0_i32 = arith.constant 0 : i32
    %c0_i32_0 = arith.constant 0 : i32
    %c0_i32_1 = arith.constant 0 : i32
    return %c0_i32, %c0_i32_0 : i32, i32
  }
  func.func @transform_3(%arg0: i32) -> (i32, i32) {
    %c0_i32 = arith.constant 0 : i32
    %c0_i32_0 = arith.constant 0 : i32
    %c0_i32_1 = arith.constant 0 : i32
    return %c0_i32, %c0_i32_0 : i32, i32
  }
  func.func @transform_4(%arg0: i32) -> (i32, i32) {
    %c0_i32 = arith.constant 0 : i32
    %c0_i32_0 = arith.constant 0 : i32
    %c0_i32_1 = arith.constant 0 : i32
    return %c0_i32, %c0_i32_0 : i32, i32
  }
  func.func @transform_5(%arg0: i32) -> (i32, i32) {
    %c0_i32 = arith.constant 0 : i32
    %c0_i32_0 = arith.constant 0 : i32
    %c0_i32_1 = arith.constant 0 : i32
    return %c0_i32, %c0_i32_0 : i32, i32
  }
  func.func @transform_6(%arg0: i32) -> (i32, i32) {
    %c0_i32 = arith.constant 0 : i32
    %c0_i32_0 = arith.constant 0 : i32
    %c0_i32_1 = arith.constant 0 : i32
    return %c0_i32, %c0_i32_0 : i32, i32
  }
  func.func @transform_7(%arg0: i32) -> (i32, i32) {
    %c0_i32 = arith.constant 0 : i32
    %c0_i32_0 = arith.constant 0 : i32
    %c0_i32_1 = arith.constant 0 : i32
    return %c0_i32, %c0_i32_0 : i32, i32
  }
  func.func @transform_8(%arg0: i32) -> (i32, i32) {
    %c0_i32 = arith.constant 0 : i32
    %c0_i32_0 = arith.constant 0 : i32
    %c0_i32_1 = arith.constant 0 : i32
    return %c0_i32, %c0_i32_0 : i32, i32
  }
  func.func @transform_9(%arg0: i32) -> (i32, i32, i32) {
    %c0_i32 = arith.constant 0 : i32
    %c0_i32_0 = arith.constant 0 : i32
    %c0_i32_1 = arith.constant 0 : i32
    return %arg0, %c0_i32, %c0_i32_0 : i32, i32, i32
  }
}

module attributes {stable_mosaic.version = 11 : i64} {
  func.func @_mbconv_kernel(%arg0: i32, %arg1: memref<1x64x8xf32, #tpu.memory_space<vmem>>, %arg2: memref<8x48xbf16, #tpu.memory_space<vmem>>, %arg3: memref<1x48xf32, #tpu.memory_space<vmem>>, %arg4: memref<25x48xf32, #tpu.memory_space<vmem>>, %arg5: memref<1x48xf32, #tpu.memory_space<vmem>>, %arg6: memref<48x2xf32, #tpu.memory_space<vmem>>, %arg7: memref<1x2xf32, #tpu.memory_space<vmem>>, %arg8: memref<2x48xf32, #tpu.memory_space<vmem>>, %arg9: memref<1x48xf32, #tpu.memory_space<vmem>>, %arg10: memref<48x8xbf16, #tpu.memory_space<vmem>>, %arg11: memref<1x8xf32, #tpu.memory_space<vmem>>, %arg12: memref<1x16x8xf32, #tpu.memory_space<vmem>>, %arg13: memref<11x11x48xf32, #tpu.memory_space<vmem>>, %arg14: memref<16x48xf32, #tpu.memory_space<vmem>>) attributes {dimension_semantics = [#tpu.dimension_semantics<parallel>], iteration_bounds = array<i64: 2>, scalar_prefetch = 0 : i64, scratch_operands = 2 : i64, tpu.core_type = #tpu.core_type<tc>, window_params = [{transform_indices = @transform_0, window_bounds = array<i64: 1, 64, 8>}, {pipeline_mode = #tpu.pipeline_mode<synchronous>, transform_indices = @transform_1, window_bounds = array<i64: 8, 48>}, {pipeline_mode = #tpu.pipeline_mode<synchronous>, transform_indices = @transform_2, window_bounds = array<i64: 1, 48>}, {pipeline_mode = #tpu.pipeline_mode<synchronous>, transform_indices = @transform_3, window_bounds = array<i64: 25, 48>}, {pipeline_mode = #tpu.pipeline_mode<synchronous>, transform_indices = @transform_4, window_bounds = array<i64: 1, 48>}, {pipeline_mode = #tpu.pipeline_mode<synchronous>, transform_indices = @transform_5, window_bounds = array<i64: 48, 2>}, {pipeline_mode = #tpu.pipeline_mode<synchronous>, transform_indices = @transform_6, window_bounds = array<i64: 1, 2>}, {pipeline_mode = #tpu.pipeline_mode<synchronous>, transform_indices = @transform_7, window_bounds = array<i64: 2, 48>}, {pipeline_mode = #tpu.pipeline_mode<synchronous>, transform_indices = @transform_8, window_bounds = array<i64: 1, 48>}, {pipeline_mode = #tpu.pipeline_mode<synchronous>, transform_indices = @transform_9, window_bounds = array<i64: 48, 8>}, {pipeline_mode = #tpu.pipeline_mode<synchronous>, transform_indices = @transform_10, window_bounds = array<i64: 1, 8>}, {transform_indices = @transform_11, window_bounds = array<i64: 1, 16, 8>}]} {
    %cst = arith.constant 0.000000e+00 : f32
    %0 = vector.broadcast %cst : f32 to vector<11x11x48xf32>
    %c0 = arith.constant 0 : index
    %c0_0 = arith.constant 0 : index
    %c0_1 = arith.constant 0 : index
    %1 = vector.load %arg13[%c0, %c0_0, %c0_1] : memref<11x11x48xf32, #tpu.memory_space<vmem>>, vector<11x11x48xf32>
    tpu.vector_store %arg13[%c0, %c0_0, %c0_1], %0 {strides = array<i32>} : memref<11x11x48xf32, #tpu.memory_space<vmem>>, vector<11x11x48xf32>,
    %c0_2 = arith.constant 0 : index
    %c0_3 = arith.constant 0 : index
    %c0_4 = arith.constant 0 : index
    %2 = vector.load %arg1[%c0_2, %c0_3, %c0_4] : memref<1x64x8xf32, #tpu.memory_space<vmem>>, vector<1x64x8xf32>
    %3 = vector.shape_cast %2 : vector<1x64x8xf32> to vector<64x8xf32>
    %4 = arith.truncf %3 : vector<64x8xf32> to vector<64x8xbf16>
    %c0_5 = arith.constant 0 : index
    %c0_6 = arith.constant 0 : index
    %5 = vector.load %arg2[%c0_5, %c0_6] : memref<8x48xbf16, #tpu.memory_space<vmem>>, vector<8x48xbf16>
    %cst_7 = arith.constant dense<0.000000e+00> : vector<64x48xf32>
    %6 = tpu.matmul %4, %5, %cst_7 {dimension_numbers = #tpu.dot_dimension_numbers<[1], [0], [0], [1], [0, 0, 1, 1], [], []>} : vector<64x8xbf16>, vector<8x48xbf16>, vector<64x48xf32> -> vector<64x48xf32>
    %c0_8 = arith.constant 0 : index
    %c0_9 = arith.constant 0 : index
    %7 = vector.load %arg3[%c0_8, %c0_9] : memref<1x48xf32, #tpu.memory_space<vmem>>, vector<1x48xf32>
    %8 = vector.broadcast %7 : vector<1x48xf32> to vector<64x48xf32>
    %9 = arith.addf %6, %8 : vector<64x48xf32>
    %10 = arith.negf %9 : vector<64x48xf32>
    %11 = math.exp %10 : vector<64x48xf32>
    %cst_10 = arith.constant 1.000000e+00 : f32
    %12 = vector.broadcast %cst_10 : f32 to vector<64x48xf32>
    %13 = arith.addf %12, %11 : vector<64x48xf32>
    %14 = arith.divf %12, %13 : vector<64x48xf32>
    %15 = arith.mulf %9, %14 : vector<64x48xf32>
    %16 = vector.extract_strided_slice %15 {offsets = [0, 0], sizes = [8, 48], strides = [1, 1]} : vector<64x48xf32> to vector<8x48xf32>
    %c1 = arith.constant 1 : index
    %c1_11 = arith.constant 1 : index
    %c0_12 = arith.constant 0 : index
    %17 = vector.load %arg13[%c1, %c1_11, %c0_12] : memref<11x11x48xf32, #tpu.memory_space<vmem>>, vector<1x8x48xf32>
    %18 = vector.shape_cast %17 : vector<1x8x48xf32> to vector<8x48xf32>
    %19 = vector.shape_cast %16 : vector<8x48xf32> to vector<1x8x48xf32>
    tpu.vector_store %arg13[%c1, %c1_11, %c0_12], %19 {strides = array<i32>} : memref<11x11x48xf32, #tpu.memory_space<vmem>>, vector<1x8x48xf32>,
    %20 = vector.extract_strided_slice %15 {offsets = [8, 0], sizes = [8, 48], strides = [1, 1]} : vector<64x48xf32> to vector<8x48xf32>
    %c2 = arith.constant 2 : index
    %c1_13 = arith.constant 1 : index
    %c0_14 = arith.constant 0 : index
    %21 = vector.load %arg13[%c2, %c1_13, %c0_14] : memref<11x11x48xf32, #tpu.memory_space<vmem>>, vector<1x8x48xf32>
    %22 = vector.shape_cast %21 : vector<1x8x48xf32> to vector<8x48xf32>
    %23 = vector.shape_cast %20 : vector<8x48xf32> to vector<1x8x48xf32>
    tpu.vector_store %arg13[%c2, %c1_13, %c0_14], %23 {strides = array<i32>} : memref<11x11x48xf32, #tpu.memory_space<vmem>>, vector<1x8x48xf32>,
    %24 = vector.extract_strided_slice %15 {offsets = [16, 0], sizes = [8, 48], strides = [1, 1]} : vector<64x48xf32> to vector<8x48xf32>
    %c3 = arith.constant 3 : index
    %c1_15 = arith.constant 1 : index
    %c0_16 = arith.constant 0 : index
    %25 = vector.load %arg13[%c3, %c1_15, %c0_16] : memref<11x11x48xf32, #tpu.memory_space<vmem>>, vector<1x8x48xf32>
    %26 = vector.shape_cast %25 : vector<1x8x48xf32> to vector<8x48xf32>
    %27 = vector.shape_cast %24 : vector<8x48xf32> to vector<1x8x48xf32>
    tpu.vector_store %arg13[%c3, %c1_15, %c0_16], %27 {strides = array<i32>} : memref<11x11x48xf32, #tpu.memory_space<vmem>>, vector<1x8x48xf32>,
    %28 = vector.extract_strided_slice %15 {offsets = [24, 0], sizes = [8, 48], strides = [1, 1]} : vector<64x48xf32> to vector<8x48xf32>
    %c4 = arith.constant 4 : index
    %c1_17 = arith.constant 1 : index
    %c0_18 = arith.constant 0 : index
    %29 = vector.load %arg13[%c4, %c1_17, %c0_18] : memref<11x11x48xf32, #tpu.memory_space<vmem>>, vector<1x8x48xf32>
    %30 = vector.shape_cast %29 : vector<1x8x48xf32> to vector<8x48xf32>
    %31 = vector.shape_cast %28 : vector<8x48xf32> to vector<1x8x48xf32>
    tpu.vector_store %arg13[%c4, %c1_17, %c0_18], %31 {strides = array<i32>} : memref<11x11x48xf32, #tpu.memory_space<vmem>>, vector<1x8x48xf32>,
    %32 = vector.extract_strided_slice %15 {offsets = [32, 0], sizes = [8, 48], strides = [1, 1]} : vector<64x48xf32> to vector<8x48xf32>
    %c5 = arith.constant 5 : index
    %c1_19 = arith.constant 1 : index
    %c0_20 = arith.constant 0 : index
    %33 = vector.load %arg13[%c5, %c1_19, %c0_20] : memref<11x11x48xf32, #tpu.memory_space<vmem>>, vector<1x8x48xf32>
    %34 = vector.shape_cast %33 : vector<1x8x48xf32> to vector<8x48xf32>
    %35 = vector.shape_cast %32 : vector<8x48xf32> to vector<1x8x48xf32>
    tpu.vector_store %arg13[%c5, %c1_19, %c0_20], %35 {strides = array<i32>} : memref<11x11x48xf32, #tpu.memory_space<vmem>>, vector<1x8x48xf32>,
    %36 = vector.extract_strided_slice %15 {offsets = [40, 0], sizes = [8, 48], strides = [1, 1]} : vector<64x48xf32> to vector<8x48xf32>
    %c6 = arith.constant 6 : index
    %c1_21 = arith.constant 1 : index
    %c0_22 = arith.constant 0 : index
    %37 = vector.load %arg13[%c6, %c1_21, %c0_22] : memref<11x11x48xf32, #tpu.memory_space<vmem>>, vector<1x8x48xf32>
    %38 = vector.shape_cast %37 : vector<1x8x48xf32> to vector<8x48xf32>
    %39 = vector.shape_cast %36 : vector<8x48xf32> to vector<1x8x48xf32>
    tpu.vector_store %arg13[%c6, %c1_21, %c0_22], %39 {strides = array<i32>} : memref<11x11x48xf32, #tpu.memory_space<vmem>>, vector<1x8x48xf32>,
    %40 = vector.extract_strided_slice %15 {offsets = [48, 0], sizes = [8, 48], strides = [1, 1]} : vector<64x48xf32> to vector<8x48xf32>
    %c7 = arith.constant 7 : index
    %c1_23 = arith.constant 1 : index
    %c0_24 = arith.constant 0 : index
    %41 = vector.load %arg13[%c7, %c1_23, %c0_24] : memref<11x11x48xf32, #tpu.memory_space<vmem>>, vector<1x8x48xf32>
    %42 = vector.shape_cast %41 : vector<1x8x48xf32> to vector<8x48xf32>
    %43 = vector.shape_cast %40 : vector<8x48xf32> to vector<1x8x48xf32>
    tpu.vector_store %arg13[%c7, %c1_23, %c0_24], %43 {strides = array<i32>} : memref<11x11x48xf32, #tpu.memory_space<vmem>>, vector<1x8x48xf32>,
    %44 = vector.extract_strided_slice %15 {offsets = [56, 0], sizes = [8, 48], strides = [1, 1]} : vector<64x48xf32> to vector<8x48xf32>
    %c8 = arith.constant 8 : index
    %c1_25 = arith.constant 1 : index
    %c0_26 = arith.constant 0 : index
    %45 = vector.load %arg13[%c8, %c1_25, %c0_26] : memref<11x11x48xf32, #tpu.memory_space<vmem>>, vector<1x8x48xf32>
    %46 = vector.shape_cast %45 : vector<1x8x48xf32> to vector<8x48xf32>
    %47 = vector.shape_cast %44 : vector<8x48xf32> to vector<1x8x48xf32>
    tpu.vector_store %arg13[%c8, %c1_25, %c0_26], %47 {strides = array<i32>} : memref<11x11x48xf32, #tpu.memory_space<vmem>>, vector<1x8x48xf32>,
    %c0_27 = arith.constant 0 : index
    %c0_28 = arith.constant 0 : index
    %48 = vector.load %arg4[%c0_27, %c0_28] : memref<25x48xf32, #tpu.memory_space<vmem>>, vector<25x48xf32>
    %cst_29 = arith.constant 0.000000e+00 : f32
    %49 = vector.broadcast %cst_29 : f32 to vector<4x4x48xf32>
    %c0_30 = arith.constant 0 : index
    %c0_31 = arith.constant 0 : index
    %c0_32 = arith.constant 0 : index
    %50 = tpu.strided_load %arg13[%c0_30, %c0_31, %c0_32] {strides = array<i32: 1, 2, 1>} : memref<11x11x48xf32, #tpu.memory_space<vmem>>, vector<11x4x48xf32>
    %51 = vector.extract_strided_slice %50 {offsets = [0, 0, 0], sizes = [1, 4, 48], strides = [1, 1, 1]} : vector<11x4x48xf32> to vector<1x4x48xf32>
    %52 = vector.shape_cast %51 : vector<1x4x48xf32> to vector<4x48xf32>
    %53 = vector.extract_strided_slice %50 {offsets = [2, 0, 0], sizes = [1, 4, 48], strides = [1, 1, 1]} : vector<11x4x48xf32> to vector<1x4x48xf32>
    %54 = vector.shape_cast %53 : vector<1x4x48xf32> to vector<4x48xf32>
    %55 = vector.extract_strided_slice %50 {offsets = [4, 0, 0], sizes = [1, 4, 48], strides = [1, 1, 1]} : vector<11x4x48xf32> to vector<1x4x48xf32>
    %56 = vector.shape_cast %55 : vector<1x4x48xf32> to vector<4x48xf32>
    %57 = vector.extract_strided_slice %50 {offsets = [6, 0, 0], sizes = [1, 4, 48], strides = [1, 1, 1]} : vector<11x4x48xf32> to vector<1x4x48xf32>
    %58 = vector.shape_cast %57 : vector<1x4x48xf32> to vector<4x48xf32>
    %59 = vector.shape_cast %52 : vector<4x48xf32> to vector<1x4x48xf32>
    %60 = vector.shape_cast %54 : vector<4x48xf32> to vector<1x4x48xf32>
    %61 = vector.shape_cast %56 : vector<4x48xf32> to vector<1x4x48xf32>
    %62 = vector.shape_cast %58 : vector<4x48xf32> to vector<1x4x48xf32>
    %63 = tpu.concatenate %59, %60, %61, %62 in 0 : vector<1x4x48xf32>, vector<1x4x48xf32>, vector<1x4x48xf32>, vector<1x4x48xf32> -> vector<4x4x48xf32>
    %64 = vector.extract_strided_slice %48 {offsets = [0, 0], sizes = [1, 48], strides = [1, 1]} : vector<25x48xf32> to vector<1x48xf32>
    %65 = vector.shape_cast %64 : vector<1x48xf32> to vector<48xf32>
    %66 = vector.shape_cast %65 : vector<48xf32> to vector<1x1x48xf32>
    %67 = vector.broadcast %66 : vector<1x1x48xf32> to vector<4x4x48xf32>
    %68 = arith.mulf %63, %67 : vector<4x4x48xf32>
    %69 = arith.addf %49, %68 : vector<4x4x48xf32>
    %70 = vector.extract_strided_slice %50 {offsets = [1, 0, 0], sizes = [1, 4, 48], strides = [1, 1, 1]} : vector<11x4x48xf32> to vector<1x4x48xf32>
    %71 = vector.shape_cast %70 : vector<1x4x48xf32> to vector<4x48xf32>
    %72 = vector.extract_strided_slice %50 {offsets = [3, 0, 0], sizes = [1, 4, 48], strides = [1, 1, 1]} : vector<11x4x48xf32> to vector<1x4x48xf32>
    %73 = vector.shape_cast %72 : vector<1x4x48xf32> to vector<4x48xf32>
    %74 = vector.extract_strided_slice %50 {offsets = [5, 0, 0], sizes = [1, 4, 48], strides = [1, 1, 1]} : vector<11x4x48xf32> to vector<1x4x48xf32>
    %75 = vector.shape_cast %74 : vector<1x4x48xf32> to vector<4x48xf32>
    %76 = vector.extract_strided_slice %50 {offsets = [7, 0, 0], sizes = [1, 4, 48], strides = [1, 1, 1]} : vector<11x4x48xf32> to vector<1x4x48xf32>
    %77 = vector.shape_cast %76 : vector<1x4x48xf32> to vector<4x48xf32>
    %78 = vector.shape_cast %71 : vector<4x48xf32> to vector<1x4x48xf32>
    %79 = vector.shape_cast %73 : vector<4x48xf32> to vector<1x4x48xf32>
    %80 = vector.shape_cast %75 : vector<4x48xf32> to vector<1x4x48xf32>
    %81 = vector.shape_cast %77 : vector<4x48xf32> to vector<1x4x48xf32>
    %82 = tpu.concatenate %78, %79, %80, %81 in 0 : vector<1x4x48xf32>, vector<1x4x48xf32>, vector<1x4x48xf32>, vector<1x4x48xf32> -> vector<4x4x48xf32>
    %83 = vector.extract_strided_slice %48 {offsets = [5, 0], sizes = [1, 48], strides = [1, 1]} : vector<25x48xf32> to vector<1x48xf32>
    %84 = vector.shape_cast %83 : vector<1x48xf32> to vector<48xf32>
    %85 = vector.shape_cast %84 : vector<48xf32> to vector<1x1x48xf32>
    %86 = vector.broadcast %85 : vector<1x1x48xf32> to vector<4x4x48xf32>
    %87 = arith.mulf %82, %86 : vector<4x4x48xf32>
    %88 = arith.addf %69, %87 : vector<4x4x48xf32>
    %89 = vector.extract_strided_slice %50 {offsets = [2, 0, 0], sizes = [1, 4, 48], strides = [1, 1, 1]} : vector<11x4x48xf32> to vector<1x4x48xf32>
    %90 = vector.shape_cast %89 : vector<1x4x48xf32> to vector<4x48xf32>
    %91 = vector.extract_strided_slice %50 {offsets = [4, 0, 0], sizes = [1, 4, 48], strides = [1, 1, 1]} : vector<11x4x48xf32> to vector<1x4x48xf32>
    %92 = vector.shape_cast %91 : vector<1x4x48xf32> to vector<4x48xf32>
    %93 = vector.extract_strided_slice %50 {offsets = [6, 0, 0], sizes = [1, 4, 48], strides = [1, 1, 1]} : vector<11x4x48xf32> to vector<1x4x48xf32>
    %94 = vector.shape_cast %93 : vector<1x4x48xf32> to vector<4x48xf32>
    %95 = vector.extract_strided_slice %50 {offsets = [8, 0, 0], sizes = [1, 4, 48], strides = [1, 1, 1]} : vector<11x4x48xf32> to vector<1x4x48xf32>
    %96 = vector.shape_cast %95 : vector<1x4x48xf32> to vector<4x48xf32>
    %97 = vector.shape_cast %90 : vector<4x48xf32> to vector<1x4x48xf32>
    %98 = vector.shape_cast %92 : vector<4x48xf32> to vector<1x4x48xf32>
    %99 = vector.shape_cast %94 : vector<4x48xf32> to vector<1x4x48xf32>
    %100 = vector.shape_cast %96 : vector<4x48xf32> to vector<1x4x48xf32>
    %101 = tpu.concatenate %97, %98, %99, %100 in 0 : vector<1x4x48xf32>, vector<1x4x48xf32>, vector<1x4x48xf32>, vector<1x4x48xf32> -> vector<4x4x48xf32>
    %102 = vector.extract_strided_slice %48 {offsets = [10, 0], sizes = [1, 48], strides = [1, 1]} : vector<25x48xf32> to vector<1x48xf32>
    %103 = vector.shape_cast %102 : vector<1x48xf32> to vector<48xf32>
    %104 = vector.shape_cast %103 : vector<48xf32> to vector<1x1x48xf32>
    %105 = vector.broadcast %104 : vector<1x1x48xf32> to vector<4x4x48xf32>
    %106 = arith.mulf %101, %105 : vector<4x4x48xf32>
    %107 = arith.addf %88, %106 : vector<4x4x48xf32>
    %108 = vector.extract_strided_slice %50 {offsets = [3, 0, 0], sizes = [1, 4, 48], strides = [1, 1, 1]} : vector<11x4x48xf32> to vector<1x4x48xf32>
    %109 = vector.shape_cast %108 : vector<1x4x48xf32> to vector<4x48xf32>
    %110 = vector.extract_strided_slice %50 {offsets = [5, 0, 0], sizes = [1, 4, 48], strides = [1, 1, 1]} : vector<11x4x48xf32> to vector<1x4x48xf32>
    %111 = vector.shape_cast %110 : vector<1x4x48xf32> to vector<4x48xf32>
    %112 = vector.extract_strided_slice %50 {offsets = [7, 0, 0], sizes = [1, 4, 48], strides = [1, 1, 1]} : vector<11x4x48xf32> to vector<1x4x48xf32>
    %113 = vector.shape_cast %112 : vector<1x4x48xf32> to vector<4x48xf32>
    %114 = vector.extract_strided_slice %50 {offsets = [9, 0, 0], sizes = [1, 4, 48], strides = [1, 1, 1]} : vector<11x4x48xf32> to vector<1x4x48xf32>
    %115 = vector.shape_cast %114 : vector<1x4x48xf32> to vector<4x48xf32>
    %116 = vector.shape_cast %109 : vector<4x48xf32> to vector<1x4x48xf32>
    %117 = vector.shape_cast %111 : vector<4x48xf32> to vector<1x4x48xf32>
    %118 = vector.shape_cast %113 : vector<4x48xf32> to vector<1x4x48xf32>
    %119 = vector.shape_cast %115 : vector<4x48xf32> to vector<1x4x48xf32>
    %120 = tpu.concatenate %116, %117, %118, %119 in 0 : vector<1x4x48xf32>, vector<1x4x48xf32>, vector<1x4x48xf32>, vector<1x4x48xf32> -> vector<4x4x48xf32>
    %121 = vector.extract_strided_slice %48 {offsets = [15, 0], sizes = [1, 48], strides = [1, 1]} : vector<25x48xf32> to vector<1x48xf32>
    %122 = vector.shape_cast %121 : vector<1x48xf32> to vector<48xf32>
    %123 = vector.shape_cast %122 : vector<48xf32> to vector<1x1x48xf32>
    %124 = vector.broadcast %123 : vector<1x1x48xf32> to vector<4x4x48xf32>
    %125 = arith.mulf %120, %124 : vector<4x4x48xf32>
    %126 = arith.addf %107, %125 : vector<4x4x48xf32>
    %127 = vector.extract_strided_slice %50 {offsets = [4, 0, 0], sizes = [1, 4, 48], strides = [1, 1, 1]} : vector<11x4x48xf32> to vector<1x4x48xf32>
    %128 = vector.shape_cast %127 : vector<1x4x48xf32> to vector<4x48xf32>
    %129 = vector.extract_strided_slice %50 {offsets = [6, 0, 0], sizes = [1, 4, 48], strides = [1, 1, 1]} : vector<11x4x48xf32> to vector<1x4x48xf32>
    %130 = vector.shape_cast %129 : vector<1x4x48xf32> to vector<4x48xf32>
    %131 = vector.extract_strided_slice %50 {offsets = [8, 0, 0], sizes = [1, 4, 48], strides = [1, 1, 1]} : vector<11x4x48xf32> to vector<1x4x48xf32>
    %132 = vector.shape_cast %131 : vector<1x4x48xf32> to vector<4x48xf32>
    %133 = vector.extract_strided_slice %50 {offsets = [10, 0, 0], sizes = [1, 4, 48], strides = [1, 1, 1]} : vector<11x4x48xf32> to vector<1x4x48xf32>
    %134 = vector.shape_cast %133 : vector<1x4x48xf32> to vector<4x48xf32>
    %135 = vector.shape_cast %128 : vector<4x48xf32> to vector<1x4x48xf32>
    %136 = vector.shape_cast %130 : vector<4x48xf32> to vector<1x4x48xf32>
    %137 = vector.shape_cast %132 : vector<4x48xf32> to vector<1x4x48xf32>
    %138 = vector.shape_cast %134 : vector<4x48xf32> to vector<1x4x48xf32>
    %139 = tpu.concatenate %135, %136, %137, %138 in 0 : vector<1x4x48xf32>, vector<1x4x48xf32>, vector<1x4x48xf32>, vector<1x4x48xf32> -> vector<4x4x48xf32>
    %140 = vector.extract_strided_slice %48 {offsets = [20, 0], sizes = [1, 48], strides = [1, 1]} : vector<25x48xf32> to vector<1x48xf32>
    %141 = vector.shape_cast %140 : vector<1x48xf32> to vector<48xf32>
    %142 = vector.shape_cast %141 : vector<48xf32> to vector<1x1x48xf32>
    %143 = vector.broadcast %142 : vector<1x1x48xf32> to vector<4x4x48xf32>
    %144 = arith.mulf %139, %143 : vector<4x4x48xf32>
    %145 = arith.addf %126, %144 : vector<4x4x48xf32>
    %c0_33 = arith.constant 0 : index
    %c1_34 = arith.constant 1 : index
    %c0_35 = arith.constant 0 : index
    %146 = tpu.strided_load %arg13[%c0_33, %c1_34, %c0_35] {strides = array<i32: 1, 2, 1>} : memref<11x11x48xf32, #tpu.memory_space<vmem>>, vector<11x4x48xf32>
    %147 = vector.extract_strided_slice %146 {offsets = [0, 0, 0], sizes = [1, 4, 48], strides = [1, 1, 1]} : vector<11x4x48xf32> to vector<1x4x48xf32>
    %148 = vector.shape_cast %147 : vector<1x4x48xf32> to vector<4x48xf32>
    %149 = vector.extract_strided_slice %146 {offsets = [2, 0, 0], sizes = [1, 4, 48], strides = [1, 1, 1]} : vector<11x4x48xf32> to vector<1x4x48xf32>
    %150 = vector.shape_cast %149 : vector<1x4x48xf32> to vector<4x48xf32>
    %151 = vector.extract_strided_slice %146 {offsets = [4, 0, 0], sizes = [1, 4, 48], strides = [1, 1, 1]} : vector<11x4x48xf32> to vector<1x4x48xf32>
    %152 = vector.shape_cast %151 : vector<1x4x48xf32> to vector<4x48xf32>
    %153 = vector.extract_strided_slice %146 {offsets = [6, 0, 0], sizes = [1, 4, 48], strides = [1, 1, 1]} : vector<11x4x48xf32> to vector<1x4x48xf32>
    %154 = vector.shape_cast %153 : vector<1x4x48xf32> to vector<4x48xf32>
    %155 = vector.shape_cast %148 : vector<4x48xf32> to vector<1x4x48xf32>
    %156 = vector.shape_cast %150 : vector<4x48xf32> to vector<1x4x48xf32>
    %157 = vector.shape_cast %152 : vector<4x48xf32> to vector<1x4x48xf32>
    %158 = vector.shape_cast %154 : vector<4x48xf32> to vector<1x4x48xf32>
    %159 = tpu.concatenate %155, %156, %157, %158 in 0 : vector<1x4x48xf32>, vector<1x4x48xf32>, vector<1x4x48xf32>, vector<1x4x48xf32> -> vector<4x4x48xf32>
    %160 = vector.extract_strided_slice %48 {offsets = [1, 0], sizes = [1, 48], strides = [1, 1]} : vector<25x48xf32> to vector<1x48xf32>
    %161 = vector.shape_cast %160 : vector<1x48xf32> to vector<48xf32>
    %162 = vector.shape_cast %161 : vector<48xf32> to vector<1x1x48xf32>
    %163 = vector.broadcast %162 : vector<1x1x48xf32> to vector<4x4x48xf32>
    %164 = arith.mulf %159, %163 : vector<4x4x48xf32>
    %165 = arith.addf %145, %164 : vector<4x4x48xf32>
    %166 = vector.extract_strided_slice %146 {offsets = [1, 0, 0], sizes = [1, 4, 48], strides = [1, 1, 1]} : vector<11x4x48xf32> to vector<1x4x48xf32>
    %167 = vector.shape_cast %166 : vector<1x4x48xf32> to vector<4x48xf32>
    %168 = vector.extract_strided_slice %146 {offsets = [3, 0, 0], sizes = [1, 4, 48], strides = [1, 1, 1]} : vector<11x4x48xf32> to vector<1x4x48xf32>
    %169 = vector.shape_cast %168 : vector<1x4x48xf32> to vector<4x48xf32>
    %170 = vector.extract_strided_slice %146 {offsets = [5, 0, 0], sizes = [1, 4, 48], strides = [1, 1, 1]} : vector<11x4x48xf32> to vector<1x4x48xf32>
    %171 = vector.shape_cast %170 : vector<1x4x48xf32> to vector<4x48xf32>
    %172 = vector.extract_strided_slice %146 {offsets = [7, 0, 0], sizes = [1, 4, 48], strides = [1, 1, 1]} : vector<11x4x48xf32> to vector<1x4x48xf32>
    %173 = vector.shape_cast %172 : vector<1x4x48xf32> to vector<4x48xf32>
    %174 = vector.shape_cast %167 : vector<4x48xf32> to vector<1x4x48xf32>
    %175 = vector.shape_cast %169 : vector<4x48xf32> to vector<1x4x48xf32>
    %176 = vector.shape_cast %171 : vector<4x48xf32> to vector<1x4x48xf32>
    %177 = vector.shape_cast %173 : vector<4x48xf32> to vector<1x4x48xf32>
    %178 = tpu.concatenate %174, %175, %176, %177 in 0 : vector<1x4x48xf32>, vector<1x4x48xf32>, vector<1x4x48xf32>, vector<1x4x48xf32> -> vector<4x4x48xf32>
    %179 = vector.extract_strided_slice %48 {offsets = [6, 0], sizes = [1, 48], strides = [1, 1]} : vector<25x48xf32> to vector<1x48xf32>
    %180 = vector.shape_cast %179 : vector<1x48xf32> to vector<48xf32>
    %181 = vector.shape_cast %180 : vector<48xf32> to vector<1x1x48xf32>
    %182 = vector.broadcast %181 : vector<1x1x48xf32> to vector<4x4x48xf32>
    %183 = arith.mulf %178, %182 : vector<4x4x48xf32>
    %184 = arith.addf %165, %183 : vector<4x4x48xf32>
    %185 = vector.extract_strided_slice %146 {offsets = [2, 0, 0], sizes = [1, 4, 48], strides = [1, 1, 1]} : vector<11x4x48xf32> to vector<1x4x48xf32>
    %186 = vector.shape_cast %185 : vector<1x4x48xf32> to vector<4x48xf32>
    %187 = vector.extract_strided_slice %146 {offsets = [4, 0, 0], sizes = [1, 4, 48], strides = [1, 1, 1]} : vector<11x4x48xf32> to vector<1x4x48xf32>
    %188 = vector.shape_cast %187 : vector<1x4x48xf32> to vector<4x48xf32>
    %189 = vector.extract_strided_slice %146 {offsets = [6, 0, 0], sizes = [1, 4, 48], strides = [1, 1, 1]} : vector<11x4x48xf32> to vector<1x4x48xf32>
    %190 = vector.shape_cast %189 : vector<1x4x48xf32> to vector<4x48xf32>
    %191 = vector.extract_strided_slice %146 {offsets = [8, 0, 0], sizes = [1, 4, 48], strides = [1, 1, 1]} : vector<11x4x48xf32> to vector<1x4x48xf32>
    %192 = vector.shape_cast %191 : vector<1x4x48xf32> to vector<4x48xf32>
    %193 = vector.shape_cast %186 : vector<4x48xf32> to vector<1x4x48xf32>
    %194 = vector.shape_cast %188 : vector<4x48xf32> to vector<1x4x48xf32>
    %195 = vector.shape_cast %190 : vector<4x48xf32> to vector<1x4x48xf32>
    %196 = vector.shape_cast %192 : vector<4x48xf32> to vector<1x4x48xf32>
    %197 = tpu.concatenate %193, %194, %195, %196 in 0 : vector<1x4x48xf32>, vector<1x4x48xf32>, vector<1x4x48xf32>, vector<1x4x48xf32> -> vector<4x4x48xf32>
    %198 = vector.extract_strided_slice %48 {offsets = [11, 0], sizes = [1, 48], strides = [1, 1]} : vector<25x48xf32> to vector<1x48xf32>
    %199 = vector.shape_cast %198 : vector<1x48xf32> to vector<48xf32>
    %200 = vector.shape_cast %199 : vector<48xf32> to vector<1x1x48xf32>
    %201 = vector.broadcast %200 : vector<1x1x48xf32> to vector<4x4x48xf32>
    %202 = arith.mulf %197, %201 : vector<4x4x48xf32>
    %203 = arith.addf %184, %202 : vector<4x4x48xf32>
    %204 = vector.extract_strided_slice %146 {offsets = [3, 0, 0], sizes = [1, 4, 48], strides = [1, 1, 1]} : vector<11x4x48xf32> to vector<1x4x48xf32>
    %205 = vector.shape_cast %204 : vector<1x4x48xf32> to vector<4x48xf32>
    %206 = vector.extract_strided_slice %146 {offsets = [5, 0, 0], sizes = [1, 4, 48], strides = [1, 1, 1]} : vector<11x4x48xf32> to vector<1x4x48xf32>
    %207 = vector.shape_cast %206 : vector<1x4x48xf32> to vector<4x48xf32>
    %208 = vector.extract_strided_slice %146 {offsets = [7, 0, 0], sizes = [1, 4, 48], strides = [1, 1, 1]} : vector<11x4x48xf32> to vector<1x4x48xf32>
    %209 = vector.shape_cast %208 : vector<1x4x48xf32> to vector<4x48xf32>
    %210 = vector.extract_strided_slice %146 {offsets = [9, 0, 0], sizes = [1, 4, 48], strides = [1, 1, 1]} : vector<11x4x48xf32> to vector<1x4x48xf32>
    %211 = vector.shape_cast %210 : vector<1x4x48xf32> to vector<4x48xf32>
    %212 = vector.shape_cast %205 : vector<4x48xf32> to vector<1x4x48xf32>
    %213 = vector.shape_cast %207 : vector<4x48xf32> to vector<1x4x48xf32>
    %214 = vector.shape_cast %209 : vector<4x48xf32> to vector<1x4x48xf32>
    %215 = vector.shape_cast %211 : vector<4x48xf32> to vector<1x4x48xf32>
    %216 = tpu.concatenate %212, %213, %214, %215 in 0 : vector<1x4x48xf32>, vector<1x4x48xf32>, vector<1x4x48xf32>, vector<1x4x48xf32> -> vector<4x4x48xf32>
    %217 = vector.extract_strided_slice %48 {offsets = [16, 0], sizes = [1, 48], strides = [1, 1]} : vector<25x48xf32> to vector<1x48xf32>
    %218 = vector.shape_cast %217 : vector<1x48xf32> to vector<48xf32>
    %219 = vector.shape_cast %218 : vector<48xf32> to vector<1x1x48xf32>
    %220 = vector.broadcast %219 : vector<1x1x48xf32> to vector<4x4x48xf32>
    %221 = arith.mulf %216, %220 : vector<4x4x48xf32>
    %222 = arith.addf %203, %221 : vector<4x4x48xf32>
    %223 = vector.extract_strided_slice %146 {offsets = [4, 0, 0], sizes = [1, 4, 48], strides = [1, 1, 1]} : vector<11x4x48xf32> to vector<1x4x48xf32>
    %224 = vector.shape_cast %223 : vector<1x4x48xf32> to vector<4x48xf32>
    %225 = vector.extract_strided_slice %146 {offsets = [6, 0, 0], sizes = [1, 4, 48], strides = [1, 1, 1]} : vector<11x4x48xf32> to vector<1x4x48xf32>
    %226 = vector.shape_cast %225 : vector<1x4x48xf32> to vector<4x48xf32>
    %227 = vector.extract_strided_slice %146 {offsets = [8, 0, 0], sizes = [1, 4, 48], strides = [1, 1, 1]} : vector<11x4x48xf32> to vector<1x4x48xf32>
    %228 = vector.shape_cast %227 : vector<1x4x48xf32> to vector<4x48xf32>
    %229 = vector.extract_strided_slice %146 {offsets = [10, 0, 0], sizes = [1, 4, 48], strides = [1, 1, 1]} : vector<11x4x48xf32> to vector<1x4x48xf32>
    %230 = vector.shape_cast %229 : vector<1x4x48xf32> to vector<4x48xf32>
    %231 = vector.shape_cast %224 : vector<4x48xf32> to vector<1x4x48xf32>
    %232 = vector.shape_cast %226 : vector<4x48xf32> to vector<1x4x48xf32>
    %233 = vector.shape_cast %228 : vector<4x48xf32> to vector<1x4x48xf32>
    %234 = vector.shape_cast %230 : vector<4x48xf32> to vector<1x4x48xf32>
    %235 = tpu.concatenate %231, %232, %233, %234 in 0 : vector<1x4x48xf32>, vector<1x4x48xf32>, vector<1x4x48xf32>, vector<1x4x48xf32> -> vector<4x4x48xf32>
    %236 = vector.extract_strided_slice %48 {offsets = [21, 0], sizes = [1, 48], strides = [1, 1]} : vector<25x48xf32> to vector<1x48xf32>
    %237 = vector.shape_cast %236 : vector<1x48xf32> to vector<48xf32>
    %238 = vector.shape_cast %237 : vector<48xf32> to vector<1x1x48xf32>
    %239 = vector.broadcast %238 : vector<1x1x48xf32> to vector<4x4x48xf32>
    %240 = arith.mulf %235, %239 : vector<4x4x48xf32>
    %241 = arith.addf %222, %240 : vector<4x4x48xf32>
    %c0_36 = arith.constant 0 : index
    %c2_37 = arith.constant 2 : index
    %c0_38 = arith.constant 0 : index
    %242 = tpu.strided_load %arg13[%c0_36, %c2_37, %c0_38] {strides = array<i32: 1, 2, 1>} : memref<11x11x48xf32, #tpu.memory_space<vmem>>, vector<11x4x48xf32>
    %243 = vector.extract_strided_slice %242 {offsets = [0, 0, 0], sizes = [1, 4, 48], strides = [1, 1, 1]} : vector<11x4x48xf32> to vector<1x4x48xf32>
    %244 = vector.shape_cast %243 : vector<1x4x48xf32> to vector<4x48xf32>
    %245 = vector.extract_strided_slice %242 {offsets = [2, 0, 0], sizes = [1, 4, 48], strides = [1, 1, 1]} : vector<11x4x48xf32> to vector<1x4x48xf32>
    %246 = vector.shape_cast %245 : vector<1x4x48xf32> to vector<4x48xf32>
    %247 = vector.extract_strided_slice %242 {offsets = [4, 0, 0], sizes = [1, 4, 48], strides = [1, 1, 1]} : vector<11x4x48xf32> to vector<1x4x48xf32>
    %248 = vector.shape_cast %247 : vector<1x4x48xf32> to vector<4x48xf32>
    %249 = vector.extract_strided_slice %242 {offsets = [6, 0, 0], sizes = [1, 4, 48], strides = [1, 1, 1]} : vector<11x4x48xf32> to vector<1x4x48xf32>
    %250 = vector.shape_cast %249 : vector<1x4x48xf32> to vector<4x48xf32>
    %251 = vector.shape_cast %244 : vector<4x48xf32> to vector<1x4x48xf32>
    %252 = vector.shape_cast %246 : vector<4x48xf32> to vector<1x4x48xf32>
    %253 = vector.shape_cast %248 : vector<4x48xf32> to vector<1x4x48xf32>
    %254 = vector.shape_cast %250 : vector<4x48xf32> to vector<1x4x48xf32>
    %255 = tpu.concatenate %251, %252, %253, %254 in 0 : vector<1x4x48xf32>, vector<1x4x48xf32>, vector<1x4x48xf32>, vector<1x4x48xf32> -> vector<4x4x48xf32>
    %256 = vector.extract_strided_slice %48 {offsets = [2, 0], sizes = [1, 48], strides = [1, 1]} : vector<25x48xf32> to vector<1x48xf32>
    %257 = vector.shape_cast %256 : vector<1x48xf32> to vector<48xf32>
    %258 = vector.shape_cast %257 : vector<48xf32> to vector<1x1x48xf32>
    %259 = vector.broadcast %258 : vector<1x1x48xf32> to vector<4x4x48xf32>
    %260 = arith.mulf %255, %259 : vector<4x4x48xf32>
    %261 = arith.addf %241, %260 : vector<4x4x48xf32>
    %262 = vector.extract_strided_slice %242 {offsets = [1, 0, 0], sizes = [1, 4, 48], strides = [1, 1, 1]} : vector<11x4x48xf32> to vector<1x4x48xf32>
    %263 = vector.shape_cast %262 : vector<1x4x48xf32> to vector<4x48xf32>
    %264 = vector.extract_strided_slice %242 {offsets = [3, 0, 0], sizes = [1, 4, 48], strides = [1, 1, 1]} : vector<11x4x48xf32> to vector<1x4x48xf32>
    %265 = vector.shape_cast %264 : vector<1x4x48xf32> to vector<4x48xf32>
    %266 = vector.extract_strided_slice %242 {offsets = [5, 0, 0], sizes = [1, 4, 48], strides = [1, 1, 1]} : vector<11x4x48xf32> to vector<1x4x48xf32>
    %267 = vector.shape_cast %266 : vector<1x4x48xf32> to vector<4x48xf32>
    %268 = vector.extract_strided_slice %242 {offsets = [7, 0, 0], sizes = [1, 4, 48], strides = [1, 1, 1]} : vector<11x4x48xf32> to vector<1x4x48xf32>
    %269 = vector.shape_cast %268 : vector<1x4x48xf32> to vector<4x48xf32>
    %270 = vector.shape_cast %263 : vector<4x48xf32> to vector<1x4x48xf32>
    %271 = vector.shape_cast %265 : vector<4x48xf32> to vector<1x4x48xf32>
    %272 = vector.shape_cast %267 : vector<4x48xf32> to vector<1x4x48xf32>
    %273 = vector.shape_cast %269 : vector<4x48xf32> to vector<1x4x48xf32>
    %274 = tpu.concatenate %270, %271, %272, %273 in 0 : vector<1x4x48xf32>, vector<1x4x48xf32>, vector<1x4x48xf32>, vector<1x4x48xf32> -> vector<4x4x48xf32>
    %275 = vector.extract_strided_slice %48 {offsets = [7, 0], sizes = [1, 48], strides = [1, 1]} : vector<25x48xf32> to vector<1x48xf32>
    %276 = vector.shape_cast %275 : vector<1x48xf32> to vector<48xf32>
    %277 = vector.shape_cast %276 : vector<48xf32> to vector<1x1x48xf32>
    %278 = vector.broadcast %277 : vector<1x1x48xf32> to vector<4x4x48xf32>
    %279 = arith.mulf %274, %278 : vector<4x4x48xf32>
    %280 = arith.addf %261, %279 : vector<4x4x48xf32>
    %281 = vector.extract_strided_slice %242 {offsets = [2, 0, 0], sizes = [1, 4, 48], strides = [1, 1, 1]} : vector<11x4x48xf32> to vector<1x4x48xf32>
    %282 = vector.shape_cast %281 : vector<1x4x48xf32> to vector<4x48xf32>
    %283 = vector.extract_strided_slice %242 {offsets = [4, 0, 0], sizes = [1, 4, 48], strides = [1, 1, 1]} : vector<11x4x48xf32> to vector<1x4x48xf32>
    %284 = vector.shape_cast %283 : vector<1x4x48xf32> to vector<4x48xf32>
    %285 = vector.extract_strided_slice %242 {offsets = [6, 0, 0], sizes = [1, 4, 48], strides = [1, 1, 1]} : vector<11x4x48xf32> to vector<1x4x48xf32>
    %286 = vector.shape_cast %285 : vector<1x4x48xf32> to vector<4x48xf32>
    %287 = vector.extract_strided_slice %242 {offsets = [8, 0, 0], sizes = [1, 4, 48], strides = [1, 1, 1]} : vector<11x4x48xf32> to vector<1x4x48xf32>
    %288 = vector.shape_cast %287 : vector<1x4x48xf32> to vector<4x48xf32>
    %289 = vector.shape_cast %282 : vector<4x48xf32> to vector<1x4x48xf32>
    %290 = vector.shape_cast %284 : vector<4x48xf32> to vector<1x4x48xf32>
    %291 = vector.shape_cast %286 : vector<4x48xf32> to vector<1x4x48xf32>
    %292 = vector.shape_cast %288 : vector<4x48xf32> to vector<1x4x48xf32>
    %293 = tpu.concatenate %289, %290, %291, %292 in 0 : vector<1x4x48xf32>, vector<1x4x48xf32>, vector<1x4x48xf32>, vector<1x4x48xf32> -> vector<4x4x48xf32>
    %294 = vector.extract_strided_slice %48 {offsets = [12, 0], sizes = [1, 48], strides = [1, 1]} : vector<25x48xf32> to vector<1x48xf32>
    %295 = vector.shape_cast %294 : vector<1x48xf32> to vector<48xf32>
    %296 = vector.shape_cast %295 : vector<48xf32> to vector<1x1x48xf32>
    %297 = vector.broadcast %296 : vector<1x1x48xf32> to vector<4x4x48xf32>
    %298 = arith.mulf %293, %297 : vector<4x4x48xf32>
    %299 = arith.addf %280, %298 : vector<4x4x48xf32>
    %300 = vector.extract_strided_slice %242 {offsets = [3, 0, 0], sizes = [1, 4, 48], strides = [1, 1, 1]} : vector<11x4x48xf32> to vector<1x4x48xf32>
    %301 = vector.shape_cast %300 : vector<1x4x48xf32> to vector<4x48xf32>
    %302 = vector.extract_strided_slice %242 {offsets = [5, 0, 0], sizes = [1, 4, 48], strides = [1, 1, 1]} : vector<11x4x48xf32> to vector<1x4x48xf32>
    %303 = vector.shape_cast %302 : vector<1x4x48xf32> to vector<4x48xf32>
    %304 = vector.extract_strided_slice %242 {offsets = [7, 0, 0], sizes = [1, 4, 48], strides = [1, 1, 1]} : vector<11x4x48xf32> to vector<1x4x48xf32>
    %305 = vector.shape_cast %304 : vector<1x4x48xf32> to vector<4x48xf32>
    %306 = vector.extract_strided_slice %242 {offsets = [9, 0, 0], sizes = [1, 4, 48], strides = [1, 1, 1]} : vector<11x4x48xf32> to vector<1x4x48xf32>
    %307 = vector.shape_cast %306 : vector<1x4x48xf32> to vector<4x48xf32>
    %308 = vector.shape_cast %301 : vector<4x48xf32> to vector<1x4x48xf32>
    %309 = vector.shape_cast %303 : vector<4x48xf32> to vector<1x4x48xf32>
    %310 = vector.shape_cast %305 : vector<4x48xf32> to vector<1x4x48xf32>
    %311 = vector.shape_cast %307 : vector<4x48xf32> to vector<1x4x48xf32>
    %312 = tpu.concatenate %308, %309, %310, %311 in 0 : vector<1x4x48xf32>, vector<1x4x48xf32>, vector<1x4x48xf32>, vector<1x4x48xf32> -> vector<4x4x48xf32>
    %313 = vector.extract_strided_slice %48 {offsets = [17, 0], sizes = [1, 48], strides = [1, 1]} : vector<25x48xf32> to vector<1x48xf32>
    %314 = vector.shape_cast %313 : vector<1x48xf32> to vector<48xf32>
    %315 = vector.shape_cast %314 : vector<48xf32> to vector<1x1x48xf32>
    %316 = vector.broadcast %315 : vector<1x1x48xf32> to vector<4x4x48xf32>
    %317 = arith.mulf %312, %316 : vector<4x4x48xf32>
    %318 = arith.addf %299, %317 : vector<4x4x48xf32>
    %319 = vector.extract_strided_slice %242 {offsets = [4, 0, 0], sizes = [1, 4, 48], strides = [1, 1, 1]} : vector<11x4x48xf32> to vector<1x4x48xf32>
    %320 = vector.shape_cast %319 : vector<1x4x48xf32> to vector<4x48xf32>
    %321 = vector.extract_strided_slice %242 {offsets = [6, 0, 0], sizes = [1, 4, 48], strides = [1, 1, 1]} : vector<11x4x48xf32> to vector<1x4x48xf32>
    %322 = vector.shape_cast %321 : vector<1x4x48xf32> to vector<4x48xf32>
    %323 = vector.extract_strided_slice %242 {offsets = [8, 0, 0], sizes = [1, 4, 48], strides = [1, 1, 1]} : vector<11x4x48xf32> to vector<1x4x48xf32>
    %324 = vector.shape_cast %323 : vector<1x4x48xf32> to vector<4x48xf32>
    %325 = vector.extract_strided_slice %242 {offsets = [10, 0, 0], sizes = [1, 4, 48], strides = [1, 1, 1]} : vector<11x4x48xf32> to vector<1x4x48xf32>
    %326 = vector.shape_cast %325 : vector<1x4x48xf32> to vector<4x48xf32>
    %327 = vector.shape_cast %320 : vector<4x48xf32> to vector<1x4x48xf32>
    %328 = vector.shape_cast %322 : vector<4x48xf32> to vector<1x4x48xf32>
    %329 = vector.shape_cast %324 : vector<4x48xf32> to vector<1x4x48xf32>
    %330 = vector.shape_cast %326 : vector<4x48xf32> to vector<1x4x48xf32>
    %331 = tpu.concatenate %327, %328, %329, %330 in 0 : vector<1x4x48xf32>, vector<1x4x48xf32>, vector<1x4x48xf32>, vector<1x4x48xf32> -> vector<4x4x48xf32>
    %332 = vector.extract_strided_slice %48 {offsets = [22, 0], sizes = [1, 48], strides = [1, 1]} : vector<25x48xf32> to vector<1x48xf32>
    %333 = vector.shape_cast %332 : vector<1x48xf32> to vector<48xf32>
    %334 = vector.shape_cast %333 : vector<48xf32> to vector<1x1x48xf32>
    %335 = vector.broadcast %334 : vector<1x1x48xf32> to vector<4x4x48xf32>
    %336 = arith.mulf %331, %335 : vector<4x4x48xf32>
    %337 = arith.addf %318, %336 : vector<4x4x48xf32>
    %c0_39 = arith.constant 0 : index
    %c3_40 = arith.constant 3 : index
    %c0_41 = arith.constant 0 : index
    %338 = tpu.strided_load %arg13[%c0_39, %c3_40, %c0_41] {strides = array<i32: 1, 2, 1>} : memref<11x11x48xf32, #tpu.memory_space<vmem>>, vector<11x4x48xf32>
    %339 = vector.extract_strided_slice %338 {offsets = [0, 0, 0], sizes = [1, 4, 48], strides = [1, 1, 1]} : vector<11x4x48xf32> to vector<1x4x48xf32>
    %340 = vector.shape_cast %339 : vector<1x4x48xf32> to vector<4x48xf32>
    %341 = vector.extract_strided_slice %338 {offsets = [2, 0, 0], sizes = [1, 4, 48], strides = [1, 1, 1]} : vector<11x4x48xf32> to vector<1x4x48xf32>
    %342 = vector.shape_cast %341 : vector<1x4x48xf32> to vector<4x48xf32>
    %343 = vector.extract_strided_slice %338 {offsets = [4, 0, 0], sizes = [1, 4, 48], strides = [1, 1, 1]} : vector<11x4x48xf32> to vector<1x4x48xf32>
    %344 = vector.shape_cast %343 : vector<1x4x48xf32> to vector<4x48xf32>
    %345 = vector.extract_strided_slice %338 {offsets = [6, 0, 0], sizes = [1, 4, 48], strides = [1, 1, 1]} : vector<11x4x48xf32> to vector<1x4x48xf32>
    %346 = vector.shape_cast %345 : vector<1x4x48xf32> to vector<4x48xf32>
    %347 = vector.shape_cast %340 : vector<4x48xf32> to vector<1x4x48xf32>
    %348 = vector.shape_cast %342 : vector<4x48xf32> to vector<1x4x48xf32>
    %349 = vector.shape_cast %344 : vector<4x48xf32> to vector<1x4x48xf32>
    %350 = vector.shape_cast %346 : vector<4x48xf32> to vector<1x4x48xf32>
    %351 = tpu.concatenate %347, %348, %349, %350 in 0 : vector<1x4x48xf32>, vector<1x4x48xf32>, vector<1x4x48xf32>, vector<1x4x48xf32> -> vector<4x4x48xf32>
    %352 = vector.extract_strided_slice %48 {offsets = [3, 0], sizes = [1, 48], strides = [1, 1]} : vector<25x48xf32> to vector<1x48xf32>
    %353 = vector.shape_cast %352 : vector<1x48xf32> to vector<48xf32>
    %354 = vector.shape_cast %353 : vector<48xf32> to vector<1x1x48xf32>
    %355 = vector.broadcast %354 : vector<1x1x48xf32> to vector<4x4x48xf32>
    %356 = arith.mulf %351, %355 : vector<4x4x48xf32>
    %357 = arith.addf %337, %356 : vector<4x4x48xf32>
    %358 = vector.extract_strided_slice %338 {offsets = [1, 0, 0], sizes = [1, 4, 48], strides = [1, 1, 1]} : vector<11x4x48xf32> to vector<1x4x48xf32>
    %359 = vector.shape_cast %358 : vector<1x4x48xf32> to vector<4x48xf32>
    %360 = vector.extract_strided_slice %338 {offsets = [3, 0, 0], sizes = [1, 4, 48], strides = [1, 1, 1]} : vector<11x4x48xf32> to vector<1x4x48xf32>
    %361 = vector.shape_cast %360 : vector<1x4x48xf32> to vector<4x48xf32>
    %362 = vector.extract_strided_slice %338 {offsets = [5, 0, 0], sizes = [1, 4, 48], strides = [1, 1, 1]} : vector<11x4x48xf32> to vector<1x4x48xf32>
    %363 = vector.shape_cast %362 : vector<1x4x48xf32> to vector<4x48xf32>
    %364 = vector.extract_strided_slice %338 {offsets = [7, 0, 0], sizes = [1, 4, 48], strides = [1, 1, 1]} : vector<11x4x48xf32> to vector<1x4x48xf32>
    %365 = vector.shape_cast %364 : vector<1x4x48xf32> to vector<4x48xf32>
    %366 = vector.shape_cast %359 : vector<4x48xf32> to vector<1x4x48xf32>
    %367 = vector.shape_cast %361 : vector<4x48xf32> to vector<1x4x48xf32>
    %368 = vector.shape_cast %363 : vector<4x48xf32> to vector<1x4x48xf32>
    %369 = vector.shape_cast %365 : vector<4x48xf32> to vector<1x4x48xf32>
    %370 = tpu.concatenate %366, %367, %368, %369 in 0 : vector<1x4x48xf32>, vector<1x4x48xf32>, vector<1x4x48xf32>, vector<1x4x48xf32> -> vector<4x4x48xf32>
    %371 = vector.extract_strided_slice %48 {offsets = [8, 0], sizes = [1, 48], strides = [1, 1]} : vector<25x48xf32> to vector<1x48xf32>
    %372 = vector.shape_cast %371 : vector<1x48xf32> to vector<48xf32>
    %373 = vector.shape_cast %372 : vector<48xf32> to vector<1x1x48xf32>
    %374 = vector.broadcast %373 : vector<1x1x48xf32> to vector<4x4x48xf32>
    %375 = arith.mulf %370, %374 : vector<4x4x48xf32>
    %376 = arith.addf %357, %375 : vector<4x4x48xf32>
    %377 = vector.extract_strided_slice %338 {offsets = [2, 0, 0], sizes = [1, 4, 48], strides = [1, 1, 1]} : vector<11x4x48xf32> to vector<1x4x48xf32>
    %378 = vector.shape_cast %377 : vector<1x4x48xf32> to vector<4x48xf32>
    %379 = vector.extract_strided_slice %338 {offsets = [4, 0, 0], sizes = [1, 4, 48], strides = [1, 1, 1]} : vector<11x4x48xf32> to vector<1x4x48xf32>
    %380 = vector.shape_cast %379 : vector<1x4x48xf32> to vector<4x48xf32>
    %381 = vector.extract_strided_slice %338 {offsets = [6, 0, 0], sizes = [1, 4, 48], strides = [1, 1, 1]} : vector<11x4x48xf32> to vector<1x4x48xf32>
    %382 = vector.shape_cast %381 : vector<1x4x48xf32> to vector<4x48xf32>
    %383 = vector.extract_strided_slice %338 {offsets = [8, 0, 0], sizes = [1, 4, 48], strides = [1, 1, 1]} : vector<11x4x48xf32> to vector<1x4x48xf32>
    %384 = vector.shape_cast %383 : vector<1x4x48xf32> to vector<4x48xf32>
    %385 = vector.shape_cast %378 : vector<4x48xf32> to vector<1x4x48xf32>
    %386 = vector.shape_cast %380 : vector<4x48xf32> to vector<1x4x48xf32>
    %387 = vector.shape_cast %382 : vector<4x48xf32> to vector<1x4x48xf32>
    %388 = vector.shape_cast %384 : vector<4x48xf32> to vector<1x4x48xf32>
    %389 = tpu.concatenate %385, %386, %387, %388 in 0 : vector<1x4x48xf32>, vector<1x4x48xf32>, vector<1x4x48xf32>, vector<1x4x48xf32> -> vector<4x4x48xf32>
    %390 = vector.extract_strided_slice %48 {offsets = [13, 0], sizes = [1, 48], strides = [1, 1]} : vector<25x48xf32> to vector<1x48xf32>
    %391 = vector.shape_cast %390 : vector<1x48xf32> to vector<48xf32>
    %392 = vector.shape_cast %391 : vector<48xf32> to vector<1x1x48xf32>
    %393 = vector.broadcast %392 : vector<1x1x48xf32> to vector<4x4x48xf32>
    %394 = arith.mulf %389, %393 : vector<4x4x48xf32>
    %395 = arith.addf %376, %394 : vector<4x4x48xf32>
    %396 = vector.extract_strided_slice %338 {offsets = [3, 0, 0], sizes = [1, 4, 48], strides = [1, 1, 1]} : vector<11x4x48xf32> to vector<1x4x48xf32>
    %397 = vector.shape_cast %396 : vector<1x4x48xf32> to vector<4x48xf32>
    %398 = vector.extract_strided_slice %338 {offsets = [5, 0, 0], sizes = [1, 4, 48], strides = [1, 1, 1]} : vector<11x4x48xf32> to vector<1x4x48xf32>
    %399 = vector.shape_cast %398 : vector<1x4x48xf32> to vector<4x48xf32>
    %400 = vector.extract_strided_slice %338 {offsets = [7, 0, 0], sizes = [1, 4, 48], strides = [1, 1, 1]} : vector<11x4x48xf32> to vector<1x4x48xf32>
    %401 = vector.shape_cast %400 : vector<1x4x48xf32> to vector<4x48xf32>
    %402 = vector.extract_strided_slice %338 {offsets = [9, 0, 0], sizes = [1, 4, 48], strides = [1, 1, 1]} : vector<11x4x48xf32> to vector<1x4x48xf32>
    %403 = vector.shape_cast %402 : vector<1x4x48xf32> to vector<4x48xf32>
    %404 = vector.shape_cast %397 : vector<4x48xf32> to vector<1x4x48xf32>
    %405 = vector.shape_cast %399 : vector<4x48xf32> to vector<1x4x48xf32>
    %406 = vector.shape_cast %401 : vector<4x48xf32> to vector<1x4x48xf32>
    %407 = vector.shape_cast %403 : vector<4x48xf32> to vector<1x4x48xf32>
    %408 = tpu.concatenate %404, %405, %406, %407 in 0 : vector<1x4x48xf32>, vector<1x4x48xf32>, vector<1x4x48xf32>, vector<1x4x48xf32> -> vector<4x4x48xf32>
    %409 = vector.extract_strided_slice %48 {offsets = [18, 0], sizes = [1, 48], strides = [1, 1]} : vector<25x48xf32> to vector<1x48xf32>
    %410 = vector.shape_cast %409 : vector<1x48xf32> to vector<48xf32>
    %411 = vector.shape_cast %410 : vector<48xf32> to vector<1x1x48xf32>
    %412 = vector.broadcast %411 : vector<1x1x48xf32> to vector<4x4x48xf32>
    %413 = arith.mulf %408, %412 : vector<4x4x48xf32>
    %414 = arith.addf %395, %413 : vector<4x4x48xf32>
    %415 = vector.extract_strided_slice %338 {offsets = [4, 0, 0], sizes = [1, 4, 48], strides = [1, 1, 1]} : vector<11x4x48xf32> to vector<1x4x48xf32>
    %416 = vector.shape_cast %415 : vector<1x4x48xf32> to vector<4x48xf32>
    %417 = vector.extract_strided_slice %338 {offsets = [6, 0, 0], sizes = [1, 4, 48], strides = [1, 1, 1]} : vector<11x4x48xf32> to vector<1x4x48xf32>
    %418 = vector.shape_cast %417 : vector<1x4x48xf32> to vector<4x48xf32>
    %419 = vector.extract_strided_slice %338 {offsets = [8, 0, 0], sizes = [1, 4, 48], strides = [1, 1, 1]} : vector<11x4x48xf32> to vector<1x4x48xf32>
    %420 = vector.shape_cast %419 : vector<1x4x48xf32> to vector<4x48xf32>
    %421 = vector.extract_strided_slice %338 {offsets = [10, 0, 0], sizes = [1, 4, 48], strides = [1, 1, 1]} : vector<11x4x48xf32> to vector<1x4x48xf32>
    %422 = vector.shape_cast %421 : vector<1x4x48xf32> to vector<4x48xf32>
    %423 = vector.shape_cast %416 : vector<4x48xf32> to vector<1x4x48xf32>
    %424 = vector.shape_cast %418 : vector<4x48xf32> to vector<1x4x48xf32>
    %425 = vector.shape_cast %420 : vector<4x48xf32> to vector<1x4x48xf32>
    %426 = vector.shape_cast %422 : vector<4x48xf32> to vector<1x4x48xf32>
    %427 = tpu.concatenate %423, %424, %425, %426 in 0 : vector<1x4x48xf32>, vector<1x4x48xf32>, vector<1x4x48xf32>, vector<1x4x48xf32> -> vector<4x4x48xf32>
    %428 = vector.extract_strided_slice %48 {offsets = [23, 0], sizes = [1, 48], strides = [1, 1]} : vector<25x48xf32> to vector<1x48xf32>
    %429 = vector.shape_cast %428 : vector<1x48xf32> to vector<48xf32>
    %430 = vector.shape_cast %429 : vector<48xf32> to vector<1x1x48xf32>
    %431 = vector.broadcast %430 : vector<1x1x48xf32> to vector<4x4x48xf32>
    %432 = arith.mulf %427, %431 : vector<4x4x48xf32>
    %433 = arith.addf %414, %432 : vector<4x4x48xf32>
    %c0_42 = arith.constant 0 : index
    %c4_43 = arith.constant 4 : index
    %c0_44 = arith.constant 0 : index
    %434 = tpu.strided_load %arg13[%c0_42, %c4_43, %c0_44] {strides = array<i32: 1, 2, 1>} : memref<11x11x48xf32, #tpu.memory_space<vmem>>, vector<11x4x48xf32>
    %435 = vector.extract_strided_slice %434 {offsets = [0, 0, 0], sizes = [1, 4, 48], strides = [1, 1, 1]} : vector<11x4x48xf32> to vector<1x4x48xf32>
    %436 = vector.shape_cast %435 : vector<1x4x48xf32> to vector<4x48xf32>
    %437 = vector.extract_strided_slice %434 {offsets = [2, 0, 0], sizes = [1, 4, 48], strides = [1, 1, 1]} : vector<11x4x48xf32> to vector<1x4x48xf32>
    %438 = vector.shape_cast %437 : vector<1x4x48xf32> to vector<4x48xf32>
    %439 = vector.extract_strided_slice %434 {offsets = [4, 0, 0], sizes = [1, 4, 48], strides = [1, 1, 1]} : vector<11x4x48xf32> to vector<1x4x48xf32>
    %440 = vector.shape_cast %439 : vector<1x4x48xf32> to vector<4x48xf32>
    %441 = vector.extract_strided_slice %434 {offsets = [6, 0, 0], sizes = [1, 4, 48], strides = [1, 1, 1]} : vector<11x4x48xf32> to vector<1x4x48xf32>
    %442 = vector.shape_cast %441 : vector<1x4x48xf32> to vector<4x48xf32>
    %443 = vector.shape_cast %436 : vector<4x48xf32> to vector<1x4x48xf32>
    %444 = vector.shape_cast %438 : vector<4x48xf32> to vector<1x4x48xf32>
    %445 = vector.shape_cast %440 : vector<4x48xf32> to vector<1x4x48xf32>
    %446 = vector.shape_cast %442 : vector<4x48xf32> to vector<1x4x48xf32>
    %447 = tpu.concatenate %443, %444, %445, %446 in 0 : vector<1x4x48xf32>, vector<1x4x48xf32>, vector<1x4x48xf32>, vector<1x4x48xf32> -> vector<4x4x48xf32>
    %448 = vector.extract_strided_slice %48 {offsets = [4, 0], sizes = [1, 48], strides = [1, 1]} : vector<25x48xf32> to vector<1x48xf32>
    %449 = vector.shape_cast %448 : vector<1x48xf32> to vector<48xf32>
    %450 = vector.shape_cast %449 : vector<48xf32> to vector<1x1x48xf32>
    %451 = vector.broadcast %450 : vector<1x1x48xf32> to vector<4x4x48xf32>
    %452 = arith.mulf %447, %451 : vector<4x4x48xf32>
    %453 = arith.addf %433, %452 : vector<4x4x48xf32>
    %454 = vector.extract_strided_slice %434 {offsets = [1, 0, 0], sizes = [1, 4, 48], strides = [1, 1, 1]} : vector<11x4x48xf32> to vector<1x4x48xf32>
    %455 = vector.shape_cast %454 : vector<1x4x48xf32> to vector<4x48xf32>
    %456 = vector.extract_strided_slice %434 {offsets = [3, 0, 0], sizes = [1, 4, 48], strides = [1, 1, 1]} : vector<11x4x48xf32> to vector<1x4x48xf32>
    %457 = vector.shape_cast %456 : vector<1x4x48xf32> to vector<4x48xf32>
    %458 = vector.extract_strided_slice %434 {offsets = [5, 0, 0], sizes = [1, 4, 48], strides = [1, 1, 1]} : vector<11x4x48xf32> to vector<1x4x48xf32>
    %459 = vector.shape_cast %458 : vector<1x4x48xf32> to vector<4x48xf32>
    %460 = vector.extract_strided_slice %434 {offsets = [7, 0, 0], sizes = [1, 4, 48], strides = [1, 1, 1]} : vector<11x4x48xf32> to vector<1x4x48xf32>
    %461 = vector.shape_cast %460 : vector<1x4x48xf32> to vector<4x48xf32>
    %462 = vector.shape_cast %455 : vector<4x48xf32> to vector<1x4x48xf32>
    %463 = vector.shape_cast %457 : vector<4x48xf32> to vector<1x4x48xf32>
    %464 = vector.shape_cast %459 : vector<4x48xf32> to vector<1x4x48xf32>
    %465 = vector.shape_cast %461 : vector<4x48xf32> to vector<1x4x48xf32>
    %466 = tpu.concatenate %462, %463, %464, %465 in 0 : vector<1x4x48xf32>, vector<1x4x48xf32>, vector<1x4x48xf32>, vector<1x4x48xf32> -> vector<4x4x48xf32>
    %467 = vector.extract_strided_slice %48 {offsets = [9, 0], sizes = [1, 48], strides = [1, 1]} : vector<25x48xf32> to vector<1x48xf32>
    %468 = vector.shape_cast %467 : vector<1x48xf32> to vector<48xf32>
    %469 = vector.shape_cast %468 : vector<48xf32> to vector<1x1x48xf32>
    %470 = vector.broadcast %469 : vector<1x1x48xf32> to vector<4x4x48xf32>
    %471 = arith.mulf %466, %470 : vector<4x4x48xf32>
    %472 = arith.addf %453, %471 : vector<4x4x48xf32>
    %473 = vector.extract_strided_slice %434 {offsets = [2, 0, 0], sizes = [1, 4, 48], strides = [1, 1, 1]} : vector<11x4x48xf32> to vector<1x4x48xf32>
    %474 = vector.shape_cast %473 : vector<1x4x48xf32> to vector<4x48xf32>
    %475 = vector.extract_strided_slice %434 {offsets = [4, 0, 0], sizes = [1, 4, 48], strides = [1, 1, 1]} : vector<11x4x48xf32> to vector<1x4x48xf32>
    %476 = vector.shape_cast %475 : vector<1x4x48xf32> to vector<4x48xf32>
    %477 = vector.extract_strided_slice %434 {offsets = [6, 0, 0], sizes = [1, 4, 48], strides = [1, 1, 1]} : vector<11x4x48xf32> to vector<1x4x48xf32>
    %478 = vector.shape_cast %477 : vector<1x4x48xf32> to vector<4x48xf32>
    %479 = vector.extract_strided_slice %434 {offsets = [8, 0, 0], sizes = [1, 4, 48], strides = [1, 1, 1]} : vector<11x4x48xf32> to vector<1x4x48xf32>
    %480 = vector.shape_cast %479 : vector<1x4x48xf32> to vector<4x48xf32>
    %481 = vector.shape_cast %474 : vector<4x48xf32> to vector<1x4x48xf32>
    %482 = vector.shape_cast %476 : vector<4x48xf32> to vector<1x4x48xf32>
    %483 = vector.shape_cast %478 : vector<4x48xf32> to vector<1x4x48xf32>
    %484 = vector.shape_cast %480 : vector<4x48xf32> to vector<1x4x48xf32>
    %485 = tpu.concatenate %481, %482, %483, %484 in 0 : vector<1x4x48xf32>, vector<1x4x48xf32>, vector<1x4x48xf32>, vector<1x4x48xf32> -> vector<4x4x48xf32>
    %486 = vector.extract_strided_slice %48 {offsets = [14, 0], sizes = [1, 48], strides = [1, 1]} : vector<25x48xf32> to vector<1x48xf32>
    %487 = vector.shape_cast %486 : vector<1x48xf32> to vector<48xf32>
    %488 = vector.shape_cast %487 : vector<48xf32> to vector<1x1x48xf32>
    %489 = vector.broadcast %488 : vector<1x1x48xf32> to vector<4x4x48xf32>
    %490 = arith.mulf %485, %489 : vector<4x4x48xf32>
    %491 = arith.addf %472, %490 : vector<4x4x48xf32>
    %492 = vector.extract_strided_slice %434 {offsets = [3, 0, 0], sizes = [1, 4, 48], strides = [1, 1, 1]} : vector<11x4x48xf32> to vector<1x4x48xf32>
    %493 = vector.shape_cast %492 : vector<1x4x48xf32> to vector<4x48xf32>
    %494 = vector.extract_strided_slice %434 {offsets = [5, 0, 0], sizes = [1, 4, 48], strides = [1, 1, 1]} : vector<11x4x48xf32> to vector<1x4x48xf32>
    %495 = vector.shape_cast %494 : vector<1x4x48xf32> to vector<4x48xf32>
    %496 = vector.extract_strided_slice %434 {offsets = [7, 0, 0], sizes = [1, 4, 48], strides = [1, 1, 1]} : vector<11x4x48xf32> to vector<1x4x48xf32>
    %497 = vector.shape_cast %496 : vector<1x4x48xf32> to vector<4x48xf32>
    %498 = vector.extract_strided_slice %434 {offsets = [9, 0, 0], sizes = [1, 4, 48], strides = [1, 1, 1]} : vector<11x4x48xf32> to vector<1x4x48xf32>
    %499 = vector.shape_cast %498 : vector<1x4x48xf32> to vector<4x48xf32>
    %500 = vector.shape_cast %493 : vector<4x48xf32> to vector<1x4x48xf32>
    %501 = vector.shape_cast %495 : vector<4x48xf32> to vector<1x4x48xf32>
    %502 = vector.shape_cast %497 : vector<4x48xf32> to vector<1x4x48xf32>
    %503 = vector.shape_cast %499 : vector<4x48xf32> to vector<1x4x48xf32>
    %504 = tpu.concatenate %500, %501, %502, %503 in 0 : vector<1x4x48xf32>, vector<1x4x48xf32>, vector<1x4x48xf32>, vector<1x4x48xf32> -> vector<4x4x48xf32>
    %505 = vector.extract_strided_slice %48 {offsets = [19, 0], sizes = [1, 48], strides = [1, 1]} : vector<25x48xf32> to vector<1x48xf32>
    %506 = vector.shape_cast %505 : vector<1x48xf32> to vector<48xf32>
    %507 = vector.shape_cast %506 : vector<48xf32> to vector<1x1x48xf32>
    %508 = vector.broadcast %507 : vector<1x1x48xf32> to vector<4x4x48xf32>
    %509 = arith.mulf %504, %508 : vector<4x4x48xf32>
    %510 = arith.addf %491, %509 : vector<4x4x48xf32>
    %511 = vector.extract_strided_slice %434 {offsets = [4, 0, 0], sizes = [1, 4, 48], strides = [1, 1, 1]} : vector<11x4x48xf32> to vector<1x4x48xf32>
    %512 = vector.shape_cast %511 : vector<1x4x48xf32> to vector<4x48xf32>
    %513 = vector.extract_strided_slice %434 {offsets = [6, 0, 0], sizes = [1, 4, 48], strides = [1, 1, 1]} : vector<11x4x48xf32> to vector<1x4x48xf32>
    %514 = vector.shape_cast %513 : vector<1x4x48xf32> to vector<4x48xf32>
    %515 = vector.extract_strided_slice %434 {offsets = [8, 0, 0], sizes = [1, 4, 48], strides = [1, 1, 1]} : vector<11x4x48xf32> to vector<1x4x48xf32>
    %516 = vector.shape_cast %515 : vector<1x4x48xf32> to vector<4x48xf32>
    %517 = vector.extract_strided_slice %434 {offsets = [10, 0, 0], sizes = [1, 4, 48], strides = [1, 1, 1]} : vector<11x4x48xf32> to vector<1x4x48xf32>
    %518 = vector.shape_cast %517 : vector<1x4x48xf32> to vector<4x48xf32>
    %519 = vector.shape_cast %512 : vector<4x48xf32> to vector<1x4x48xf32>
    %520 = vector.shape_cast %514 : vector<4x48xf32> to vector<1x4x48xf32>
    %521 = vector.shape_cast %516 : vector<4x48xf32> to vector<1x4x48xf32>
    %522 = vector.shape_cast %518 : vector<4x48xf32> to vector<1x4x48xf32>
    %523 = tpu.concatenate %519, %520, %521, %522 in 0 : vector<1x4x48xf32>, vector<1x4x48xf32>, vector<1x4x48xf32>, vector<1x4x48xf32> -> vector<4x4x48xf32>
    %524 = vector.extract_strided_slice %48 {offsets = [24, 0], sizes = [1, 48], strides = [1, 1]} : vector<25x48xf32> to vector<1x48xf32>
    %525 = vector.shape_cast %524 : vector<1x48xf32> to vector<48xf32>
    %526 = vector.shape_cast %525 : vector<48xf32> to vector<1x1x48xf32>
    %527 = vector.broadcast %526 : vector<1x1x48xf32> to vector<4x4x48xf32>
    %528 = arith.mulf %523, %527 : vector<4x4x48xf32>
    %529 = arith.addf %510, %528 : vector<4x4x48xf32>
    %c0_45 = arith.constant 0 : index
    %c0_46 = arith.constant 0 : index
    %530 = vector.load %arg5[%c0_45, %c0_46] : memref<1x48xf32, #tpu.memory_space<vmem>>, vector<1x48xf32>
    %531 = vector.shape_cast %530 : vector<1x48xf32> to vector<1x1x48xf32>
    %532 = vector.broadcast %531 : vector<1x1x48xf32> to vector<4x4x48xf32>
    %533 = arith.addf %529, %532 : vector<4x4x48xf32>
    %534 = arith.negf %533 : vector<4x4x48xf32>
    %535 = math.exp %534 : vector<4x4x48xf32>
    %cst_47 = arith.constant 1.000000e+00 : f32
    %536 = vector.broadcast %cst_47 : f32 to vector<4x4x48xf32>
    %537 = arith.addf %536, %535 : vector<4x4x48xf32>
    %538 = arith.divf %536, %537 : vector<4x4x48xf32>
    %539 = arith.mulf %533, %538 : vector<4x4x48xf32>
    %540 = vector.extract_strided_slice %539 {offsets = [0, 0, 0], sizes = [1, 4, 48], strides = [1, 1, 1]} : vector<4x4x48xf32> to vector<1x4x48xf32>
    %541 = vector.shape_cast %540 : vector<1x4x48xf32> to vector<4x48xf32>
    %c0_48 = arith.constant 0 : index
    %c0_49 = arith.constant 0 : index
    %542 = vector.load %arg14[%c0_48, %c0_49] : memref<16x48xf32, #tpu.memory_space<vmem>>, vector<4x48xf32>
    tpu.vector_store %arg14[%c0_48, %c0_49], %541 {strides = array<i32>} : memref<16x48xf32, #tpu.memory_space<vmem>>, vector<4x48xf32>,
    %543 = vector.extract_strided_slice %539 {offsets = [1, 0, 0], sizes = [1, 4, 48], strides = [1, 1, 1]} : vector<4x4x48xf32> to vector<1x4x48xf32>
    %544 = vector.shape_cast %543 : vector<1x4x48xf32> to vector<4x48xf32>
    %c4_50 = arith.constant 4 : index
    %c0_51 = arith.constant 0 : index
    %545 = vector.load %arg14[%c4_50, %c0_51] : memref<16x48xf32, #tpu.memory_space<vmem>>, vector<4x48xf32>
    tpu.vector_store %arg14[%c4_50, %c0_51], %544 {strides = array<i32>} : memref<16x48xf32, #tpu.memory_space<vmem>>, vector<4x48xf32>,
    %546 = vector.extract_strided_slice %539 {offsets = [2, 0, 0], sizes = [1, 4, 48], strides = [1, 1, 1]} : vector<4x4x48xf32> to vector<1x4x48xf32>
    %547 = vector.shape_cast %546 : vector<1x4x48xf32> to vector<4x48xf32>
    %c8_52 = arith.constant 8 : index
    %c0_53 = arith.constant 0 : index
    %548 = vector.load %arg14[%c8_52, %c0_53] : memref<16x48xf32, #tpu.memory_space<vmem>>, vector<4x48xf32>
    tpu.vector_store %arg14[%c8_52, %c0_53], %547 {strides = array<i32>} : memref<16x48xf32, #tpu.memory_space<vmem>>, vector<4x48xf32>,
    %549 = vector.extract_strided_slice %539 {offsets = [3, 0, 0], sizes = [1, 4, 48], strides = [1, 1, 1]} : vector<4x4x48xf32> to vector<1x4x48xf32>
    %550 = vector.shape_cast %549 : vector<1x4x48xf32> to vector<4x48xf32>
    %c12 = arith.constant 12 : index
    %c0_54 = arith.constant 0 : index
    %551 = vector.load %arg14[%c12, %c0_54] : memref<16x48xf32, #tpu.memory_space<vmem>>, vector<4x48xf32>
    tpu.vector_store %arg14[%c12, %c0_54], %550 {strides = array<i32>} : memref<16x48xf32, #tpu.memory_space<vmem>>, vector<4x48xf32>,
    %c0_55 = arith.constant 0 : index
    %c0_56 = arith.constant 0 : index
    %552 = vector.load %arg14[%c0_55, %c0_56] : memref<16x48xf32, #tpu.memory_space<vmem>>, vector<16x48xf32>
    %cst_57 = arith.constant dense<0.000000e+00> : vector<48xf32>
    %553 = vector.multi_reduction <add>, %552, %cst_57 [0] : vector<16x48xf32> to vector<48xf32>
    %554 = vector.shape_cast %553 : vector<48xf32> to vector<1x48xf32>
    %cst_58 = arith.constant 6.250000e-02 : f32
    %555 = vector.broadcast %cst_58 : f32 to vector<1x48xf32>
    %556 = arith.mulf %554, %555 : vector<1x48xf32>
    %c0_59 = arith.constant 0 : index
    %c0_60 = arith.constant 0 : index
    %557 = vector.load %arg6[%c0_59, %c0_60] : memref<48x2xf32, #tpu.memory_space<vmem>>, vector<48x2xf32>
    %cst_61 = arith.constant dense<0.000000e+00> : vector<1x2xf32>
    %558 = tpu.matmul %556, %557, %cst_61 {dimension_numbers = #tpu.dot_dimension_numbers<[1], [0], [0], [1], [0, 0, 1, 1], [], []>} : vector<1x48xf32>, vector<48x2xf32>, vector<1x2xf32> -> vector<1x2xf32>
    %c0_62 = arith.constant 0 : index
    %c0_63 = arith.constant 0 : index
    %559 = vector.load %arg7[%c0_62, %c0_63] : memref<1x2xf32, #tpu.memory_space<vmem>>, vector<1x2xf32>
    %560 = arith.addf %558, %559 : vector<1x2xf32>
    %561 = arith.negf %560 : vector<1x2xf32>
    %562 = math.exp %561 : vector<1x2xf32>
    %cst_64 = arith.constant 1.000000e+00 : f32
    %563 = vector.broadcast %cst_64 : f32 to vector<1x2xf32>
    %564 = arith.addf %563, %562 : vector<1x2xf32>
    %565 = arith.divf %563, %564 : vector<1x2xf32>
    %566 = arith.mulf %560, %565 : vector<1x2xf32>
    %c0_65 = arith.constant 0 : index
    %c0_66 = arith.constant 0 : index
    %567 = vector.load %arg8[%c0_65, %c0_66] : memref<2x48xf32, #tpu.memory_space<vmem>>, vector<2x48xf32>
    %cst_67 = arith.constant dense<0.000000e+00> : vector<1x48xf32>
    %568 = tpu.matmul %566, %567, %cst_67 {dimension_numbers = #tpu.dot_dimension_numbers<[1], [0], [0], [1], [0, 0, 1, 1], [], []>} : vector<1x2xf32>, vector<2x48xf32>, vector<1x48xf32> -> vector<1x48xf32>
    %c0_68 = arith.constant 0 : index
    %c0_69 = arith.constant 0 : index
    %569 = vector.load %arg9[%c0_68, %c0_69] : memref<1x48xf32, #tpu.memory_space<vmem>>, vector<1x48xf32>
    %570 = arith.addf %568, %569 : vector<1x48xf32>
    %571 = arith.negf %570 : vector<1x48xf32>
    %572 = math.exp %571 : vector<1x48xf32>
    %cst_70 = arith.constant 1.000000e+00 : f32
    %573 = vector.broadcast %cst_70 : f32 to vector<1x48xf32>
    %574 = arith.addf %573, %572 : vector<1x48xf32>
    %575 = arith.divf %573, %574 : vector<1x48xf32>
    %576 = vector.broadcast %575 : vector<1x48xf32> to vector<16x48xf32>
    %577 = arith.mulf %552, %576 : vector<16x48xf32>
    %578 = arith.truncf %577 : vector<16x48xf32> to vector<16x48xbf16>
    %c0_71 = arith.constant 0 : index
    %c0_72 = arith.constant 0 : index
    %579 = vector.load %arg10[%c0_71, %c0_72] : memref<48x8xbf16, #tpu.memory_space<vmem>>, vector<48x8xbf16>
    %cst_73 = arith.constant dense<0.000000e+00> : vector<16x8xf32>
    %580 = tpu.matmul %578, %579, %cst_73 {dimension_numbers = #tpu.dot_dimension_numbers<[1], [0], [0], [1], [0, 0, 1, 1], [], []>} : vector<16x48xbf16>, vector<48x8xbf16>, vector<16x8xf32> -> vector<16x8xf32>
    %c0_74 = arith.constant 0 : index
    %c0_75 = arith.constant 0 : index
    %581 = vector.load %arg11[%c0_74, %c0_75] : memref<1x8xf32, #tpu.memory_space<vmem>>, vector<1x8xf32>
    %582 = vector.broadcast %581 : vector<1x8xf32> to vector<16x8xf32>
    %583 = arith.addf %580, %582 : vector<16x8xf32>
    %c0_76 = arith.constant 0 : index
    %c0_77 = arith.constant 0 : index
    %c0_78 = arith.constant 0 : index
    %584 = vector.load %arg12[%c0_76, %c0_77, %c0_78] : memref<1x16x8xf32, #tpu.memory_space<vmem>>, vector<1x16x8xf32>
    %585 = vector.shape_cast %584 : vector<1x16x8xf32> to vector<16x8xf32>
    %586 = vector.shape_cast %583 : vector<16x8xf32> to vector<1x16x8xf32>
    tpu.vector_store %arg12[%c0_76, %c0_77, %c0_78], %586 {strides = array<i32>} : memref<1x16x8xf32, #tpu.memory_space<vmem>>, vector<1x16x8xf32>,
    return
  }
  func.func @transform_0(%arg0: i32) -> (i32, i32, i32) {
    %c0_i32 = arith.constant 0 : i32
    %c0_i32_0 = arith.constant 0 : i32
    %c0_i32_1 = arith.constant 0 : i32
    return %arg0, %c0_i32, %c0_i32_0 : i32, i32, i32
  }
  func.func @transform_1(%arg0: i32) -> (i32, i32) {
    %c0_i32 = arith.constant 0 : i32
    %c0_i32_0 = arith.constant 0 : i32
    %c0_i32_1 = arith.constant 0 : i32
    return %c0_i32, %c0_i32_0 : i32, i32
  }
  func.func @transform_2(%arg0: i32) -> (i32, i32) {
    %c0_i32 = arith.constant 0 : i32
    %c0_i32_0 = arith.constant 0 : i32
    %c0_i32_1 = arith.constant 0 : i32
    return %c0_i32, %c0_i32_0 : i32, i32
  }
  func.func @transform_3(%arg0: i32) -> (i32, i32) {
    %c0_i32 = arith.constant 0 : i32
    %c0_i32_0 = arith.constant 0 : i32
    %c0_i32_1 = arith.constant 0 : i32
    return %c0_i32, %c0_i32_0 : i32, i32
  }
  func.func @transform_4(%arg0: i32) -> (i32, i32) {
    %c0_i32 = arith.constant 0 : i32
    %c0_i32_0 = arith.constant 0 : i32
    %c0_i32_1 = arith.constant 0 : i32
    return %c0_i32, %c0_i32_0 : i32, i32
  }
  func.func @transform_5(%arg0: i32) -> (i32, i32) {
    %c0_i32 = arith.constant 0 : i32
    %c0_i32_0 = arith.constant 0 : i32
    %c0_i32_1 = arith.constant 0 : i32
    return %c0_i32, %c0_i32_0 : i32, i32
  }
  func.func @transform_6(%arg0: i32) -> (i32, i32) {
    %c0_i32 = arith.constant 0 : i32
    %c0_i32_0 = arith.constant 0 : i32
    %c0_i32_1 = arith.constant 0 : i32
    return %c0_i32, %c0_i32_0 : i32, i32
  }
  func.func @transform_7(%arg0: i32) -> (i32, i32) {
    %c0_i32 = arith.constant 0 : i32
    %c0_i32_0 = arith.constant 0 : i32
    %c0_i32_1 = arith.constant 0 : i32
    return %c0_i32, %c0_i32_0 : i32, i32
  }
  func.func @transform_8(%arg0: i32) -> (i32, i32) {
    %c0_i32 = arith.constant 0 : i32
    %c0_i32_0 = arith.constant 0 : i32
    %c0_i32_1 = arith.constant 0 : i32
    return %c0_i32, %c0_i32_0 : i32, i32
  }
  func.func @transform_9(%arg0: i32) -> (i32, i32) {
    %c0_i32 = arith.constant 0 : i32
    %c0_i32_0 = arith.constant 0 : i32
    %c0_i32_1 = arith.constant 0 : i32
    return %c0_i32, %c0_i32_0 : i32, i32
  }
  func.func @transform_10(%arg0: i32) -> (i32, i32) {
    %c0_i32 = arith.constant 0 : i32
    %c0_i32_0 = arith.constant 0 : i32
    %c0_i32_1 = arith.constant 0 : i32
    return %c0_i32, %c0_i32_0 : i32, i32
  }
  func.func @transform_11(%arg0: i32) -> (i32, i32, i32) {
    %c0_i32 = arith.constant 0 : i32
    %c0_i32_0 = arith.constant 0 : i32
    %c0_i32_1 = arith.constant 0 : i32
    return %arg0, %c0_i32, %c0_i32_0 : i32, i32, i32
  }
}

module attributes {stable_mosaic.version = 11 : i64} {
  func.func @_mbconv_kernel(%arg0: i32, %arg1: memref<1x16x8xf32, #tpu.memory_space<vmem>>, %arg2: memref<8x48xbf16, #tpu.memory_space<vmem>>, %arg3: memref<1x48xf32, #tpu.memory_space<vmem>>, %arg4: memref<25x48xf32, #tpu.memory_space<vmem>>, %arg5: memref<1x48xf32, #tpu.memory_space<vmem>>, %arg6: memref<48x2xf32, #tpu.memory_space<vmem>>, %arg7: memref<1x2xf32, #tpu.memory_space<vmem>>, %arg8: memref<2x48xf32, #tpu.memory_space<vmem>>, %arg9: memref<1x48xf32, #tpu.memory_space<vmem>>, %arg10: memref<48x8xbf16, #tpu.memory_space<vmem>>, %arg11: memref<1x8xf32, #tpu.memory_space<vmem>>, %arg12: memref<1x16x8xf32, #tpu.memory_space<vmem>>, %arg13: memref<8x8x48xf32, #tpu.memory_space<vmem>>, %arg14: memref<16x48xf32, #tpu.memory_space<vmem>>) attributes {dimension_semantics = [#tpu.dimension_semantics<parallel>], iteration_bounds = array<i64: 2>, scalar_prefetch = 0 : i64, scratch_operands = 2 : i64, tpu.core_type = #tpu.core_type<tc>, window_params = [{transform_indices = @transform_0, window_bounds = array<i64: 1, 16, 8>}, {pipeline_mode = #tpu.pipeline_mode<synchronous>, transform_indices = @transform_1, window_bounds = array<i64: 8, 48>}, {pipeline_mode = #tpu.pipeline_mode<synchronous>, transform_indices = @transform_2, window_bounds = array<i64: 1, 48>}, {pipeline_mode = #tpu.pipeline_mode<synchronous>, transform_indices = @transform_3, window_bounds = array<i64: 25, 48>}, {pipeline_mode = #tpu.pipeline_mode<synchronous>, transform_indices = @transform_4, window_bounds = array<i64: 1, 48>}, {pipeline_mode = #tpu.pipeline_mode<synchronous>, transform_indices = @transform_5, window_bounds = array<i64: 48, 2>}, {pipeline_mode = #tpu.pipeline_mode<synchronous>, transform_indices = @transform_6, window_bounds = array<i64: 1, 2>}, {pipeline_mode = #tpu.pipeline_mode<synchronous>, transform_indices = @transform_7, window_bounds = array<i64: 2, 48>}, {pipeline_mode = #tpu.pipeline_mode<synchronous>, transform_indices = @transform_8, window_bounds = array<i64: 1, 48>}, {pipeline_mode = #tpu.pipeline_mode<synchronous>, transform_indices = @transform_9, window_bounds = array<i64: 48, 8>}, {pipeline_mode = #tpu.pipeline_mode<synchronous>, transform_indices = @transform_10, window_bounds = array<i64: 1, 8>}, {transform_indices = @transform_11, window_bounds = array<i64: 1, 16, 8>}]} {
    %cst = arith.constant 0.000000e+00 : f32
    %0 = vector.broadcast %cst : f32 to vector<8x8x48xf32>
    %c0 = arith.constant 0 : index
    %c0_0 = arith.constant 0 : index
    %c0_1 = arith.constant 0 : index
    %1 = vector.load %arg13[%c0, %c0_0, %c0_1] : memref<8x8x48xf32, #tpu.memory_space<vmem>>, vector<8x8x48xf32>
    tpu.vector_store %arg13[%c0, %c0_0, %c0_1], %0 {strides = array<i32>} : memref<8x8x48xf32, #tpu.memory_space<vmem>>, vector<8x8x48xf32>,
    %c0_2 = arith.constant 0 : index
    %c0_3 = arith.constant 0 : index
    %c0_4 = arith.constant 0 : index
    %2 = vector.load %arg1[%c0_2, %c0_3, %c0_4] : memref<1x16x8xf32, #tpu.memory_space<vmem>>, vector<1x16x8xf32>
    %3 = vector.shape_cast %2 : vector<1x16x8xf32> to vector<16x8xf32>
    %4 = arith.truncf %3 : vector<16x8xf32> to vector<16x8xbf16>
    %c0_5 = arith.constant 0 : index
    %c0_6 = arith.constant 0 : index
    %5 = vector.load %arg2[%c0_5, %c0_6] : memref<8x48xbf16, #tpu.memory_space<vmem>>, vector<8x48xbf16>
    %cst_7 = arith.constant dense<0.000000e+00> : vector<16x48xf32>
    %6 = tpu.matmul %4, %5, %cst_7 {dimension_numbers = #tpu.dot_dimension_numbers<[1], [0], [0], [1], [0, 0, 1, 1], [], []>} : vector<16x8xbf16>, vector<8x48xbf16>, vector<16x48xf32> -> vector<16x48xf32>
    %c0_8 = arith.constant 0 : index
    %c0_9 = arith.constant 0 : index
    %7 = vector.load %arg3[%c0_8, %c0_9] : memref<1x48xf32, #tpu.memory_space<vmem>>, vector<1x48xf32>
    %8 = vector.broadcast %7 : vector<1x48xf32> to vector<16x48xf32>
    %9 = arith.addf %6, %8 : vector<16x48xf32>
    %10 = arith.negf %9 : vector<16x48xf32>
    %11 = math.exp %10 : vector<16x48xf32>
    %cst_10 = arith.constant 1.000000e+00 : f32
    %12 = vector.broadcast %cst_10 : f32 to vector<16x48xf32>
    %13 = arith.addf %12, %11 : vector<16x48xf32>
    %14 = arith.divf %12, %13 : vector<16x48xf32>
    %15 = arith.mulf %9, %14 : vector<16x48xf32>
    %16 = vector.extract_strided_slice %15 {offsets = [0, 0], sizes = [4, 48], strides = [1, 1]} : vector<16x48xf32> to vector<4x48xf32>
    %c2 = arith.constant 2 : index
    %c2_11 = arith.constant 2 : index
    %c0_12 = arith.constant 0 : index
    %17 = vector.load %arg13[%c2, %c2_11, %c0_12] : memref<8x8x48xf32, #tpu.memory_space<vmem>>, vector<1x4x48xf32>
    %18 = vector.shape_cast %17 : vector<1x4x48xf32> to vector<4x48xf32>
    %19 = vector.shape_cast %16 : vector<4x48xf32> to vector<1x4x48xf32>
    tpu.vector_store %arg13[%c2, %c2_11, %c0_12], %19 {strides = array<i32>} : memref<8x8x48xf32, #tpu.memory_space<vmem>>, vector<1x4x48xf32>,
    %20 = vector.extract_strided_slice %15 {offsets = [4, 0], sizes = [4, 48], strides = [1, 1]} : vector<16x48xf32> to vector<4x48xf32>
    %c3 = arith.constant 3 : index
    %c2_13 = arith.constant 2 : index
    %c0_14 = arith.constant 0 : index
    %21 = vector.load %arg13[%c3, %c2_13, %c0_14] : memref<8x8x48xf32, #tpu.memory_space<vmem>>, vector<1x4x48xf32>
    %22 = vector.shape_cast %21 : vector<1x4x48xf32> to vector<4x48xf32>
    %23 = vector.shape_cast %20 : vector<4x48xf32> to vector<1x4x48xf32>
    tpu.vector_store %arg13[%c3, %c2_13, %c0_14], %23 {strides = array<i32>} : memref<8x8x48xf32, #tpu.memory_space<vmem>>, vector<1x4x48xf32>,
    %24 = vector.extract_strided_slice %15 {offsets = [8, 0], sizes = [4, 48], strides = [1, 1]} : vector<16x48xf32> to vector<4x48xf32>
    %c4 = arith.constant 4 : index
    %c2_15 = arith.constant 2 : index
    %c0_16 = arith.constant 0 : index
    %25 = vector.load %arg13[%c4, %c2_15, %c0_16] : memref<8x8x48xf32, #tpu.memory_space<vmem>>, vector<1x4x48xf32>
    %26 = vector.shape_cast %25 : vector<1x4x48xf32> to vector<4x48xf32>
    %27 = vector.shape_cast %24 : vector<4x48xf32> to vector<1x4x48xf32>
    tpu.vector_store %arg13[%c4, %c2_15, %c0_16], %27 {strides = array<i32>} : memref<8x8x48xf32, #tpu.memory_space<vmem>>, vector<1x4x48xf32>,
    %28 = vector.extract_strided_slice %15 {offsets = [12, 0], sizes = [4, 48], strides = [1, 1]} : vector<16x48xf32> to vector<4x48xf32>
    %c5 = arith.constant 5 : index
    %c2_17 = arith.constant 2 : index
    %c0_18 = arith.constant 0 : index
    %29 = vector.load %arg13[%c5, %c2_17, %c0_18] : memref<8x8x48xf32, #tpu.memory_space<vmem>>, vector<1x4x48xf32>
    %30 = vector.shape_cast %29 : vector<1x4x48xf32> to vector<4x48xf32>
    %31 = vector.shape_cast %28 : vector<4x48xf32> to vector<1x4x48xf32>
    tpu.vector_store %arg13[%c5, %c2_17, %c0_18], %31 {strides = array<i32>} : memref<8x8x48xf32, #tpu.memory_space<vmem>>, vector<1x4x48xf32>,
    %c0_19 = arith.constant 0 : index
    %c0_20 = arith.constant 0 : index
    %32 = vector.load %arg4[%c0_19, %c0_20] : memref<25x48xf32, #tpu.memory_space<vmem>>, vector<25x48xf32>
    %cst_21 = arith.constant 0.000000e+00 : f32
    %33 = vector.broadcast %cst_21 : f32 to vector<4x4x48xf32>
    %c0_22 = arith.constant 0 : index
    %c0_23 = arith.constant 0 : index
    %c0_24 = arith.constant 0 : index
    %34 = vector.load %arg13[%c0_22, %c0_23, %c0_24] : memref<8x8x48xf32, #tpu.memory_space<vmem>>, vector<8x4x48xf32>
    %35 = vector.extract_strided_slice %34 {offsets = [0, 0, 0], sizes = [4, 4, 48], strides = [1, 1, 1]} : vector<8x4x48xf32> to vector<4x4x48xf32>
    %36 = vector.extract_strided_slice %32 {offsets = [0, 0], sizes = [1, 48], strides = [1, 1]} : vector<25x48xf32> to vector<1x48xf32>
    %37 = vector.shape_cast %36 : vector<1x48xf32> to vector<48xf32>
    %38 = vector.shape_cast %37 : vector<48xf32> to vector<1x1x48xf32>
    %39 = vector.broadcast %38 : vector<1x1x48xf32> to vector<4x4x48xf32>
    %40 = arith.mulf %35, %39 : vector<4x4x48xf32>
    %41 = arith.addf %33, %40 : vector<4x4x48xf32>
    %42 = vector.extract_strided_slice %34 {offsets = [1, 0, 0], sizes = [4, 4, 48], strides = [1, 1, 1]} : vector<8x4x48xf32> to vector<4x4x48xf32>
    %43 = vector.extract_strided_slice %32 {offsets = [5, 0], sizes = [1, 48], strides = [1, 1]} : vector<25x48xf32> to vector<1x48xf32>
    %44 = vector.shape_cast %43 : vector<1x48xf32> to vector<48xf32>
    %45 = vector.shape_cast %44 : vector<48xf32> to vector<1x1x48xf32>
    %46 = vector.broadcast %45 : vector<1x1x48xf32> to vector<4x4x48xf32>
    %47 = arith.mulf %42, %46 : vector<4x4x48xf32>
    %48 = arith.addf %41, %47 : vector<4x4x48xf32>
    %49 = vector.extract_strided_slice %34 {offsets = [2, 0, 0], sizes = [4, 4, 48], strides = [1, 1, 1]} : vector<8x4x48xf32> to vector<4x4x48xf32>
    %50 = vector.extract_strided_slice %32 {offsets = [10, 0], sizes = [1, 48], strides = [1, 1]} : vector<25x48xf32> to vector<1x48xf32>
    %51 = vector.shape_cast %50 : vector<1x48xf32> to vector<48xf32>
    %52 = vector.shape_cast %51 : vector<48xf32> to vector<1x1x48xf32>
    %53 = vector.broadcast %52 : vector<1x1x48xf32> to vector<4x4x48xf32>
    %54 = arith.mulf %49, %53 : vector<4x4x48xf32>
    %55 = arith.addf %48, %54 : vector<4x4x48xf32>
    %56 = vector.extract_strided_slice %34 {offsets = [3, 0, 0], sizes = [4, 4, 48], strides = [1, 1, 1]} : vector<8x4x48xf32> to vector<4x4x48xf32>
    %57 = vector.extract_strided_slice %32 {offsets = [15, 0], sizes = [1, 48], strides = [1, 1]} : vector<25x48xf32> to vector<1x48xf32>
    %58 = vector.shape_cast %57 : vector<1x48xf32> to vector<48xf32>
    %59 = vector.shape_cast %58 : vector<48xf32> to vector<1x1x48xf32>
    %60 = vector.broadcast %59 : vector<1x1x48xf32> to vector<4x4x48xf32>
    %61 = arith.mulf %56, %60 : vector<4x4x48xf32>
    %62 = arith.addf %55, %61 : vector<4x4x48xf32>
    %63 = vector.extract_strided_slice %34 {offsets = [4, 0, 0], sizes = [4, 4, 48], strides = [1, 1, 1]} : vector<8x4x48xf32> to vector<4x4x48xf32>
    %64 = vector.extract_strided_slice %32 {offsets = [20, 0], sizes = [1, 48], strides = [1, 1]} : vector<25x48xf32> to vector<1x48xf32>
    %65 = vector.shape_cast %64 : vector<1x48xf32> to vector<48xf32>
    %66 = vector.shape_cast %65 : vector<48xf32> to vector<1x1x48xf32>
    %67 = vector.broadcast %66 : vector<1x1x48xf32> to vector<4x4x48xf32>
    %68 = arith.mulf %63, %67 : vector<4x4x48xf32>
    %69 = arith.addf %62, %68 : vector<4x4x48xf32>
    %c0_25 = arith.constant 0 : index
    %c1 = arith.constant 1 : index
    %c0_26 = arith.constant 0 : index
    %70 = vector.load %arg13[%c0_25, %c1, %c0_26] : memref<8x8x48xf32, #tpu.memory_space<vmem>>, vector<8x4x48xf32>
    %71 = vector.extract_strided_slice %70 {offsets = [0, 0, 0], sizes = [4, 4, 48], strides = [1, 1, 1]} : vector<8x4x48xf32> to vector<4x4x48xf32>
    %72 = vector.extract_strided_slice %32 {offsets = [1, 0], sizes = [1, 48], strides = [1, 1]} : vector<25x48xf32> to vector<1x48xf32>
    %73 = vector.shape_cast %72 : vector<1x48xf32> to vector<48xf32>
    %74 = vector.shape_cast %73 : vector<48xf32> to vector<1x1x48xf32>
    %75 = vector.broadcast %74 : vector<1x1x48xf32> to vector<4x4x48xf32>
    %76 = arith.mulf %71, %75 : vector<4x4x48xf32>
    %77 = arith.addf %69, %76 : vector<4x4x48xf32>
    %78 = vector.extract_strided_slice %70 {offsets = [1, 0, 0], sizes = [4, 4, 48], strides = [1, 1, 1]} : vector<8x4x48xf32> to vector<4x4x48xf32>
    %79 = vector.extract_strided_slice %32 {offsets = [6, 0], sizes = [1, 48], strides = [1, 1]} : vector<25x48xf32> to vector<1x48xf32>
    %80 = vector.shape_cast %79 : vector<1x48xf32> to vector<48xf32>
    %81 = vector.shape_cast %80 : vector<48xf32> to vector<1x1x48xf32>
    %82 = vector.broadcast %81 : vector<1x1x48xf32> to vector<4x4x48xf32>
    %83 = arith.mulf %78, %82 : vector<4x4x48xf32>
    %84 = arith.addf %77, %83 : vector<4x4x48xf32>
    %85 = vector.extract_strided_slice %70 {offsets = [2, 0, 0], sizes = [4, 4, 48], strides = [1, 1, 1]} : vector<8x4x48xf32> to vector<4x4x48xf32>
    %86 = vector.extract_strided_slice %32 {offsets = [11, 0], sizes = [1, 48], strides = [1, 1]} : vector<25x48xf32> to vector<1x48xf32>
    %87 = vector.shape_cast %86 : vector<1x48xf32> to vector<48xf32>
    %88 = vector.shape_cast %87 : vector<48xf32> to vector<1x1x48xf32>
    %89 = vector.broadcast %88 : vector<1x1x48xf32> to vector<4x4x48xf32>
    %90 = arith.mulf %85, %89 : vector<4x4x48xf32>
    %91 = arith.addf %84, %90 : vector<4x4x48xf32>
    %92 = vector.extract_strided_slice %70 {offsets = [3, 0, 0], sizes = [4, 4, 48], strides = [1, 1, 1]} : vector<8x4x48xf32> to vector<4x4x48xf32>
    %93 = vector.extract_strided_slice %32 {offsets = [16, 0], sizes = [1, 48], strides = [1, 1]} : vector<25x48xf32> to vector<1x48xf32>
    %94 = vector.shape_cast %93 : vector<1x48xf32> to vector<48xf32>
    %95 = vector.shape_cast %94 : vector<48xf32> to vector<1x1x48xf32>
    %96 = vector.broadcast %95 : vector<1x1x48xf32> to vector<4x4x48xf32>
    %97 = arith.mulf %92, %96 : vector<4x4x48xf32>
    %98 = arith.addf %91, %97 : vector<4x4x48xf32>
    %99 = vector.extract_strided_slice %70 {offsets = [4, 0, 0], sizes = [4, 4, 48], strides = [1, 1, 1]} : vector<8x4x48xf32> to vector<4x4x48xf32>
    %100 = vector.extract_strided_slice %32 {offsets = [21, 0], sizes = [1, 48], strides = [1, 1]} : vector<25x48xf32> to vector<1x48xf32>
    %101 = vector.shape_cast %100 : vector<1x48xf32> to vector<48xf32>
    %102 = vector.shape_cast %101 : vector<48xf32> to vector<1x1x48xf32>
    %103 = vector.broadcast %102 : vector<1x1x48xf32> to vector<4x4x48xf32>
    %104 = arith.mulf %99, %103 : vector<4x4x48xf32>
    %105 = arith.addf %98, %104 : vector<4x4x48xf32>
    %c0_27 = arith.constant 0 : index
    %c2_28 = arith.constant 2 : index
    %c0_29 = arith.constant 0 : index
    %106 = vector.load %arg13[%c0_27, %c2_28, %c0_29] : memref<8x8x48xf32, #tpu.memory_space<vmem>>, vector<8x4x48xf32>
    %107 = vector.extract_strided_slice %106 {offsets = [0, 0, 0], sizes = [4, 4, 48], strides = [1, 1, 1]} : vector<8x4x48xf32> to vector<4x4x48xf32>
    %108 = vector.extract_strided_slice %32 {offsets = [2, 0], sizes = [1, 48], strides = [1, 1]} : vector<25x48xf32> to vector<1x48xf32>
    %109 = vector.shape_cast %108 : vector<1x48xf32> to vector<48xf32>
    %110 = vector.shape_cast %109 : vector<48xf32> to vector<1x1x48xf32>
    %111 = vector.broadcast %110 : vector<1x1x48xf32> to vector<4x4x48xf32>
    %112 = arith.mulf %107, %111 : vector<4x4x48xf32>
    %113 = arith.addf %105, %112 : vector<4x4x48xf32>
    %114 = vector.extract_strided_slice %106 {offsets = [1, 0, 0], sizes = [4, 4, 48], strides = [1, 1, 1]} : vector<8x4x48xf32> to vector<4x4x48xf32>
    %115 = vector.extract_strided_slice %32 {offsets = [7, 0], sizes = [1, 48], strides = [1, 1]} : vector<25x48xf32> to vector<1x48xf32>
    %116 = vector.shape_cast %115 : vector<1x48xf32> to vector<48xf32>
    %117 = vector.shape_cast %116 : vector<48xf32> to vector<1x1x48xf32>
    %118 = vector.broadcast %117 : vector<1x1x48xf32> to vector<4x4x48xf32>
    %119 = arith.mulf %114, %118 : vector<4x4x48xf32>
    %120 = arith.addf %113, %119 : vector<4x4x48xf32>
    %121 = vector.extract_strided_slice %106 {offsets = [2, 0, 0], sizes = [4, 4, 48], strides = [1, 1, 1]} : vector<8x4x48xf32> to vector<4x4x48xf32>
    %122 = vector.extract_strided_slice %32 {offsets = [12, 0], sizes = [1, 48], strides = [1, 1]} : vector<25x48xf32> to vector<1x48xf32>
    %123 = vector.shape_cast %122 : vector<1x48xf32> to vector<48xf32>
    %124 = vector.shape_cast %123 : vector<48xf32> to vector<1x1x48xf32>
    %125 = vector.broadcast %124 : vector<1x1x48xf32> to vector<4x4x48xf32>
    %126 = arith.mulf %121, %125 : vector<4x4x48xf32>
    %127 = arith.addf %120, %126 : vector<4x4x48xf32>
    %128 = vector.extract_strided_slice %106 {offsets = [3, 0, 0], sizes = [4, 4, 48], strides = [1, 1, 1]} : vector<8x4x48xf32> to vector<4x4x48xf32>
    %129 = vector.extract_strided_slice %32 {offsets = [17, 0], sizes = [1, 48], strides = [1, 1]} : vector<25x48xf32> to vector<1x48xf32>
    %130 = vector.shape_cast %129 : vector<1x48xf32> to vector<48xf32>
    %131 = vector.shape_cast %130 : vector<48xf32> to vector<1x1x48xf32>
    %132 = vector.broadcast %131 : vector<1x1x48xf32> to vector<4x4x48xf32>
    %133 = arith.mulf %128, %132 : vector<4x4x48xf32>
    %134 = arith.addf %127, %133 : vector<4x4x48xf32>
    %135 = vector.extract_strided_slice %106 {offsets = [4, 0, 0], sizes = [4, 4, 48], strides = [1, 1, 1]} : vector<8x4x48xf32> to vector<4x4x48xf32>
    %136 = vector.extract_strided_slice %32 {offsets = [22, 0], sizes = [1, 48], strides = [1, 1]} : vector<25x48xf32> to vector<1x48xf32>
    %137 = vector.shape_cast %136 : vector<1x48xf32> to vector<48xf32>
    %138 = vector.shape_cast %137 : vector<48xf32> to vector<1x1x48xf32>
    %139 = vector.broadcast %138 : vector<1x1x48xf32> to vector<4x4x48xf32>
    %140 = arith.mulf %135, %139 : vector<4x4x48xf32>
    %141 = arith.addf %134, %140 : vector<4x4x48xf32>
    %c0_30 = arith.constant 0 : index
    %c3_31 = arith.constant 3 : index
    %c0_32 = arith.constant 0 : index
    %142 = vector.load %arg13[%c0_30, %c3_31, %c0_32] : memref<8x8x48xf32, #tpu.memory_space<vmem>>, vector<8x4x48xf32>
    %143 = vector.extract_strided_slice %142 {offsets = [0, 0, 0], sizes = [4, 4, 48], strides = [1, 1, 1]} : vector<8x4x48xf32> to vector<4x4x48xf32>
    %144 = vector.extract_strided_slice %32 {offsets = [3, 0], sizes = [1, 48], strides = [1, 1]} : vector<25x48xf32> to vector<1x48xf32>
    %145 = vector.shape_cast %144 : vector<1x48xf32> to vector<48xf32>
    %146 = vector.shape_cast %145 : vector<48xf32> to vector<1x1x48xf32>
    %147 = vector.broadcast %146 : vector<1x1x48xf32> to vector<4x4x48xf32>
    %148 = arith.mulf %143, %147 : vector<4x4x48xf32>
    %149 = arith.addf %141, %148 : vector<4x4x48xf32>
    %150 = vector.extract_strided_slice %142 {offsets = [1, 0, 0], sizes = [4, 4, 48], strides = [1, 1, 1]} : vector<8x4x48xf32> to vector<4x4x48xf32>
    %151 = vector.extract_strided_slice %32 {offsets = [8, 0], sizes = [1, 48], strides = [1, 1]} : vector<25x48xf32> to vector<1x48xf32>
    %152 = vector.shape_cast %151 : vector<1x48xf32> to vector<48xf32>
    %153 = vector.shape_cast %152 : vector<48xf32> to vector<1x1x48xf32>
    %154 = vector.broadcast %153 : vector<1x1x48xf32> to vector<4x4x48xf32>
    %155 = arith.mulf %150, %154 : vector<4x4x48xf32>
    %156 = arith.addf %149, %155 : vector<4x4x48xf32>
    %157 = vector.extract_strided_slice %142 {offsets = [2, 0, 0], sizes = [4, 4, 48], strides = [1, 1, 1]} : vector<8x4x48xf32> to vector<4x4x48xf32>
    %158 = vector.extract_strided_slice %32 {offsets = [13, 0], sizes = [1, 48], strides = [1, 1]} : vector<25x48xf32> to vector<1x48xf32>
    %159 = vector.shape_cast %158 : vector<1x48xf32> to vector<48xf32>
    %160 = vector.shape_cast %159 : vector<48xf32> to vector<1x1x48xf32>
    %161 = vector.broadcast %160 : vector<1x1x48xf32> to vector<4x4x48xf32>
    %162 = arith.mulf %157, %161 : vector<4x4x48xf32>
    %163 = arith.addf %156, %162 : vector<4x4x48xf32>
    %164 = vector.extract_strided_slice %142 {offsets = [3, 0, 0], sizes = [4, 4, 48], strides = [1, 1, 1]} : vector<8x4x48xf32> to vector<4x4x48xf32>
    %165 = vector.extract_strided_slice %32 {offsets = [18, 0], sizes = [1, 48], strides = [1, 1]} : vector<25x48xf32> to vector<1x48xf32>
    %166 = vector.shape_cast %165 : vector<1x48xf32> to vector<48xf32>
    %167 = vector.shape_cast %166 : vector<48xf32> to vector<1x1x48xf32>
    %168 = vector.broadcast %167 : vector<1x1x48xf32> to vector<4x4x48xf32>
    %169 = arith.mulf %164, %168 : vector<4x4x48xf32>
    %170 = arith.addf %163, %169 : vector<4x4x48xf32>
    %171 = vector.extract_strided_slice %142 {offsets = [4, 0, 0], sizes = [4, 4, 48], strides = [1, 1, 1]} : vector<8x4x48xf32> to vector<4x4x48xf32>
    %172 = vector.extract_strided_slice %32 {offsets = [23, 0], sizes = [1, 48], strides = [1, 1]} : vector<25x48xf32> to vector<1x48xf32>
    %173 = vector.shape_cast %172 : vector<1x48xf32> to vector<48xf32>
    %174 = vector.shape_cast %173 : vector<48xf32> to vector<1x1x48xf32>
    %175 = vector.broadcast %174 : vector<1x1x48xf32> to vector<4x4x48xf32>
    %176 = arith.mulf %171, %175 : vector<4x4x48xf32>
    %177 = arith.addf %170, %176 : vector<4x4x48xf32>
    %c0_33 = arith.constant 0 : index
    %c4_34 = arith.constant 4 : index
    %c0_35 = arith.constant 0 : index
    %178 = vector.load %arg13[%c0_33, %c4_34, %c0_35] : memref<8x8x48xf32, #tpu.memory_space<vmem>>, vector<8x4x48xf32>
    %179 = vector.extract_strided_slice %178 {offsets = [0, 0, 0], sizes = [4, 4, 48], strides = [1, 1, 1]} : vector<8x4x48xf32> to vector<4x4x48xf32>
    %180 = vector.extract_strided_slice %32 {offsets = [4, 0], sizes = [1, 48], strides = [1, 1]} : vector<25x48xf32> to vector<1x48xf32>
    %181 = vector.shape_cast %180 : vector<1x48xf32> to vector<48xf32>
    %182 = vector.shape_cast %181 : vector<48xf32> to vector<1x1x48xf32>
    %183 = vector.broadcast %182 : vector<1x1x48xf32> to vector<4x4x48xf32>
    %184 = arith.mulf %179, %183 : vector<4x4x48xf32>
    %185 = arith.addf %177, %184 : vector<4x4x48xf32>
    %186 = vector.extract_strided_slice %178 {offsets = [1, 0, 0], sizes = [4, 4, 48], strides = [1, 1, 1]} : vector<8x4x48xf32> to vector<4x4x48xf32>
    %187 = vector.extract_strided_slice %32 {offsets = [9, 0], sizes = [1, 48], strides = [1, 1]} : vector<25x48xf32> to vector<1x48xf32>
    %188 = vector.shape_cast %187 : vector<1x48xf32> to vector<48xf32>
    %189 = vector.shape_cast %188 : vector<48xf32> to vector<1x1x48xf32>
    %190 = vector.broadcast %189 : vector<1x1x48xf32> to vector<4x4x48xf32>
    %191 = arith.mulf %186, %190 : vector<4x4x48xf32>
    %192 = arith.addf %185, %191 : vector<4x4x48xf32>
    %193 = vector.extract_strided_slice %178 {offsets = [2, 0, 0], sizes = [4, 4, 48], strides = [1, 1, 1]} : vector<8x4x48xf32> to vector<4x4x48xf32>
    %194 = vector.extract_strided_slice %32 {offsets = [14, 0], sizes = [1, 48], strides = [1, 1]} : vector<25x48xf32> to vector<1x48xf32>
    %195 = vector.shape_cast %194 : vector<1x48xf32> to vector<48xf32>
    %196 = vector.shape_cast %195 : vector<48xf32> to vector<1x1x48xf32>
    %197 = vector.broadcast %196 : vector<1x1x48xf32> to vector<4x4x48xf32>
    %198 = arith.mulf %193, %197 : vector<4x4x48xf32>
    %199 = arith.addf %192, %198 : vector<4x4x48xf32>
    %200 = vector.extract_strided_slice %178 {offsets = [3, 0, 0], sizes = [4, 4, 48], strides = [1, 1, 1]} : vector<8x4x48xf32> to vector<4x4x48xf32>
    %201 = vector.extract_strided_slice %32 {offsets = [19, 0], sizes = [1, 48], strides = [1, 1]} : vector<25x48xf32> to vector<1x48xf32>
    %202 = vector.shape_cast %201 : vector<1x48xf32> to vector<48xf32>
    %203 = vector.shape_cast %202 : vector<48xf32> to vector<1x1x48xf32>
    %204 = vector.broadcast %203 : vector<1x1x48xf32> to vector<4x4x48xf32>
    %205 = arith.mulf %200, %204 : vector<4x4x48xf32>
    %206 = arith.addf %199, %205 : vector<4x4x48xf32>
    %207 = vector.extract_strided_slice %178 {offsets = [4, 0, 0], sizes = [4, 4, 48], strides = [1, 1, 1]} : vector<8x4x48xf32> to vector<4x4x48xf32>
    %208 = vector.extract_strided_slice %32 {offsets = [24, 0], sizes = [1, 48], strides = [1, 1]} : vector<25x48xf32> to vector<1x48xf32>
    %209 = vector.shape_cast %208 : vector<1x48xf32> to vector<48xf32>
    %210 = vector.shape_cast %209 : vector<48xf32> to vector<1x1x48xf32>
    %211 = vector.broadcast %210 : vector<1x1x48xf32> to vector<4x4x48xf32>
    %212 = arith.mulf %207, %211 : vector<4x4x48xf32>
    %213 = arith.addf %206, %212 : vector<4x4x48xf32>
    %c0_36 = arith.constant 0 : index
    %c0_37 = arith.constant 0 : index
    %214 = vector.load %arg5[%c0_36, %c0_37] : memref<1x48xf32, #tpu.memory_space<vmem>>, vector<1x48xf32>
    %215 = vector.shape_cast %214 : vector<1x48xf32> to vector<1x1x48xf32>
    %216 = vector.broadcast %215 : vector<1x1x48xf32> to vector<4x4x48xf32>
    %217 = arith.addf %213, %216 : vector<4x4x48xf32>
    %218 = arith.negf %217 : vector<4x4x48xf32>
    %219 = math.exp %218 : vector<4x4x48xf32>
    %cst_38 = arith.constant 1.000000e+00 : f32
    %220 = vector.broadcast %cst_38 : f32 to vector<4x4x48xf32>
    %221 = arith.addf %220, %219 : vector<4x4x48xf32>
    %222 = arith.divf %220, %221 : vector<4x4x48xf32>
    %223 = arith.mulf %217, %222 : vector<4x4x48xf32>
    %224 = vector.extract_strided_slice %223 {offsets = [0, 0, 0], sizes = [1, 4, 48], strides = [1, 1, 1]} : vector<4x4x48xf32> to vector<1x4x48xf32>
    %225 = vector.shape_cast %224 : vector<1x4x48xf32> to vector<4x48xf32>
    %c0_39 = arith.constant 0 : index
    %c0_40 = arith.constant 0 : index
    %226 = vector.load %arg14[%c0_39, %c0_40] : memref<16x48xf32, #tpu.memory_space<vmem>>, vector<4x48xf32>
    tpu.vector_store %arg14[%c0_39, %c0_40], %225 {strides = array<i32>} : memref<16x48xf32, #tpu.memory_space<vmem>>, vector<4x48xf32>,
    %227 = vector.extract_strided_slice %223 {offsets = [1, 0, 0], sizes = [1, 4, 48], strides = [1, 1, 1]} : vector<4x4x48xf32> to vector<1x4x48xf32>
    %228 = vector.shape_cast %227 : vector<1x4x48xf32> to vector<4x48xf32>
    %c4_41 = arith.constant 4 : index
    %c0_42 = arith.constant 0 : index
    %229 = vector.load %arg14[%c4_41, %c0_42] : memref<16x48xf32, #tpu.memory_space<vmem>>, vector<4x48xf32>
    tpu.vector_store %arg14[%c4_41, %c0_42], %228 {strides = array<i32>} : memref<16x48xf32, #tpu.memory_space<vmem>>, vector<4x48xf32>,
    %230 = vector.extract_strided_slice %223 {offsets = [2, 0, 0], sizes = [1, 4, 48], strides = [1, 1, 1]} : vector<4x4x48xf32> to vector<1x4x48xf32>
    %231 = vector.shape_cast %230 : vector<1x4x48xf32> to vector<4x48xf32>
    %c8 = arith.constant 8 : index
    %c0_43 = arith.constant 0 : index
    %232 = vector.load %arg14[%c8, %c0_43] : memref<16x48xf32, #tpu.memory_space<vmem>>, vector<4x48xf32>
    tpu.vector_store %arg14[%c8, %c0_43], %231 {strides = array<i32>} : memref<16x48xf32, #tpu.memory_space<vmem>>, vector<4x48xf32>,
    %233 = vector.extract_strided_slice %223 {offsets = [3, 0, 0], sizes = [1, 4, 48], strides = [1, 1, 1]} : vector<4x4x48xf32> to vector<1x4x48xf32>
    %234 = vector.shape_cast %233 : vector<1x4x48xf32> to vector<4x48xf32>
    %c12 = arith.constant 12 : index
    %c0_44 = arith.constant 0 : index
    %235 = vector.load %arg14[%c12, %c0_44] : memref<16x48xf32, #tpu.memory_space<vmem>>, vector<4x48xf32>
    tpu.vector_store %arg14[%c12, %c0_44], %234 {strides = array<i32>} : memref<16x48xf32, #tpu.memory_space<vmem>>, vector<4x48xf32>,
    %c0_45 = arith.constant 0 : index
    %c0_46 = arith.constant 0 : index
    %236 = vector.load %arg14[%c0_45, %c0_46] : memref<16x48xf32, #tpu.memory_space<vmem>>, vector<16x48xf32>
    %cst_47 = arith.constant dense<0.000000e+00> : vector<48xf32>
    %237 = vector.multi_reduction <add>, %236, %cst_47 [0] : vector<16x48xf32> to vector<48xf32>
    %238 = vector.shape_cast %237 : vector<48xf32> to vector<1x48xf32>
    %cst_48 = arith.constant 6.250000e-02 : f32
    %239 = vector.broadcast %cst_48 : f32 to vector<1x48xf32>
    %240 = arith.mulf %238, %239 : vector<1x48xf32>
    %c0_49 = arith.constant 0 : index
    %c0_50 = arith.constant 0 : index
    %241 = vector.load %arg6[%c0_49, %c0_50] : memref<48x2xf32, #tpu.memory_space<vmem>>, vector<48x2xf32>
    %cst_51 = arith.constant dense<0.000000e+00> : vector<1x2xf32>
    %242 = tpu.matmul %240, %241, %cst_51 {dimension_numbers = #tpu.dot_dimension_numbers<[1], [0], [0], [1], [0, 0, 1, 1], [], []>} : vector<1x48xf32>, vector<48x2xf32>, vector<1x2xf32> -> vector<1x2xf32>
    %c0_52 = arith.constant 0 : index
    %c0_53 = arith.constant 0 : index
    %243 = vector.load %arg7[%c0_52, %c0_53] : memref<1x2xf32, #tpu.memory_space<vmem>>, vector<1x2xf32>
    %244 = arith.addf %242, %243 : vector<1x2xf32>
    %245 = arith.negf %244 : vector<1x2xf32>
    %246 = math.exp %245 : vector<1x2xf32>
    %cst_54 = arith.constant 1.000000e+00 : f32
    %247 = vector.broadcast %cst_54 : f32 to vector<1x2xf32>
    %248 = arith.addf %247, %246 : vector<1x2xf32>
    %249 = arith.divf %247, %248 : vector<1x2xf32>
    %250 = arith.mulf %244, %249 : vector<1x2xf32>
    %c0_55 = arith.constant 0 : index
    %c0_56 = arith.constant 0 : index
    %251 = vector.load %arg8[%c0_55, %c0_56] : memref<2x48xf32, #tpu.memory_space<vmem>>, vector<2x48xf32>
    %cst_57 = arith.constant dense<0.000000e+00> : vector<1x48xf32>
    %252 = tpu.matmul %250, %251, %cst_57 {dimension_numbers = #tpu.dot_dimension_numbers<[1], [0], [0], [1], [0, 0, 1, 1], [], []>} : vector<1x2xf32>, vector<2x48xf32>, vector<1x48xf32> -> vector<1x48xf32>
    %c0_58 = arith.constant 0 : index
    %c0_59 = arith.constant 0 : index
    %253 = vector.load %arg9[%c0_58, %c0_59] : memref<1x48xf32, #tpu.memory_space<vmem>>, vector<1x48xf32>
    %254 = arith.addf %252, %253 : vector<1x48xf32>
    %255 = arith.negf %254 : vector<1x48xf32>
    %256 = math.exp %255 : vector<1x48xf32>
    %cst_60 = arith.constant 1.000000e+00 : f32
    %257 = vector.broadcast %cst_60 : f32 to vector<1x48xf32>
    %258 = arith.addf %257, %256 : vector<1x48xf32>
    %259 = arith.divf %257, %258 : vector<1x48xf32>
    %260 = vector.broadcast %259 : vector<1x48xf32> to vector<16x48xf32>
    %261 = arith.mulf %236, %260 : vector<16x48xf32>
    %262 = arith.truncf %261 : vector<16x48xf32> to vector<16x48xbf16>
    %c0_61 = arith.constant 0 : index
    %c0_62 = arith.constant 0 : index
    %263 = vector.load %arg10[%c0_61, %c0_62] : memref<48x8xbf16, #tpu.memory_space<vmem>>, vector<48x8xbf16>
    %cst_63 = arith.constant dense<0.000000e+00> : vector<16x8xf32>
    %264 = tpu.matmul %262, %263, %cst_63 {dimension_numbers = #tpu.dot_dimension_numbers<[1], [0], [0], [1], [0, 0, 1, 1], [], []>} : vector<16x48xbf16>, vector<48x8xbf16>, vector<16x8xf32> -> vector<16x8xf32>
    %c0_64 = arith.constant 0 : index
    %c0_65 = arith.constant 0 : index
    %265 = vector.load %arg11[%c0_64, %c0_65] : memref<1x8xf32, #tpu.memory_space<vmem>>, vector<1x8xf32>
    %266 = vector.broadcast %265 : vector<1x8xf32> to vector<16x8xf32>
    %267 = arith.addf %264, %266 : vector<16x8xf32>
    %268 = arith.addf %267, %3 : vector<16x8xf32>
    %c0_66 = arith.constant 0 : index
    %c0_67 = arith.constant 0 : index
    %c0_68 = arith.constant 0 : index
    %269 = vector.load %arg12[%c0_66, %c0_67, %c0_68] : memref<1x16x8xf32, #tpu.memory_space<vmem>>, vector<1x16x8xf32>
    %270 = vector.shape_cast %269 : vector<1x16x8xf32> to vector<16x8xf32>
    %271 = vector.shape_cast %268 : vector<16x8xf32> to vector<1x16x8xf32>
    tpu.vector_store %arg12[%c0_66, %c0_67, %c0_68], %271 {strides = array<i32>} : memref<1x16x8xf32, #tpu.memory_space<vmem>>, vector<1x16x8xf32>,
    return
  }
  func.func @transform_0(%arg0: i32) -> (i32, i32, i32) {
    %c0_i32 = arith.constant 0 : i32
    %c0_i32_0 = arith.constant 0 : i32
    %c0_i32_1 = arith.constant 0 : i32
    return %arg0, %c0_i32, %c0_i32_0 : i32, i32, i32
  }
  func.func @transform_1(%arg0: i32) -> (i32, i32) {
    %c0_i32 = arith.constant 0 : i32
    %c0_i32_0 = arith.constant 0 : i32
    %c0_i32_1 = arith.constant 0 : i32
    return %c0_i32, %c0_i32_0 : i32, i32
  }
  func.func @transform_2(%arg0: i32) -> (i32, i32) {
    %c0_i32 = arith.constant 0 : i32
    %c0_i32_0 = arith.constant 0 : i32
    %c0_i32_1 = arith.constant 0 : i32
    return %c0_i32, %c0_i32_0 : i32, i32
  }
  func.func @transform_3(%arg0: i32) -> (i32, i32) {
    %c0_i32 = arith.constant 0 : i32
    %c0_i32_0 = arith.constant 0 : i32
    %c0_i32_1 = arith.constant 0 : i32
    return %c0_i32, %c0_i32_0 : i32, i32
  }
  func.func @transform_4(%arg0: i32) -> (i32, i32) {
    %c0_i32 = arith.constant 0 : i32
    %c0_i32_0 = arith.constant 0 : i32
    %c0_i32_1 = arith.constant 0 : i32
    return %c0_i32, %c0_i32_0 : i32, i32
  }
  func.func @transform_5(%arg0: i32) -> (i32, i32) {
    %c0_i32 = arith.constant 0 : i32
    %c0_i32_0 = arith.constant 0 : i32
    %c0_i32_1 = arith.constant 0 : i32
    return %c0_i32, %c0_i32_0 : i32, i32
  }
  func.func @transform_6(%arg0: i32) -> (i32, i32) {
    %c0_i32 = arith.constant 0 : i32
    %c0_i32_0 = arith.constant 0 : i32
    %c0_i32_1 = arith.constant 0 : i32
    return %c0_i32, %c0_i32_0 : i32, i32
  }
  func.func @transform_7(%arg0: i32) -> (i32, i32) {
    %c0_i32 = arith.constant 0 : i32
    %c0_i32_0 = arith.constant 0 : i32
    %c0_i32_1 = arith.constant 0 : i32
    return %c0_i32, %c0_i32_0 : i32, i32
  }
  func.func @transform_8(%arg0: i32) -> (i32, i32) {
    %c0_i32 = arith.constant 0 : i32
    %c0_i32_0 = arith.constant 0 : i32
    %c0_i32_1 = arith.constant 0 : i32
    return %c0_i32, %c0_i32_0 : i32, i32
  }
  func.func @transform_9(%arg0: i32) -> (i32, i32) {
    %c0_i32 = arith.constant 0 : i32
    %c0_i32_0 = arith.constant 0 : i32
    %c0_i32_1 = arith.constant 0 : i32
    return %c0_i32, %c0_i32_0 : i32, i32
  }
  func.func @transform_10(%arg0: i32) -> (i32, i32) {
    %c0_i32 = arith.constant 0 : i32
    %c0_i32_0 = arith.constant 0 : i32
    %c0_i32_1 = arith.constant 0 : i32
    return %c0_i32, %c0_i32_0 : i32, i32
  }
  func.func @transform_11(%arg0: i32) -> (i32, i32, i32) {
    %c0_i32 = arith.constant 0 : i32
    %c0_i32_0 = arith.constant 0 : i32
    %c0_i32_1 = arith.constant 0 : i32
    return %arg0, %c0_i32, %c0_i32_0 : i32, i32, i32
  }
}

module attributes {stable_mosaic.version = 11 : i64} {
  func.func @_head_kernel(%arg0: i32, %arg1: memref<1x16x8xf32, #tpu.memory_space<vmem>>, %arg2: memref<8x320xbf16, #tpu.memory_space<vmem>>, %arg3: memref<1x320xf32, #tpu.memory_space<vmem>>, %arg4: memref<1x1x320xf32, #tpu.memory_space<vmem>>) attributes {dimension_semantics = [#tpu.dimension_semantics<parallel>], iteration_bounds = array<i64: 2>, scalar_prefetch = 0 : i64, scratch_operands = 0 : i64, tpu.core_type = #tpu.core_type<tc>, window_params = [{transform_indices = @transform_0, window_bounds = array<i64: 1, 16, 8>}, {pipeline_mode = #tpu.pipeline_mode<synchronous>, transform_indices = @transform_1, window_bounds = array<i64: 8, 320>}, {pipeline_mode = #tpu.pipeline_mode<synchronous>, transform_indices = @transform_2, window_bounds = array<i64: 1, 320>}, {transform_indices = @transform_3, window_bounds = array<i64: 1, 1, 320>}]} {
    %c0 = arith.constant 0 : index
    %c0_0 = arith.constant 0 : index
    %c0_1 = arith.constant 0 : index
    %0 = vector.load %arg1[%c0, %c0_0, %c0_1] : memref<1x16x8xf32, #tpu.memory_space<vmem>>, vector<1x16x8xf32>
    %1 = vector.shape_cast %0 : vector<1x16x8xf32> to vector<16x8xf32>
    %2 = arith.truncf %1 : vector<16x8xf32> to vector<16x8xbf16>
    %c0_2 = arith.constant 0 : index
    %c0_3 = arith.constant 0 : index
    %3 = vector.load %arg2[%c0_2, %c0_3] : memref<8x320xbf16, #tpu.memory_space<vmem>>, vector<8x320xbf16>
    %cst = arith.constant dense<0.000000e+00> : vector<16x320xf32>
    %4 = tpu.matmul %2, %3, %cst {dimension_numbers = #tpu.dot_dimension_numbers<[1], [0], [0], [1], [0, 0, 1, 1], [], []>} : vector<16x8xbf16>, vector<8x320xbf16>, vector<16x320xf32> -> vector<16x320xf32>
    %c0_4 = arith.constant 0 : index
    %c0_5 = arith.constant 0 : index
    %5 = vector.load %arg3[%c0_4, %c0_5] : memref<1x320xf32, #tpu.memory_space<vmem>>, vector<1x320xf32>
    %6 = vector.broadcast %5 : vector<1x320xf32> to vector<16x320xf32>
    %7 = arith.addf %4, %6 : vector<16x320xf32>
    %8 = arith.negf %7 : vector<16x320xf32>
    %9 = math.exp %8 : vector<16x320xf32>
    %cst_6 = arith.constant 1.000000e+00 : f32
    %10 = vector.broadcast %cst_6 : f32 to vector<16x320xf32>
    %11 = arith.addf %10, %9 : vector<16x320xf32>
    %12 = arith.divf %10, %11 : vector<16x320xf32>
    %13 = arith.mulf %7, %12 : vector<16x320xf32>
    %cst_7 = arith.constant dense<0.000000e+00> : vector<320xf32>
    %14 = vector.multi_reduction <add>, %13, %cst_7 [0] : vector<16x320xf32> to vector<320xf32>
    %15 = vector.shape_cast %14 : vector<320xf32> to vector<1x320xf32>
    %cst_8 = arith.constant 6.250000e-02 : f32
    %16 = vector.broadcast %cst_8 : f32 to vector<1x320xf32>
    %17 = arith.mulf %15, %16 : vector<1x320xf32>
    %c0_9 = arith.constant 0 : index
    %c0_10 = arith.constant 0 : index
    %c0_11 = arith.constant 0 : index
    %18 = vector.load %arg4[%c0_9, %c0_10, %c0_11] : memref<1x1x320xf32, #tpu.memory_space<vmem>>, vector<1x1x320xf32>
    %19 = vector.shape_cast %18 : vector<1x1x320xf32> to vector<1x320xf32>
    %20 = vector.shape_cast %17 : vector<1x320xf32> to vector<1x1x320xf32>
    tpu.vector_store %arg4[%c0_9, %c0_10, %c0_11], %20 {strides = array<i32>} : memref<1x1x320xf32, #tpu.memory_space<vmem>>, vector<1x1x320xf32>,
    return
  }
  func.func @transform_0(%arg0: i32) -> (i32, i32, i32) {
    %c0_i32 = arith.constant 0 : i32
    %c0_i32_0 = arith.constant 0 : i32
    %c0_i32_1 = arith.constant 0 : i32
    return %arg0, %c0_i32, %c0_i32_0 : i32, i32, i32
  }
  func.func @transform_1(%arg0: i32) -> (i32, i32) {
    %c0_i32 = arith.constant 0 : i32
    %c0_i32_0 = arith.constant 0 : i32
    %c0_i32_1 = arith.constant 0 : i32
    return %c0_i32, %c0_i32_0 : i32, i32
  }
  func.func @transform_2(%arg0: i32) -> (i32, i32) {
    %c0_i32 = arith.constant 0 : i32
    %c0_i32_0 = arith.constant 0 : i32
    %c0_i32_1 = arith.constant 0 : i32
    return %c0_i32, %c0_i32_0 : i32, i32
  }
  func.func @transform_3(%arg0: i32) -> (i32, i32, i32) {
    %c0_i32 = arith.constant 0 : i32
    %c0_i32_0 = arith.constant 0 : i32
    %c0_i32_1 = arith.constant 0 : i32
    return %arg0, %c0_i32, %c0_i32_0 : i32, i32, i32
  }
}

</mosaic_0001>

<llo_original>
// kernel: _lambda_.6
$region0: #{_lambda_.6}
  #allocation0 [shape = 'u32[]', space=smem, size = 0x4, offset = 0x4, fixed_abs, tag = 'smem constant byte address 0x4 - core index']
  #allocation1 [shape = 'u32[144,128]{1,0:T(1,128)}', space=vmem, size = 0x12000, scoped, tag = 'internal scratch']
  #allocation2 [shape = 'f32[10,10,8]{2,1,0:T(8,128)}', space=vmem, size = 0x14000, scoped, tag = 'scratch operand']
  #allocation3 [shape = 'f32[64,8]{1,0:T(8,128)}', space=vmem, size = 0x8000, scoped, tag = 'scratch operand']
  %s0 = inlined_call_operand.vmem [shape: f32[2,64,8], index: 0, kind: input, shape index: {}]
  %s1 = inlined_call_operand.vmem [shape: f32[9,8], index: 1, kind: input, shape index: {}]
  %s2 = inlined_call_operand.vmem [shape: f32[1,8], index: 2, kind: input, shape index: {}]
  %s3 = inlined_call_operand.vmem [shape: f32[8,2], index: 3, kind: input, shape index: {}]
  %s4 = inlined_call_operand.vmem [shape: f32[1,2], index: 4, kind: input, shape index: {}]
  %s5 = inlined_call_operand.vmem [shape: f32[2,8], index: 5, kind: input, shape index: {}]
  %s6 = inlined_call_operand.vmem [shape: f32[1,8], index: 6, kind: input, shape index: {}]
  %s7 = inlined_call_operand.vmem [shape: bf16[8,8], index: 7, kind: input, shape index: {}]
  %s8 = inlined_call_operand.vmem [shape: f32[1,8], index: 8, kind: input, shape index: {}]
  %s9 = inlined_call_operand.vmem [shape: f32[2,64,8], index: 9, kind: output, shape index: {}]
  %s10 = sld [smem:[#allocation0]]
  $region69: #{_lambda_.6} parent=0
    _
  %s12 = ssub.s32 1, %s10
  %s13 = scalar_select 0, %s12, %s10
  loop: start=0, step=1, limit=4
  $region2: #{_lambda_.6} parent=0 // loop_pre_header
    _
  $region3: #{_lambda_.6} parent=0 // loop_header
    %s15 = sphi 0, %s19
    %p16 = scmp.ge.s32.totalorder %s15, 4
    %s25 = sphi 0, %s27
    %s28 = sphi 0, %s25
    %s29 = sphi 0, %s28
    %s45 = sphi 0, %s29
    %s49 = sphi 0, %s49
    %s51 = sphi 0, %s49
    %s52 = sphi 0, %s51
    %s66 = sphi 0, %s52
    %s70 = sphi 0, %s70
    %s72 = sphi 0, %s70
    %s73 = sphi 0, %s72
    %s87 = sphi 0, %s73
    %s91 = sphi 0, %s91
    %s93 = sphi 0, %s91
    %s94 = sphi 0, %s93
    %s108 = sphi 0, %s94
    %s112 = sphi 0, %s112
    %s114 = sphi 0, %s112
    %s115 = sphi 0, %s114
    %s129 = sphi 0, %s115
    %s133 = sphi 0, %s133
    %s135 = sphi 0, %s133
    %s136 = sphi 0, %s135
    %s150 = sphi 0, %s136
    %s154 = sphi 0, %s154
    %s156 = sphi 0, %s154
    %s157 = sphi 0, %s156
    %s171 = sphi 0, %s157
    %s175 = sphi 0, %s175
    %s177 = sphi 0, %s175
    %s178 = sphi 0, %s177
    %s192 = sphi 0, %s178
    %s196 = sphi 0, %s196
    %s198 = sphi 0, %s196
    %s199 = sphi 0, %s198
    %s213 = sphi 0, %s199
    %s219 = sphi 0, %s221
    %s222 = sphi 0, %s219
    %s223 = sphi 0, %s222
    %s239 = sphi 0, %s223
  $region4: #{_lambda_.6} parent=0 // loop_header_branch
    %18 = sbr.rel (%p16) target = $region8
  $region5: #{_lambda_.6} parent=0 // loop_body
    %s20 = ssub.s32 %s15, 1
    %s21 = ssub.s32 %s15, 2
    %s22 = sadd.s32 %s15, 1
    %s23 = ssub.s32 %s15, %s22
    %p24 = scmp.eq.s32.totalorder %s23, 0
    %s26 = sadd.s32 %s25, 1
    %s27 = scalar_select %p24, %s25, %s26
    %p30 = pneg %p24
    %p31 = scmp.eq.s32.totalorder %s15, 1
    %p32 = por %p30, %p31
    %p33 = scmp.ne.s32.totalorder %s25, %s28
    %p34 = scmp.eq.s32.totalorder %s15, 0
    %p35 = por %p33, %p34
    %p36 = scmp.ne.s32.totalorder %s25, %s28
    %p37 = scmp.eq.s32.totalorder %s20, 1
    %p38 = por %p36, %p37
    %p39 = scmp.ne.s32.totalorder %s28, %s29
    %p40 = scmp.eq.s32.totalorder %s20, 0
    %p41 = por %p39, %p40
    %p42 = scmp.ne.s32.totalorder %s28, %s29
    %p43 = scmp.eq.s32.totalorder %s21, 1
    %p44 = por %p42, %p43
    %p46 = scmp.ne.s32.totalorder %s29, %s45
    %p47 = scmp.eq.s32.totalorder %s21, 0
    %p48 = por %p46, %p47
    %s50 = sadd.s32 %s49, 1
    %p53 = scmp.eq.s32.totalorder %s15, 1
    %p54 = scmp.ne.s32.totalorder %s49, %s51
    %p55 = scmp.eq.s32.totalorder %s15, 0
    %p56 = por %p54, %p55
    %p57 = scmp.ne.s32.totalorder %s49, %s51
    %p58 = scmp.eq.s32.totalorder %s20, 1
    %p59 = por %p57, %p58
    %p60 = scmp.ne.s32.totalorder %s51, %s52
    %p61 = scmp.eq.s32.totalorder %s20, 0
    %p62 = por %p60, %p61
    %p63 = scmp.ne.s32.totalorder %s51, %s52
    %p64 = scmp.eq.s32.totalorder %s21, 1
    %p65 = por %p63, %p64
    %p67 = scmp.ne.s32.totalorder %s52, %s66
    %p68 = scmp.eq.s32.totalorder %s21, 0
    %p69 = por %p67, %p68
    %s71 = sadd.s32 %s70, 1
    %p74 = scmp.eq.s32.totalorder %s15, 1
    %p75 = scmp.ne.s32.totalorder %s70, %s72
    %p76 = scmp.eq.s32.totalorder %s15, 0
    %p77 = por %p75, %p76
    %p78 = scmp.ne.s32.totalorder %s70, %s72
    %p79 = scmp.eq.s32.totalorder %s20, 1
    %p80 = por %p78, %p79
    %p81 = scmp.ne.s32.totalorder %s72, %s73
    %p82 = scmp.eq.s32.totalorder %s20, 0
    %p83 = por %p81, %p82
    %p84 = scmp.ne.s32.totalorder %s72, %s73
    %p85 = scmp.eq.s32.totalorder %s21, 1
    %p86 = por %p84, %p85
    %p88 = scmp.ne.s32.totalorder %s73, %s87
    %p89 = scmp.eq.s32.totalorder %s21, 0
    %p90 = por %p88, %p89
    %s92 = sadd.s32 %s91, 1
    %p95 = scmp.eq.s32.totalorder %s15, 1
    %p96 = scmp.ne.s32.totalorder %s91, %s93
    %p97 = scmp.eq.s32.totalorder %s15, 0
    %p98 = por %p96, %p97
    %p99 = scmp.ne.s32.totalorder %s91, %s93
    %p100 = scmp.eq.s32.totalorder %s20, 1
    %p101 = por %p99, %p100
    %p102 = scmp.ne.s32.totalorder %s93, %s94
    %p103 = scmp.eq.s32.totalorder %s20, 0
    %p104 = por %p102, %p103
    %p105 = scmp.ne.s32.totalorder %s93, %s94
    %p106 = scmp.eq.s32.totalorder %s21, 1
    %p107 = por %p105, %p106
    %p109 = scmp.ne.s32.totalorder %s94, %s108
    %p110 = scmp.eq.s32.totalorder %s21, 0
    %p111 = por %p109, %p110
    %s113 = sadd.s32 %s112, 1
    %p116 = scmp.eq.s32.totalorder %s15, 1
    %p117 = scmp.ne.s32.totalorder %s112, %s114
    %p118 = scmp.eq.s32.totalorder %s15, 0
    %p119 = por %p117, %p118
    %p120 = scmp.ne.s32.totalorder %s112, %s114
    %p121 = scmp.eq.s32.totalorder %s20, 1
    %p122 = por %p120, %p121
    %p123 = scmp.ne.s32.totalorder %s114, %s115
    %p124 = scmp.eq.s32.totalorder %s20, 0
    %p125 = por %p123, %p124
    %p126 = scmp.ne.s32.totalorder %s114, %s115
    %p127 = scmp.eq.s32.totalorder %s21, 1
    %p128 = por %p126, %p127
    %p130 = scmp.ne.s32.totalorder %s115, %s129
    %p131 = scmp.eq.s32.totalorder %s21, 0
    %p132 = por %p130, %p131
    %s134 = sadd.s32 %s133, 1
    %p137 = scmp.eq.s32.totalorder %s15, 1
    %p138 = scmp.ne.s32.totalorder %s133, %s135
    %p139 = scmp.eq.s32.totalorder %s15, 0
    %p140 = por %p138, %p139
    %p141 = scmp.ne.s32.totalorder %s133, %s135
    %p142 = scmp.eq.s32.totalorder %s20, 1
    %p143 = por %p141, %p142
    %p144 = scmp.ne.s32.totalorder %s135, %s136
    %p145 = scmp.eq.s32.totalorder %s20, 0
    %p146 = por %p144, %p145
    %p147 = scmp.ne.s32.totalorder %s135, %s136
    %p148 = scmp.eq.s32.totalorder %s21, 1
    %p149 = por %p147, %p148
    %p151 = scmp.ne.s32.totalorder %s136, %s150
    %p152 = scmp.eq.s32.totalorder %s21, 0
    %p153 = por %p151, %p152
    %s155 = sadd.s32 %s154, 1
    %p158 = scmp.eq.s32.totalorder %s15, 1
    %p159 = scmp.ne.s32.totalorder %s154, %s156
    %p160 = scmp.eq.s32.totalorder %s15, 0
    %p161 = por %p159, %p160
    %p162 = scmp.ne.s32.totalorder %s154, %s156
    %p163 = scmp.eq.s32.totalorder %s20, 1
    %p164 = por %p162, %p163
    %p165 = scmp.ne.s32.totalorder %s156, %s157
    %p166 = scmp.eq.s32.totalorder %s20, 0
    %p167 = por %p165, %p166
    %p168 = scmp.ne.s32.totalorder %s156, %s157
    %p169 = scmp.eq.s32.totalorder %s21, 1
    %p170 = por %p168, %p169
    %p172 = scmp.ne.s32.totalorder %s157, %s171
    %p173 = scmp.eq.s32.totalorder %s21, 0
    %p174 = por %p172, %p173
    %s176 = sadd.s32 %s175, 1
    %p179 = scmp.eq.s32.totalorder %s15, 1
    %p180 = scmp.ne.s32.totalorder %s175, %s177
    %p181 = scmp.eq.s32.totalorder %s15, 0
    %p182 = por %p180, %p181
    %p183 = scmp.ne.s32.totalorder %s175, %s177
    %p184 = scmp.eq.s32.totalorder %s20, 1
    %p185 = por %p183, %p184
    %p186 = scmp.ne.s32.totalorder %s177, %s178
    %p187 = scmp.eq.s32.totalorder %s20, 0
    %p188 = por %p186, %p187
    %p189 = scmp.ne.s32.totalorder %s177, %s178
    %p190 = scmp.eq.s32.totalorder %s21, 1
    %p191 = por %p189, %p190
    %p193 = scmp.ne.s32.totalorder %s178, %s192
    %p194 = scmp.eq.s32.totalorder %s21, 0
    %p195 = por %p193, %p194
    %s197 = sadd.s32 %s196, 1
    %p200 = scmp.eq.s32.totalorder %s15, 1
    %p201 = scmp.ne.s32.totalorder %s196, %s198
    %p202 = scmp.eq.s32.totalorder %s15, 0
    %p203 = por %p201, %p202
    %p204 = scmp.ne.s32.totalorder %s196, %s198
    %p205 = scmp.eq.s32.totalorder %s20, 1
    %p206 = por %p204, %p205
    %p207 = scmp.ne.s32.totalorder %s198, %s199
    %p208 = scmp.eq.s32.totalorder %s20, 0
    %p209 = por %p207, %p208
    %p210 = scmp.ne.s32.totalorder %s198, %s199
    %p211 = scmp.eq.s32.totalorder %s21, 1
    %p212 = por %p210, %p211
    %p214 = scmp.ne.s32.totalorder %s199, %s213
    %p215 = scmp.eq.s32.totalorder %s21, 0
    %p216 = por %p214, %p215
    %s217 = ssub.s32 %s15, %s22
    %p218 = scmp.eq.s32.totalorder %s217, 0
    %s220 = sadd.s32 %s219, 1
    %s221 = scalar_select %p218, %s219, %s220
    %p224 = pneg %p218
    %p225 = scmp.eq.s32.totalorder %s15, 1
    %p226 = por %p224, %p225
    %p227 = scmp.ne.s32.totalorder %s219, %s222
    %p228 = scmp.eq.s32.totalorder %s15, 0
    %p229 = por %p227, %p228
    %p230 = scmp.ne.s32.totalorder %s219, %s222
    %p231 = scmp.eq.s32.totalorder %s20, 1
    %p232 = por %p230, %p231
    %p233 = scmp.ne.s32.totalorder %s222, %s223
    %p234 = scmp.eq.s32.totalorder %s20, 0
    %p235 = por %p233, %p234
    %p236 = scmp.ne.s32.totalorder %s222, %s223
    %p237 = scmp.eq.s32.totalorder %s21, 1
    %p238 = por %p236, %p237
    %p240 = scmp.ne.s32.totalorder %s223, %s239
    %p241 = scmp.eq.s32.totalorder %s21, 0
    %p242 = por %p240, %p241
    %p243 = scmp.le.s32.totalorder 1, %s15
    %p244 = scmp.lt.s32.totalorder %s15, 3
    %p245 = pnand %p243, %p244
    %p246 = pneg %p245
    // Predicated region
    $region9: #{_lambda_.6} parent=5 // pred_check
      _
    $region10: #{_lambda_.6} parent=5 // pred_check_branch
      %248 = sbr.rel (%p245) target = $region12
    $region11: #{_lambda_.6} parent=5 // pred_region
      %s249 = ssub.s32 %s15, 1
      // Predicated region
      $region13: #{_lambda_.6} parent=11 // pred_check
        %p250 = pneg %p62
      $region14: #{_lambda_.6} parent=11 // pred_check_branch
        %252 = sbr.rel (%p250) target = $region16
      $region15: #{_lambda_.6} parent=11 // pred_region
        _
      $region16: #{_lambda_.6} parent=11 // pred_fallthru
        _
      // Predicated region
      $region17: #{_lambda_.6} parent=11 // pred_check
        %p253 = pneg %p83
      $region18: #{_lambda_.6} parent=11 // pred_check_branch
        %255 = sbr.rel (%p253) target = $region20
      $region19: #{_lambda_.6} parent=11 // pred_region
        _
      $region20: #{_lambda_.6} parent=11 // pred_fallthru
        _
      // Predicated region
      $region21: #{_lambda_.6} parent=11 // pred_check
        %p256 = pneg %p104
      $region22: #{_lambda_.6} parent=11 // pred_check_branch
        %258 = sbr.rel (%p256) target = $region24
      $region23: #{_lambda_.6} parent=11 // pred_region
        _
      $region24: #{_lambda_.6} parent=11 // pred_fallthru
        _
      // Predicated region
      $region25: #{_lambda_.6} parent=11 // pred_check
        %p259 = pneg %p125
      $region26: #{_lambda_.6} parent=11 // pred_check_branch
        %261 = sbr.rel (%p259) target = $region28
      $region27: #{_lambda_.6} parent=11 // pred_region
        _
      $region28: #{_lambda_.6} parent=11 // pred_fallthru
        _
      // Predicated region
      $region29: #{_lambda_.6} parent=11 // pred_check
        %p262 = pneg %p146
      $region30: #{_lambda_.6} parent=11 // pred_check_branch
        %264 = sbr.rel (%p262) target = $region32
      $region31: #{_lambda_.6} parent=11 // pred_region
        _
      $region32: #{_lambda_.6} parent=11 // pred_fallthru
        _
      // Predicated region
      $region33: #{_lambda_.6} parent=11 // pred_check
        %p265 = pneg %p167
      $region34: #{_lambda_.6} parent=11 // pred_check_branch
        %267 = sbr.rel (%p265) target = $region36
      $region35: #{_lambda_.6} parent=11 // pred_region
        _
      $region36: #{_lambda_.6} parent=11 // pred_fallthru
        _
      // Predicated region
      $region37: #{_lambda_.6} parent=11 // pred_check
        %p268 = pneg %p188
      $region38: #{_lambda_.6} parent=11 // pred_check_branch
        %270 = sbr.rel (%p268) target = $region40
      $region39: #{_lambda_.6} parent=11 // pred_region
        _
      $region40: #{_lambda_.6} parent=11 // pred_fallthru
        _
      // Predicated region
      $region41: #{_lambda_.6} parent=11 // pred_check
        %p271 = pneg %p209
      $region42: #{_lambda_.6} parent=11 // pred_check_branch
        %273 = sbr.rel (%p271) target = $region44
      $region43: #{_lambda_.6} parent=11 // pred_region
        _
      $region44: #{_lambda_.6} parent=11 // pred_fallthru
        _
    $region12: #{_lambda_.6} parent=5 // pred_fallthru
      _
    %p274 = scmp.lt.s32.totalorder %s15, 2
    // Predicated region
    $region45: #{_lambda_.6} parent=5 // pred_check
      %p275 = pneg %p274
    $region46: #{_lambda_.6} parent=5 // pred_check_branch
      %277 = sbr.rel (%p275) target = $region48
    $region47: #{_lambda_.6} parent=5 // pred_region
      // Predicated region
      $region49: #{_lambda_.6} parent=47 // pred_check
        %p278 = pneg %p35
      $region50: #{_lambda_.6} parent=47 // pred_check_branch
        %280 = sbr.rel (%p278) target = $region52
      $region51: #{_lambda_.6} parent=47 // pred_region
        %p281 = scmp.lt.s32.totalorder %s15, 1
        %s282 = scalar_select %p281, %s15, 1
        %s283 = smul.addr %s282, 8
        %s284 = smul.addr %s283, 8
        %s285 = scalar_lea.vmem %s0, %s284
      $region52: #{_lambda_.6} parent=47 // pred_fallthru
        _
    $region48: #{_lambda_.6} parent=5 // pred_fallthru
      _
    %p286 = scmp.le.s32.totalorder 1, %s15
    %p287 = scmp.lt.s32.totalorder %s15, 3
    %p288 = pnand %p286, %p287
    %p289 = pneg %p288
    // Predicated region
    $region53: #{_lambda_.6} parent=5 // pred_check
      _
    $region54: #{_lambda_.6} parent=5 // pred_check_branch
      %291 = sbr.rel (%p288) target = $region56
    $region55: #{_lambda_.6} parent=5 // pred_region
      %s292 = ssub.s32 %s15, 1
      %p293 = scmp.lt.s32.totalorder %s20, 1
      %s294 = scalar_select %p293, %s20, 1
      %s295 = smul.addr %s294, 8
      %s296 = smul.addr %s295, 8
      %s297 = scalar_lea.vmem %s0, %s296
      %p298 = pneg %p41
      %p299 = pneg %p38
      %p300 = pneg %p62
      %p301 = pneg %p59
      %p302 = pneg %p83
      %p303 = pneg %p80
      %p304 = pneg %p104
      %p305 = pneg %p101
      %p306 = pneg %p125
      %p307 = pneg %p122
      %p308 = pneg %p146
      %p309 = pneg %p143
      %p310 = pneg %p167
      %p311 = pneg %p164
      %p312 = pneg %p188
      %p313 = pneg %p185
      %p314 = pneg %p209
      %p315 = pneg %p206
      %p316 = pneg %p235
      %p317 = pneg %p232
      %p318 = scmp.lt.s32.totalorder %s20, 1
      %s319 = scalar_select %p318, %s20, 1
      %s320 = smul.addr %s319, 8
      %s321 = smul.addr %s320, 8
      %s322 = scalar_lea.vmem %s9, %s321
      %p323 = scmp.lt.s32.totalorder %s20, 1
      %s324 = scalar_select %p323, %s20, 1
      %s325 = smul.addr %s324, 8
      %s326 = smul.addr %s325, 8
      %s327 = scalar_lea.vmem %s0, %s326
      %p328 = scmp.lt.s32.totalorder %s20, 1
      %s329 = scalar_select %p328, %s20, 1
      %s330 = smul.addr %s329, 8
      %s331 = smul.addr %s330, 8
      %s332 = scalar_lea.vmem %s9, %s331
      %vm334 = vcmask 64512
      %335 = vst.msk [vmem:[#allocation2] sm:$0xff] %vm334, 0.0
      %vm336 = vcmask 58368
      %337 = vst.msk [vmem:[#allocation2 + $0x8] sm:$0x3] %vm336, 0.0
      %338 = vst.msk [vmem:[#allocation2 + $0x10] sm:$0xff] %vm334, 0.0
      %339 = vst.msk [vmem:[#allocation2 + $0x18] sm:$0x3] %vm336, 0.0
      %340 = vst.msk [vmem:[#allocation2 + $0x20] sm:$0xff] %vm334, 0.0
      %341 = vst.msk [vmem:[#allocation2 + $0x28] sm:$0x3] %vm336, 0.0
      %342 = vst.msk [vmem:[#allocation2 + $0x30] sm:$0xff] %vm334, 0.0
      %343 = vst.msk [vmem:[#allocation2 + $0x38] sm:$0x3] %vm336, 0.0
      %344 = vst.msk [vmem:[#allocation2 + $0x40] sm:$0xff] %vm334, 0.0
      %345 = vst.msk [vmem:[#allocation2 + $0x48] sm:$0x3] %vm336, 0.0
      %346 = vst.msk [vmem:[#allocation2 + $0x50] sm:$0xff] %vm334, 0.0
      %347 = vst.msk [vmem:[#allocation2 + $0x58] sm:$0x3] %vm336, 0.0
      %348 = vst.msk [vmem:[#allocation2 + $0x60] sm:$0xff] %vm334, 0.0
      %349 = vst.msk [vmem:[#allocation2 + $0x68] sm:$0x3] %vm336, 0.0
      %350 = vst.msk [vmem:[#allocation2 + $0x70] sm:$0xff] %vm334, 0.0
      %351 = vst.msk [vmem:[#allocation2 + $0x78] sm:$0x3] %vm336, 0.0
      %352 = vst.msk [vmem:[#allocation2 + $0x80] sm:$0xff] %vm334, 0.0
      %353 = vst.msk [vmem:[#allocation2 + $0x88] sm:$0x3] %vm336, 0.0
      %354 = vst.msk [vmem:[#allocation2 + $0x90] sm:$0xff] %vm334, 0.0
      %355 = vst.msk [vmem:[#allocation2 + $0x98] sm:$0x3] %vm336, 0.0
      %v356 = vld [vmem:[%s327] sm:$0xff]
      %v357 = vld [vmem:[%s327 + $0x8] sm:$0xff]
      %v358 = vld [vmem:[%s327 + $0x10] sm:$0xff]
      %v359 = vld [vmem:[%s327 + $0x18] sm:$0xff]
      %v360 = vld [vmem:[%s327 + $0x20] sm:$0xff]
      %v361 = vld [vmem:[%s327 + $0x28] sm:$0xff]
      %v362 = vld [vmem:[%s327 + $0x30] sm:$0xff]
      %v363 = vld [vmem:[%s327 + $0x38] sm:$0xff]
      %s364 = scalar_lea.vmem [#allocation2], 16
      %365 = vst.msk [vmem:[%s364 + $0x1] sm:$0xff] %vm334, %v356
      %s366 = scalar_lea.vmem [#allocation2], 32
      %367 = vst.msk [vmem:[%s366 + $0x1] sm:$0xff] %vm334, %v357
      %s368 = scalar_lea.vmem [#allocation2], 48
      %369 = vst.msk [vmem:[%s368 + $0x1] sm:$0xff] %vm334, %v358
      %s370 = scalar_lea.vmem [#allocation2], 64
      %371 = vst.msk [vmem:[%s370 + $0x1] sm:$0xff] %vm334, %v359
      %s372 = scalar_lea.vmem [#allocation2], 80
      %373 = vst.msk [vmem:[%s372 + $0x1] sm:$0xff] %vm334, %v360
      %s374 = scalar_lea.vmem [#allocation2], 96
      %375 = vst.msk [vmem:[%s374 + $0x1] sm:$0xff] %vm334, %v361
      %s376 = scalar_lea.vmem [#allocation2], 112
      %377 = vst.msk [vmem:[%s376 + $0x1] sm:$0xff] %vm334, %v362
      %s378 = scalar_lea.vmem [#allocation2], 128
      %379 = vst.msk [vmem:[%s378 + $0x1] sm:$0xff] %vm334, %v363
      %v380 = vld [vmem:[%s1] sm:$0xff]
      %v381 = vld [vmem:[%s1 + $0x8] sm:$0x1]
      %v382 = vld [vmem:[#allocation2] sm:$0xff]
      %v383 = vld [vmem:[#allocation2 + $0x10] sm:$0xff]
      %v384 = vld [vmem:[#allocation2 + $0x20] sm:$0xff]
      %v385 = vld [vmem:[#allocation2 + $0x30] sm:$0xff]
      %v386 = vld [vmem:[#allocation2 + $0x40] sm:$0xff]
      %v387 = vld [vmem:[#allocation2 + $0x50] sm:$0xff]
      %v388 = vld [vmem:[#allocation2 + $0x60] sm:$0xff]
      %v389 = vld [vmem:[#allocation2 + $0x70] sm:$0xff]
      %v390 = vld [vmem:[#allocation2 + $0x80] sm:$0xff]
      %v391 = vld [vmem:[#allocation2 + $0x90] sm:$0xff]
      %v392 = vlaneseq
      %v393 = vshrl.u32 %v392, 7
      %v394 = vsub.s32 0, %v393
      %v395 = vrot.slane %v380, %v394
      %v396 = vmul.f32 %v382, %v395
      %v397 = vmul.f32 %v383, %v395
      %v398 = vmul.f32 %v384, %v395
      %v399 = vmul.f32 %v385, %v395
      %v400 = vmul.f32 %v386, %v395
      %v401 = vmul.f32 %v387, %v395
      %v402 = vmul.f32 %v388, %v395
      %v403 = vmul.f32 %v389, %v395
      %v404 = vadd.f32 %v396, 0.0
      %v405 = vadd.f32 %v397, 0.0
      %v406 = vadd.f32 %v398, 0.0
      %v407 = vadd.f32 %v399, 0.0
      %v408 = vadd.f32 %v400, 0.0
      %v409 = vadd.f32 %v401, 0.0
      %v410 = vadd.f32 %v402, 0.0
      %v411 = vadd.f32 %v403, 0.0
      %v412 = vlaneseq
      %v413 = vshrl.u32 %v412, 7
      %v414 = vsub.s32 3, %v413
      %v415 = vrot.slane %v380, %v414
      %v416 = vmul.f32 %v383, %v415
      %v417 = vmul.f32 %v384, %v415
      %v418 = vmul.f32 %v385, %v415
      %v419 = vmul.f32 %v386, %v415
      %v420 = vmul.f32 %v387, %v415
      %v421 = vmul.f32 %v388, %v415
      %v422 = vmul.f32 %v389, %v415
      %v423 = vmul.f32 %v390, %v415
      %v424 = vadd.f32 %v404, %v416
      %v425 = vadd.f32 %v405, %v417
      %v426 = vadd.f32 %v406, %v418
      %v427 = vadd.f32 %v407, %v419
      %v428 = vadd.f32 %v408, %v420
      %v429 = vadd.f32 %v409, %v421
      %v430 = vadd.f32 %v410, %v422
      %v431 = vadd.f32 %v411, %v423
      %v432 = vlaneseq
      %v433 = vshrl.u32 %v432, 7
      %v434 = vsub.s32 6, %v433
      %v435 = vrot.slane %v380, %v434
      %v436 = vmul.f32 %v384, %v435
      %v437 = vmul.f32 %v385, %v435
      %v438 = vmul.f32 %v386, %v435
      %v439 = vmul.f32 %v387, %v435
      %v440 = vmul.f32 %v388, %v435
      %v441 = vmul.f32 %v389, %v435
      %v442 = vmul.f32 %v390, %v435
      %v443 = vmul.f32 %v391, %v435
      %v444 = vadd.f32 %v424, %v436
      %v445 = vadd.f32 %v425, %v437
      %v446 = vadd.f32 %v426, %v438
      %v447 = vadd.f32 %v427, %v439
      %v448 = vadd.f32 %v428, %v440
      %v449 = vadd.f32 %v429, %v441
      %v450 = vadd.f32 %v430, %v442
      %v451 = vadd.f32 %v431, %v443
      %v452 = vld [vmem:[#allocation2 + $0x1] sm:$0xff]
      %v453 = vld [vmem:[#allocation2 + $0x11] sm:$0xff]
      %v454 = vld [vmem:[#allocation2 + $0x21] sm:$0xff]
      %v455 = vld [vmem:[#allocation2 + $0x31] sm:$0xff]
      %v456 = vld [vmem:[#allocation2 + $0x41] sm:$0xff]
      %v457 = vld [vmem:[#allocation2 + $0x51] sm:$0xff]
      %v458 = vld [vmem:[#allocation2 + $0x61] sm:$0xff]
      %v459 = vld [vmem:[#allocation2 + $0x71] sm:$0xff]
      %v460 = vld [vmem:[#allocation2 + $0x81] sm:$0xff]
      %v461 = vld [vmem:[#allocation2 + $0x91] sm:$0xff]
      %v462 = vlaneseq
      %v463 = vshrl.u32 %v462, 7
      %v464 = vsub.s32 1, %v463
      %v465 = vrot.slane %v380, %v464
      %v466 = vmul.f32 %v452, %v465
      %v467 = vmul.f32 %v453, %v465
      %v468 = vmul.f32 %v454, %v465
      %v469 = vmul.f32 %v455, %v465
      %v470 = vmul.f32 %v456, %v465
      %v471 = vmul.f32 %v457, %v465
      %v472 = vmul.f32 %v458, %v465
      %v473 = vmul.f32 %v459, %v465
      %v474 = vadd.f32 %v444, %v466
      %v475 = vadd.f32 %v445, %v467
      %v476 = vadd.f32 %v446, %v468
      %v477 = vadd.f32 %v447, %v469
      %v478 = vadd.f32 %v448, %v470
      %v479 = vadd.f32 %v449, %v471
      %v480 = vadd.f32 %v450, %v472
      %v481 = vadd.f32 %v451, %v473
      %v482 = vlaneseq
      %v483 = vshrl.u32 %v482, 7
      %v484 = vsub.s32 4, %v483
      %v485 = vrot.slane %v380, %v484
      %v486 = vmul.f32 %v453, %v485
      %v487 = vmul.f32 %v454, %v485
      %v488 = vmul.f32 %v455, %v485
      %v489 = vmul.f32 %v456, %v485
      %v490 = vmul.f32 %v457, %v485
      %v491 = vmul.f32 %v458, %v485
      %v492 = vmul.f32 %v459, %v485
      %v493 = vmul.f32 %v460, %v485
      %v494 = vadd.f32 %v474, %v486
      %v495 = vadd.f32 %v475, %v487
      %v496 = vadd.f32 %v476, %v488
      %v497 = vadd.f32 %v477, %v489
      %v498 = vadd.f32 %v478, %v490
      %v499 = vadd.f32 %v479, %v491
      %v500 = vadd.f32 %v480, %v492
      %v501 = vadd.f32 %v481, %v493
      %v502 = vlaneseq
      %v503 = vshrl.u32 %v502, 7
      %v504 = vsub.s32 7, %v503
      %v505 = vrot.slane %v380, %v504
      %v506 = vmul.f32 %v454, %v505
      %v507 = vmul.f32 %v455, %v505
      %v508 = vmul.f32 %v456, %v505
      %v509 = vmul.f32 %v457, %v505
      %v510 = vmul.f32 %v458, %v505
      %v511 = vmul.f32 %v459, %v505
      %v512 = vmul.f32 %v460, %v505
      %v513 = vmul.f32 %v461, %v505
      %v514 = vadd.f32 %v494, %v506
      %v515 = vadd.f32 %v495, %v507
      %v516 = vadd.f32 %v496, %v508
      %v517 = vadd.f32 %v497, %v509
      %v518 = vadd.f32 %v498, %v510
      %v519 = vadd.f32 %v499, %v511
      %v520 = vadd.f32 %v500, %v512
      %v521 = vadd.f32 %v501, %v513
      %v522 = vld [vmem:[#allocation2 + $0x2] sm:$0xff]
      %v523 = vld [vmem:[#allocation2 + $0x12] sm:$0xff]
      %v524 = vld [vmem:[#allocation2 + $0x22] sm:$0xff]
      %v525 = vld [vmem:[#allocation2 + $0x32] sm:$0xff]
      %v526 = vld [vmem:[#allocation2 + $0x42] sm:$0xff]
      %v527 = vld [vmem:[#allocation2 + $0x52] sm:$0xff]
      %v528 = vld [vmem:[#allocation2 + $0x62] sm:$0xff]
      %v529 = vld [vmem:[#allocation2 + $0x72] sm:$0xff]
      %v530 = vld [vmem:[#allocation2 + $0x82] sm:$0xff]
      %v531 = vld [vmem:[#allocation2 + $0x92] sm:$0xff]
      %v532 = vlaneseq
      %v533 = vshrl.u32 %v532, 7
      %v534 = vsub.s32 2, %v533
      %v535 = vrot.slane %v380, %v534
      %v536 = vmul.f32 %v522, %v535
      %v537 = vmul.f32 %v523, %v535
      %v538 = vmul.f32 %v524, %v535
      %v539 = vmul.f32 %v525, %v535
      %v540 = vmul.f32 %v526, %v535
      %v541 = vmul.f32 %v527, %v535
      %v542 = vmul.f32 %v528, %v535
      %v543 = vmul.f32 %v529, %v535
      %v544 = vadd.f32 %v514, %v536
      %v545 = vadd.f32 %v515, %v537
      %v546 = vadd.f32 %v516, %v538
      %v547 = vadd.f32 %v517, %v539
      %v548 = vadd.f32 %v518, %v540
      %v549 = vadd.f32 %v519, %v541
      %v550 = vadd.f32 %v520, %v542
      %v551 = vadd.f32 %v521, %v543
      %v552 = vlaneseq
      %v553 = vshrl.u32 %v552, 7
      %v554 = vsub.s32 5, %v553
      %v555 = vrot.slane %v380, %v554
      %v556 = vmul.f32 %v523, %v555
      %v557 = vmul.f32 %v524, %v555
      %v558 = vmul.f32 %v525, %v555
      %v559 = vmul.f32 %v526, %v555
      %v560 = vmul.f32 %v527, %v555
      %v561 = vmul.f32 %v528, %v555
      %v562 = vmul.f32 %v529, %v555
      %v563 = vmul.f32 %v530, %v555
      %v564 = vadd.f32 %v544, %v556
      %v565 = vadd.f32 %v545, %v557
      %v566 = vadd.f32 %v546, %v558
      %v567 = vadd.f32 %v547, %v559
      %v568 = vadd.f32 %v548, %v560
      %v569 = vadd.f32 %v549, %v561
      %v570 = vadd.f32 %v550, %v562
      %v571 = vadd.f32 %v551, %v563
      %v572 = vlaneseq
      %v573 = vshrl.u32 %v572, 7
      %v574 = vsub.s32 0, %v573
      %v575 = vrot.slane %v381, %v574
      %v576 = vmul.f32 %v524, %v575
      %v577 = vmul.f32 %v525, %v575
      %v578 = vmul.f32 %v526, %v575
      %v579 = vmul.f32 %v527, %v575
      %v580 = vmul.f32 %v528, %v575
      %v581 = vmul.f32 %v529, %v575
      %v582 = vmul.f32 %v530, %v575
      %v583 = vmul.f32 %v531, %v575
      %v584 = vadd.f32 %v564, %v576
      %v585 = vadd.f32 %v565, %v577
      %v586 = vadd.f32 %v566, %v578
      %v587 = vadd.f32 %v567, %v579
      %v588 = vadd.f32 %v568, %v580
      %v589 = vadd.f32 %v569, %v581
      %v590 = vadd.f32 %v570, %v582
      %v591 = vadd.f32 %v571, %v583
      %v592 = vld [vmem:[%s2] sm:$0x1]
      %v594 = vlaneseq
      %v595 = vshrl.u32 %v594, 7
      %v596 = vsub.s32 0, %v595
      %v597 = vrot.slane %v592, %v596
      %v599 = vadd.f32 %v584, %v597
      %v600 = vadd.f32 %v585, %v597
      %v601 = vadd.f32 %v586, %v597
      %v602 = vadd.f32 %v587, %v597
      %v603 = vadd.f32 %v588, %v597
      %v604 = vadd.f32 %v589, %v597
      %v605 = vadd.f32 %v590, %v597
      %v606 = vadd.f32 %v591, %v597
      %v607 = vxor.u32 %v599, 2147483648
      %v608 = vxor.u32 %v600, 2147483648
      %v609 = vxor.u32 %v601, 2147483648
      %v610 = vxor.u32 %v602, 2147483648
      %v611 = vxor.u32 %v603, 2147483648
      %v612 = vxor.u32 %v604, 2147483648
      %v613 = vxor.u32 %v605, 2147483648
      %v614 = vxor.u32 %v606, 2147483648
      %v615 = vmul.f32 %v607, 1.442695
      %v616 = vpow.pop %v615
      %v617 = vmul.f32 %v608, 1.442695
      %v618 = vpow.pop %v617
      %v619 = vmul.f32 %v609, 1.442695
      %v620 = vpow.pop %v619
      %v621 = vmul.f32 %v610, 1.442695
      %v622 = vpow.pop %v621
      %v623 = vmul.f32 %v611, 1.442695
      %v624 = vpow.pop %v623
      %v625 = vmul.f32 %v612, 1.442695
      %v626 = vpow.pop %v625
      %v627 = vmul.f32 %v613, 1.442695
      %v628 = vpow.pop %v627
      %v629 = vmul.f32 %v614, 1.442695
      %v630 = vpow.pop %v629
      %v631 = vadd.f32 %v616, 1.0
      %v632 = vadd.f32 %v618, 1.0
      %v633 = vadd.f32 %v620, 1.0
      %v634 = vadd.f32 %v622, 1.0
      %v635 = vadd.f32 %v624, 1.0
      %v636 = vadd.f32 %v626, 1.0
      %v637 = vadd.f32 %v628, 1.0
      %v638 = vadd.f32 %v630, 1.0
      %v639 = vrcp.pop %v631
      %v640 = vmul.f32 1.0, %v639
      %v641 = vrcp.pop %v632
      %v642 = vmul.f32 1.0, %v641
      %v643 = vrcp.pop %v633
      %v644 = vmul.f32 1.0, %v643
      %v645 = vrcp.pop %v634
      %v646 = vmul.f32 1.0, %v645
      %v647 = vrcp.pop %v635
      %v648 = vmul.f32 1.0, %v647
      %v649 = vrcp.pop %v636
      %v650 = vmul.f32 1.0, %v649
      %v651 = vrcp.pop %v637
      %v652 = vmul.f32 1.0, %v651
      %v653 = vrcp.pop %v638
      %v654 = vmul.f32 1.0, %v653
      %v655 = vmul.f32 %v599, %v640
      %v656 = vmul.f32 %v600, %v642
      %v657 = vmul.f32 %v601, %v644
      %v658 = vmul.f32 %v602, %v646
      %v659 = vmul.f32 %v603, %v648
      %v660 = vmul.f32 %v604, %v650
      %v661 = vmul.f32 %v605, %v652
      %v662 = vmul.f32 %v606, %v654
      %663 = vst.msk [vmem:[#allocation3] sm:$0xff] %vm334, %v655
      %664 = vst.msk [vmem:[#allocation3 + $0x8] sm:$0xff] %vm334, %v656
      %665 = vst.msk [vmem:[#allocation3 + $0x10] sm:$0xff] %vm334, %v657
      %666 = vst.msk [vmem:[#allocation3 + $0x18] sm:$0xff] %vm334, %v658
      %667 = vst.msk [vmem:[#allocation3 + $0x20] sm:$0xff] %vm334, %v659
      %668 = vst.msk [vmem:[#allocation3 + $0x28] sm:$0xff] %vm334, %v660
      %669 = vst.msk [vmem:[#allocation3 + $0x30] sm:$0xff] %vm334, %v661
      %670 = vst.msk [vmem:[#allocation3 + $0x38] sm:$0xff] %vm334, %v662
      %v671 = vld [vmem:[#allocation3] sm:$0xff]
      %v672 = vld [vmem:[#allocation3 + $0x8] sm:$0xff]
      %v673 = vld [vmem:[#allocation3 + $0x10] sm:$0xff]
      %v674 = vld [vmem:[#allocation3 + $0x18] sm:$0xff]
      %v675 = vld [vmem:[#allocation3 + $0x20] sm:$0xff]
      %v676 = vld [vmem:[#allocation3 + $0x28] sm:$0xff]
      %v677 = vld [vmem:[#allocation3 + $0x30] sm:$0xff]
      %v678 = vld [vmem:[#allocation3 + $0x38] sm:$0xff]
      %v679 = vsel %vm334, %v671, 0.0
      %v680 = vsel %vm334, %v672, 0.0
      %v681 = vadd.f32 %v679, %v680
      %v682 = vsel %vm334, %v673, 0.0
      %v683 = vadd.f32 %v681, %v682
      %v684 = vsel %vm334, %v674, 0.0
      %v685 = vadd.f32 %v683, %v684
      %v686 = vsel %vm334, %v675, 0.0
      %v687 = vadd.f32 %v685, %v686
      %v688 = vsel %vm334, %v676, 0.0
      %v689 = vadd.f32 %v687, %v688
      %v690 = vsel %vm334, %v677, 0.0
      %v691 = vadd.f32 %v689, %v690
      %v692 = vsel %vm334, %v678, 0.0
      %v693 = vadd.f32 %v691, %v692
      %v694 = vrot.slane %v693, 4
      %v695 = vadd.f32 %v693, %v694
      %v696 = vrot.slane %v695, 2
      %v697 = vadd.f32 %v695, %v696
      %v698 = vrot.slane %v697, 1
      %v699 = vadd.f32 %v697, %v698
      %v700 = vmul.f32 %v699, 0.015625
      %v701 = vld [vmem:[%s3] sm:$0xff]
      %v702 = vld [vmem:[%s4] sm:$0x1]
      %v704 = vsel %vm334, %v700, 0
      %706 = vmatprep.subr.mxu0 0.0
      %707 = vmatpush1.msra.mxu0 %v701
      %708 = vmatprep.subr.mxu0 0.0
      %709 = vmatpush1.msra.mxu0 0.0
      %710 = vmatprep.subr.mxu0 0.0
      %711 = vmatpush1.msra.mxu0 0.0
      %712 = vmatprep.subr.mxu0 0.0
      %713 = vmatpush1.msra.mxu0 0.0
      %714 = vmatprep.subr.mxu0 0.0
      %715 = vmatpush1.msra.mxu0 0.0
      %716 = vmatprep.subr.mxu0 0.0
      %717 = vmatpush1.msra.mxu0 0.0
      %718 = vmatprep.subr.mxu0 0.0
      %719 = vmatpush1.msra.mxu0 0.0
      %720 = vmatprep.subr.mxu0 0.0
      %721 = vmatpush1.msra.mxu0 0.0
      %722 = vmatprep.subr.mxu0 0.0
      %723 = vmatpush1.msra.mxu0 0.0
      %724 = vmatprep.subr.mxu0 0.0
      %725 = vmatpush1.msra.mxu0 0.0
      %726 = vmatprep.subr.mxu0 0.0
      %727 = vmatpush1.msra.mxu0 0.0
      %728 = vmatprep.subr.mxu0 0.0
      %729 = vmatpush1.msra.mxu0 0.0
      %730 = vmatprep.subr.mxu0 0.0
      %731 = vmatpush1.msra.mxu0 0.0
      %732 = vmatprep.subr.mxu0 0.0
      %733 = vmatpush1.msra.mxu0 0.0
      %734 = vmatprep.subr.mxu0 0.0
      %735 = vmatpush1.msra.mxu0 0.0
      %736 = vmatprep.subr.mxu0 0.0
      %737 = vmatpush1.msra.mxu0 0.0
      %738 = vmatprep.subr.mxu0 0.0
      %739 = vmatpush1.msra.mxu0 0.0
      %740 = vmatprep.subr.mxu0 0.0
      %741 = vmatpush1.msra.mxu0 0.0
      %742 = vmatprep.subr.mxu0 0.0
      %743 = vmatpush1.msra.mxu0 0.0
      %744 = vmatprep.subr.mxu0 0.0
      %745 = vmatpush1.msra.mxu0 0.0
      %746 = vmatprep.subr.mxu0 0.0
      %747 = vmatpush1.msra.mxu0 0.0
      %748 = vmatprep.subr.mxu0 0.0
      %749 = vmatpush1.msra.mxu0 0.0
      %750 = vmatprep.subr.mxu0 0.0
      %751 = vmatpush1.msra.mxu0 0.0
      %752 = vmatprep.subr.mxu0 0.0
      %753 = vmatpush1.msra.mxu0 0.0
      %754 = vmatprep.subr.mxu0 0.0
      %755 = vmatpush1.msra.mxu0 0.0
      %756 = vmatprep.subr.mxu0 0.0
      %757 = vmatpush1.msra.mxu0 0.0
      %758 = vmatprep.subr.mxu0 0.0
      %759 = vmatpush1.msra.mxu0 0.0
      %760 = vmatprep.subr.mxu0 0.0
      %761 = vmatpush1.msra.mxu0 0.0
      %762 = vmatprep.subr.mxu0 0.0
      %763 = vmatpush1.msra.mxu0 0.0
      %764 = vmatprep.subr.mxu0 0.0
      %765 = vmatpush1.msra.mxu0 0.0
      %766 = vmatprep.subr.mxu0 0.0
      %767 = vmatpush1.msra.mxu0 0.0
      %768 = vmatprep.subr.mxu0 0.0
      %769 = vmatpush1.msra.mxu0 0.0
      %770 = vmatprep.mubr.f32.mxu0 0.0
      %771 = vmatmul.mubr.f32.gmra.mrb[0].mxu0 %v704
      %v772 = vpop.f32.mrb[0].mxu0
      %v773 = vadd.f32 %v702, %v772
      %v774 = vpop.f32.mrb[0].mxu0
      %775 = vdwg.mxu0
      %v776 = vxor.u32 %v773, 2147483648
      %v777 = vmul.f32 %v776, 1.442695
      %v778 = vpow.pop %v777
      %v779 = vadd.f32 %v778, 1.0
      %v780 = vrcp.pop %v779
      %v781 = vmul.f32 1.0, %v780
      %v782 = vmul.f32 %v773, %v781
      %v783 = vld [vmem:[%s5] sm:$0x3]
      %v784 = vld [vmem:[%s6] sm:$0x1]
      %vm785 = vcmask 15360
      %v787 = vsel %vm785, %v782, 0
      %vm789 = vcmask 1041408
      %v791 = vsel %vm789, %v783, 0
      %793 = vmatprep.subr.mxu0 0.0
      %794 = vmatpush1.msra.mxu0 %v791
      %795 = vmatprep.subr.mxu0 0.0
      %796 = vmatpush1.msra.mxu0 0.0
      %797 = vmatprep.subr.mxu0 0.0
      %798 = vmatpush1.msra.mxu0 0.0
      %799 = vmatprep.subr.mxu0 0.0
      %800 = vmatpush1.msra.mxu0 0.0
      %801 = vmatprep.subr.mxu0 0.0
      %802 = vmatpush1.msra.mxu0 0.0
      %803 = vmatprep.subr.mxu0 0.0
      %804 = vmatpush1.msra.mxu0 0.0
      %805 = vmatprep.subr.mxu0 0.0
      %806 = vmatpush1.msra.mxu0 0.0
      %807 = vmatprep.subr.mxu0 0.0
      %808 = vmatpush1.msra.mxu0 0.0
      %809 = vmatprep.subr.mxu0 0.0
      %810 = vmatpush1.msra.mxu0 0.0
      %811 = vmatprep.subr.mxu0 0.0
      %812 = vmatpush1.msra.mxu0 0.0
      %813 = vmatprep.subr.mxu0 0.0
      %814 = vmatpush1.msra.mxu0 0.0
      %815 = vmatprep.subr.mxu0 0.0
      %816 = vmatpush1.msra.mxu0 0.0
      %817 = vmatprep.subr.mxu0 0.0
      %818 = vmatpush1.msra.mxu0 0.0
      %819 = vmatprep.subr.mxu0 0.0
      %820 = vmatpush1.msra.mxu0 0.0
      %821 = vmatprep.subr.mxu0 0.0
      %822 = vmatpush1.msra.mxu0 0.0
      %823 = vmatprep.subr.mxu0 0.0
      %824 = vmatpush1.msra.mxu0 0.0
      %825 = vmatprep.subr.mxu0 0.0
      %826 = vmatpush1.msra.mxu0 0.0
      %827 = vmatprep.subr.mxu0 0.0
      %828 = vmatpush1.msra.mxu0 0.0
      %829 = vmatprep.subr.mxu0 0.0
      %830 = vmatpush1.msra.mxu0 0.0
      %831 = vmatprep.subr.mxu0 0.0
      %832 = vmatpush1.msra.mxu0 0.0
      %833 = vmatprep.subr.mxu0 0.0
      %834 = vmatpush1.msra.mxu0 0.0
      %835 = vmatprep.subr.mxu0 0.0
      %836 = vmatpush1.msra.mxu0 0.0
      %837 = vmatprep.subr.mxu0 0.0
      %838 = vmatpush1.msra.mxu0 0.0
      %839 = vmatprep.subr.mxu0 0.0
      %840 = vmatpush1.msra.mxu0 0.0
      %841 = vmatprep.subr.mxu0 0.0
      %842 = vmatpush1.msra.mxu0 0.0
      %843 = vmatprep.subr.mxu0 0.0
      %844 = vmatpush1.msra.mxu0 0.0
      %845 = vmatprep.subr.mxu0 0.0
      %846 = vmatpush1.msra.mxu0 0.0
      %847 = vmatprep.subr.mxu0 0.0
      %848 = vmatpush1.msra.mxu0 0.0
      %849 = vmatprep.subr.mxu0 0.0
      %850 = vmatpush1.msra.mxu0 0.0
      %851 = vmatprep.subr.mxu0 0.0
      %852 = vmatpush1.msra.mxu0 0.0
      %853 = vmatprep.subr.mxu0 0.0
      %854 = vmatpush1.msra.mxu0 0.0
      %855 = vmatprep.subr.mxu0 0.0
      %856 = vmatpush1.msra.mxu0 0.0
      %857 = vmatprep.mubr.f32.mxu0 0.0
      %858 = vmatmul.mubr.f32.gmra.mrb[0].mxu0 %v787
      %v859 = vpop.f32.mrb[0].mxu0
      %v860 = vadd.f32 %v784, %v859
      %v861 = vpop.f32.mrb[0].mxu0
      %862 = vdwg.mxu0
      %v863 = vxor.u32 %v860, 2147483648
      %v864 = vmul.f32 %v863, 1.442695
      %v865 = vpow.pop %v864
      %v866 = vadd.f32 %v865, 1.0
      %v867 = vrcp.pop %v866
      %v868 = vmul.f32 1.0, %v867
      %v869 = vlaneseq
      %v870 = vshrl.u32 %v869, 7
      %v871 = vsub.s32 0, %v870
      %v872 = vrot.slane %v868, %v871
      %v873 = vmul.f32 %v671, %v872
      %v874 = vmul.f32 %v672, %v872
      %v875 = vmul.f32 %v673, %v872
      %v876 = vmul.f32 %v674, %v872
      %v877 = vmul.f32 %v675, %v872
      %v878 = vmul.f32 %v676, %v872
      %v879 = vmul.f32 %v677, %v872
      %v880 = vmul.f32 %v678, %v872
      %v881 = vpack.c.bf16 %v874, %v873
      %v882 = vpack.c.bf16 %v876, %v875
      %v883 = vpack.c.bf16 %v878, %v877
      %v884 = vpack.c.bf16 %v880, %v879
      %v885 = vld [vmem:[%s7] sm:$0xf]
      %v886 = vld [vmem:[%s8] sm:$0x1]
      %v888 = vlaneseq
      %v889 = vshrl.u32 %v888, 7
      %v890 = vsub.s32 0, %v889
      %v891 = vrot.slane %v886, %v890
      %v894 = vsel %vm334, %v881, 0
      %v897 = vsel %vm334, %v882, 0
      %v900 = vsel %vm334, %v883, 0
      %v903 = vsel %vm334, %v884, 0
      %vm905 = vcmask 1043456
      %v907 = vsel %vm905, %v885, 0
      %909 = vmatprep.subr.bf16.mxu0 0
      %910 = vmatpush1.bf16.msra.mxu0 %v907
      %911 = vmatprep.subr.bf16.mxu0 0
      %912 = vmatpush1.bf16.msra.mxu0 0
      %913 = vmatprep.subr.bf16.mxu0 0
      %914 = vmatpush1.bf16.msra.mxu0 0
      %915 = vmatprep.subr.bf16.mxu0 0
      %916 = vmatpush1.bf16.msra.mxu0 0
      %917 = vmatprep.subr.bf16.mxu0 0
      %918 = vmatpush1.bf16.msra.mxu0 0
      %919 = vmatprep.subr.bf16.mxu0 0
      %920 = vmatpush1.bf16.msra.mxu0 0
      %921 = vmatprep.subr.bf16.mxu0 0
      %922 = vmatpush1.bf16.msra.mxu0 0
      %923 = vmatprep.subr.bf16.mxu0 0
      %924 = vmatpush1.bf16.msra.mxu0 0
      %925 = vmatprep.subr.bf16.mxu0 0
      %926 = vmatpush1.bf16.msra.mxu0 0
      %927 = vmatprep.subr.bf16.mxu0 0
      %928 = vmatpush1.bf16.msra.mxu0 0
      %929 = vmatprep.subr.bf16.mxu0 0
      %930 = vmatpush1.bf16.msra.mxu0 0
      %931 = vmatprep.subr.bf16.mxu0 0
      %932 = vmatpush1.bf16.msra.mxu0 0
      %933 = vmatprep.subr.bf16.mxu0 0
      %934 = vmatpush1.bf16.msra.mxu0 0
      %935 = vmatprep.subr.bf16.mxu0 0
      %936 = vmatpush1.bf16.msra.mxu0 0
      %937 = vmatprep.subr.bf16.mxu0 0
      %938 = vmatpush1.bf16.msra.mxu0 0
      %939 = vmatprep.subr.bf16.mxu0 0
      %940 = vmatpush1.bf16.msra.mxu0 0
      %941 = vmatprep.mubr.bf16.mxu0 0
      %942 = vmatmul.mubr.bf16.gmra.mrb[0].mxu0 %v894
      %v943 = vpop.f32.mrb[0].mxu0
      %v944 = vadd.f32 %v891, %v943
      %v945 = vpop.f32.mrb[0].mxu0
      %v946 = vpop.f32.mrb[0].mxu0
      %v947 = vadd.f32 %v891, %v946
      %v948 = vpop.f32.mrb[0].mxu0
      %949 = vmatprep.mubr.bf16.mxu0 0
      %950 = vmatmul.mubr.bf16.gmra.mrb[0].mxu0 %v897
      %v951 = vpop.f32.mrb[0].mxu0
      %v952 = vadd.f32 %v891, %v951
      %v953 = vpop.f32.mrb[0].mxu0
      %v954 = vpop.f32.mrb[0].mxu0
      %v955 = vadd.f32 %v891, %v954
      %v956 = vpop.f32.mrb[0].mxu0
      %957 = vmatprep.mubr.bf16.mxu0 0
      %958 = vmatmul.mubr.bf16.gmra.mrb[0].mxu0 %v900
      %v959 = vpop.f32.mrb[0].mxu0
      %v960 = vadd.f32 %v891, %v959
      %v961 = vpop.f32.mrb[0].mxu0
      %v962 = vpop.f32.mrb[0].mxu0
      %v963 = vadd.f32 %v891, %v962
      %v964 = vpop.f32.mrb[0].mxu0
      %965 = vmatprep.mubr.bf16.mxu0 0
      %966 = vmatmul.mubr.bf16.gmra.mrb[0].mxu0 %v903
      %v967 = vpop.f32.mrb[0].mxu0
      %v968 = vadd.f32 %v891, %v967
      %v969 = vpop.f32.mrb[0].mxu0
      %v970 = vpop.f32.mrb[0].mxu0
      %v971 = vadd.f32 %v891, %v970
      %v972 = vpop.f32.mrb[0].mxu0
      %973 = vdwg.mxu0
      %v974 = vadd.f32 %v944, %v356
      %v975 = vadd.f32 %v947, %v357
      %v976 = vadd.f32 %v952, %v358
      %v977 = vadd.f32 %v955, %v359
      %v978 = vadd.f32 %v960, %v360
      %v979 = vadd.f32 %v963, %v361
      %v980 = vadd.f32 %v968, %v362
      %v981 = vadd.f32 %v971, %v363
      %982 = vst.msk [vmem:[%s332] sm:$0xff] %vm334, %v974
      %983 = vst.msk [vmem:[%s332 + $0x8] sm:$0xff] %vm334, %v975
      %984 = vst.msk [vmem:[%s332 + $0x10] sm:$0xff] %vm334, %v976
      %985 = vst.msk [vmem:[%s332 + $0x18] sm:$0xff] %vm334, %v977
      %986 = vst.msk [vmem:[%s332 + $0x20] sm:$0xff] %vm334, %v978
      %987 = vst.msk [vmem:[%s332 + $0x28] sm:$0xff] %vm334, %v979
      %988 = vst.msk [vmem:[%s332 + $0x30] sm:$0xff] %vm334, %v980
      %989 = vst.msk [vmem:[%s332 + $0x38] sm:$0xff] %vm334, %v981
      %p990 = scmp.lt.s32.totalorder %s20, 1
      %s991 = scalar_select %p990, %s20, 1
      %s992 = smul.addr %s991, 8
      %s993 = smul.addr %s992, 8
      %s994 = scalar_lea.vmem %s9, %s993
      // Predicated region
      $region57: #{_lambda_.6} parent=55 // pred_check
        %p995 = pneg %p232
      $region58: #{_lambda_.6} parent=55 // pred_check_branch
        %997 = sbr.rel (%p995) target = $region60
      $region59: #{_lambda_.6} parent=55 // pred_region
        _
      $region60: #{_lambda_.6} parent=55 // pred_fallthru
        _
    $region56: #{_lambda_.6} parent=5 // pred_fallthru
      _
    %p998 = scmp.le.s32.totalorder 2, %s15
    // Predicated region
    $region61: #{_lambda_.6} parent=5 // pred_check
      %p999 = pneg %p998
    $region62: #{_lambda_.6} parent=5 // pred_check_branch
      %1001 = sbr.rel (%p999) target = $region64
    $region63: #{_lambda_.6} parent=5 // pred_region
      %s1002 = ssub.s32 %s15, 2
      // Predicated region
      $region65: #{_lambda_.6} parent=63 // pred_check
        %p1003 = pneg %p238
      $region66: #{_lambda_.6} parent=63 // pred_check_branch
        %1005 = sbr.rel (%p1003) target = $region68
      $region67: #{_lambda_.6} parent=63 // pred_region
        %p1006 = scmp.lt.s32.totalorder %s21, 1
        %s1007 = scalar_select %p1006, %s21, 1
        %s1008 = smul.addr %s1007, 8
        %s1009 = smul.addr %s1008, 8
        %s1010 = scalar_lea.vmem %s9, %s1009
      $region68: #{_lambda_.6} parent=63 // pred_fallthru
        _
    $region64: #{_lambda_.6} parent=5 // pred_fallthru
      _
  $region6: #{_lambda_.6} parent=0 // loop_footer
    %s19 = sadd.s32 1, %s15
  $region7: #{_lambda_.6} parent=0 // loop_footer_branch
    %14 = sbr.rel target = $region3
  $region8: #{_lambda_.6} parent=0 // loop_exit
    _

// kernel: _lambda_.5
$region0: #{_lambda_.5}
  #allocation0 [shape = 'u32[]', space=smem, size = 0x4, offset = 0x4, fixed_abs, tag = 'smem constant byte address 0x4 - core index']
  #allocation1 [shape = 'u32[144,128]{1,0:T(1,128)}', space=vmem, size = 0x12000, scoped, tag = 'internal scratch']
  %s0 = inlined_call_operand.vmem [shape: f32[128,27], index: 0, kind: input, shape index: {}]
  %s1 = inlined_call_operand.vmem [shape: bf16[27,8], index: 1, kind: input, shape index: {}]
  %s2 = inlined_call_operand.vmem [shape: f32[1,8], index: 2, kind: input, shape index: {}]
  %s3 = inlined_call_operand.vmem [shape: f32[128,8], index: 3, kind: output, shape index: {}]
  %s4 = sld [smem:[#allocation0]]
  $region22: #{_lambda_.5} parent=0
    _
  %s6 = ssub.s32 1, %s4
  %s7 = scalar_select 0, %s6, %s4
  // Predicated region
  $region2: #{_lambda_.5} parent=0 // pred_check
    _
  $region3: #{_lambda_.5} parent=0 // pred_check_branch
    %9 = sbr.rel (0) target = $region5
  $region4: #{_lambda_.5} parent=0 // pred_region
    _
  $region5: #{_lambda_.5} parent=0 // pred_fallthru
    _
  // Predicated region
  $region6: #{_lambda_.5} parent=0 // pred_check
    _
  $region7: #{_lambda_.5} parent=0 // pred_check_branch
    %11 = sbr.rel (0) target = $region9
  $region8: #{_lambda_.5} parent=0 // pred_region
    _
  $region9: #{_lambda_.5} parent=0 // pred_fallthru
    _
  // Predicated region
  $region10: #{_lambda_.5} parent=0 // pred_check
    _
  $region11: #{_lambda_.5} parent=0 // pred_check_branch
    %13 = sbr.rel (0) target = $region13
  $region12: #{_lambda_.5} parent=0 // pred_region
    _
  $region13: #{_lambda_.5} parent=0 // pred_fallthru
    _
  %v15 = vld [vmem:[%s0] sm:$0xff]
  %v16 = vld [vmem:[%s0 + $0x8] sm:$0xff]
  %v17 = vld [vmem:[%s0 + $0x10] sm:$0xff]
  %v18 = vld [vmem:[%s0 + $0x18] sm:$0xff]
  %v19 = vld [vmem:[%s0 + $0x20] sm:$0xff]
  %v20 = vld [vmem:[%s0 + $0x28] sm:$0xff]
  %v21 = vld [vmem:[%s0 + $0x30] sm:$0xff]
  %v22 = vld [vmem:[%s0 + $0x38] sm:$0xff]
  %v23 = vld [vmem:[%s0 + $0x40] sm:$0xff]
  %v24 = vld [vmem:[%s0 + $0x48] sm:$0xff]
  %v25 = vld [vmem:[%s0 + $0x50] sm:$0xff]
  %v26 = vld [vmem:[%s0 + $0x58] sm:$0xff]
  %v27 = vld [vmem:[%s0 + $0x60] sm:$0xff]
  %v28 = vld [vmem:[%s0 + $0x68] sm:$0xff]
  %v29 = vld [vmem:[%s0 + $0x70] sm:$0xff]
  %v30 = vld [vmem:[%s0 + $0x78] sm:$0xff]
  %v31 = vpack.c.bf16 %v16, %v15
  %v32 = vpack.c.bf16 %v18, %v17
  %v33 = vpack.c.bf16 %v20, %v19
  %v34 = vpack.c.bf16 %v22, %v21
  %v35 = vpack.c.bf16 %v24, %v23
  %v36 = vpack.c.bf16 %v26, %v25
  %v37 = vpack.c.bf16 %v28, %v27
  %v38 = vpack.c.bf16 %v30, %v29
  %v39 = vld [vmem:[%s1] sm:$0xf]
  %v40 = vld [vmem:[%s1 + $0x4] sm:$0xf]
  %v41 = vld [vmem:[%s1 + $0x8] sm:$0xf]
  %v42 = vld [vmem:[%s1 + $0xc] sm:$0x3]
  %v43 = vld [vmem:[%s2] sm:$0x1]
  %v45 = vlaneseq
  %v46 = vshrl.u32 %v45, 7
  %v47 = vsub.s32 0, %v46
  %v48 = vrot.slane %v43, %v47
  %v54 = vunpack.c.l.b16 %v39
  %v55 = vunpack.c.l.b16 %v40
  %v56 = vunpack.c.l.b16 %v41
  %v57 = vunpack.c.l.b16 %v42
  %v58 = vpack.c.b16 %v55, %v54
  %v59 = vpack.c.b16 %v57, %v56
  %vm61 = vcmask 220160
  %v63 = vsel %vm61, %v31, 0
  %v66 = vsel %vm61, %v32, 0
  %v69 = vsel %vm61, %v33, 0
  %v72 = vsel %vm61, %v34, 0
  %v75 = vsel %vm61, %v35, 0
  %v78 = vsel %vm61, %v36, 0
  %v81 = vsel %vm61, %v37, 0
  %v84 = vsel %vm61, %v38, 0
  %vm86 = vcmask 1044480
  %vm87 = vcmask 1045504
  %v88 = vsel %vm86, 4294967295, 65535
  %v89 = vsel %vm87, %v88, 0
  %v91 = vand.u32 %v59, %v89
  %93 = vmatprep.subr.bf16.mxu0 0
  %94 = vmatpush1.bf16.msra.mxu0 %v58
  %95 = vmatprep.subr.bf16.mxu0 0
  %96 = vmatpush1.bf16.msra.mxu0 %v91
  %97 = vmatprep.subr.bf16.mxu0 0
  %98 = vmatpush1.bf16.msra.mxu0 0
  %99 = vmatprep.subr.bf16.mxu0 0
  %100 = vmatpush1.bf16.msra.mxu0 0
  %101 = vmatprep.subr.bf16.mxu0 0
  %102 = vmatpush1.bf16.msra.mxu0 0
  %103 = vmatprep.subr.bf16.mxu0 0
  %104 = vmatpush1.bf16.msra.mxu0 0
  %105 = vmatprep.subr.bf16.mxu0 0
  %106 = vmatpush1.bf16.msra.mxu0 0
  %107 = vmatprep.subr.bf16.mxu0 0
  %108 = vmatpush1.bf16.msra.mxu0 0
  %109 = vmatprep.subr.bf16.mxu0 0
  %110 = vmatpush1.bf16.msra.mxu0 0
  %111 = vmatprep.subr.bf16.mxu0 0
  %112 = vmatpush1.bf16.msra.mxu0 0
  %113 = vmatprep.subr.bf16.mxu0 0
  %114 = vmatpush1.bf16.msra.mxu0 0
  %115 = vmatprep.subr.bf16.mxu0 0
  %116 = vmatpush1.bf16.msra.mxu0 0
  %117 = vmatprep.subr.bf16.mxu0 0
  %118 = vmatpush1.bf16.msra.mxu0 0
  %119 = vmatprep.subr.bf16.mxu0 0
  %120 = vmatpush1.bf16.msra.mxu0 0
  %121 = vmatprep.subr.bf16.mxu0 0
  %122 = vmatpush1.bf16.msra.mxu0 0
  %123 = vmatprep.subr.bf16.mxu0 0
  %124 = vmatpush1.bf16.msra.mxu0 0
  %125 = vmatprep.mubr.bf16.mxu0 0
  %126 = vmatmul.mubr.bf16.gmra.mrb[0].mxu0 %v63
  %v127 = vpop.f32.mrb[0].mxu0
  %v128 = vadd.f32 %v48, %v127
  %v129 = vpop.f32.mrb[0].mxu0
  %v130 = vpop.f32.mrb[0].mxu0
  %v131 = vadd.f32 %v48, %v130
  %v132 = vpop.f32.mrb[0].mxu0
  %133 = vmatprep.mubr.bf16.mxu0 0
  %134 = vmatmul.mubr.bf16.gmra.mrb[0].mxu0 %v66
  %v135 = vpop.f32.mrb[0].mxu0
  %v136 = vadd.f32 %v48, %v135
  %v137 = vpop.f32.mrb[0].mxu0
  %v138 = vpop.f32.mrb[0].mxu0
  %v139 = vadd.f32 %v48, %v138
  %v140 = vpop.f32.mrb[0].mxu0
  %141 = vmatprep.mubr.bf16.mxu0 0
  %142 = vmatmul.mubr.bf16.gmra.mrb[0].mxu0 %v69
  %v143 = vpop.f32.mrb[0].mxu0
  %v144 = vadd.f32 %v48, %v143
  %v145 = vpop.f32.mrb[0].mxu0
  %v146 = vpop.f32.mrb[0].mxu0
  %v147 = vadd.f32 %v48, %v146
  %v148 = vpop.f32.mrb[0].mxu0
  %149 = vmatprep.mubr.bf16.mxu0 0
  %150 = vmatmul.mubr.bf16.gmra.mrb[0].mxu0 %v72
  %v151 = vpop.f32.mrb[0].mxu0
  %v152 = vadd.f32 %v48, %v151
  %v153 = vpop.f32.mrb[0].mxu0
  %v154 = vpop.f32.mrb[0].mxu0
  %v155 = vadd.f32 %v48, %v154
  %v156 = vpop.f32.mrb[0].mxu0
  %157 = vmatprep.mubr.bf16.mxu0 0
  %158 = vmatmul.mubr.bf16.gmra.mrb[0].mxu0 %v75
  %v159 = vpop.f32.mrb[0].mxu0
  %v160 = vadd.f32 %v48, %v159
  %v161 = vpop.f32.mrb[0].mxu0
  %v162 = vpop.f32.mrb[0].mxu0
  %v163 = vadd.f32 %v48, %v162
  %v164 = vpop.f32.mrb[0].mxu0
  %165 = vmatprep.mubr.bf16.mxu0 0
  %166 = vmatmul.mubr.bf16.gmra.mrb[0].mxu0 %v78
  %v167 = vpop.f32.mrb[0].mxu0
  %v168 = vadd.f32 %v48, %v167
  %v169 = vpop.f32.mrb[0].mxu0
  %v170 = vpop.f32.mrb[0].mxu0
  %v171 = vadd.f32 %v48, %v170
  %v172 = vpop.f32.mrb[0].mxu0
  %173 = vmatprep.mubr.bf16.mxu0 0
  %174 = vmatmul.mubr.bf16.gmra.mrb[0].mxu0 %v81
  %v175 = vpop.f32.mrb[0].mxu0
  %v176 = vadd.f32 %v48, %v175
  %v177 = vpop.f32.mrb[0].mxu0
  %v178 = vpop.f32.mrb[0].mxu0
  %v179 = vadd.f32 %v48, %v178
  %v180 = vpop.f32.mrb[0].mxu0
  %181 = vmatprep.mubr.bf16.mxu0 0
  %182 = vmatmul.mubr.bf16.gmra.mrb[0].mxu0 %v84
  %v183 = vpop.f32.mrb[0].mxu0
  %v184 = vadd.f32 %v48, %v183
  %v185 = vpop.f32.mrb[0].mxu0
  %v186 = vpop.f32.mrb[0].mxu0
  %v187 = vadd.f32 %v48, %v186
  %v188 = vpop.f32.mrb[0].mxu0
  %189 = vdwg.mxu0
  %v190 = vxor.u32 %v128, 2147483648
  %v191 = vxor.u32 %v131, 2147483648
  %v192 = vxor.u32 %v136, 2147483648
  %v193 = vxor.u32 %v139, 2147483648
  %v194 = vxor.u32 %v144, 2147483648
  %v195 = vxor.u32 %v147, 2147483648
  %v196 = vxor.u32 %v152, 2147483648
  %v197 = vxor.u32 %v155, 2147483648
  %v198 = vxor.u32 %v160, 2147483648
  %v199 = vxor.u32 %v163, 2147483648
  %v200 = vxor.u32 %v168, 2147483648
  %v201 = vxor.u32 %v171, 2147483648
  %v202 = vxor.u32 %v176, 2147483648
  %v203 = vxor.u32 %v179, 2147483648
  %v204 = vxor.u32 %v184, 2147483648
  %v205 = vxor.u32 %v187, 2147483648
  %v206 = vmul.f32 %v190, 1.442695
  %v207 = vpow.pop %v206
  %v208 = vmul.f32 %v191, 1.442695
  %v209 = vpow.pop %v208
  %v210 = vmul.f32 %v192, 1.442695
  %v211 = vpow.pop %v210
  %v212 = vmul.f32 %v193, 1.442695
  %v213 = vpow.pop %v212
  %v214 = vmul.f32 %v194, 1.442695
  %v215 = vpow.pop %v214
  %v216 = vmul.f32 %v195, 1.442695
  %v217 = vpow.pop %v216
  %v218 = vmul.f32 %v196, 1.442695
  %v219 = vpow.pop %v218
  %v220 = vmul.f32 %v197, 1.442695
  %v221 = vpow.pop %v220
  %v222 = vmul.f32 %v198, 1.442695
  %v223 = vpow.pop %v222
  %v224 = vmul.f32 %v199, 1.442695
  %v225 = vpow.pop %v224
  %v226 = vmul.f32 %v200, 1.442695
  %v227 = vpow.pop %v226
  %v228 = vmul.f32 %v201, 1.442695
  %v229 = vpow.pop %v228
  %v230 = vmul.f32 %v202, 1.442695
  %v231 = vpow.pop %v230
  %v232 = vmul.f32 %v203, 1.442695
  %v233 = vpow.pop %v232
  %v234 = vmul.f32 %v204, 1.442695
  %v235 = vpow.pop %v234
  %v236 = vmul.f32 %v205, 1.442695
  %v237 = vpow.pop %v236
  %v238 = vadd.f32 %v207, 1.0
  %v239 = vadd.f32 %v209, 1.0
  %v240 = vadd.f32 %v211, 1.0
  %v241 = vadd.f32 %v213, 1.0
  %v242 = vadd.f32 %v215, 1.0
  %v243 = vadd.f32 %v217, 1.0
  %v244 = vadd.f32 %v219, 1.0
  %v245 = vadd.f32 %v221, 1.0
  %v246 = vadd.f32 %v223, 1.0
  %v247 = vadd.f32 %v225, 1.0
  %v248 = vadd.f32 %v227, 1.0
  %v249 = vadd.f32 %v229, 1.0
  %v250 = vadd.f32 %v231, 1.0
  %v251 = vadd.f32 %v233, 1.0
  %v252 = vadd.f32 %v235, 1.0
  %v253 = vadd.f32 %v237, 1.0
  %v254 = vrcp.pop %v238
  %v255 = vmul.f32 1.0, %v254
  %v256 = vrcp.pop %v239
  %v257 = vmul.f32 1.0, %v256
  %v258 = vrcp.pop %v240
  %v259 = vmul.f32 1.0, %v258
  %v260 = vrcp.pop %v241
  %v261 = vmul.f32 1.0, %v260
  %v262 = vrcp.pop %v242
  %v263 = vmul.f32 1.0, %v262
  %v264 = vrcp.pop %v243
  %v265 = vmul.f32 1.0, %v264
  %v266 = vrcp.pop %v244
  %v267 = vmul.f32 1.0, %v266
  %v268 = vrcp.pop %v245
  %v269 = vmul.f32 1.0, %v268
  %v270 = vrcp.pop %v246
  %v271 = vmul.f32 1.0, %v270
  %v272 = vrcp.pop %v247
  %v273 = vmul.f32 1.0, %v272
  %v274 = vrcp.pop %v248
  %v275 = vmul.f32 1.0, %v274
  %v276 = vrcp.pop %v249
  %v277 = vmul.f32 1.0, %v276
  %v278 = vrcp.pop %v250
  %v279 = vmul.f32 1.0, %v278
  %v280 = vrcp.pop %v251
  %v281 = vmul.f32 1.0, %v280
  %v282 = vrcp.pop %v252
  %v283 = vmul.f32 1.0, %v282
  %v284 = vrcp.pop %v253
  %v285 = vmul.f32 1.0, %v284
  %v286 = vmul.f32 %v128, %v255
  %v287 = vmul.f32 %v131, %v257
  %v288 = vmul.f32 %v136, %v259
  %v289 = vmul.f32 %v139, %v261
  %v290 = vmul.f32 %v144, %v263
  %v291 = vmul.f32 %v147, %v265
  %v292 = vmul.f32 %v152, %v267
  %v293 = vmul.f32 %v155, %v269
  %v294 = vmul.f32 %v160, %v271
  %v295 = vmul.f32 %v163, %v273
  %v296 = vmul.f32 %v168, %v275
  %v297 = vmul.f32 %v171, %v277
  %v298 = vmul.f32 %v176, %v279
  %v299 = vmul.f32 %v179, %v281
  %v300 = vmul.f32 %v184, %v283
  %v301 = vmul.f32 %v187, %v285
  %vm302 = vcmask 64512
  %303 = vst.msk [vmem:[%s3] sm:$0xff] %vm302, %v286
  %304 = vst.msk [vmem:[%s3 + $0x8] sm:$0xff] %vm302, %v287
  %305 = vst.msk [vmem:[%s3 + $0x10] sm:$0xff] %vm302, %v288
  %306 = vst.msk [vmem:[%s3 + $0x18] sm:$0xff] %vm302, %v289
  %307 = vst.msk [vmem:[%s3 + $0x20] sm:$0xff] %vm302, %v290
  %308 = vst.msk [vmem:[%s3 + $0x28] sm:$0xff] %vm302, %v291
  %309 = vst.msk [vmem:[%s3 + $0x30] sm:$0xff] %vm302, %v292
  %310 = vst.msk [vmem:[%s3 + $0x38] sm:$0xff] %vm302, %v293
  %311 = vst.msk [vmem:[%s3 + $0x40] sm:$0xff] %vm302, %v294
  %312 = vst.msk [vmem:[%s3 + $0x48] sm:$0xff] %vm302, %v295
  %313 = vst.msk [vmem:[%s3 + $0x50] sm:$0xff] %vm302, %v296
  %314 = vst.msk [vmem:[%s3 + $0x58] sm:$0xff] %vm302, %v297
  %315 = vst.msk [vmem:[%s3 + $0x60] sm:$0xff] %vm302, %v298
  %316 = vst.msk [vmem:[%s3 + $0x68] sm:$0xff] %vm302, %v299
  %317 = vst.msk [vmem:[%s3 + $0x70] sm:$0xff] %vm302, %v300
  %318 = vst.msk [vmem:[%s3 + $0x78] sm:$0xff] %vm302, %v301
  // Predicated region
  $region14: #{_lambda_.5} parent=0 // pred_check
    _
  $region15: #{_lambda_.5} parent=0 // pred_check_branch
    %320 = sbr.rel (0) target = $region17
  $region16: #{_lambda_.5} parent=0 // pred_region
    _
  $region17: #{_lambda_.5} parent=0 // pred_fallthru
    _
  // Predicated region
  $region18: #{_lambda_.5} parent=0 // pred_check
    _
  $region19: #{_lambda_.5} parent=0 // pred_check_branch
    %322 = sbr.rel (0) target = $region21
  $region20: #{_lambda_.5} parent=0 // pred_region
    _
  $region21: #{_lambda_.5} parent=0 // pred_fallthru
    _

// kernel: _lambda_.8
$region0: #{_lambda_.8}
  #allocation0 [shape = 'u32[]', space=smem, size = 0x4, offset = 0x4, fixed_abs, tag = 'smem constant byte address 0x4 - core index']
  #allocation1 [shape = 'u32[144,128]{1,0:T(1,128)}', space=vmem, size = 0x12000, scoped, tag = 'internal scratch']
  #allocation2 [shape = 'f32[8,8,48]{2,1,0:T(8,128)}', space=vmem, size = 0x8000, scoped, tag = 'scratch operand']
  #allocation3 [shape = 'f32[16,48]{1,0:T(8,128)}', space=vmem, size = 0x2000, scoped, tag = 'scratch operand']
  %s0 = inlined_call_operand.vmem [shape: f32[2,16,8], index: 0, kind: input, shape index: {}]
  %s1 = inlined_call_operand.vmem [shape: bf16[8,48], index: 1, kind: input, shape index: {}]
  %s2 = inlined_call_operand.vmem [shape: f32[1,48], index: 2, kind: input, shape index: {}]
  %s3 = inlined_call_operand.vmem [shape: f32[25,48], index: 3, kind: input, shape index: {}]
  %s4 = inlined_call_operand.vmem [shape: f32[1,48], index: 4, kind: input, shape index: {}]
  %s5 = inlined_call_operand.vmem [shape: f32[48,2], index: 5, kind: input, shape index: {}]
  %s6 = inlined_call_operand.vmem [shape: f32[1,2], index: 6, kind: input, shape index: {}]
  %s7 = inlined_call_operand.vmem [shape: f32[2,48], index: 7, kind: input, shape index: {}]
  %s8 = inlined_call_operand.vmem [shape: f32[1,48], index: 8, kind: input, shape index: {}]
  %s9 = inlined_call_operand.vmem [shape: bf16[48,8], index: 9, kind: input, shape index: {}]
  %s10 = inlined_call_operand.vmem [shape: f32[1,8], index: 10, kind: input, shape index: {}]
  %s11 = inlined_call_operand.vmem [shape: f32[2,16,8], index: 11, kind: output, shape index: {}]
  %s12 = sld [smem:[#allocation0]]
  $region77: #{_lambda_.8} parent=0
    _
  %s14 = ssub.s32 1, %s12
  %s15 = scalar_select 0, %s14, %s12
  loop: start=0, step=1, limit=4
  $region2: #{_lambda_.8} parent=0 // loop_pre_header
    _
  $region3: #{_lambda_.8} parent=0 // loop_header
    %s17 = sphi 0, %s21
    %p18 = scmp.ge.s32.totalorder %s17, 4
    %s27 = sphi 0, %s29
    %s30 = sphi 0, %s27
    %s31 = sphi 0, %s30
    %s47 = sphi 0, %s31
    %s51 = sphi 0, %s51
    %s53 = sphi 0, %s51
    %s54 = sphi 0, %s53
    %s68 = sphi 0, %s54
    %s72 = sphi 0, %s72
    %s74 = sphi 0, %s72
    %s75 = sphi 0, %s74
    %s89 = sphi 0, %s75
    %s93 = sphi 0, %s93
    %s95 = sphi 0, %s93
    %s96 = sphi 0, %s95
    %s110 = sphi 0, %s96
    %s114 = sphi 0, %s114
    %s116 = sphi 0, %s114
    %s117 = sphi 0, %s116
    %s131 = sphi 0, %s117
    %s135 = sphi 0, %s135
    %s137 = sphi 0, %s135
    %s138 = sphi 0, %s137
    %s152 = sphi 0, %s138
    %s156 = sphi 0, %s156
    %s158 = sphi 0, %s156
    %s159 = sphi 0, %s158
    %s173 = sphi 0, %s159
    %s177 = sphi 0, %s177
    %s179 = sphi 0, %s177
    %s180 = sphi 0, %s179
    %s194 = sphi 0, %s180
    %s198 = sphi 0, %s198
    %s200 = sphi 0, %s198
    %s201 = sphi 0, %s200
    %s215 = sphi 0, %s201
    %s219 = sphi 0, %s219
    %s221 = sphi 0, %s219
    %s222 = sphi 0, %s221
    %s236 = sphi 0, %s222
    %s240 = sphi 0, %s240
    %s242 = sphi 0, %s240
    %s243 = sphi 0, %s242
    %s257 = sphi 0, %s243
    %s263 = sphi 0, %s265
    %s266 = sphi 0, %s263
    %s267 = sphi 0, %s266
    %s283 = sphi 0, %s267
  $region4: #{_lambda_.8} parent=0 // loop_header_branch
    %20 = sbr.rel (%p18) target = $region8
  $region5: #{_lambda_.8} parent=0 // loop_body
    %s22 = ssub.s32 %s17, 1
    %s23 = ssub.s32 %s17, 2
    %s24 = sadd.s32 %s17, 1
    %s25 = ssub.s32 %s17, %s24
    %p26 = scmp.eq.s32.totalorder %s25, 0
    %s28 = sadd.s32 %s27, 1
    %s29 = scalar_select %p26, %s27, %s28
    %p32 = pneg %p26
    %p33 = scmp.eq.s32.totalorder %s17, 1
    %p34 = por %p32, %p33
    %p35 = scmp.ne.s32.totalorder %s27, %s30
    %p36 = scmp.eq.s32.totalorder %s17, 0
    %p37 = por %p35, %p36
    %p38 = scmp.ne.s32.totalorder %s27, %s30
    %p39 = scmp.eq.s32.totalorder %s22, 1
    %p40 = por %p38, %p39
    %p41 = scmp.ne.s32.totalorder %s30, %s31
    %p42 = scmp.eq.s32.totalorder %s22, 0
    %p43 = por %p41, %p42
    %p44 = scmp.ne.s32.totalorder %s30, %s31
    %p45 = scmp.eq.s32.totalorder %s23, 1
    %p46 = por %p44, %p45
    %p48 = scmp.ne.s32.totalorder %s31, %s47
    %p49 = scmp.eq.s32.totalorder %s23, 0
    %p50 = por %p48, %p49
    %s52 = sadd.s32 %s51, 1
    %p55 = scmp.eq.s32.totalorder %s17, 1
    %p56 = scmp.ne.s32.totalorder %s51, %s53
    %p57 = scmp.eq.s32.totalorder %s17, 0
    %p58 = por %p56, %p57
    %p59 = scmp.ne.s32.totalorder %s51, %s53
    %p60 = scmp.eq.s32.totalorder %s22, 1
    %p61 = por %p59, %p60
    %p62 = scmp.ne.s32.totalorder %s53, %s54
    %p63 = scmp.eq.s32.totalorder %s22, 0
    %p64 = por %p62, %p63
    %p65 = scmp.ne.s32.totalorder %s53, %s54
    %p66 = scmp.eq.s32.totalorder %s23, 1
    %p67 = por %p65, %p66
    %p69 = scmp.ne.s32.totalorder %s54, %s68
    %p70 = scmp.eq.s32.totalorder %s23, 0
    %p71 = por %p69, %p70
    %s73 = sadd.s32 %s72, 1
    %p76 = scmp.eq.s32.totalorder %s17, 1
    %p77 = scmp.ne.s32.totalorder %s72, %s74
    %p78 = scmp.eq.s32.totalorder %s17, 0
    %p79 = por %p77, %p78
    %p80 = scmp.ne.s32.totalorder %s72, %s74
    %p81 = scmp.eq.s32.totalorder %s22, 1
    %p82 = por %p80, %p81
    %p83 = scmp.ne.s32.totalorder %s74, %s75
    %p84 = scmp.eq.s32.totalorder %s22, 0
    %p85 = por %p83, %p84
    %p86 = scmp.ne.s32.totalorder %s74, %s75
    %p87 = scmp.eq.s32.totalorder %s23, 1
    %p88 = por %p86, %p87
    %p90 = scmp.ne.s32.totalorder %s75, %s89
    %p91 = scmp.eq.s32.totalorder %s23, 0
    %p92 = por %p90, %p91
    %s94 = sadd.s32 %s93, 1
    %p97 = scmp.eq.s32.totalorder %s17, 1
    %p98 = scmp.ne.s32.totalorder %s93, %s95
    %p99 = scmp.eq.s32.totalorder %s17, 0
    %p100 = por %p98, %p99
    %p101 = scmp.ne.s32.totalorder %s93, %s95
    %p102 = scmp.eq.s32.totalorder %s22, 1
    %p103 = por %p101, %p102
    %p104 = scmp.ne.s32.totalorder %s95, %s96
    %p105 = scmp.eq.s32.totalorder %s22, 0
    %p106 = por %p104, %p105
    %p107 = scmp.ne.s32.totalorder %s95, %s96
    %p108 = scmp.eq.s32.totalorder %s23, 1
    %p109 = por %p107, %p108
    %p111 = scmp.ne.s32.totalorder %s96, %s110
    %p112 = scmp.eq.s32.totalorder %s23, 0
    %p113 = por %p111, %p112
    %s115 = sadd.s32 %s114, 1
    %p118 = scmp.eq.s32.totalorder %s17, 1
    %p119 = scmp.ne.s32.totalorder %s114, %s116
    %p120 = scmp.eq.s32.totalorder %s17, 0
    %p121 = por %p119, %p120
    %p122 = scmp.ne.s32.totalorder %s114, %s116
    %p123 = scmp.eq.s32.totalorder %s22, 1
    %p124 = por %p122, %p123
    %p125 = scmp.ne.s32.totalorder %s116, %s117
    %p126 = scmp.eq.s32.totalorder %s22, 0
    %p127 = por %p125, %p126
    %p128 = scmp.ne.s32.totalorder %s116, %s117
    %p129 = scmp.eq.s32.totalorder %s23, 1
    %p130 = por %p128, %p129
    %p132 = scmp.ne.s32.totalorder %s117, %s131
    %p133 = scmp.eq.s32.totalorder %s23, 0
    %p134 = por %p132, %p133
    %s136 = sadd.s32 %s135, 1
    %p139 = scmp.eq.s32.totalorder %s17, 1
    %p140 = scmp.ne.s32.totalorder %s135, %s137
    %p141 = scmp.eq.s32.totalorder %s17, 0
    %p142 = por %p140, %p141
    %p143 = scmp.ne.s32.totalorder %s135, %s137
    %p144 = scmp.eq.s32.totalorder %s22, 1
    %p145 = por %p143, %p144
    %p146 = scmp.ne.s32.totalorder %s137, %s138
    %p147 = scmp.eq.s32.totalorder %s22, 0
    %p148 = por %p146, %p147
    %p149 = scmp.ne.s32.totalorder %s137, %s138
    %p150 = scmp.eq.s32.totalorder %s23, 1
    %p151 = por %p149, %p150
    %p153 = scmp.ne.s32.totalorder %s138, %s152
    %p154 = scmp.eq.s32.totalorder %s23, 0
    %p155 = por %p153, %p154
    %s157 = sadd.s32 %s156, 1
    %p160 = scmp.eq.s32.totalorder %s17, 1
    %p161 = scmp.ne.s32.totalorder %s156, %s158
    %p162 = scmp.eq.s32.totalorder %s17, 0
    %p163 = por %p161, %p162
    %p164 = scmp.ne.s32.totalorder %s156, %s158
    %p165 = scmp.eq.s32.totalorder %s22, 1
    %p166 = por %p164, %p165
    %p167 = scmp.ne.s32.totalorder %s158, %s159
    %p168 = scmp.eq.s32.totalorder %s22, 0
    %p169 = por %p167, %p168
    %p170 = scmp.ne.s32.totalorder %s158, %s159
    %p171 = scmp.eq.s32.totalorder %s23, 1
    %p172 = por %p170, %p171
    %p174 = scmp.ne.s32.totalorder %s159, %s173
    %p175 = scmp.eq.s32.totalorder %s23, 0
    %p176 = por %p174, %p175
    %s178 = sadd.s32 %s177, 1
    %p181 = scmp.eq.s32.totalorder %s17, 1
    %p182 = scmp.ne.s32.totalorder %s177, %s179
    %p183 = scmp.eq.s32.totalorder %s17, 0
    %p184 = por %p182, %p183
    %p185 = scmp.ne.s32.totalorder %s177, %s179
    %p186 = scmp.eq.s32.totalorder %s22, 1
    %p187 = por %p185, %p186
    %p188 = scmp.ne.s32.totalorder %s179, %s180
    %p189 = scmp.eq.s32.totalorder %s22, 0
    %p190 = por %p188, %p189
    %p191 = scmp.ne.s32.totalorder %s179, %s180
    %p192 = scmp.eq.s32.totalorder %s23, 1
    %p193 = por %p191, %p192
    %p195 = scmp.ne.s32.totalorder %s180, %s194
    %p196 = scmp.eq.s32.totalorder %s23, 0
    %p197 = por %p195, %p196
    %s199 = sadd.s32 %s198, 1
    %p202 = scmp.eq.s32.totalorder %s17, 1
    %p203 = scmp.ne.s32.totalorder %s198, %s200
    %p204 = scmp.eq.s32.totalorder %s17, 0
    %p205 = por %p203, %p204
    %p206 = scmp.ne.s32.totalorder %s198, %s200
    %p207 = scmp.eq.s32.totalorder %s22, 1
    %p208 = por %p206, %p207
    %p209 = scmp.ne.s32.totalorder %s200, %s201
    %p210 = scmp.eq.s32.totalorder %s22, 0
    %p211 = por %p209, %p210
    %p212 = scmp.ne.s32.totalorder %s200, %s201
    %p213 = scmp.eq.s32.totalorder %s23, 1
    %p214 = por %p212, %p213
    %p216 = scmp.ne.s32.totalorder %s201, %s215
    %p217 = scmp.eq.s32.totalorder %s23, 0
    %p218 = por %p216, %p217
    %s220 = sadd.s32 %s219, 1
    %p223 = scmp.eq.s32.totalorder %s17, 1
    %p224 = scmp.ne.s32.totalorder %s219, %s221
    %p225 = scmp.eq.s32.totalorder %s17, 0
    %p226 = por %p224, %p225
    %p227 = scmp.ne.s32.totalorder %s219, %s221
    %p228 = scmp.eq.s32.totalorder %s22, 1
    %p229 = por %p227, %p228
    %p230 = scmp.ne.s32.totalorder %s221, %s222
    %p231 = scmp.eq.s32.totalorder %s22, 0
    %p232 = por %p230, %p231
    %p233 = scmp.ne.s32.totalorder %s221, %s222
    %p234 = scmp.eq.s32.totalorder %s23, 1
    %p235 = por %p233, %p234
    %p237 = scmp.ne.s32.totalorder %s222, %s236
    %p238 = scmp.eq.s32.totalorder %s23, 0
    %p239 = por %p237, %p238
    %s241 = sadd.s32 %s240, 1
    %p244 = scmp.eq.s32.totalorder %s17, 1
    %p245 = scmp.ne.s32.totalorder %s240, %s242
    %p246 = scmp.eq.s32.totalorder %s17, 0
    %p247 = por %p245, %p246
    %p248 = scmp.ne.s32.totalorder %s240, %s242
    %p249 = scmp.eq.s32.totalorder %s22, 1
    %p250 = por %p248, %p249
    %p251 = scmp.ne.s32.totalorder %s242, %s243
    %p252 = scmp.eq.s32.totalorder %s22, 0
    %p253 = por %p251, %p252
    %p254 = scmp.ne.s32.totalorder %s242, %s243
    %p255 = scmp.eq.s32.totalorder %s23, 1
    %p256 = por %p254, %p255
    %p258 = scmp.ne.s32.totalorder %s243, %s257
    %p259 = scmp.eq.s32.totalorder %s23, 0
    %p260 = por %p258, %p259
    %s261 = ssub.s32 %s17, %s24
    %p262 = scmp.eq.s32.totalorder %s261, 0
    %s264 = sadd.s32 %s263, 1
    %s265 = scalar_select %p262, %s263, %s264
    %p268 = pneg %p262
    %p269 = scmp.eq.s32.totalorder %s17, 1
    %p270 = por %p268, %p269
    %p271 = scmp.ne.s32.totalorder %s263, %s266
    %p272 = scmp.eq.s32.totalorder %s17, 0
    %p273 = por %p271, %p272
    %p274 = scmp.ne.s32.totalorder %s263, %s266
    %p275 = scmp.eq.s32.totalorder %s22, 1
    %p276 = por %p274, %p275
    %p277 = scmp.ne.s32.totalorder %s266, %s267
    %p278 = scmp.eq.s32.totalorder %s22, 0
    %p279 = por %p277, %p278
    %p280 = scmp.ne.s32.totalorder %s266, %s267
    %p281 = scmp.eq.s32.totalorder %s23, 1
    %p282 = por %p280, %p281
    %p284 = scmp.ne.s32.totalorder %s267, %s283
    %p285 = scmp.eq.s32.totalorder %s23, 0
    %p286 = por %p284, %p285
    %p287 = scmp.le.s32.totalorder 1, %s17
    %p288 = scmp.lt.s32.totalorder %s17, 3
    %p289 = pnand %p287, %p288
    %p290 = pneg %p289
    // Predicated region
    $region9: #{_lambda_.8} parent=5 // pred_check
      _
    $region10: #{_lambda_.8} parent=5 // pred_check_branch
      %292 = sbr.rel (%p289) target = $region12
    $region11: #{_lambda_.8} parent=5 // pred_region
      %s293 = ssub.s32 %s17, 1
      // Predicated region
      $region13: #{_lambda_.8} parent=11 // pred_check
        %p294 = pneg %p64
      $region14: #{_lambda_.8} parent=11 // pred_check_branch
        %296 = sbr.rel (%p294) target = $region16
      $region15: #{_lambda_.8} parent=11 // pred_region
        _
      $region16: #{_lambda_.8} parent=11 // pred_fallthru
        _
      // Predicated region
      $region17: #{_lambda_.8} parent=11 // pred_check
        %p297 = pneg %p85
      $region18: #{_lambda_.8} parent=11 // pred_check_branch
        %299 = sbr.rel (%p297) target = $region20
      $region19: #{_lambda_.8} parent=11 // pred_region
        _
      $region20: #{_lambda_.8} parent=11 // pred_fallthru
        _
      // Predicated region
      $region21: #{_lambda_.8} parent=11 // pred_check
        %p300 = pneg %p106
      $region22: #{_lambda_.8} parent=11 // pred_check_branch
        %302 = sbr.rel (%p300) target = $region24
      $region23: #{_lambda_.8} parent=11 // pred_region
        _
      $region24: #{_lambda_.8} parent=11 // pred_fallthru
        _
      // Predicated region
      $region25: #{_lambda_.8} parent=11 // pred_check
        %p303 = pneg %p127
      $region26: #{_lambda_.8} parent=11 // pred_check_branch
        %305 = sbr.rel (%p303) target = $region28
      $region27: #{_lambda_.8} parent=11 // pred_region
        _
      $region28: #{_lambda_.8} parent=11 // pred_fallthru
        _
      // Predicated region
      $region29: #{_lambda_.8} parent=11 // pred_check
        %p306 = pneg %p148
      $region30: #{_lambda_.8} parent=11 // pred_check_branch
        %308 = sbr.rel (%p306) target = $region32
      $region31: #{_lambda_.8} parent=11 // pred_region
        _
      $region32: #{_lambda_.8} parent=11 // pred_fallthru
        _
      // Predicated region
      $region33: #{_lambda_.8} parent=11 // pred_check
        %p309 = pneg %p169
      $region34: #{_lambda_.8} parent=11 // pred_check_branch
        %311 = sbr.rel (%p309) target = $region36
      $region35: #{_lambda_.8} parent=11 // pred_region
        _
      $region36: #{_lambda_.8} parent=11 // pred_fallthru
        _
      // Predicated region
      $region37: #{_lambda_.8} parent=11 // pred_check
        %p312 = pneg %p190
      $region38: #{_lambda_.8} parent=11 // pred_check_branch
        %314 = sbr.rel (%p312) target = $region40
      $region39: #{_lambda_.8} parent=11 // pred_region
        _
      $region40: #{_lambda_.8} parent=11 // pred_fallthru
        _
      // Predicated region
      $region41: #{_lambda_.8} parent=11 // pred_check
        %p315 = pneg %p211
      $region42: #{_lambda_.8} parent=11 // pred_check_branch
        %317 = sbr.rel (%p315) target = $region44
      $region43: #{_lambda_.8} parent=11 // pred_region
        _
      $region44: #{_lambda_.8} parent=11 // pred_fallthru
        _
      // Predicated region
      $region45: #{_lambda_.8} parent=11 // pred_check
        %p318 = pneg %p232
      $region46: #{_lambda_.8} parent=11 // pred_check_branch
        %320 = sbr.rel (%p318) target = $region48
      $region47: #{_lambda_.8} parent=11 // pred_region
        _
      $region48: #{_lambda_.8} parent=11 // pred_fallthru
        _
      // Predicated region
      $region49: #{_lambda_.8} parent=11 // pred_check
        %p321 = pneg %p253
      $region50: #{_lambda_.8} parent=11 // pred_check_branch
        %323 = sbr.rel (%p321) target = $region52
      $region51: #{_lambda_.8} parent=11 // pred_region
        _
      $region52: #{_lambda_.8} parent=11 // pred_fallthru
        _
    $region12: #{_lambda_.8} parent=5 // pred_fallthru
      _
    %p324 = scmp.lt.s32.totalorder %s17, 2
    // Predicated region
    $region53: #{_lambda_.8} parent=5 // pred_check
      %p325 = pneg %p324
    $region54: #{_lambda_.8} parent=5 // pred_check_branch
      %327 = sbr.rel (%p325) target = $region56
    $region55: #{_lambda_.8} parent=5 // pred_region
      // Predicated region
      $region57: #{_lambda_.8} parent=55 // pred_check
        %p328 = pneg %p37
      $region58: #{_lambda_.8} parent=55 // pred_check_branch
        %330 = sbr.rel (%p328) target = $region60
      $region59: #{_lambda_.8} parent=55 // pred_region
        %p331 = scmp.lt.s32.totalorder %s17, 1
        %s332 = scalar_select %p331, %s17, 1
        %s333 = smul.addr %s332, 2
        %s334 = smul.addr %s333, 8
        %s335 = scalar_lea.vmem %s0, %s334
      $region60: #{_lambda_.8} parent=55 // pred_fallthru
        _
    $region56: #{_lambda_.8} parent=5 // pred_fallthru
      _
    %p336 = scmp.le.s32.totalorder 1, %s17
    %p337 = scmp.lt.s32.totalorder %s17, 3
    %p338 = pnand %p336, %p337
    %p339 = pneg %p338
    // Predicated region
    $region61: #{_lambda_.8} parent=5 // pred_check
      _
    $region62: #{_lambda_.8} parent=5 // pred_check_branch
      %341 = sbr.rel (%p338) target = $region64
    $region63: #{_lambda_.8} parent=5 // pred_region
      %s342 = ssub.s32 %s17, 1
      %p343 = scmp.lt.s32.totalorder %s22, 1
      %s344 = scalar_select %p343, %s22, 1
      %s345 = smul.addr %s344, 2
      %s346 = smul.addr %s345, 8
      %s347 = scalar_lea.vmem %s0, %s346
      %p348 = pneg %p43
      %p349 = pneg %p40
      %p350 = pneg %p64
      %p351 = pneg %p61
      %p352 = pneg %p85
      %p353 = pneg %p82
      %p354 = pneg %p106
      %p355 = pneg %p103
      %p356 = pneg %p127
      %p357 = pneg %p124
      %p358 = pneg %p148
      %p359 = pneg %p145
      %p360 = pneg %p169
      %p361 = pneg %p166
      %p362 = pneg %p190
      %p363 = pneg %p187
      %p364 = pneg %p211
      %p365 = pneg %p208
      %p366 = pneg %p232
      %p367 = pneg %p229
      %p368 = pneg %p253
      %p369 = pneg %p250
      %p370 = pneg %p279
      %p371 = pneg %p276
      %p372 = scmp.lt.s32.totalorder %s22, 1
      %s373 = scalar_select %p372, %s22, 1
      %s374 = smul.addr %s373, 2
      %s375 = smul.addr %s374, 8
      %s376 = scalar_lea.vmem %s11, %s375
      %p377 = scmp.lt.s32.totalorder %s22, 1
      %s378 = scalar_select %p377, %s22, 1
      %s379 = smul.addr %s378, 2
      %s380 = smul.addr %s379, 8
      %s381 = scalar_lea.vmem %s0, %s380
      %p382 = scmp.lt.s32.totalorder %s22, 1
      %s383 = scalar_select %p382, %s22, 1
      %s384 = smul.addr %s383, 2
      %s385 = smul.addr %s384, 8
      %s386 = scalar_lea.vmem %s11, %s385
      %vm388 = vcmask 392192
      %389 = vst.msk [vmem:[#allocation2] sm:$0xff] %vm388, 0.0
      %390 = vst.msk [vmem:[#allocation2 + $0x8] sm:$0xff] %vm388, 0.0
      %391 = vst.msk [vmem:[#allocation2 + $0x10] sm:$0xff] %vm388, 0.0
      %392 = vst.msk [vmem:[#allocation2 + $0x18] sm:$0xff] %vm388, 0.0
      %393 = vst.msk [vmem:[#allocation2 + $0x20] sm:$0xff] %vm388, 0.0
      %394 = vst.msk [vmem:[#allocation2 + $0x28] sm:$0xff] %vm388, 0.0
      %395 = vst.msk [vmem:[#allocation2 + $0x30] sm:$0xff] %vm388, 0.0
      %396 = vst.msk [vmem:[#allocation2 + $0x38] sm:$0xff] %vm388, 0.0
      %v397 = vld [vmem:[%s381] sm:$0xff]
      %v398 = vld [vmem:[%s381 + $0x8] sm:$0xff]
      %v399 = vpack.c.bf16 %v398, %v397
      %v400 = vld [vmem:[%s1] sm:$0xf]
      %v401 = vld [vmem:[%s2] sm:$0x1]
      %v403 = vlaneseq
      %v404 = vshrl.u32 %v403, 7
      %v405 = vsub.s32 0, %v404
      %v406 = vrot.slane %v401, %v405
      %vm408 = vcmask 64512
      %v410 = vsel %vm408, %v399, 0
      %vm412 = vcmask 1043456
      %v414 = vsel %vm412, %v400, 0
      %416 = vmatprep.subr.bf16.mxu0 0
      %417 = vmatpush1.bf16.msra.mxu0 %v414
      %418 = vmatprep.subr.bf16.mxu0 0
      %419 = vmatpush1.bf16.msra.mxu0 0
      %420 = vmatprep.subr.bf16.mxu0 0
      %421 = vmatpush1.bf16.msra.mxu0 0
      %422 = vmatprep.subr.bf16.mxu0 0
      %423 = vmatpush1.bf16.msra.mxu0 0
      %424 = vmatprep.subr.bf16.mxu0 0
      %425 = vmatpush1.bf16.msra.mxu0 0
      %426 = vmatprep.subr.bf16.mxu0 0
      %427 = vmatpush1.bf16.msra.mxu0 0
      %428 = vmatprep.subr.bf16.mxu0 0
      %429 = vmatpush1.bf16.msra.mxu0 0
      %430 = vmatprep.subr.bf16.mxu0 0
      %431 = vmatpush1.bf16.msra.mxu0 0
      %432 = vmatprep.subr.bf16.mxu0 0
      %433 = vmatpush1.bf16.msra.mxu0 0
      %434 = vmatprep.subr.bf16.mxu0 0
      %435 = vmatpush1.bf16.msra.mxu0 0
      %436 = vmatprep.subr.bf16.mxu0 0
      %437 = vmatpush1.bf16.msra.mxu0 0
      %438 = vmatprep.subr.bf16.mxu0 0
      %439 = vmatpush1.bf16.msra.mxu0 0
      %440 = vmatprep.subr.bf16.mxu0 0
      %441 = vmatpush1.bf16.msra.mxu0 0
      %442 = vmatprep.subr.bf16.mxu0 0
      %443 = vmatpush1.bf16.msra.mxu0 0
      %444 = vmatprep.subr.bf16.mxu0 0
      %445 = vmatpush1.bf16.msra.mxu0 0
      %446 = vmatprep.subr.bf16.mxu0 0
      %447 = vmatpush1.bf16.msra.mxu0 0
      %448 = vmatprep.mubr.bf16.mxu0 0
      %449 = vmatmul.mubr.bf16.gmra.mrb[0].mxu0 %v410
      %v450 = vpop.f32.mrb[0].mxu0
      %v451 = vadd.f32 %v406, %v450
      %v452 = vpop.f32.mrb[0].mxu0
      %v453 = vpop.f32.mrb[0].mxu0
      %v454 = vadd.f32 %v406, %v453
      %v455 = vpop.f32.mrb[0].mxu0
      %456 = vdwg.mxu0
      %v457 = vxor.u32 %v451, 2147483648
      %v458 = vxor.u32 %v454, 2147483648
      %v459 = vmul.f32 %v457, 1.442695
      %v460 = vpow.pop %v459
      %v461 = vmul.f32 %v458, 1.442695
      %v462 = vpow.pop %v461
      %v463 = vadd.f32 %v460, 1.0
      %v464 = vadd.f32 %v462, 1.0
      %v465 = vrcp.pop %v463
      %v466 = vmul.f32 1.0, %v465
      %v467 = vrcp.pop %v464
      %v468 = vmul.f32 1.0, %v467
      %v469 = vmul.f32 %v451, %v466
      %v470 = vmul.f32 %v454, %v468
      %s471 = scalar_lea.vmem [#allocation2], 16
      %vm472 = vcmask 388096
      %473 = vst.msk [vmem:[%s471 + $0x2] sm:$0xf] %vm472, %v469
      %s474 = scalar_lea.vmem [#allocation2], 24
      %vm475 = vcmask 392196
      %476 = vst.msk [vmem:[%s474 - $0x2] sm:$0xf0] %vm475, %v469
      %s477 = scalar_lea.vmem [#allocation2], 32
      %478 = vst.msk [vmem:[%s477 + $0x2] sm:$0xf] %vm472, %v470
      %s479 = scalar_lea.vmem [#allocation2], 40
      %480 = vst.msk [vmem:[%s479 - $0x2] sm:$0xf0] %vm475, %v470
      %v481 = vld [vmem:[%s3] sm:$0xff]
      %v482 = vld [vmem:[%s3 + $0x8] sm:$0xff]
      %v483 = vld [vmem:[%s3 + $0x10] sm:$0xff]
      %v484 = vld [vmem:[%s3 + $0x18] sm:$0x1]
      %v485 = vld [vmem:[#allocation2] sm:$0xf]
      %v486 = vld [vmem:[#allocation2 + $0x8] sm:$0xf]
      %v487 = vld [vmem:[#allocation2 + $0x10] sm:$0xf]
      %v488 = vld [vmem:[#allocation2 + $0x18] sm:$0xf]
      %v489 = vld [vmem:[#allocation2 + $0x20] sm:$0xf]
      %v490 = vld [vmem:[#allocation2 + $0x28] sm:$0xf]
      %v491 = vld [vmem:[#allocation2 + $0x30] sm:$0xf]
      %v492 = vld [vmem:[#allocation2 + $0x38] sm:$0xf]
      %v493 = vlaneseq
      %v494 = vshrl.u32 %v493, 7
      %v495 = vsub.s32 0, %v494
      %v496 = vrot.slane %v481, %v495
      %v497 = vmul.f32 %v485, %v496
      %v498 = vmul.f32 %v486, %v496
      %v499 = vmul.f32 %v487, %v496
      %v500 = vmul.f32 %v488, %v496
      %v501 = vadd.f32 %v497, 0.0
      %v502 = vadd.f32 %v498, 0.0
      %v503 = vadd.f32 %v499, 0.0
      %v504 = vadd.f32 %v500, 0.0
      %v505 = vlaneseq
      %v506 = vshrl.u32 %v505, 7
      %v507 = vsub.s32 5, %v506
      %v508 = vrot.slane %v481, %v507
      %v509 = vmul.f32 %v486, %v508
      %v510 = vmul.f32 %v487, %v508
      %v511 = vmul.f32 %v488, %v508
      %v512 = vmul.f32 %v489, %v508
      %v513 = vadd.f32 %v501, %v509
      %v514 = vadd.f32 %v502, %v510
      %v515 = vadd.f32 %v503, %v511
      %v516 = vadd.f32 %v504, %v512
      %v517 = vlaneseq
      %v518 = vshrl.u32 %v517, 7
      %v519 = vsub.s32 2, %v518
      %v520 = vrot.slane %v482, %v519
      %v521 = vmul.f32 %v487, %v520
      %v522 = vmul.f32 %v488, %v520
      %v523 = vmul.f32 %v489, %v520
      %v524 = vmul.f32 %v490, %v520
      %v525 = vadd.f32 %v513, %v521
      %v526 = vadd.f32 %v514, %v522
      %v527 = vadd.f32 %v515, %v523
      %v528 = vadd.f32 %v516, %v524
      %v529 = vlaneseq
      %v530 = vshrl.u32 %v529, 7
      %v531 = vsub.s32 7, %v530
      %v532 = vrot.slane %v482, %v531
      %v533 = vmul.f32 %v488, %v532
      %v534 = vmul.f32 %v489, %v532
      %v535 = vmul.f32 %v490, %v532
      %v536 = vmul.f32 %v491, %v532
      %v537 = vadd.f32 %v525, %v533
      %v538 = vadd.f32 %v526, %v534
      %v539 = vadd.f32 %v527, %v535
      %v540 = vadd.f32 %v528, %v536
      %v541 = vlaneseq
      %v542 = vshrl.u32 %v541, 7
      %v543 = vsub.s32 4, %v542
      %v544 = vrot.slane %v483, %v543
      %v545 = vmul.f32 %v489, %v544
      %v546 = vmul.f32 %v490, %v544
      %v547 = vmul.f32 %v491, %v544
      %v548 = vmul.f32 %v492, %v544
      %v549 = vadd.f32 %v537, %v545
      %v550 = vadd.f32 %v538, %v546
      %v551 = vadd.f32 %v539, %v547
      %v552 = vadd.f32 %v540, %v548
      %v553 = vld [vmem:[#allocation2 + $0x1] sm:$0xf]
      %v554 = vld [vmem:[#allocation2 + $0x9] sm:$0xf]
      %v555 = vld [vmem:[#allocation2 + $0x11] sm:$0xf]
      %v556 = vld [vmem:[#allocation2 + $0x19] sm:$0xf]
      %v557 = vld [vmem:[#allocation2 + $0x21] sm:$0xf]
      %v558 = vld [vmem:[#allocation2 + $0x29] sm:$0xf]
      %v559 = vld [vmem:[#allocation2 + $0x31] sm:$0xf]
      %v560 = vld [vmem:[#allocation2 + $0x39] sm:$0xf]
      %v561 = vlaneseq
      %v562 = vshrl.u32 %v561, 7
      %v563 = vsub.s32 1, %v562
      %v564 = vrot.slane %v481, %v563
      %v565 = vmul.f32 %v553, %v564
      %v566 = vmul.f32 %v554, %v564
      %v567 = vmul.f32 %v555, %v564
      %v568 = vmul.f32 %v556, %v564
      %v569 = vadd.f32 %v549, %v565
      %v570 = vadd.f32 %v550, %v566
      %v571 = vadd.f32 %v551, %v567
      %v572 = vadd.f32 %v552, %v568
      %v573 = vlaneseq
      %v574 = vshrl.u32 %v573, 7
      %v575 = vsub.s32 6, %v574
      %v576 = vrot.slane %v481, %v575
      %v577 = vmul.f32 %v554, %v576
      %v578 = vmul.f32 %v555, %v576
      %v579 = vmul.f32 %v556, %v576
      %v580 = vmul.f32 %v557, %v576
      %v581 = vadd.f32 %v569, %v577
      %v582 = vadd.f32 %v570, %v578
      %v583 = vadd.f32 %v571, %v579
      %v584 = vadd.f32 %v572, %v580
      %v585 = vlaneseq
      %v586 = vshrl.u32 %v585, 7
      %v587 = vsub.s32 3, %v586
      %v588 = vrot.slane %v482, %v587
      %v589 = vmul.f32 %v555, %v588
      %v590 = vmul.f32 %v556, %v588
      %v591 = vmul.f32 %v557, %v588
      %v592 = vmul.f32 %v558, %v588
      %v593 = vadd.f32 %v581, %v589
      %v594 = vadd.f32 %v582, %v590
      %v595 = vadd.f32 %v583, %v591
      %v596 = vadd.f32 %v584, %v592
      %v597 = vlaneseq
      %v598 = vshrl.u32 %v597, 7
      %v599 = vsub.s32 0, %v598
      %v600 = vrot.slane %v483, %v599
      %v601 = vmul.f32 %v556, %v600
      %v602 = vmul.f32 %v557, %v600
      %v603 = vmul.f32 %v558, %v600
      %v604 = vmul.f32 %v559, %v600
      %v605 = vadd.f32 %v593, %v601
      %v606 = vadd.f32 %v594, %v602
      %v607 = vadd.f32 %v595, %v603
      %v608 = vadd.f32 %v596, %v604
      %v609 = vlaneseq
      %v610 = vshrl.u32 %v609, 7
      %v611 = vsub.s32 5, %v610
      %v612 = vrot.slane %v483, %v611
      %v613 = vmul.f32 %v557, %v612
      %v614 = vmul.f32 %v558, %v612
      %v615 = vmul.f32 %v559, %v612
      %v616 = vmul.f32 %v560, %v612
      %v617 = vadd.f32 %v605, %v613
      %v618 = vadd.f32 %v606, %v614
      %v619 = vadd.f32 %v607, %v615
      %v620 = vadd.f32 %v608, %v616
      %v621 = vld [vmem:[#allocation2 + $0x2] sm:$0xf]
      %v622 = vld [vmem:[#allocation2 + $0xa] sm:$0xf]
      %v623 = vld [vmem:[#allocation2 + $0x12] sm:$0xf]
      %v624 = vld [vmem:[#allocation2 + $0x1a] sm:$0xf]
      %v625 = vld [vmem:[#allocation2 + $0x22] sm:$0xf]
      %v626 = vld [vmem:[#allocation2 + $0x2a] sm:$0xf]
      %v627 = vld [vmem:[#allocation2 + $0x32] sm:$0xf]
      %v628 = vld [vmem:[#allocation2 + $0x3a] sm:$0xf]
      %v629 = vlaneseq
      %v630 = vshrl.u32 %v629, 7
      %v631 = vsub.s32 2, %v630
      %v632 = vrot.slane %v481, %v631
      %v633 = vmul.f32 %v621, %v632
      %v634 = vmul.f32 %v622, %v632
      %v635 = vmul.f32 %v623, %v632
      %v636 = vmul.f32 %v624, %v632
      %v637 = vadd.f32 %v617, %v633
      %v638 = vadd.f32 %v618, %v634
      %v639 = vadd.f32 %v619, %v635
      %v640 = vadd.f32 %v620, %v636
      %v641 = vlaneseq
      %v642 = vshrl.u32 %v641, 7
      %v643 = vsub.s32 7, %v642
      %v644 = vrot.slane %v481, %v643
      %v645 = vmul.f32 %v622, %v644
      %v646 = vmul.f32 %v623, %v644
      %v647 = vmul.f32 %v624, %v644
      %v648 = vmul.f32 %v625, %v644
      %v649 = vadd.f32 %v637, %v645
      %v650 = vadd.f32 %v638, %v646
      %v651 = vadd.f32 %v639, %v647
      %v652 = vadd.f32 %v640, %v648
      %v653 = vlaneseq
      %v654 = vshrl.u32 %v653, 7
      %v655 = vsub.s32 4, %v654
      %v656 = vrot.slane %v482, %v655
      %v657 = vmul.f32 %v623, %v656
      %v658 = vmul.f32 %v624, %v656
      %v659 = vmul.f32 %v625, %v656
      %v660 = vmul.f32 %v626, %v656
      %v661 = vadd.f32 %v649, %v657
      %v662 = vadd.f32 %v650, %v658
      %v663 = vadd.f32 %v651, %v659
      %v664 = vadd.f32 %v652, %v660
      %v665 = vlaneseq
      %v666 = vshrl.u32 %v665, 7
      %v667 = vsub.s32 1, %v666
      %v668 = vrot.slane %v483, %v667
      %v669 = vmul.f32 %v624, %v668
      %v670 = vmul.f32 %v625, %v668
      %v671 = vmul.f32 %v626, %v668
      %v672 = vmul.f32 %v627, %v668
      %v673 = vadd.f32 %v661, %v669
      %v674 = vadd.f32 %v662, %v670
      %v675 = vadd.f32 %v663, %v671
      %v676 = vadd.f32 %v664, %v672
      %v677 = vlaneseq
      %v678 = vshrl.u32 %v677, 7
      %v679 = vsub.s32 6, %v678
      %v680 = vrot.slane %v483, %v679
      %v681 = vmul.f32 %v625, %v680
      %v682 = vmul.f32 %v626, %v680
      %v683 = vmul.f32 %v627, %v680
      %v684 = vmul.f32 %v628, %v680
      %v685 = vadd.f32 %v673, %v681
      %v686 = vadd.f32 %v674, %v682
      %v687 = vadd.f32 %v675, %v683
      %v688 = vadd.f32 %v676, %v684
      %v689 = vld [vmem:[#allocation2 + $0x3] sm:$0xf]
      %v690 = vld [vmem:[#allocation2 + $0xb] sm:$0xf]
      %v691 = vld [vmem:[#allocation2 + $0x13] sm:$0xf]
      %v692 = vld [vmem:[#allocation2 + $0x1b] sm:$0xf]
      %v693 = vld [vmem:[#allocation2 + $0x23] sm:$0xf]
      %v694 = vld [vmem:[#allocation2 + $0x2b] sm:$0xf]
      %v695 = vld [vmem:[#allocation2 + $0x33] sm:$0xf]
      %v696 = vld [vmem:[#allocation2 + $0x3b] sm:$0xf]
      %v697 = vlaneseq
      %v698 = vshrl.u32 %v697, 7
      %v699 = vsub.s32 3, %v698
      %v700 = vrot.slane %v481, %v699
      %v701 = vmul.f32 %v689, %v700
      %v702 = vmul.f32 %v690, %v700
      %v703 = vmul.f32 %v691, %v700
      %v704 = vmul.f32 %v692, %v700
      %v705 = vadd.f32 %v685, %v701
      %v706 = vadd.f32 %v686, %v702
      %v707 = vadd.f32 %v687, %v703
      %v708 = vadd.f32 %v688, %v704
      %v709 = vlaneseq
      %v710 = vshrl.u32 %v709, 7
      %v711 = vsub.s32 0, %v710
      %v712 = vrot.slane %v482, %v711
      %v713 = vmul.f32 %v690, %v712
      %v714 = vmul.f32 %v691, %v712
      %v715 = vmul.f32 %v692, %v712
      %v716 = vmul.f32 %v693, %v712
      %v717 = vadd.f32 %v705, %v713
      %v718 = vadd.f32 %v706, %v714
      %v719 = vadd.f32 %v707, %v715
      %v720 = vadd.f32 %v708, %v716
      %v721 = vlaneseq
      %v722 = vshrl.u32 %v721, 7
      %v723 = vsub.s32 5, %v722
      %v724 = vrot.slane %v482, %v723
      %v725 = vmul.f32 %v691, %v724
      %v726 = vmul.f32 %v692, %v724
      %v727 = vmul.f32 %v693, %v724
      %v728 = vmul.f32 %v694, %v724
      %v729 = vadd.f32 %v717, %v725
      %v730 = vadd.f32 %v718, %v726
      %v731 = vadd.f32 %v719, %v727
      %v732 = vadd.f32 %v720, %v728
      %v733 = vlaneseq
      %v734 = vshrl.u32 %v733, 7
      %v735 = vsub.s32 2, %v734
      %v736 = vrot.slane %v483, %v735
      %v737 = vmul.f32 %v692, %v736
      %v738 = vmul.f32 %v693, %v736
      %v739 = vmul.f32 %v694, %v736
      %v740 = vmul.f32 %v695, %v736
      %v741 = vadd.f32 %v729, %v737
      %v742 = vadd.f32 %v730, %v738
      %v743 = vadd.f32 %v731, %v739
      %v744 = vadd.f32 %v732, %v740
      %v745 = vlaneseq
      %v746 = vshrl.u32 %v745, 7
      %v747 = vsub.s32 7, %v746
      %v748 = vrot.slane %v483, %v747
      %v749 = vmul.f32 %v693, %v748
      %v750 = vmul.f32 %v694, %v748
      %v751 = vmul.f32 %v695, %v748
      %v752 = vmul.f32 %v696, %v748
      %v753 = vadd.f32 %v741, %v749
      %v754 = vadd.f32 %v742, %v750
      %v755 = vadd.f32 %v743, %v751
      %v756 = vadd.f32 %v744, %v752
      %v757 = vld [vmem:[#allocation2 + $0x4] sm:$0xf]
      %v758 = vld [vmem:[#allocation2 + $0xc] sm:$0xf]
      %v759 = vld [vmem:[#allocation2 + $0x14] sm:$0xf]
      %v760 = vld [vmem:[#allocation2 + $0x1c] sm:$0xf]
      %v761 = vld [vmem:[#allocation2 + $0x24] sm:$0xf]
      %v762 = vld [vmem:[#allocation2 + $0x2c] sm:$0xf]
      %v763 = vld [vmem:[#allocation2 + $0x34] sm:$0xf]
      %v764 = vld [vmem:[#allocation2 + $0x3c] sm:$0xf]
      %v765 = vlaneseq
      %v766 = vshrl.u32 %v765, 7
      %v767 = vsub.s32 4, %v766
      %v768 = vrot.slane %v481, %v767
      %v769 = vmul.f32 %v757, %v768
      %v770 = vmul.f32 %v758, %v768
      %v771 = vmul.f32 %v759, %v768
      %v772 = vmul.f32 %v760, %v768
      %v773 = vadd.f32 %v753, %v769
      %v774 = vadd.f32 %v754, %v770
      %v775 = vadd.f32 %v755, %v771
      %v776 = vadd.f32 %v756, %v772
      %v777 = vlaneseq
      %v778 = vshrl.u32 %v777, 7
      %v779 = vsub.s32 1, %v778
      %v780 = vrot.slane %v482, %v779
      %v781 = vmul.f32 %v758, %v780
      %v782 = vmul.f32 %v759, %v780
      %v783 = vmul.f32 %v760, %v780
      %v784 = vmul.f32 %v761, %v780
      %v785 = vadd.f32 %v773, %v781
      %v786 = vadd.f32 %v774, %v782
      %v787 = vadd.f32 %v775, %v783
      %v788 = vadd.f32 %v776, %v784
      %v789 = vlaneseq
      %v790 = vshrl.u32 %v789, 7
      %v791 = vsub.s32 6, %v790
      %v792 = vrot.slane %v482, %v791
      %v793 = vmul.f32 %v759, %v792
      %v794 = vmul.f32 %v760, %v792
      %v795 = vmul.f32 %v761, %v792
      %v796 = vmul.f32 %v762, %v792
      %v797 = vadd.f32 %v785, %v793
      %v798 = vadd.f32 %v786, %v794
      %v799 = vadd.f32 %v787, %v795
      %v800 = vadd.f32 %v788, %v796
      %v801 = vlaneseq
      %v802 = vshrl.u32 %v801, 7
      %v803 = vsub.s32 3, %v802
      %v804 = vrot.slane %v483, %v803
      %v805 = vmul.f32 %v760, %v804
      %v806 = vmul.f32 %v761, %v804
      %v807 = vmul.f32 %v762, %v804
      %v808 = vmul.f32 %v763, %v804
      %v809 = vadd.f32 %v797, %v805
      %v810 = vadd.f32 %v798, %v806
      %v811 = vadd.f32 %v799, %v807
      %v812 = vadd.f32 %v800, %v808
      %v813 = vlaneseq
      %v814 = vshrl.u32 %v813, 7
      %v815 = vsub.s32 0, %v814
      %v816 = vrot.slane %v484, %v815
      %v817 = vmul.f32 %v761, %v816
      %v818 = vmul.f32 %v762, %v816
      %v819 = vmul.f32 %v763, %v816
      %v820 = vmul.f32 %v764, %v816
      %v821 = vadd.f32 %v809, %v817
      %v822 = vadd.f32 %v810, %v818
      %v823 = vadd.f32 %v811, %v819
      %v824 = vadd.f32 %v812, %v820
      %v825 = vld [vmem:[%s4] sm:$0x1]
      %v827 = vlaneseq
      %v828 = vshrl.u32 %v827, 7
      %v829 = vsub.s32 0, %v828
      %v830 = vrot.slane %v825, %v829
      %v832 = vadd.f32 %v821, %v830
      %v833 = vadd.f32 %v822, %v830
      %v834 = vadd.f32 %v823, %v830
      %v835 = vadd.f32 %v824, %v830
      %v836 = vxor.u32 %v832, 2147483648
      %v837 = vxor.u32 %v833, 2147483648
      %v838 = vxor.u32 %v834, 2147483648
      %v839 = vxor.u32 %v835, 2147483648
      %v840 = vmul.f32 %v836, 1.442695
      %v841 = vpow.pop %v840
      %v842 = vmul.f32 %v837, 1.442695
      %v843 = vpow.pop %v842
      %v844 = vmul.f32 %v838, 1.442695
      %v845 = vpow.pop %v844
      %v846 = vmul.f32 %v839, 1.442695
      %v847 = vpow.pop %v846
      %v848 = vadd.f32 %v841, 1.0
      %v849 = vadd.f32 %v843, 1.0
      %v850 = vadd.f32 %v845, 1.0
      %v851 = vadd.f32 %v847, 1.0
      %v852 = vrcp.pop %v848
      %v853 = vmul.f32 1.0, %v852
      %v854 = vrcp.pop %v849
      %v855 = vmul.f32 1.0, %v854
      %v856 = vrcp.pop %v850
      %v857 = vmul.f32 1.0, %v856
      %v858 = vrcp.pop %v851
      %v859 = vmul.f32 1.0, %v858
      %v860 = vmul.f32 %v832, %v853
      %v861 = vmul.f32 %v833, %v855
      %v862 = vmul.f32 %v834, %v857
      %v863 = vmul.f32 %v835, %v859
      %864 = vst.msk [vmem:[#allocation3] sm:$0xf] %vm472, %v860
      %865 = vst.msk [vmem:[#allocation3 + $0x4] sm:$0xf] %vm472, %v861
      %866 = vst.msk [vmem:[#allocation3 + $0x8] sm:$0xf] %vm472, %v862
      %867 = vst.msk [vmem:[#allocation3 + $0xc] sm:$0xf] %vm472, %v863
      %v868 = vld [vmem:[#allocation3] sm:$0xff]
      %v869 = vld [vmem:[#allocation3 + $0x8] sm:$0xff]
      %v870 = vsel %vm388, %v868, 0.0
      %v871 = vsel %vm388, %v869, 0.0
      %v872 = vadd.f32 %v870, %v871
      %v873 = vrot.slane %v872, 4
      %v874 = vadd.f32 %v872, %v873
      %v875 = vrot.slane %v874, 2
      %v876 = vadd.f32 %v874, %v875
      %v877 = vrot.slane %v876, 1
      %v878 = vadd.f32 %v876, %v877
      %v879 = vmul.f32 %v878, 0.0625
      %v880 = vld [vmem:[%s5] sm:$0xff]
      %v881 = vld [vmem:[%s5 + $0x8] sm:$0xff]
      %v882 = vld [vmem:[%s5 + $0x10] sm:$0xff]
      %v883 = vld [vmem:[%s5 + $0x18] sm:$0xff]
      %v884 = vld [vmem:[%s5 + $0x20] sm:$0xff]
      %v885 = vld [vmem:[%s5 + $0x28] sm:$0xff]
      %v886 = vld [vmem:[%s6] sm:$0x1]
      %v888 = vsel %vm388, %v879, 0
      %890 = vmatprep.subr.mxu0 0.0
      %891 = vmatpush1.msra.mxu0 %v880
      %892 = vmatprep.subr.mxu0 0.0
      %893 = vmatpush1.msra.mxu0 %v881
      %894 = vmatprep.subr.mxu0 0.0
      %895 = vmatpush1.msra.mxu0 %v882
      %896 = vmatprep.subr.mxu0 0.0
      %897 = vmatpush1.msra.mxu0 %v883
      %898 = vmatprep.subr.mxu0 0.0
      %899 = vmatpush1.msra.mxu0 %v884
      %900 = vmatprep.subr.mxu0 0.0
      %901 = vmatpush1.msra.mxu0 %v885
      %902 = vmatprep.subr.mxu0 0.0
      %903 = vmatpush1.msra.mxu0 0.0
      %904 = vmatprep.subr.mxu0 0.0
      %905 = vmatpush1.msra.mxu0 0.0
      %906 = vmatprep.subr.mxu0 0.0
      %907 = vmatpush1.msra.mxu0 0.0
      %908 = vmatprep.subr.mxu0 0.0
      %909 = vmatpush1.msra.mxu0 0.0
      %910 = vmatprep.subr.mxu0 0.0
      %911 = vmatpush1.msra.mxu0 0.0
      %912 = vmatprep.subr.mxu0 0.0
      %913 = vmatpush1.msra.mxu0 0.0
      %914 = vmatprep.subr.mxu0 0.0
      %915 = vmatpush1.msra.mxu0 0.0
      %916 = vmatprep.subr.mxu0 0.0
      %917 = vmatpush1.msra.mxu0 0.0
      %918 = vmatprep.subr.mxu0 0.0
      %919 = vmatpush1.msra.mxu0 0.0
      %920 = vmatprep.subr.mxu0 0.0
      %921 = vmatpush1.msra.mxu0 0.0
      %922 = vmatprep.subr.mxu0 0.0
      %923 = vmatpush1.msra.mxu0 0.0
      %924 = vmatprep.subr.mxu0 0.0
      %925 = vmatpush1.msra.mxu0 0.0
      %926 = vmatprep.subr.mxu0 0.0
      %927 = vmatpush1.msra.mxu0 0.0
      %928 = vmatprep.subr.mxu0 0.0
      %929 = vmatpush1.msra.mxu0 0.0
      %930 = vmatprep.subr.mxu0 0.0
      %931 = vmatpush1.msra.mxu0 0.0
      %932 = vmatprep.subr.mxu0 0.0
      %933 = vmatpush1.msra.mxu0 0.0
      %934 = vmatprep.subr.mxu0 0.0
      %935 = vmatpush1.msra.mxu0 0.0
      %936 = vmatprep.subr.mxu0 0.0
      %937 = vmatpush1.msra.mxu0 0.0
      %938 = vmatprep.subr.mxu0 0.0
      %939 = vmatpush1.msra.mxu0 0.0
      %940 = vmatprep.subr.mxu0 0.0
      %941 = vmatpush1.msra.mxu0 0.0
      %942 = vmatprep.subr.mxu0 0.0
      %943 = vmatpush1.msra.mxu0 0.0
      %944 = vmatprep.subr.mxu0 0.0
      %945 = vmatpush1.msra.mxu0 0.0
      %946 = vmatprep.subr.mxu0 0.0
      %947 = vmatpush1.msra.mxu0 0.0
      %948 = vmatprep.subr.mxu0 0.0
      %949 = vmatpush1.msra.mxu0 0.0
      %950 = vmatprep.subr.mxu0 0.0
      %951 = vmatpush1.msra.mxu0 0.0
      %952 = vmatprep.subr.mxu0 0.0
      %953 = vmatpush1.msra.mxu0 0.0
      %954 = vmatprep.mubr.f32.mxu0 0.0
      %955 = vmatmul.mubr.f32.gmra.mrb[0].mxu0 %v888
      %v956 = vpop.f32.mrb[0].mxu0
      %v957 = vadd.f32 %v886, %v956
      %v958 = vpop.f32.mrb[0].mxu0
      %959 = vdwg.mxu0
      %v960 = vxor.u32 %v957, 2147483648
      %v961 = vmul.f32 %v960, 1.442695
      %v962 = vpow.pop %v961
      %v963 = vadd.f32 %v962, 1.0
      %v964 = vrcp.pop %v963
      %v965 = vmul.f32 1.0, %v964
      %v966 = vmul.f32 %v957, %v965
      %v967 = vld [vmem:[%s7] sm:$0x3]
      %v968 = vld [vmem:[%s8] sm:$0x1]
      %vm969 = vcmask 15360
      %v971 = vsel %vm969, %v966, 0
      %vm973 = vcmask 1041408
      %v975 = vsel %vm973, %v967, 0
      %977 = vmatprep.subr.mxu0 0.0
      %978 = vmatpush1.msra.mxu0 %v975
      %979 = vmatprep.subr.mxu0 0.0
      %980 = vmatpush1.msra.mxu0 0.0
      %981 = vmatprep.subr.mxu0 0.0
      %982 = vmatpush1.msra.mxu0 0.0
      %983 = vmatprep.subr.mxu0 0.0
      %984 = vmatpush1.msra.mxu0 0.0
      %985 = vmatprep.subr.mxu0 0.0
      %986 = vmatpush1.msra.mxu0 0.0
      %987 = vmatprep.subr.mxu0 0.0
      %988 = vmatpush1.msra.mxu0 0.0
      %989 = vmatprep.subr.mxu0 0.0
      %990 = vmatpush1.msra.mxu0 0.0
      %991 = vmatprep.subr.mxu0 0.0
      %992 = vmatpush1.msra.mxu0 0.0
      %993 = vmatprep.subr.mxu0 0.0
      %994 = vmatpush1.msra.mxu0 0.0
      %995 = vmatprep.subr.mxu0 0.0
      %996 = vmatpush1.msra.mxu0 0.0
      %997 = vmatprep.subr.mxu0 0.0
      %998 = vmatpush1.msra.mxu0 0.0
      %999 = vmatprep.subr.mxu0 0.0
      %1000 = vmatpush1.msra.mxu0 0.0
      %1001 = vmatprep.subr.mxu0 0.0
      %1002 = vmatpush1.msra.mxu0 0.0
      %1003 = vmatprep.subr.mxu0 0.0
      %1004 = vmatpush1.msra.mxu0 0.0
      %1005 = vmatprep.subr.mxu0 0.0
      %1006 = vmatpush1.msra.mxu0 0.0
      %1007 = vmatprep.subr.mxu0 0.0
      %1008 = vmatpush1.msra.mxu0 0.0
      %1009 = vmatprep.subr.mxu0 0.0
      %1010 = vmatpush1.msra.mxu0 0.0
      %1011 = vmatprep.subr.mxu0 0.0
      %1012 = vmatpush1.msra.mxu0 0.0
      %1013 = vmatprep.subr.mxu0 0.0
      %1014 = vmatpush1.msra.mxu0 0.0
      %1015 = vmatprep.subr.mxu0 0.0
      %1016 = vmatpush1.msra.mxu0 0.0
      %1017 = vmatprep.subr.mxu0 0.0
      %1018 = vmatpush1.msra.mxu0 0.0
      %1019 = vmatprep.subr.mxu0 0.0
      %1020 = vmatpush1.msra.mxu0 0.0
      %1021 = vmatprep.subr.mxu0 0.0
      %1022 = vmatpush1.msra.mxu0 0.0
      %1023 = vmatprep.subr.mxu0 0.0
      %1024 = vmatpush1.msra.mxu0 0.0
      %1025 = vmatprep.subr.mxu0 0.0
      %1026 = vmatpush1.msra.mxu0 0.0
      %1027 = vmatprep.subr.mxu0 0.0
      %1028 = vmatpush1.msra.mxu0 0.0
      %1029 = vmatprep.subr.mxu0 0.0
      %1030 = vmatpush1.msra.mxu0 0.0
      %1031 = vmatprep.subr.mxu0 0.0
      %1032 = vmatpush1.msra.mxu0 0.0
      %1033 = vmatprep.subr.mxu0 0.0
      %1034 = vmatpush1.msra.mxu0 0.0
      %1035 = vmatprep.subr.mxu0 0.0
      %1036 = vmatpush1.msra.mxu0 0.0
      %1037 = vmatprep.subr.mxu0 0.0
      %1038 = vmatpush1.msra.mxu0 0.0
      %1039 = vmatprep.subr.mxu0 0.0
      %1040 = vmatpush1.msra.mxu0 0.0
      %1041 = vmatprep.mubr.f32.mxu0 0.0
      %1042 = vmatmul.mubr.f32.gmra.mrb[0].mxu0 %v971
      %v1043 = vpop.f32.mrb[0].mxu0
      %v1044 = vadd.f32 %v968, %v1043
      %v1045 = vpop.f32.mrb[0].mxu0
      %1046 = vdwg.mxu0
      %v1047 = vxor.u32 %v1044, 2147483648
      %v1048 = vmul.f32 %v1047, 1.442695
      %v1049 = vpow.pop %v1048
      %v1050 = vadd.f32 %v1049, 1.0
      %v1051 = vrcp.pop %v1050
      %v1052 = vmul.f32 1.0, %v1051
      %v1053 = vlaneseq
      %v1054 = vshrl.u32 %v1053, 7
      %v1055 = vsub.s32 0, %v1054
      %v1056 = vrot.slane %v1052, %v1055
      %v1057 = vmul.f32 %v868, %v1056
      %v1058 = vmul.f32 %v869, %v1056
      %v1059 = vpack.c.bf16 %v1058, %v1057
      %v1060 = vld [vmem:[%s9] sm:$0xf]
      %v1061 = vld [vmem:[%s9 + $0x4] sm:$0xf]
      %v1062 = vld [vmem:[%s9 + $0x8] sm:$0xf]
      %v1063 = vld [vmem:[%s9 + $0xc] sm:$0xf]
      %v1064 = vld [vmem:[%s9 + $0x10] sm:$0xf]
      %v1065 = vld [vmem:[%s9 + $0x14] sm:$0xf]
      %v1066 = vld [vmem:[%s10] sm:$0x1]
      %v1068 = vlaneseq
      %v1069 = vshrl.u32 %v1068, 7
      %v1070 = vsub.s32 0, %v1069
      %v1071 = vrot.slane %v1066, %v1070
      %v1079 = vunpack.c.l.b16 %v1060
      %v1080 = vunpack.c.l.b16 %v1061
      %v1081 = vunpack.c.l.b16 %v1062
      %v1082 = vunpack.c.l.b16 %v1063
      %v1083 = vunpack.c.l.b16 %v1064
      %v1084 = vunpack.c.l.b16 %v1065
      %v1085 = vpack.c.b16 %v1080, %v1079
      %v1086 = vpack.c.b16 %v1082, %v1081
      %v1087 = vpack.c.b16 %v1084, %v1083
      %v1092 = vsel %vm388, %v1059, 0
      %1094 = vmatprep.subr.bf16.mxu0 0
      %1095 = vmatpush1.bf16.msra.mxu0 %v1085
      %1096 = vmatprep.subr.bf16.mxu0 0
      %1097 = vmatpush1.bf16.msra.mxu0 %v1086
      %1098 = vmatprep.subr.bf16.mxu0 0
      %1099 = vmatpush1.bf16.msra.mxu0 %v1087
      %1100 = vmatprep.subr.bf16.mxu0 0
      %1101 = vmatpush1.bf16.msra.mxu0 0
      %1102 = vmatprep.subr.bf16.mxu0 0
      %1103 = vmatpush1.bf16.msra.mxu0 0
      %1104 = vmatprep.subr.bf16.mxu0 0
      %1105 = vmatpush1.bf16.msra.mxu0 0
      %1106 = vmatprep.subr.bf16.mxu0 0
      %1107 = vmatpush1.bf16.msra.mxu0 0
      %1108 = vmatprep.subr.bf16.mxu0 0
      %1109 = vmatpush1.bf16.msra.mxu0 0
      %1110 = vmatprep.subr.bf16.mxu0 0
      %1111 = vmatpush1.bf16.msra.mxu0 0
      %1112 = vmatprep.subr.bf16.mxu0 0
      %1113 = vmatpush1.bf16.msra.mxu0 0
      %1114 = vmatprep.subr.bf16.mxu0 0
      %1115 = vmatpush1.bf16.msra.mxu0 0
      %1116 = vmatprep.subr.bf16.mxu0 0
      %1117 = vmatpush1.bf16.msra.mxu0 0
      %1118 = vmatprep.subr.bf16.mxu0 0
      %1119 = vmatpush1.bf16.msra.mxu0 0
      %1120 = vmatprep.subr.bf16.mxu0 0
      %1121 = vmatpush1.bf16.msra.mxu0 0
      %1122 = vmatprep.subr.bf16.mxu0 0
      %1123 = vmatpush1.bf16.msra.mxu0 0
      %1124 = vmatprep.subr.bf16.mxu0 0
      %1125 = vmatpush1.bf16.msra.mxu0 0
      %1126 = vmatprep.mubr.bf16.mxu0 0
      %1127 = vmatmul.mubr.bf16.gmra.mrb[0].mxu0 %v1092
      %v1128 = vpop.f32.mrb[0].mxu0
      %v1129 = vadd.f32 %v1071, %v1128
      %v1130 = vpop.f32.mrb[0].mxu0
      %v1131 = vpop.f32.mrb[0].mxu0
      %v1132 = vadd.f32 %v1071, %v1131
      %v1133 = vpop.f32.mrb[0].mxu0
      %1134 = vdwg.mxu0
      %v1135 = vadd.f32 %v1129, %v397
      %v1136 = vadd.f32 %v1132, %v398
      %1137 = vst.msk [vmem:[%s386] sm:$0xff] %vm408, %v1135
      %1138 = vst.msk [vmem:[%s386 + $0x8] sm:$0xff] %vm408, %v1136
      %p1139 = scmp.lt.s32.totalorder %s22, 1
      %s1140 = scalar_select %p1139, %s22, 1
      %s1141 = smul.addr %s1140, 2
      %s1142 = smul.addr %s1141, 8
      %s1143 = scalar_lea.vmem %s11, %s1142
      // Predicated region
      $region65: #{_lambda_.8} parent=63 // pred_check
        %p1144 = pneg %p276
      $region66: #{_lambda_.8} parent=63 // pred_check_branch
        %1146 = sbr.rel (%p1144) target = $region68
      $region67: #{_lambda_.8} parent=63 // pred_region
        _
      $region68: #{_lambda_.8} parent=63 // pred_fallthru
        _
    $region64: #{_lambda_.8} parent=5 // pred_fallthru
      _
    %p1147 = scmp.le.s32.totalorder 2, %s17
    // Predicated region
    $region69: #{_lambda_.8} parent=5 // pred_check
      %p1148 = pneg %p1147
    $region70: #{_lambda_.8} parent=5 // pred_check_branch
      %1150 = sbr.rel (%p1148) target = $region72
    $region71: #{_lambda_.8} parent=5 // pred_region
      %s1151 = ssub.s32 %s17, 2
      // Predicated region
      $region73: #{_lambda_.8} parent=71 // pred_check
        %p1152 = pneg %p282
      $region74: #{_lambda_.8} parent=71 // pred_check_branch
        %1154 = sbr.rel (%p1152) target = $region76
      $region75: #{_lambda_.8} parent=71 // pred_region
        %p1155 = scmp.lt.s32.totalorder %s23, 1
        %s1156 = scalar_select %p1155, %s23, 1
        %s1157 = smul.addr %s1156, 2
        %s1158 = smul.addr %s1157, 8
        %s1159 = scalar_lea.vmem %s11, %s1158
      $region76: #{_lambda_.8} parent=71 // pred_fallthru
        _
    $region72: #{_lambda_.8} parent=5 // pred_fallthru
      _
  $region6: #{_lambda_.8} parent=0 // loop_footer
    %s21 = sadd.s32 1, %s17
  $region7: #{_lambda_.8} parent=0 // loop_footer_branch
    %16 = sbr.rel target = $region3
  $region8: #{_lambda_.8} parent=0 // loop_exit
    _

// kernel: _lambda_.7
$region0: #{_lambda_.7}
  #allocation0 [shape = 'u32[]', space=smem, size = 0x4, offset = 0x4, fixed_abs, tag = 'smem constant byte address 0x4 - core index']
  #allocation1 [shape = 'u32[144,128]{1,0:T(1,128)}', space=vmem, size = 0x12000, scoped, tag = 'internal scratch']
  #allocation2 [shape = 'f32[11,11,48]{2,1,0:T(8,128)}', space=vmem, size = 0x16000, scoped, tag = 'scratch operand']
  #allocation3 [shape = 'f32[16,48]{1,0:T(8,128)}', space=vmem, size = 0x2000, scoped, tag = 'scratch operand']
  %s0 = inlined_call_operand.vmem [shape: f32[2,64,8], index: 0, kind: input, shape index: {}]
  %s1 = inlined_call_operand.vmem [shape: bf16[8,48], index: 1, kind: input, shape index: {}]
  %s2 = inlined_call_operand.vmem [shape: f32[1,48], index: 2, kind: input, shape index: {}]
  %s3 = inlined_call_operand.vmem [shape: f32[25,48], index: 3, kind: input, shape index: {}]
  %s4 = inlined_call_operand.vmem [shape: f32[1,48], index: 4, kind: input, shape index: {}]
  %s5 = inlined_call_operand.vmem [shape: f32[48,2], index: 5, kind: input, shape index: {}]
  %s6 = inlined_call_operand.vmem [shape: f32[1,2], index: 6, kind: input, shape index: {}]
  %s7 = inlined_call_operand.vmem [shape: f32[2,48], index: 7, kind: input, shape index: {}]
  %s8 = inlined_call_operand.vmem [shape: f32[1,48], index: 8, kind: input, shape index: {}]
  %s9 = inlined_call_operand.vmem [shape: bf16[48,8], index: 9, kind: input, shape index: {}]
  %s10 = inlined_call_operand.vmem [shape: f32[1,8], index: 10, kind: input, shape index: {}]
  %s11 = inlined_call_operand.vmem [shape: f32[2,16,8], index: 11, kind: output, shape index: {}]
  %s12 = sld [smem:[#allocation0]]
  $region77: #{_lambda_.7} parent=0
    _
  %s14 = ssub.s32 1, %s12
  %s15 = scalar_select 0, %s14, %s12
  loop: start=0, step=1, limit=4
  $region2: #{_lambda_.7} parent=0 // loop_pre_header
    _
  $region3: #{_lambda_.7} parent=0 // loop_header
    %s17 = sphi 0, %s21
    %p18 = scmp.ge.s32.totalorder %s17, 4
    %s27 = sphi 0, %s29
    %s30 = sphi 0, %s27
    %s31 = sphi 0, %s30
    %s47 = sphi 0, %s31
    %s51 = sphi 0, %s51
    %s53 = sphi 0, %s51
    %s54 = sphi 0, %s53
    %s68 = sphi 0, %s54
    %s72 = sphi 0, %s72
    %s74 = sphi 0, %s72
    %s75 = sphi 0, %s74
    %s89 = sphi 0, %s75
    %s93 = sphi 0, %s93
    %s95 = sphi 0, %s93
    %s96 = sphi 0, %s95
    %s110 = sphi 0, %s96
    %s114 = sphi 0, %s114
    %s116 = sphi 0, %s114
    %s117 = sphi 0, %s116
    %s131 = sphi 0, %s117
    %s135 = sphi 0, %s135
    %s137 = sphi 0, %s135
    %s138 = sphi 0, %s137
    %s152 = sphi 0, %s138
    %s156 = sphi 0, %s156
    %s158 = sphi 0, %s156
    %s159 = sphi 0, %s158
    %s173 = sphi 0, %s159
    %s177 = sphi 0, %s177
    %s179 = sphi 0, %s177
    %s180 = sphi 0, %s179
    %s194 = sphi 0, %s180
    %s198 = sphi 0, %s198
    %s200 = sphi 0, %s198
    %s201 = sphi 0, %s200
    %s215 = sphi 0, %s201
    %s219 = sphi 0, %s219
    %s221 = sphi 0, %s219
    %s222 = sphi 0, %s221
    %s236 = sphi 0, %s222
    %s240 = sphi 0, %s240
    %s242 = sphi 0, %s240
    %s243 = sphi 0, %s242
    %s257 = sphi 0, %s243
    %s263 = sphi 0, %s265
    %s266 = sphi 0, %s263
    %s267 = sphi 0, %s266
    %s283 = sphi 0, %s267
  $region4: #{_lambda_.7} parent=0 // loop_header_branch
    %20 = sbr.rel (%p18) target = $region8
  $region5: #{_lambda_.7} parent=0 // loop_body
    %s22 = ssub.s32 %s17, 1
    %s23 = ssub.s32 %s17, 2
    %s24 = sadd.s32 %s17, 1
    %s25 = ssub.s32 %s17, %s24
    %p26 = scmp.eq.s32.totalorder %s25, 0
    %s28 = sadd.s32 %s27, 1
    %s29 = scalar_select %p26, %s27, %s28
    %p32 = pneg %p26
    %p33 = scmp.eq.s32.totalorder %s17, 1
    %p34 = por %p32, %p33
    %p35 = scmp.ne.s32.totalorder %s27, %s30
    %p36 = scmp.eq.s32.totalorder %s17, 0
    %p37 = por %p35, %p36
    %p38 = scmp.ne.s32.totalorder %s27, %s30
    %p39 = scmp.eq.s32.totalorder %s22, 1
    %p40 = por %p38, %p39
    %p41 = scmp.ne.s32.totalorder %s30, %s31
    %p42 = scmp.eq.s32.totalorder %s22, 0
    %p43 = por %p41, %p42
    %p44 = scmp.ne.s32.totalorder %s30, %s31
    %p45 = scmp.eq.s32.totalorder %s23, 1
    %p46 = por %p44, %p45
    %p48 = scmp.ne.s32.totalorder %s31, %s47
    %p49 = scmp.eq.s32.totalorder %s23, 0
    %p50 = por %p48, %p49
    %s52 = sadd.s32 %s51, 1
    %p55 = scmp.eq.s32.totalorder %s17, 1
    %p56 = scmp.ne.s32.totalorder %s51, %s53
    %p57 = scmp.eq.s32.totalorder %s17, 0
    %p58 = por %p56, %p57
    %p59 = scmp.ne.s32.totalorder %s51, %s53
    %p60 = scmp.eq.s32.totalorder %s22, 1
    %p61 = por %p59, %p60
    %p62 = scmp.ne.s32.totalorder %s53, %s54
    %p63 = scmp.eq.s32.totalorder %s22, 0
    %p64 = por %p62, %p63
    %p65 = scmp.ne.s32.totalorder %s53, %s54
    %p66 = scmp.eq.s32.totalorder %s23, 1
    %p67 = por %p65, %p66
    %p69 = scmp.ne.s32.totalorder %s54, %s68
    %p70 = scmp.eq.s32.totalorder %s23, 0
    %p71 = por %p69, %p70
    %s73 = sadd.s32 %s72, 1
    %p76 = scmp.eq.s32.totalorder %s17, 1
    %p77 = scmp.ne.s32.totalorder %s72, %s74
    %p78 = scmp.eq.s32.totalorder %s17, 0
    %p79 = por %p77, %p78
    %p80 = scmp.ne.s32.totalorder %s72, %s74
    %p81 = scmp.eq.s32.totalorder %s22, 1
    %p82 = por %p80, %p81
    %p83 = scmp.ne.s32.totalorder %s74, %s75
    %p84 = scmp.eq.s32.totalorder %s22, 0
    %p85 = por %p83, %p84
    %p86 = scmp.ne.s32.totalorder %s74, %s75
    %p87 = scmp.eq.s32.totalorder %s23, 1
    %p88 = por %p86, %p87
    %p90 = scmp.ne.s32.totalorder %s75, %s89
    %p91 = scmp.eq.s32.totalorder %s23, 0
    %p92 = por %p90, %p91
    %s94 = sadd.s32 %s93, 1
    %p97 = scmp.eq.s32.totalorder %s17, 1
    %p98 = scmp.ne.s32.totalorder %s93, %s95
    %p99 = scmp.eq.s32.totalorder %s17, 0
    %p100 = por %p98, %p99
    %p101 = scmp.ne.s32.totalorder %s93, %s95
    %p102 = scmp.eq.s32.totalorder %s22, 1
    %p103 = por %p101, %p102
    %p104 = scmp.ne.s32.totalorder %s95, %s96
    %p105 = scmp.eq.s32.totalorder %s22, 0
    %p106 = por %p104, %p105
    %p107 = scmp.ne.s32.totalorder %s95, %s96
    %p108 = scmp.eq.s32.totalorder %s23, 1
    %p109 = por %p107, %p108
    %p111 = scmp.ne.s32.totalorder %s96, %s110
    %p112 = scmp.eq.s32.totalorder %s23, 0
    %p113 = por %p111, %p112
    %s115 = sadd.s32 %s114, 1
    %p118 = scmp.eq.s32.totalorder %s17, 1
    %p119 = scmp.ne.s32.totalorder %s114, %s116
    %p120 = scmp.eq.s32.totalorder %s17, 0
    %p121 = por %p119, %p120
    %p122 = scmp.ne.s32.totalorder %s114, %s116
    %p123 = scmp.eq.s32.totalorder %s22, 1
    %p124 = por %p122, %p123
    %p125 = scmp.ne.s32.totalorder %s116, %s117
    %p126 = scmp.eq.s32.totalorder %s22, 0
    %p127 = por %p125, %p126
    %p128 = scmp.ne.s32.totalorder %s116, %s117
    %p129 = scmp.eq.s32.totalorder %s23, 1
    %p130 = por %p128, %p129
    %p132 = scmp.ne.s32.totalorder %s117, %s131
    %p133 = scmp.eq.s32.totalorder %s23, 0
    %p134 = por %p132, %p133
    %s136 = sadd.s32 %s135, 1
    %p139 = scmp.eq.s32.totalorder %s17, 1
    %p140 = scmp.ne.s32.totalorder %s135, %s137
    %p141 = scmp.eq.s32.totalorder %s17, 0
    %p142 = por %p140, %p141
    %p143 = scmp.ne.s32.totalorder %s135, %s137
    %p144 = scmp.eq.s32.totalorder %s22, 1
    %p145 = por %p143, %p144
    %p146 = scmp.ne.s32.totalorder %s137, %s138
    %p147 = scmp.eq.s32.totalorder %s22, 0
    %p148 = por %p146, %p147
    %p149 = scmp.ne.s32.totalorder %s137, %s138
    %p150 = scmp.eq.s32.totalorder %s23, 1
    %p151 = por %p149, %p150
    %p153 = scmp.ne.s32.totalorder %s138, %s152
    %p154 = scmp.eq.s32.totalorder %s23, 0
    %p155 = por %p153, %p154
    %s157 = sadd.s32 %s156, 1
    %p160 = scmp.eq.s32.totalorder %s17, 1
    %p161 = scmp.ne.s32.totalorder %s156, %s158
    %p162 = scmp.eq.s32.totalorder %s17, 0
    %p163 = por %p161, %p162
    %p164 = scmp.ne.s32.totalorder %s156, %s158
    %p165 = scmp.eq.s32.totalorder %s22, 1
    %p166 = por %p164, %p165
    %p167 = scmp.ne.s32.totalorder %s158, %s159
    %p168 = scmp.eq.s32.totalorder %s22, 0
    %p169 = por %p167, %p168
    %p170 = scmp.ne.s32.totalorder %s158, %s159
    %p171 = scmp.eq.s32.totalorder %s23, 1
    %p172 = por %p170, %p171
    %p174 = scmp.ne.s32.totalorder %s159, %s173
    %p175 = scmp.eq.s32.totalorder %s23, 0
    %p176 = por %p174, %p175
    %s178 = sadd.s32 %s177, 1
    %p181 = scmp.eq.s32.totalorder %s17, 1
    %p182 = scmp.ne.s32.totalorder %s177, %s179
    %p183 = scmp.eq.s32.totalorder %s17, 0
    %p184 = por %p182, %p183
    %p185 = scmp.ne.s32.totalorder %s177, %s179
    %p186 = scmp.eq.s32.totalorder %s22, 1
    %p187 = por %p185, %p186
    %p188 = scmp.ne.s32.totalorder %s179, %s180
    %p189 = scmp.eq.s32.totalorder %s22, 0
    %p190 = por %p188, %p189
    %p191 = scmp.ne.s32.totalorder %s179, %s180
    %p192 = scmp.eq.s32.totalorder %s23, 1
    %p193 = por %p191, %p192
    %p195 = scmp.ne.s32.totalorder %s180, %s194
    %p196 = scmp.eq.s32.totalorder %s23, 0
    %p197 = por %p195, %p196
    %s199 = sadd.s32 %s198, 1
    %p202 = scmp.eq.s32.totalorder %s17, 1
    %p203 = scmp.ne.s32.totalorder %s198, %s200
    %p204 = scmp.eq.s32.totalorder %s17, 0
    %p205 = por %p203, %p204
    %p206 = scmp.ne.s32.totalorder %s198, %s200
    %p207 = scmp.eq.s32.totalorder %s22, 1
    %p208 = por %p206, %p207
    %p209 = scmp.ne.s32.totalorder %s200, %s201
    %p210 = scmp.eq.s32.totalorder %s22, 0
    %p211 = por %p209, %p210
    %p212 = scmp.ne.s32.totalorder %s200, %s201
    %p213 = scmp.eq.s32.totalorder %s23, 1
    %p214 = por %p212, %p213
    %p216 = scmp.ne.s32.totalorder %s201, %s215
    %p217 = scmp.eq.s32.totalorder %s23, 0
    %p218 = por %p216, %p217
    %s220 = sadd.s32 %s219, 1
    %p223 = scmp.eq.s32.totalorder %s17, 1
    %p224 = scmp.ne.s32.totalorder %s219, %s221
    %p225 = scmp.eq.s32.totalorder %s17, 0
    %p226 = por %p224, %p225
    %p227 = scmp.ne.s32.totalorder %s219, %s221
    %p228 = scmp.eq.s32.totalorder %s22, 1
    %p229 = por %p227, %p228
    %p230 = scmp.ne.s32.totalorder %s221, %s222
    %p231 = scmp.eq.s32.totalorder %s22, 0
    %p232 = por %p230, %p231
    %p233 = scmp.ne.s32.totalorder %s221, %s222
    %p234 = scmp.eq.s32.totalorder %s23, 1
    %p235 = por %p233, %p234
    %p237 = scmp.ne.s32.totalorder %s222, %s236
    %p238 = scmp.eq.s32.totalorder %s23, 0
    %p239 = por %p237, %p238
    %s241 = sadd.s32 %s240, 1
    %p244 = scmp.eq.s32.totalorder %s17, 1
    %p245 = scmp.ne.s32.totalorder %s240, %s242
    %p246 = scmp.eq.s32.totalorder %s17, 0
    %p247 = por %p245, %p246
    %p248 = scmp.ne.s32.totalorder %s240, %s242
    %p249 = scmp.eq.s32.totalorder %s22, 1
    %p250 = por %p248, %p249
    %p251 = scmp.ne.s32.totalorder %s242, %s243
    %p252 = scmp.eq.s32.totalorder %s22, 0
    %p253 = por %p251, %p252
    %p254 = scmp.ne.s32.totalorder %s242, %s243
    %p255 = scmp.eq.s32.totalorder %s23, 1
    %p256 = por %p254, %p255
    %p258 = scmp.ne.s32.totalorder %s243, %s257
    %p259 = scmp.eq.s32.totalorder %s23, 0
    %p260 = por %p258, %p259
    %s261 = ssub.s32 %s17, %s24
    %p262 = scmp.eq.s32.totalorder %s261, 0
    %s264 = sadd.s32 %s263, 1
    %s265 = scalar_select %p262, %s263, %s264
    %p268 = pneg %p262
    %p269 = scmp.eq.s32.totalorder %s17, 1
    %p270 = por %p268, %p269
    %p271 = scmp.ne.s32.totalorder %s263, %s266
    %p272 = scmp.eq.s32.totalorder %s17, 0
    %p273 = por %p271, %p272
    %p274 = scmp.ne.s32.totalorder %s263, %s266
    %p275 = scmp.eq.s32.totalorder %s22, 1
    %p276 = por %p274, %p275
    %p277 = scmp.ne.s32.totalorder %s266, %s267
    %p278 = scmp.eq.s32.totalorder %s22, 0
    %p279 = por %p277, %p278
    %p280 = scmp.ne.s32.totalorder %s266, %s267
    %p281 = scmp.eq.s32.totalorder %s23, 1
    %p282 = por %p280, %p281
    %p284 = scmp.ne.s32.totalorder %s267, %s283
    %p285 = scmp.eq.s32.totalorder %s23, 0
    %p286 = por %p284, %p285
    %p287 = scmp.le.s32.totalorder 1, %s17
    %p288 = scmp.lt.s32.totalorder %s17, 3
    %p289 = pnand %p287, %p288
    %p290 = pneg %p289
    // Predicated region
    $region9: #{_lambda_.7} parent=5 // pred_check
      _
    $region10: #{_lambda_.7} parent=5 // pred_check_branch
      %292 = sbr.rel (%p289) target = $region12
    $region11: #{_lambda_.7} parent=5 // pred_region
      %s293 = ssub.s32 %s17, 1
      // Predicated region
      $region13: #{_lambda_.7} parent=11 // pred_check
        %p294 = pneg %p64
      $region14: #{_lambda_.7} parent=11 // pred_check_branch
        %296 = sbr.rel (%p294) target = $region16
      $region15: #{_lambda_.7} parent=11 // pred_region
        _
      $region16: #{_lambda_.7} parent=11 // pred_fallthru
        _
      // Predicated region
      $region17: #{_lambda_.7} parent=11 // pred_check
        %p297 = pneg %p85
      $region18: #{_lambda_.7} parent=11 // pred_check_branch
        %299 = sbr.rel (%p297) target = $region20
      $region19: #{_lambda_.7} parent=11 // pred_region
        _
      $region20: #{_lambda_.7} parent=11 // pred_fallthru
        _
      // Predicated region
      $region21: #{_lambda_.7} parent=11 // pred_check
        %p300 = pneg %p106
      $region22: #{_lambda_.7} parent=11 // pred_check_branch
        %302 = sbr.rel (%p300) target = $region24
      $region23: #{_lambda_.7} parent=11 // pred_region
        _
      $region24: #{_lambda_.7} parent=11 // pred_fallthru
        _
      // Predicated region
      $region25: #{_lambda_.7} parent=11 // pred_check
        %p303 = pneg %p127
      $region26: #{_lambda_.7} parent=11 // pred_check_branch
        %305 = sbr.rel (%p303) target = $region28
      $region27: #{_lambda_.7} parent=11 // pred_region
        _
      $region28: #{_lambda_.7} parent=11 // pred_fallthru
        _
      // Predicated region
      $region29: #{_lambda_.7} parent=11 // pred_check
        %p306 = pneg %p148
      $region30: #{_lambda_.7} parent=11 // pred_check_branch
        %308 = sbr.rel (%p306) target = $region32
      $region31: #{_lambda_.7} parent=11 // pred_region
        _
      $region32: #{_lambda_.7} parent=11 // pred_fallthru
        _
      // Predicated region
      $region33: #{_lambda_.7} parent=11 // pred_check
        %p309 = pneg %p169
      $region34: #{_lambda_.7} parent=11 // pred_check_branch
        %311 = sbr.rel (%p309) target = $region36
      $region35: #{_lambda_.7} parent=11 // pred_region
        _
      $region36: #{_lambda_.7} parent=11 // pred_fallthru
        _
      // Predicated region
      $region37: #{_lambda_.7} parent=11 // pred_check
        %p312 = pneg %p190
      $region38: #{_lambda_.7} parent=11 // pred_check_branch
        %314 = sbr.rel (%p312) target = $region40
      $region39: #{_lambda_.7} parent=11 // pred_region
        _
      $region40: #{_lambda_.7} parent=11 // pred_fallthru
        _
      // Predicated region
      $region41: #{_lambda_.7} parent=11 // pred_check
        %p315 = pneg %p211
      $region42: #{_lambda_.7} parent=11 // pred_check_branch
        %317 = sbr.rel (%p315) target = $region44
      $region43: #{_lambda_.7} parent=11 // pred_region
        _
      $region44: #{_lambda_.7} parent=11 // pred_fallthru
        _
      // Predicated region
      $region45: #{_lambda_.7} parent=11 // pred_check
        %p318 = pneg %p232
      $region46: #{_lambda_.7} parent=11 // pred_check_branch
        %320 = sbr.rel (%p318) target = $region48
      $region47: #{_lambda_.7} parent=11 // pred_region
        _
      $region48: #{_lambda_.7} parent=11 // pred_fallthru
        _
      // Predicated region
      $region49: #{_lambda_.7} parent=11 // pred_check
        %p321 = pneg %p253
      $region50: #{_lambda_.7} parent=11 // pred_check_branch
        %323 = sbr.rel (%p321) target = $region52
      $region51: #{_lambda_.7} parent=11 // pred_region
        _
      $region52: #{_lambda_.7} parent=11 // pred_fallthru
        _
    $region12: #{_lambda_.7} parent=5 // pred_fallthru
      _
    %p324 = scmp.lt.s32.totalorder %s17, 2
    // Predicated region
    $region53: #{_lambda_.7} parent=5 // pred_check
      %p325 = pneg %p324
    $region54: #{_lambda_.7} parent=5 // pred_check_branch
      %327 = sbr.rel (%p325) target = $region56
    $region55: #{_lambda_.7} parent=5 // pred_region
      // Predicated region
      $region57: #{_lambda_.7} parent=55 // pred_check
        %p328 = pneg %p37
      $region58: #{_lambda_.7} parent=55 // pred_check_branch
        %330 = sbr.rel (%p328) target = $region60
      $region59: #{_lambda_.7} parent=55 // pred_region
        %p331 = scmp.lt.s32.totalorder %s17, 1
        %s332 = scalar_select %p331, %s17, 1
        %s333 = smul.addr %s332, 8
        %s334 = smul.addr %s333, 8
        %s335 = scalar_lea.vmem %s0, %s334
      $region60: #{_lambda_.7} parent=55 // pred_fallthru
        _
    $region56: #{_lambda_.7} parent=5 // pred_fallthru
      _
    %p336 = scmp.le.s32.totalorder 1, %s17
    %p337 = scmp.lt.s32.totalorder %s17, 3
    %p338 = pnand %p336, %p337
    %p339 = pneg %p338
    // Predicated region
    $region61: #{_lambda_.7} parent=5 // pred_check
      _
    $region62: #{_lambda_.7} parent=5 // pred_check_branch
      %341 = sbr.rel (%p338) target = $region64
    $region63: #{_lambda_.7} parent=5 // pred_region
      %s342 = ssub.s32 %s17, 1
      %p343 = scmp.lt.s32.totalorder %s22, 1
      %s344 = scalar_select %p343, %s22, 1
      %s345 = smul.addr %s344, 8
      %s346 = smul.addr %s345, 8
      %s347 = scalar_lea.vmem %s0, %s346
      %p348 = pneg %p43
      %p349 = pneg %p40
      %p350 = pneg %p64
      %p351 = pneg %p61
      %p352 = pneg %p85
      %p353 = pneg %p82
      %p354 = pneg %p106
      %p355 = pneg %p103
      %p356 = pneg %p127
      %p357 = pneg %p124
      %p358 = pneg %p148
      %p359 = pneg %p145
      %p360 = pneg %p169
      %p361 = pneg %p166
      %p362 = pneg %p190
      %p363 = pneg %p187
      %p364 = pneg %p211
      %p365 = pneg %p208
      %p366 = pneg %p232
      %p367 = pneg %p229
      %p368 = pneg %p253
      %p369 = pneg %p250
      %p370 = pneg %p279
      %p371 = pneg %p276
      %p372 = scmp.lt.s32.totalorder %s22, 1
      %s373 = scalar_select %p372, %s22, 1
      %s374 = smul.addr %s373, 2
      %s375 = smul.addr %s374, 8
      %s376 = scalar_lea.vmem %s11, %s375
      %p377 = scmp.lt.s32.totalorder %s22, 1
      %s378 = scalar_select %p377, %s22, 1
      %s379 = smul.addr %s378, 8
      %s380 = smul.addr %s379, 8
      %s381 = scalar_lea.vmem %s0, %s380
      %p382 = scmp.lt.s32.totalorder %s22, 1
      %s383 = scalar_select %p382, %s22, 1
      %s384 = smul.addr %s383, 2
      %s385 = smul.addr %s384, 8
      %s386 = scalar_lea.vmem %s11, %s385
      %vm388 = vcmask 392192
      %389 = vst.msk [vmem:[#allocation2] sm:$0xff] %vm388, 0.0
      %vm390 = vcmask 387072
      %391 = vst.msk [vmem:[#allocation2 + $0x8] sm:$0x7] %vm390, 0.0
      %392 = vst.msk [vmem:[#allocation2 + $0x10] sm:$0xff] %vm388, 0.0
      %393 = vst.msk [vmem:[#allocation2 + $0x18] sm:$0x7] %vm390, 0.0
      %394 = vst.msk [vmem:[#allocation2 + $0x20] sm:$0xff] %vm388, 0.0
      %395 = vst.msk [vmem:[#allocation2 + $0x28] sm:$0x7] %vm390, 0.0
      %396 = vst.msk [vmem:[#allocation2 + $0x30] sm:$0xff] %vm388, 0.0
      %397 = vst.msk [vmem:[#allocation2 + $0x38] sm:$0x7] %vm390, 0.0
      %398 = vst.msk [vmem:[#allocation2 + $0x40] sm:$0xff] %vm388, 0.0
      %399 = vst.msk [vmem:[#allocation2 + $0x48] sm:$0x7] %vm390, 0.0
      %400 = vst.msk [vmem:[#allocation2 + $0x50] sm:$0xff] %vm388, 0.0
      %401 = vst.msk [vmem:[#allocation2 + $0x58] sm:$0x7] %vm390, 0.0
      %402 = vst.msk [vmem:[#allocation2 + $0x60] sm:$0xff] %vm388, 0.0
      %403 = vst.msk [vmem:[#allocation2 + $0x68] sm:$0x7] %vm390, 0.0
      %404 = vst.msk [vmem:[#allocation2 + $0x70] sm:$0xff] %vm388, 0.0
      %405 = vst.msk [vmem:[#allocation2 + $0x78] sm:$0x7] %vm390, 0.0
      %406 = vst.msk [vmem:[#allocation2 + $0x80] sm:$0xff] %vm388, 0.0
      %407 = vst.msk [vmem:[#allocation2 + $0x88] sm:$0x7] %vm390, 0.0
      %408 = vst.msk [vmem:[#allocation2 + $0x90] sm:$0xff] %vm388, 0.0
      %409 = vst.msk [vmem:[#allocation2 + $0x98] sm:$0x7] %vm390, 0.0
      %410 = vst.msk [vmem:[#allocation2 + $0xa0] sm:$0xff] %vm388, 0.0
      %411 = vst.msk [vmem:[#allocation2 + $0xa8] sm:$0x7] %vm390, 0.0
      %v412 = vld [vmem:[%s381] sm:$0xff]
      %v413 = vld [vmem:[%s381 + $0x8] sm:$0xff]
      %v414 = vld [vmem:[%s381 + $0x10] sm:$0xff]
      %v415 = vld [vmem:[%s381 + $0x18] sm:$0xff]
      %v416 = vld [vmem:[%s381 + $0x20] sm:$0xff]
      %v417 = vld [vmem:[%s381 + $0x28] sm:$0xff]
      %v418 = vld [vmem:[%s381 + $0x30] sm:$0xff]
      %v419 = vld [vmem:[%s381 + $0x38] sm:$0xff]
      %v420 = vpack.c.bf16 %v413, %v412
      %v421 = vpack.c.bf16 %v415, %v414
      %v422 = vpack.c.bf16 %v417, %v416
      %v423 = vpack.c.bf16 %v419, %v418
      %v424 = vld [vmem:[%s1] sm:$0xf]
      %v425 = vld [vmem:[%s2] sm:$0x1]
      %v427 = vlaneseq
      %v428 = vshrl.u32 %v427, 7
      %v429 = vsub.s32 0, %v428
      %v430 = vrot.slane %v425, %v429
      %vm432 = vcmask 64512
      %v434 = vsel %vm432, %v420, 0
      %v437 = vsel %vm432, %v421, 0
      %v440 = vsel %vm432, %v422, 0
      %v443 = vsel %vm432, %v423, 0
      %vm445 = vcmask 1043456
      %v447 = vsel %vm445, %v424, 0
      %449 = vmatprep.subr.bf16.mxu0 0
      %450 = vmatpush1.bf16.msra.mxu0 %v447
      %451 = vmatprep.subr.bf16.mxu0 0
      %452 = vmatpush1.bf16.msra.mxu0 0
      %453 = vmatprep.subr.bf16.mxu0 0
      %454 = vmatpush1.bf16.msra.mxu0 0
      %455 = vmatprep.subr.bf16.mxu0 0
      %456 = vmatpush1.bf16.msra.mxu0 0
      %457 = vmatprep.subr.bf16.mxu0 0
      %458 = vmatpush1.bf16.msra.mxu0 0
      %459 = vmatprep.subr.bf16.mxu0 0
      %460 = vmatpush1.bf16.msra.mxu0 0
      %461 = vmatprep.subr.bf16.mxu0 0
      %462 = vmatpush1.bf16.msra.mxu0 0
      %463 = vmatprep.subr.bf16.mxu0 0
      %464 = vmatpush1.bf16.msra.mxu0 0
      %465 = vmatprep.subr.bf16.mxu0 0
      %466 = vmatpush1.bf16.msra.mxu0 0
      %467 = vmatprep.subr.bf16.mxu0 0
      %468 = vmatpush1.bf16.msra.mxu0 0
      %469 = vmatprep.subr.bf16.mxu0 0
      %470 = vmatpush1.bf16.msra.mxu0 0
      %471 = vmatprep.subr.bf16.mxu0 0
      %472 = vmatpush1.bf16.msra.mxu0 0
      %473 = vmatprep.subr.bf16.mxu0 0
      %474 = vmatpush1.bf16.msra.mxu0 0
      %475 = vmatprep.subr.bf16.mxu0 0
      %476 = vmatpush1.bf16.msra.mxu0 0
      %477 = vmatprep.subr.bf16.mxu0 0
      %478 = vmatpush1.bf16.msra.mxu0 0
      %479 = vmatprep.subr.bf16.mxu0 0
      %480 = vmatpush1.bf16.msra.mxu0 0
      %481 = vmatprep.mubr.bf16.mxu0 0
      %482 = vmatmul.mubr.bf16.gmra.mrb[0].mxu0 %v434
      %v483 = vpop.f32.mrb[0].mxu0
      %v484 = vadd.f32 %v430, %v483
      %v485 = vpop.f32.mrb[0].mxu0
      %v486 = vpop.f32.mrb[0].mxu0
      %v487 = vadd.f32 %v430, %v486
      %v488 = vpop.f32.mrb[0].mxu0
      %489 = vmatprep.mubr.bf16.mxu0 0
      %490 = vmatmul.mubr.bf16.gmra.mrb[0].mxu0 %v437
      %v491 = vpop.f32.mrb[0].mxu0
      %v492 = vadd.f32 %v430, %v491
      %v493 = vpop.f32.mrb[0].mxu0
      %v494 = vpop.f32.mrb[0].mxu0
      %v495 = vadd.f32 %v430, %v494
      %v496 = vpop.f32.mrb[0].mxu0
      %497 = vmatprep.mubr.bf16.mxu0 0
      %498 = vmatmul.mubr.bf16.gmra.mrb[0].mxu0 %v440
      %v499 = vpop.f32.mrb[0].mxu0
      %v500 = vadd.f32 %v430, %v499
      %v501 = vpop.f32.mrb[0].mxu0
      %v502 = vpop.f32.mrb[0].mxu0
      %v503 = vadd.f32 %v430, %v502
      %v504 = vpop.f32.mrb[0].mxu0
      %505 = vmatprep.mubr.bf16.mxu0 0
      %506 = vmatmul.mubr.bf16.gmra.mrb[0].mxu0 %v443
      %v507 = vpop.f32.mrb[0].mxu0
      %v508 = vadd.f32 %v430, %v507
      %v509 = vpop.f32.mrb[0].mxu0
      %v510 = vpop.f32.mrb[0].mxu0
      %v511 = vadd.f32 %v430, %v510
      %v512 = vpop.f32.mrb[0].mxu0
      %513 = vdwg.mxu0
      %v514 = vxor.u32 %v484, 2147483648
      %v515 = vxor.u32 %v487, 2147483648
      %v516 = vxor.u32 %v492, 2147483648
      %v517 = vxor.u32 %v495, 2147483648
      %v518 = vxor.u32 %v500, 2147483648
      %v519 = vxor.u32 %v503, 2147483648
      %v520 = vxor.u32 %v508, 2147483648
      %v521 = vxor.u32 %v511, 2147483648
      %v522 = vmul.f32 %v514, 1.442695
      %v523 = vpow.pop %v522
      %v524 = vmul.f32 %v515, 1.442695
      %v525 = vpow.pop %v524
      %v526 = vmul.f32 %v516, 1.442695
      %v527 = vpow.pop %v526
      %v528 = vmul.f32 %v517, 1.442695
      %v529 = vpow.pop %v528
      %v530 = vmul.f32 %v518, 1.442695
      %v531 = vpow.pop %v530
      %v532 = vmul.f32 %v519, 1.442695
      %v533 = vpow.pop %v532
      %v534 = vmul.f32 %v520, 1.442695
      %v535 = vpow.pop %v534
      %v536 = vmul.f32 %v521, 1.442695
      %v537 = vpow.pop %v536
      %v538 = vadd.f32 %v523, 1.0
      %v539 = vadd.f32 %v525, 1.0
      %v540 = vadd.f32 %v527, 1.0
      %v541 = vadd.f32 %v529, 1.0
      %v542 = vadd.f32 %v531, 1.0
      %v543 = vadd.f32 %v533, 1.0
      %v544 = vadd.f32 %v535, 1.0
      %v545 = vadd.f32 %v537, 1.0
      %v546 = vrcp.pop %v538
      %v547 = vmul.f32 1.0, %v546
      %v548 = vrcp.pop %v539
      %v549 = vmul.f32 1.0, %v548
      %v550 = vrcp.pop %v540
      %v551 = vmul.f32 1.0, %v550
      %v552 = vrcp.pop %v541
      %v553 = vmul.f32 1.0, %v552
      %v554 = vrcp.pop %v542
      %v555 = vmul.f32 1.0, %v554
      %v556 = vrcp.pop %v543
      %v557 = vmul.f32 1.0, %v556
      %v558 = vrcp.pop %v544
      %v559 = vmul.f32 1.0, %v558
      %v560 = vrcp.pop %v545
      %v561 = vmul.f32 1.0, %v560
      %v562 = vmul.f32 %v484, %v547
      %v563 = vmul.f32 %v487, %v549
      %v564 = vmul.f32 %v492, %v551
      %v565 = vmul.f32 %v495, %v553
      %v566 = vmul.f32 %v500, %v555
      %v567 = vmul.f32 %v503, %v557
      %v568 = vmul.f32 %v508, %v559
      %v569 = vmul.f32 %v511, %v561
      %s570 = scalar_lea.vmem [#allocation2], 16
      %571 = vst.msk [vmem:[%s570 + $0x1] sm:$0xff] %vm388, %v562
      %s572 = scalar_lea.vmem [#allocation2], 32
      %573 = vst.msk [vmem:[%s572 + $0x1] sm:$0xff] %vm388, %v563
      %s574 = scalar_lea.vmem [#allocation2], 48
      %575 = vst.msk [vmem:[%s574 + $0x1] sm:$0xff] %vm388, %v564
      %s576 = scalar_lea.vmem [#allocation2], 64
      %577 = vst.msk [vmem:[%s576 + $0x1] sm:$0xff] %vm388, %v565
      %s578 = scalar_lea.vmem [#allocation2], 80
      %579 = vst.msk [vmem:[%s578 + $0x1] sm:$0xff] %vm388, %v566
      %s580 = scalar_lea.vmem [#allocation2], 96
      %581 = vst.msk [vmem:[%s580 + $0x1] sm:$0xff] %vm388, %v567
      %s582 = scalar_lea.vmem [#allocation2], 112
      %583 = vst.msk [vmem:[%s582 + $0x1] sm:$0xff] %vm388, %v568
      %s584 = scalar_lea.vmem [#allocation2], 128
      %585 = vst.msk [vmem:[%s584 + $0x1] sm:$0xff] %vm388, %v569
      %v586 = vld [vmem:[%s3] sm:$0xff]
      %v587 = vld [vmem:[%s3 + $0x8] sm:$0xff]
      %v588 = vld [vmem:[%s3 + $0x10] sm:$0xff]
      %v589 = vld [vmem:[%s3 + $0x18] sm:$0x1]
      %v590 = vld [vmem:[#allocation2] ss:$2 sm:$0xf]
      %s591 = scalar_lea.vmem [#allocation2], 16
      %v592 = vld [vmem:[%s591] ss:$2 sm:$0xf]
      %s593 = scalar_lea.vmem [#allocation2], 32
      %v594 = vld [vmem:[%s593] ss:$2 sm:$0xf]
      %s595 = scalar_lea.vmem [#allocation2], 48
      %v596 = vld [vmem:[%s595] ss:$2 sm:$0xf]
      %s597 = scalar_lea.vmem [#allocation2], 64
      %v598 = vld [vmem:[%s597] ss:$2 sm:$0xf]
      %s599 = scalar_lea.vmem [#allocation2], 80
      %v600 = vld [vmem:[%s599] ss:$2 sm:$0xf]
      %s601 = scalar_lea.vmem [#allocation2], 96
      %v602 = vld [vmem:[%s601] ss:$2 sm:$0xf]
      %s603 = scalar_lea.vmem [#allocation2], 112
      %v604 = vld [vmem:[%s603] ss:$2 sm:$0xf]
      %s605 = scalar_lea.vmem [#allocation2], 128
      %v606 = vld [vmem:[%s605] ss:$2 sm:$0xf]
      %s607 = scalar_lea.vmem [#allocation2], 144
      %v608 = vld [vmem:[%s607] ss:$2 sm:$0xf]
      %s609 = scalar_lea.vmem [#allocation2], 160
      %v610 = vld [vmem:[%s609] ss:$2 sm:$0xf]
      %v611 = vlaneseq
      %v612 = vshrl.u32 %v611, 7
      %v613 = vsub.s32 0, %v612
      %v614 = vrot.slane %v586, %v613
      %v615 = vmul.f32 %v590, %v614
      %v616 = vmul.f32 %v594, %v614
      %v617 = vmul.f32 %v598, %v614
      %v618 = vmul.f32 %v602, %v614
      %v619 = vadd.f32 %v615, 0.0
      %v620 = vadd.f32 %v616, 0.0
      %v621 = vadd.f32 %v617, 0.0
      %v622 = vadd.f32 %v618, 0.0
      %v623 = vlaneseq
      %v624 = vshrl.u32 %v623, 7
      %v625 = vsub.s32 5, %v624
      %v626 = vrot.slane %v586, %v625
      %v627 = vmul.f32 %v592, %v626
      %v628 = vmul.f32 %v596, %v626
      %v629 = vmul.f32 %v600, %v626
      %v630 = vmul.f32 %v604, %v626
      %v631 = vadd.f32 %v619, %v627
      %v632 = vadd.f32 %v620, %v628
      %v633 = vadd.f32 %v621, %v629
      %v634 = vadd.f32 %v622, %v630
      %v635 = vlaneseq
      %v636 = vshrl.u32 %v635, 7
      %v637 = vsub.s32 2, %v636
      %v638 = vrot.slane %v587, %v637
      %v639 = vmul.f32 %v594, %v638
      %v640 = vmul.f32 %v598, %v638
      %v641 = vmul.f32 %v602, %v638
      %v642 = vmul.f32 %v606, %v638
      %v643 = vadd.f32 %v631, %v639
      %v644 = vadd.f32 %v632, %v640
      %v645 = vadd.f32 %v633, %v641
      %v646 = vadd.f32 %v634, %v642
      %v647 = vlaneseq
      %v648 = vshrl.u32 %v647, 7
      %v649 = vsub.s32 7, %v648
      %v650 = vrot.slane %v587, %v649
      %v651 = vmul.f32 %v596, %v650
      %v652 = vmul.f32 %v600, %v650
      %v653 = vmul.f32 %v604, %v650
      %v654 = vmul.f32 %v608, %v650
      %v655 = vadd.f32 %v643, %v651
      %v656 = vadd.f32 %v644, %v652
      %v657 = vadd.f32 %v645, %v653
      %v658 = vadd.f32 %v646, %v654
      %v659 = vlaneseq
      %v660 = vshrl.u32 %v659, 7
      %v661 = vsub.s32 4, %v660
      %v662 = vrot.slane %v588, %v661
      %v663 = vmul.f32 %v598, %v662
      %v664 = vmul.f32 %v602, %v662
      %v665 = vmul.f32 %v606, %v662
      %v666 = vmul.f32 %v610, %v662
      %v667 = vadd.f32 %v655, %v663
      %v668 = vadd.f32 %v656, %v664
      %v669 = vadd.f32 %v657, %v665
      %v670 = vadd.f32 %v658, %v666
      %s671 = scalar_lea.vmem [#allocation2], 1
      %v672 = vld [vmem:[%s671] ss:$2 sm:$0xf]
      %s673 = scalar_lea.vmem [#allocation2], 17
      %v674 = vld [vmem:[%s673] ss:$2 sm:$0xf]
      %s675 = scalar_lea.vmem [#allocation2], 33
      %v676 = vld [vmem:[%s675] ss:$2 sm:$0xf]
      %s677 = scalar_lea.vmem [#allocation2], 49
      %v678 = vld [vmem:[%s677] ss:$2 sm:$0xf]
      %s679 = scalar_lea.vmem [#allocation2], 65
      %v680 = vld [vmem:[%s679] ss:$2 sm:$0xf]
      %s681 = scalar_lea.vmem [#allocation2], 81
      %v682 = vld [vmem:[%s681] ss:$2 sm:$0xf]
      %s683 = scalar_lea.vmem [#allocation2], 97
      %v684 = vld [vmem:[%s683] ss:$2 sm:$0xf]
      %s685 = scalar_lea.vmem [#allocation2], 113
      %v686 = vld [vmem:[%s685] ss:$2 sm:$0xf]
      %s687 = scalar_lea.vmem [#allocation2], 129
      %v688 = vld [vmem:[%s687] ss:$2 sm:$0xf]
      %s689 = scalar_lea.vmem [#allocation2], 145
      %v690 = vld [vmem:[%s689] ss:$2 sm:$0xf]
      %s691 = scalar_lea.vmem [#allocation2], 161
      %v692 = vld [vmem:[%s691] ss:$2 sm:$0xf]
      %v693 = vlaneseq
      %v694 = vshrl.u32 %v693, 7
      %v695 = vsub.s32 1, %v694
      %v696 = vrot.slane %v586, %v695
      %v697 = vmul.f32 %v672, %v696
      %v698 = vmul.f32 %v676, %v696
      %v699 = vmul.f32 %v680, %v696
      %v700 = vmul.f32 %v684, %v696
      %v701 = vadd.f32 %v667, %v697
      %v702 = vadd.f32 %v668, %v698
      %v703 = vadd.f32 %v669, %v699
      %v704 = vadd.f32 %v670, %v700
      %v705 = vlaneseq
      %v706 = vshrl.u32 %v705, 7
      %v707 = vsub.s32 6, %v706
      %v708 = vrot.slane %v586, %v707
      %v709 = vmul.f32 %v674, %v708
      %v710 = vmul.f32 %v678, %v708
      %v711 = vmul.f32 %v682, %v708
      %v712 = vmul.f32 %v686, %v708
      %v713 = vadd.f32 %v701, %v709
      %v714 = vadd.f32 %v702, %v710
      %v715 = vadd.f32 %v703, %v711
      %v716 = vadd.f32 %v704, %v712
      %v717 = vlaneseq
      %v718 = vshrl.u32 %v717, 7
      %v719 = vsub.s32 3, %v718
      %v720 = vrot.slane %v587, %v719
      %v721 = vmul.f32 %v676, %v720
      %v722 = vmul.f32 %v680, %v720
      %v723 = vmul.f32 %v684, %v720
      %v724 = vmul.f32 %v688, %v720
      %v725 = vadd.f32 %v713, %v721
      %v726 = vadd.f32 %v714, %v722
      %v727 = vadd.f32 %v715, %v723
      %v728 = vadd.f32 %v716, %v724
      %v729 = vlaneseq
      %v730 = vshrl.u32 %v729, 7
      %v731 = vsub.s32 0, %v730
      %v732 = vrot.slane %v588, %v731
      %v733 = vmul.f32 %v678, %v732
      %v734 = vmul.f32 %v682, %v732
      %v735 = vmul.f32 %v686, %v732
      %v736 = vmul.f32 %v690, %v732
      %v737 = vadd.f32 %v725, %v733
      %v738 = vadd.f32 %v726, %v734
      %v739 = vadd.f32 %v727, %v735
      %v740 = vadd.f32 %v728, %v736
      %v741 = vlaneseq
      %v742 = vshrl.u32 %v741, 7
      %v743 = vsub.s32 5, %v742
      %v744 = vrot.slane %v588, %v743
      %v745 = vmul.f32 %v680, %v744
      %v746 = vmul.f32 %v684, %v744
      %v747 = vmul.f32 %v688, %v744
      %v748 = vmul.f32 %v692, %v744
      %v749 = vadd.f32 %v737, %v745
      %v750 = vadd.f32 %v738, %v746
      %v751 = vadd.f32 %v739, %v747
      %v752 = vadd.f32 %v740, %v748
      %s753 = scalar_lea.vmem [#allocation2], 2
      %v754 = vld [vmem:[%s753] ss:$2 sm:$0xf]
      %s755 = scalar_lea.vmem [#allocation2], 18
      %v756 = vld [vmem:[%s755] ss:$2 sm:$0xf]
      %s757 = scalar_lea.vmem [#allocation2], 34
      %v758 = vld [vmem:[%s757] ss:$2 sm:$0xf]
      %s759 = scalar_lea.vmem [#allocation2], 50
      %v760 = vld [vmem:[%s759] ss:$2 sm:$0xf]
      %s761 = scalar_lea.vmem [#allocation2], 66
      %v762 = vld [vmem:[%s761] ss:$2 sm:$0xf]
      %s763 = scalar_lea.vmem [#allocation2], 82
      %v764 = vld [vmem:[%s763] ss:$2 sm:$0xf]
      %s765 = scalar_lea.vmem [#allocation2], 98
      %v766 = vld [vmem:[%s765] ss:$2 sm:$0xf]
      %s767 = scalar_lea.vmem [#allocation2], 114
      %v768 = vld [vmem:[%s767] ss:$2 sm:$0xf]
      %s769 = scalar_lea.vmem [#allocation2], 130
      %v770 = vld [vmem:[%s769] ss:$2 sm:$0xf]
      %s771 = scalar_lea.vmem [#allocation2], 146
      %v772 = vld [vmem:[%s771] ss:$2 sm:$0xf]
      %s773 = scalar_lea.vmem [#allocation2], 162
      %v774 = vld [vmem:[%s773] ss:$2 sm:$0xf]
      %v775 = vlaneseq
      %v776 = vshrl.u32 %v775, 7
      %v777 = vsub.s32 2, %v776
      %v778 = vrot.slane %v586, %v777
      %v779 = vmul.f32 %v754, %v778
      %v780 = vmul.f32 %v758, %v778
      %v781 = vmul.f32 %v762, %v778
      %v782 = vmul.f32 %v766, %v778
      %v783 = vadd.f32 %v749, %v779
      %v784 = vadd.f32 %v750, %v780
      %v785 = vadd.f32 %v751, %v781
      %v786 = vadd.f32 %v752, %v782
      %v787 = vlaneseq
      %v788 = vshrl.u32 %v787, 7
      %v789 = vsub.s32 7, %v788
      %v790 = vrot.slane %v586, %v789
      %v791 = vmul.f32 %v756, %v790
      %v792 = vmul.f32 %v760, %v790
      %v793 = vmul.f32 %v764, %v790
      %v794 = vmul.f32 %v768, %v790
      %v795 = vadd.f32 %v783, %v791
      %v796 = vadd.f32 %v784, %v792
      %v797 = vadd.f32 %v785, %v793
      %v798 = vadd.f32 %v786, %v794
      %v799 = vlaneseq
      %v800 = vshrl.u32 %v799, 7
      %v801 = vsub.s32 4, %v800
      %v802 = vrot.slane %v587, %v801
      %v803 = vmul.f32 %v758, %v802
      %v804 = vmul.f32 %v762, %v802
      %v805 = vmul.f32 %v766, %v802
      %v806 = vmul.f32 %v770, %v802
      %v807 = vadd.f32 %v795, %v803
      %v808 = vadd.f32 %v796, %v804
      %v809 = vadd.f32 %v797, %v805
      %v810 = vadd.f32 %v798, %v806
      %v811 = vlaneseq
      %v812 = vshrl.u32 %v811, 7
      %v813 = vsub.s32 1, %v812
      %v814 = vrot.slane %v588, %v813
      %v815 = vmul.f32 %v760, %v814
      %v816 = vmul.f32 %v764, %v814
      %v817 = vmul.f32 %v768, %v814
      %v818 = vmul.f32 %v772, %v814
      %v819 = vadd.f32 %v807, %v815
      %v820 = vadd.f32 %v808, %v816
      %v821 = vadd.f32 %v809, %v817
      %v822 = vadd.f32 %v810, %v818
      %v823 = vlaneseq
      %v824 = vshrl.u32 %v823, 7
      %v825 = vsub.s32 6, %v824
      %v826 = vrot.slane %v588, %v825
      %v827 = vmul.f32 %v762, %v826
      %v828 = vmul.f32 %v766, %v826
      %v829 = vmul.f32 %v770, %v826
      %v830 = vmul.f32 %v774, %v826
      %v831 = vadd.f32 %v819, %v827
      %v832 = vadd.f32 %v820, %v828
      %v833 = vadd.f32 %v821, %v829
      %v834 = vadd.f32 %v822, %v830
      %s835 = scalar_lea.vmem [#allocation2], 3
      %v836 = vld [vmem:[%s835] ss:$2 sm:$0xf]
      %s837 = scalar_lea.vmem [#allocation2], 19
      %v838 = vld [vmem:[%s837] ss:$2 sm:$0xf]
      %s839 = scalar_lea.vmem [#allocation2], 35
      %v840 = vld [vmem:[%s839] ss:$2 sm:$0xf]
      %s841 = scalar_lea.vmem [#allocation2], 51
      %v842 = vld [vmem:[%s841] ss:$2 sm:$0xf]
      %s843 = scalar_lea.vmem [#allocation2], 67
      %v844 = vld [vmem:[%s843] ss:$2 sm:$0xf]
      %s845 = scalar_lea.vmem [#allocation2], 83
      %v846 = vld [vmem:[%s845] ss:$2 sm:$0xf]
      %s847 = scalar_lea.vmem [#allocation2], 99
      %v848 = vld [vmem:[%s847] ss:$2 sm:$0xf]
      %s849 = scalar_lea.vmem [#allocation2], 115
      %v850 = vld [vmem:[%s849] ss:$2 sm:$0xf]
      %s851 = scalar_lea.vmem [#allocation2], 131
      %v852 = vld [vmem:[%s851] ss:$2 sm:$0xf]
      %s853 = scalar_lea.vmem [#allocation2], 147
      %v854 = vld [vmem:[%s853] ss:$2 sm:$0xf]
      %s855 = scalar_lea.vmem [#allocation2], 163
      %v856 = vld [vmem:[%s855] ss:$2 sm:$0xf]
      %v857 = vlaneseq
      %v858 = vshrl.u32 %v857, 7
      %v859 = vsub.s32 3, %v858
      %v860 = vrot.slane %v586, %v859
      %v861 = vmul.f32 %v836, %v860
      %v862 = vmul.f32 %v840, %v860
      %v863 = vmul.f32 %v844, %v860
      %v864 = vmul.f32 %v848, %v860
      %v865 = vadd.f32 %v831, %v861
      %v866 = vadd.f32 %v832, %v862
      %v867 = vadd.f32 %v833, %v863
      %v868 = vadd.f32 %v834, %v864
      %v869 = vlaneseq
      %v870 = vshrl.u32 %v869, 7
      %v871 = vsub.s32 0, %v870
      %v872 = vrot.slane %v587, %v871
      %v873 = vmul.f32 %v838, %v872
      %v874 = vmul.f32 %v842, %v872
      %v875 = vmul.f32 %v846, %v872
      %v876 = vmul.f32 %v850, %v872
      %v877 = vadd.f32 %v865, %v873
      %v878 = vadd.f32 %v866, %v874
      %v879 = vadd.f32 %v867, %v875
      %v880 = vadd.f32 %v868, %v876
      %v881 = vlaneseq
      %v882 = vshrl.u32 %v881, 7
      %v883 = vsub.s32 5, %v882
      %v884 = vrot.slane %v587, %v883
      %v885 = vmul.f32 %v840, %v884
      %v886 = vmul.f32 %v844, %v884
      %v887 = vmul.f32 %v848, %v884
      %v888 = vmul.f32 %v852, %v884
      %v889 = vadd.f32 %v877, %v885
      %v890 = vadd.f32 %v878, %v886
      %v891 = vadd.f32 %v879, %v887
      %v892 = vadd.f32 %v880, %v888
      %v893 = vlaneseq
      %v894 = vshrl.u32 %v893, 7
      %v895 = vsub.s32 2, %v894
      %v896 = vrot.slane %v588, %v895
      %v897 = vmul.f32 %v842, %v896
      %v898 = vmul.f32 %v846, %v896
      %v899 = vmul.f32 %v850, %v896
      %v900 = vmul.f32 %v854, %v896
      %v901 = vadd.f32 %v889, %v897
      %v902 = vadd.f32 %v890, %v898
      %v903 = vadd.f32 %v891, %v899
      %v904 = vadd.f32 %v892, %v900
      %v905 = vlaneseq
      %v906 = vshrl.u32 %v905, 7
      %v907 = vsub.s32 7, %v906
      %v908 = vrot.slane %v588, %v907
      %v909 = vmul.f32 %v844, %v908
      %v910 = vmul.f32 %v848, %v908
      %v911 = vmul.f32 %v852, %v908
      %v912 = vmul.f32 %v856, %v908
      %v913 = vadd.f32 %v901, %v909
      %v914 = vadd.f32 %v902, %v910
      %v915 = vadd.f32 %v903, %v911
      %v916 = vadd.f32 %v904, %v912
      %s917 = scalar_lea.vmem [#allocation2], 4
      %v918 = vld [vmem:[%s917] ss:$2 sm:$0xf]
      %s919 = scalar_lea.vmem [#allocation2], 20
      %v920 = vld [vmem:[%s919] ss:$2 sm:$0xf]
      %s921 = scalar_lea.vmem [#allocation2], 36
      %v922 = vld [vmem:[%s921] ss:$2 sm:$0xf]
      %s923 = scalar_lea.vmem [#allocation2], 52
      %v924 = vld [vmem:[%s923] ss:$2 sm:$0xf]
      %s925 = scalar_lea.vmem [#allocation2], 68
      %v926 = vld [vmem:[%s925] ss:$2 sm:$0xf]
      %s927 = scalar_lea.vmem [#allocation2], 84
      %v928 = vld [vmem:[%s927] ss:$2 sm:$0xf]
      %s929 = scalar_lea.vmem [#allocation2], 100
      %v930 = vld [vmem:[%s929] ss:$2 sm:$0xf]
      %s931 = scalar_lea.vmem [#allocation2], 116
      %v932 = vld [vmem:[%s931] ss:$2 sm:$0xf]
      %s933 = scalar_lea.vmem [#allocation2], 132
      %v934 = vld [vmem:[%s933] ss:$2 sm:$0xf]
      %s935 = scalar_lea.vmem [#allocation2], 148
      %v936 = vld [vmem:[%s935] ss:$2 sm:$0xf]
      %s937 = scalar_lea.vmem [#allocation2], 164
      %v938 = vld [vmem:[%s937] ss:$2 sm:$0xf]
      %v939 = vlaneseq
      %v940 = vshrl.u32 %v939, 7
      %v941 = vsub.s32 4, %v940
      %v942 = vrot.slane %v586, %v941
      %v943 = vmul.f32 %v918, %v942
      %v944 = vmul.f32 %v922, %v942
      %v945 = vmul.f32 %v926, %v942
      %v946 = vmul.f32 %v930, %v942
      %v947 = vadd.f32 %v913, %v943
      %v948 = vadd.f32 %v914, %v944
      %v949 = vadd.f32 %v915, %v945
      %v950 = vadd.f32 %v916, %v946
      %v951 = vlaneseq
      %v952 = vshrl.u32 %v951, 7
      %v953 = vsub.s32 1, %v952
      %v954 = vrot.slane %v587, %v953
      %v955 = vmul.f32 %v920, %v954
      %v956 = vmul.f32 %v924, %v954
      %v957 = vmul.f32 %v928, %v954
      %v958 = vmul.f32 %v932, %v954
      %v959 = vadd.f32 %v947, %v955
      %v960 = vadd.f32 %v948, %v956
      %v961 = vadd.f32 %v949, %v957
      %v962 = vadd.f32 %v950, %v958
      %v963 = vlaneseq
      %v964 = vshrl.u32 %v963, 7
      %v965 = vsub.s32 6, %v964
      %v966 = vrot.slane %v587, %v965
      %v967 = vmul.f32 %v922, %v966
      %v968 = vmul.f32 %v926, %v966
      %v969 = vmul.f32 %v930, %v966
      %v970 = vmul.f32 %v934, %v966
      %v971 = vadd.f32 %v959, %v967
      %v972 = vadd.f32 %v960, %v968
      %v973 = vadd.f32 %v961, %v969
      %v974 = vadd.f32 %v962, %v970
      %v975 = vlaneseq
      %v976 = vshrl.u32 %v975, 7
      %v977 = vsub.s32 3, %v976
      %v978 = vrot.slane %v588, %v977
      %v979 = vmul.f32 %v924, %v978
      %v980 = vmul.f32 %v928, %v978
      %v981 = vmul.f32 %v932, %v978
      %v982 = vmul.f32 %v936, %v978
      %v983 = vadd.f32 %v971, %v979
      %v984 = vadd.f32 %v972, %v980
      %v985 = vadd.f32 %v973, %v981
      %v986 = vadd.f32 %v974, %v982
      %v987 = vlaneseq
      %v988 = vshrl.u32 %v987, 7
      %v989 = vsub.s32 0, %v988
      %v990 = vrot.slane %v589, %v989
      %v991 = vmul.f32 %v926, %v990
      %v992 = vmul.f32 %v930, %v990
      %v993 = vmul.f32 %v934, %v990
      %v994 = vmul.f32 %v938, %v990
      %v995 = vadd.f32 %v983, %v991
      %v996 = vadd.f32 %v984, %v992
      %v997 = vadd.f32 %v985, %v993
      %v998 = vadd.f32 %v986, %v994
      %v999 = vld [vmem:[%s4] sm:$0x1]
      %v1001 = vlaneseq
      %v1002 = vshrl.u32 %v1001, 7
      %v1003 = vsub.s32 0, %v1002
      %v1004 = vrot.slane %v999, %v1003
      %v1006 = vadd.f32 %v995, %v1004
      %v1007 = vadd.f32 %v996, %v1004
      %v1008 = vadd.f32 %v997, %v1004
      %v1009 = vadd.f32 %v998, %v1004
      %v1010 = vxor.u32 %v1006, 2147483648
      %v1011 = vxor.u32 %v1007, 2147483648
      %v1012 = vxor.u32 %v1008, 2147483648
      %v1013 = vxor.u32 %v1009, 2147483648
      %v1014 = vmul.f32 %v1010, 1.442695
      %v1015 = vpow.pop %v1014
      %v1016 = vmul.f32 %v1011, 1.442695
      %v1017 = vpow.pop %v1016
      %v1018 = vmul.f32 %v1012, 1.442695
      %v1019 = vpow.pop %v1018
      %v1020 = vmul.f32 %v1013, 1.442695
      %v1021 = vpow.pop %v1020
      %v1022 = vadd.f32 %v1015, 1.0
      %v1023 = vadd.f32 %v1017, 1.0
      %v1024 = vadd.f32 %v1019, 1.0
      %v1025 = vadd.f32 %v1021, 1.0
      %v1026 = vrcp.pop %v1022
      %v1027 = vmul.f32 1.0, %v1026
      %v1028 = vrcp.pop %v1023
      %v1029 = vmul.f32 1.0, %v1028
      %v1030 = vrcp.pop %v1024
      %v1031 = vmul.f32 1.0, %v1030
      %v1032 = vrcp.pop %v1025
      %v1033 = vmul.f32 1.0, %v1032
      %v1034 = vmul.f32 %v1006, %v1027
      %v1035 = vmul.f32 %v1007, %v1029
      %v1036 = vmul.f32 %v1008, %v1031
      %v1037 = vmul.f32 %v1009, %v1033
      %vm1038 = vcmask 388096
      %1039 = vst.msk [vmem:[#allocation3] sm:$0xf] %vm1038, %v1034
      %1040 = vst.msk [vmem:[#allocation3 + $0x4] sm:$0xf] %vm1038, %v1035
      %1041 = vst.msk [vmem:[#allocation3 + $0x8] sm:$0xf] %vm1038, %v1036
      %1042 = vst.msk [vmem:[#allocation3 + $0xc] sm:$0xf] %vm1038, %v1037
      %v1043 = vld [vmem:[#allocation3] sm:$0xff]
      %v1044 = vld [vmem:[#allocation3 + $0x8] sm:$0xff]
      %v1045 = vsel %vm388, %v1043, 0.0
      %v1046 = vsel %vm388, %v1044, 0.0
      %v1047 = vadd.f32 %v1045, %v1046
      %v1048 = vrot.slane %v1047, 4
      %v1049 = vadd.f32 %v1047, %v1048
      %v1050 = vrot.slane %v1049, 2
      %v1051 = vadd.f32 %v1049, %v1050
      %v1052 = vrot.slane %v1051, 1
      %v1053 = vadd.f32 %v1051, %v1052
      %v1054 = vmul.f32 %v1053, 0.0625
      %v1055 = vld [vmem:[%s5] sm:$0xff]
      %v1056 = vld [vmem:[%s5 + $0x8] sm:$0xff]
      %v1057 = vld [vmem:[%s5 + $0x10] sm:$0xff]
      %v1058 = vld [vmem:[%s5 + $0x18] sm:$0xff]
      %v1059 = vld [vmem:[%s5 + $0x20] sm:$0xff]
      %v1060 = vld [vmem:[%s5 + $0x28] sm:$0xff]
      %v1061 = vld [vmem:[%s6] sm:$0x1]
      %v1063 = vsel %vm388, %v1054, 0
      %1065 = vmatprep.subr.mxu0 0.0
      %1066 = vmatpush1.msra.mxu0 %v1055
      %1067 = vmatprep.subr.mxu0 0.0
      %1068 = vmatpush1.msra.mxu0 %v1056
      %1069 = vmatprep.subr.mxu0 0.0
      %1070 = vmatpush1.msra.mxu0 %v1057
      %1071 = vmatprep.subr.mxu0 0.0
      %1072 = vmatpush1.msra.mxu0 %v1058
      %1073 = vmatprep.subr.mxu0 0.0
      %1074 = vmatpush1.msra.mxu0 %v1059
      %1075 = vmatprep.subr.mxu0 0.0
      %1076 = vmatpush1.msra.mxu0 %v1060
      %1077 = vmatprep.subr.mxu0 0.0
      %1078 = vmatpush1.msra.mxu0 0.0
      %1079 = vmatprep.subr.mxu0 0.0
      %1080 = vmatpush1.msra.mxu0 0.0
      %1081 = vmatprep.subr.mxu0 0.0
      %1082 = vmatpush1.msra.mxu0 0.0
      %1083 = vmatprep.subr.mxu0 0.0
      %1084 = vmatpush1.msra.mxu0 0.0
      %1085 = vmatprep.subr.mxu0 0.0
      %1086 = vmatpush1.msra.mxu0 0.0
      %1087 = vmatprep.subr.mxu0 0.0
      %1088 = vmatpush1.msra.mxu0 0.0
      %1089 = vmatprep.subr.mxu0 0.0
      %1090 = vmatpush1.msra.mxu0 0.0
      %1091 = vmatprep.subr.mxu0 0.0
      %1092 = vmatpush1.msra.mxu0 0.0
      %1093 = vmatprep.subr.mxu0 0.0
      %1094 = vmatpush1.msra.mxu0 0.0
      %1095 = vmatprep.subr.mxu0 0.0
      %1096 = vmatpush1.msra.mxu0 0.0
      %1097 = vmatprep.subr.mxu0 0.0
      %1098 = vmatpush1.msra.mxu0 0.0
      %1099 = vmatprep.subr.mxu0 0.0
      %1100 = vmatpush1.msra.mxu0 0.0
      %1101 = vmatprep.subr.mxu0 0.0
      %1102 = vmatpush1.msra.mxu0 0.0
      %1103 = vmatprep.subr.mxu0 0.0
      %1104 = vmatpush1.msra.mxu0 0.0
      %1105 = vmatprep.subr.mxu0 0.0
      %1106 = vmatpush1.msra.mxu0 0.0
      %1107 = vmatprep.subr.mxu0 0.0
      %1108 = vmatpush1.msra.mxu0 0.0
      %1109 = vmatprep.subr.mxu0 0.0
      %1110 = vmatpush1.msra.mxu0 0.0
      %1111 = vmatprep.subr.mxu0 0.0
      %1112 = vmatpush1.msra.mxu0 0.0
      %1113 = vmatprep.subr.mxu0 0.0
      %1114 = vmatpush1.msra.mxu0 0.0
      %1115 = vmatprep.subr.mxu0 0.0
      %1116 = vmatpush1.msra.mxu0 0.0
      %1117 = vmatprep.subr.mxu0 0.0
      %1118 = vmatpush1.msra.mxu0 0.0
      %1119 = vmatprep.subr.mxu0 0.0
      %1120 = vmatpush1.msra.mxu0 0.0
      %1121 = vmatprep.subr.mxu0 0.0
      %1122 = vmatpush1.msra.mxu0 0.0
      %1123 = vmatprep.subr.mxu0 0.0
      %1124 = vmatpush1.msra.mxu0 0.0
      %1125 = vmatprep.subr.mxu0 0.0
      %1126 = vmatpush1.msra.mxu0 0.0
      %1127 = vmatprep.subr.mxu0 0.0
      %1128 = vmatpush1.msra.mxu0 0.0
      %1129 = vmatprep.mubr.f32.mxu0 0.0
      %1130 = vmatmul.mubr.f32.gmra.mrb[0].mxu0 %v1063
      %v1131 = vpop.f32.mrb[0].mxu0
      %v1132 = vadd.f32 %v1061, %v1131
      %v1133 = vpop.f32.mrb[0].mxu0
      %1134 = vdwg.mxu0
      %v1135 = vxor.u32 %v1132, 2147483648
      %v1136 = vmul.f32 %v1135, 1.442695
      %v1137 = vpow.pop %v1136
      %v1138 = vadd.f32 %v1137, 1.0
      %v1139 = vrcp.pop %v1138
      %v1140 = vmul.f32 1.0, %v1139
      %v1141 = vmul.f32 %v1132, %v1140
      %v1142 = vld [vmem:[%s7] sm:$0x3]
      %v1143 = vld [vmem:[%s8] sm:$0x1]
      %vm1144 = vcmask 15360
      %v1146 = vsel %vm1144, %v1141, 0
      %vm1148 = vcmask 1041408
      %v1150 = vsel %vm1148, %v1142, 0
      %1152 = vmatprep.subr.mxu0 0.0
      %1153 = vmatpush1.msra.mxu0 %v1150
      %1154 = vmatprep.subr.mxu0 0.0
      %1155 = vmatpush1.msra.mxu0 0.0
      %1156 = vmatprep.subr.mxu0 0.0
      %1157 = vmatpush1.msra.mxu0 0.0
      %1158 = vmatprep.subr.mxu0 0.0
      %1159 = vmatpush1.msra.mxu0 0.0
      %1160 = vmatprep.subr.mxu0 0.0
      %1161 = vmatpush1.msra.mxu0 0.0
      %1162 = vmatprep.subr.mxu0 0.0
      %1163 = vmatpush1.msra.mxu0 0.0
      %1164 = vmatprep.subr.mxu0 0.0
      %1165 = vmatpush1.msra.mxu0 0.0
      %1166 = vmatprep.subr.mxu0 0.0
      %1167 = vmatpush1.msra.mxu0 0.0
      %1168 = vmatprep.subr.mxu0 0.0
      %1169 = vmatpush1.msra.mxu0 0.0
      %1170 = vmatprep.subr.mxu0 0.0
      %1171 = vmatpush1.msra.mxu0 0.0
      %1172 = vmatprep.subr.mxu0 0.0
      %1173 = vmatpush1.msra.mxu0 0.0
      %1174 = vmatprep.subr.mxu0 0.0
      %1175 = vmatpush1.msra.mxu0 0.0
      %1176 = vmatprep.subr.mxu0 0.0
      %1177 = vmatpush1.msra.mxu0 0.0
      %1178 = vmatprep.subr.mxu0 0.0
      %1179 = vmatpush1.msra.mxu0 0.0
      %1180 = vmatprep.subr.mxu0 0.0
      %1181 = vmatpush1.msra.mxu0 0.0
      %1182 = vmatprep.subr.mxu0 0.0
      %1183 = vmatpush1.msra.mxu0 0.0
      %1184 = vmatprep.subr.mxu0 0.0
      %1185 = vmatpush1.msra.mxu0 0.0
      %1186 = vmatprep.subr.mxu0 0.0
      %1187 = vmatpush1.msra.mxu0 0.0
      %1188 = vmatprep.subr.mxu0 0.0
      %1189 = vmatpush1.msra.mxu0 0.0
      %1190 = vmatprep.subr.mxu0 0.0
      %1191 = vmatpush1.msra.mxu0 0.0
      %1192 = vmatprep.subr.mxu0 0.0
      %1193 = vmatpush1.msra.mxu0 0.0
      %1194 = vmatprep.subr.mxu0 0.0
      %1195 = vmatpush1.msra.mxu0 0.0
      %1196 = vmatprep.subr.mxu0 0.0
      %1197 = vmatpush1.msra.mxu0 0.0
      %1198 = vmatprep.subr.mxu0 0.0
      %1199 = vmatpush1.msra.mxu0 0.0
      %1200 = vmatprep.subr.mxu0 0.0
      %1201 = vmatpush1.msra.mxu0 0.0
      %1202 = vmatprep.subr.mxu0 0.0
      %1203 = vmatpush1.msra.mxu0 0.0
      %1204 = vmatprep.subr.mxu0 0.0
      %1205 = vmatpush1.msra.mxu0 0.0
      %1206 = vmatprep.subr.mxu0 0.0
      %1207 = vmatpush1.msra.mxu0 0.0
      %1208 = vmatprep.subr.mxu0 0.0
      %1209 = vmatpush1.msra.mxu0 0.0
      %1210 = vmatprep.subr.mxu0 0.0
      %1211 = vmatpush1.msra.mxu0 0.0
      %1212 = vmatprep.subr.mxu0 0.0
      %1213 = vmatpush1.msra.mxu0 0.0
      %1214 = vmatprep.subr.mxu0 0.0
      %1215 = vmatpush1.msra.mxu0 0.0
      %1216 = vmatprep.mubr.f32.mxu0 0.0
      %1217 = vmatmul.mubr.f32.gmra.mrb[0].mxu0 %v1146
      %v1218 = vpop.f32.mrb[0].mxu0
      %v1219 = vadd.f32 %v1143, %v1218
      %v1220 = vpop.f32.mrb[0].mxu0
      %1221 = vdwg.mxu0
      %v1222 = vxor.u32 %v1219, 2147483648
      %v1223 = vmul.f32 %v1222, 1.442695
      %v1224 = vpow.pop %v1223
      %v1225 = vadd.f32 %v1224, 1.0
      %v1226 = vrcp.pop %v1225
      %v1227 = vmul.f32 1.0, %v1226
      %v1228 = vlaneseq
      %v1229 = vshrl.u32 %v1228, 7
      %v1230 = vsub.s32 0, %v1229
      %v1231 = vrot.slane %v1227, %v1230
      %v1232 = vmul.f32 %v1043, %v1231
      %v1233 = vmul.f32 %v1044, %v1231
      %v1234 = vpack.c.bf16 %v1233, %v1232
      %v1235 = vld [vmem:[%s9] sm:$0xf]
      %v1236 = vld [vmem:[%s9 + $0x4] sm:$0xf]
      %v1237 = vld [vmem:[%s9 + $0x8] sm:$0xf]
      %v1238 = vld [vmem:[%s9 + $0xc] sm:$0xf]
      %v1239 = vld [vmem:[%s9 + $0x10] sm:$0xf]
      %v1240 = vld [vmem:[%s9 + $0x14] sm:$0xf]
      %v1241 = vld [vmem:[%s10] sm:$0x1]
      %v1243 = vlaneseq
      %v1244 = vshrl.u32 %v1243, 7
      %v1245 = vsub.s32 0, %v1244
      %v1246 = vrot.slane %v1241, %v1245
      %v1254 = vunpack.c.l.b16 %v1235
      %v1255 = vunpack.c.l.b16 %v1236
      %v1256 = vunpack.c.l.b16 %v1237
      %v1257 = vunpack.c.l.b16 %v1238
      %v1258 = vunpack.c.l.b16 %v1239
      %v1259 = vunpack.c.l.b16 %v1240
      %v1260 = vpack.c.b16 %v1255, %v1254
      %v1261 = vpack.c.b16 %v1257, %v1256
      %v1262 = vpack.c.b16 %v1259, %v1258
      %v1267 = vsel %vm388, %v1234, 0
      %1269 = vmatprep.subr.bf16.mxu0 0
      %1270 = vmatpush1.bf16.msra.mxu0 %v1260
      %1271 = vmatprep.subr.bf16.mxu0 0
      %1272 = vmatpush1.bf16.msra.mxu0 %v1261
      %1273 = vmatprep.subr.bf16.mxu0 0
      %1274 = vmatpush1.bf16.msra.mxu0 %v1262
      %1275 = vmatprep.subr.bf16.mxu0 0
      %1276 = vmatpush1.bf16.msra.mxu0 0
      %1277 = vmatprep.subr.bf16.mxu0 0
      %1278 = vmatpush1.bf16.msra.mxu0 0
      %1279 = vmatprep.subr.bf16.mxu0 0
      %1280 = vmatpush1.bf16.msra.mxu0 0
      %1281 = vmatprep.subr.bf16.mxu0 0
      %1282 = vmatpush1.bf16.msra.mxu0 0
      %1283 = vmatprep.subr.bf16.mxu0 0
      %1284 = vmatpush1.bf16.msra.mxu0 0
      %1285 = vmatprep.subr.bf16.mxu0 0
      %1286 = vmatpush1.bf16.msra.mxu0 0
      %1287 = vmatprep.subr.bf16.mxu0 0
      %1288 = vmatpush1.bf16.msra.mxu0 0
      %1289 = vmatprep.subr.bf16.mxu0 0
      %1290 = vmatpush1.bf16.msra.mxu0 0
      %1291 = vmatprep.subr.bf16.mxu0 0
      %1292 = vmatpush1.bf16.msra.mxu0 0
      %1293 = vmatprep.subr.bf16.mxu0 0
      %1294 = vmatpush1.bf16.msra.mxu0 0
      %1295 = vmatprep.subr.bf16.mxu0 0
      %1296 = vmatpush1.bf16.msra.mxu0 0
      %1297 = vmatprep.subr.bf16.mxu0 0
      %1298 = vmatpush1.bf16.msra.mxu0 0
      %1299 = vmatprep.subr.bf16.mxu0 0
      %1300 = vmatpush1.bf16.msra.mxu0 0
      %1301 = vmatprep.mubr.bf16.mxu0 0
      %1302 = vmatmul.mubr.bf16.gmra.mrb[0].mxu0 %v1267
      %v1303 = vpop.f32.mrb[0].mxu0
      %v1304 = vadd.f32 %v1246, %v1303
      %v1305 = vpop.f32.mrb[0].mxu0
      %v1306 = vpop.f32.mrb[0].mxu0
      %v1307 = vadd.f32 %v1246, %v1306
      %v1308 = vpop.f32.mrb[0].mxu0
      %1309 = vdwg.mxu0
      %1310 = vst.msk [vmem:[%s386] sm:$0xff] %vm432, %v1304
      %1311 = vst.msk [vmem:[%s386 + $0x8] sm:$0xff] %vm432, %v1307
      %p1312 = scmp.lt.s32.totalorder %s22, 1
      %s1313 = scalar_select %p1312, %s22, 1
      %s1314 = smul.addr %s1313, 2
      %s1315 = smul.addr %s1314, 8
      %s1316 = scalar_lea.vmem %s11, %s1315
      // Predicated region
      $region65: #{_lambda_.7} parent=63 // pred_check
        %p1317 = pneg %p276
      $region66: #{_lambda_.7} parent=63 // pred_check_branch
        %1319 = sbr.rel (%p1317) target = $region68
      $region67: #{_lambda_.7} parent=63 // pred_region
        _
      $region68: #{_lambda_.7} parent=63 // pred_fallthru
        _
    $region64: #{_lambda_.7} parent=5 // pred_fallthru
      _
    %p1320 = scmp.le.s32.totalorder 2, %s17
    // Predicated region
    $region69: #{_lambda_.7} parent=5 // pred_check
      %p1321 = pneg %p1320
    $region70: #{_lambda_.7} parent=5 // pred_check_branch
      %1323 = sbr.rel (%p1321) target = $region72
    $region71: #{_lambda_.7} parent=5 // pred_region
      %s1324 = ssub.s32 %s17, 2
      // Predicated region
      $region73: #{_lambda_.7} parent=71 // pred_check
        %p1325 = pneg %p282
      $region74: #{_lambda_.7} parent=71 // pred_check_branch
        %1327 = sbr.rel (%p1325) target = $region76
      $region75: #{_lambda_.7} parent=71 // pred_region
        %p1328 = scmp.lt.s32.totalorder %s23, 1
        %s1329 = scalar_select %p1328, %s23, 1
        %s1330 = smul.addr %s1329, 2
        %s1331 = smul.addr %s1330, 8
        %s1332 = scalar_lea.vmem %s11, %s1331
      $region76: #{_lambda_.7} parent=71 // pred_fallthru
        _
    $region72: #{_lambda_.7} parent=5 // pred_fallthru
      _
  $region6: #{_lambda_.7} parent=0 // loop_footer
    %s21 = sadd.s32 1, %s17
  $region7: #{_lambda_.7} parent=0 // loop_footer_branch
    %16 = sbr.rel target = $region3
  $region8: #{_lambda_.7} parent=0 // loop_exit
    _

// kernel: _lambda_.9
$region0: #{_lambda_.9}
  #allocation0 [shape = 'u32[]', space=smem, size = 0x4, offset = 0x4, fixed_abs, tag = 'smem constant byte address 0x4 - core index']
  #allocation1 [shape = 'u32[144,128]{1,0:T(1,128)}', space=vmem, size = 0x12000, scoped, tag = 'internal scratch']
  %s0 = inlined_call_operand.vmem [shape: f32[2,16,8], index: 0, kind: input, shape index: {}]
  %s1 = inlined_call_operand.vmem [shape: bf16[8,320], index: 1, kind: input, shape index: {}]
  %s2 = inlined_call_operand.vmem [shape: f32[1,320], index: 2, kind: input, shape index: {}]
  %s3 = inlined_call_operand.vmem [shape: f32[2,1,320], index: 3, kind: output, shape index: {}]
  %s4 = sld [smem:[#allocation0]]
  $region45: #{_lambda_.9} parent=0
    _
  %s6 = ssub.s32 1, %s4
  %s7 = scalar_select 0, %s6, %s4
  loop: start=0, step=1, limit=4
  $region2: #{_lambda_.9} parent=0 // loop_pre_header
    _
  $region3: #{_lambda_.9} parent=0 // loop_header
    %s9 = sphi 0, %s13
    %p10 = scmp.ge.s32.totalorder %s9, 4
    %s19 = sphi 0, %s21
    %s22 = sphi 0, %s19
    %s23 = sphi 0, %s22
    %s39 = sphi 0, %s23
    %s43 = sphi 0, %s43
    %s45 = sphi 0, %s43
    %s46 = sphi 0, %s45
    %s60 = sphi 0, %s46
    %s64 = sphi 0, %s64
    %s66 = sphi 0, %s64
    %s67 = sphi 0, %s66
    %s81 = sphi 0, %s67
    %s87 = sphi 0, %s89
    %s90 = sphi 0, %s87
    %s91 = sphi 0, %s90
    %s107 = sphi 0, %s91
  $region4: #{_lambda_.9} parent=0 // loop_header_branch
    %12 = sbr.rel (%p10) target = $region8
  $region5: #{_lambda_.9} parent=0 // loop_body
    %s14 = ssub.s32 %s9, 1
    %s15 = ssub.s32 %s9, 2
    %s16 = sadd.s32 %s9, 1
    %s17 = ssub.s32 %s9, %s16
    %p18 = scmp.eq.s32.totalorder %s17, 0
    %s20 = sadd.s32 %s19, 1
    %s21 = scalar_select %p18, %s19, %s20
    %p24 = pneg %p18
    %p25 = scmp.eq.s32.totalorder %s9, 1
    %p26 = por %p24, %p25
    %p27 = scmp.ne.s32.totalorder %s19, %s22
    %p28 = scmp.eq.s32.totalorder %s9, 0
    %p29 = por %p27, %p28
    %p30 = scmp.ne.s32.totalorder %s19, %s22
    %p31 = scmp.eq.s32.totalorder %s14, 1
    %p32 = por %p30, %p31
    %p33 = scmp.ne.s32.totalorder %s22, %s23
    %p34 = scmp.eq.s32.totalorder %s14, 0
    %p35 = por %p33, %p34
    %p36 = scmp.ne.s32.totalorder %s22, %s23
    %p37 = scmp.eq.s32.totalorder %s15, 1
    %p38 = por %p36, %p37
    %p40 = scmp.ne.s32.totalorder %s23, %s39
    %p41 = scmp.eq.s32.totalorder %s15, 0
    %p42 = por %p40, %p41
    %s44 = sadd.s32 %s43, 1
    %p47 = scmp.eq.s32.totalorder %s9, 1
    %p48 = scmp.ne.s32.totalorder %s43, %s45
    %p49 = scmp.eq.s32.totalorder %s9, 0
    %p50 = por %p48, %p49
    %p51 = scmp.ne.s32.totalorder %s43, %s45
    %p52 = scmp.eq.s32.totalorder %s14, 1
    %p53 = por %p51, %p52
    %p54 = scmp.ne.s32.totalorder %s45, %s46
    %p55 = scmp.eq.s32.totalorder %s14, 0
    %p56 = por %p54, %p55
    %p57 = scmp.ne.s32.totalorder %s45, %s46
    %p58 = scmp.eq.s32.totalorder %s15, 1
    %p59 = por %p57, %p58
    %p61 = scmp.ne.s32.totalorder %s46, %s60
    %p62 = scmp.eq.s32.totalorder %s15, 0
    %p63 = por %p61, %p62
    %s65 = sadd.s32 %s64, 1
    %p68 = scmp.eq.s32.totalorder %s9, 1
    %p69 = scmp.ne.s32.totalorder %s64, %s66
    %p70 = scmp.eq.s32.totalorder %s9, 0
    %p71 = por %p69, %p70
    %p72 = scmp.ne.s32.totalorder %s64, %s66
    %p73 = scmp.eq.s32.totalorder %s14, 1
    %p74 = por %p72, %p73
    %p75 = scmp.ne.s32.totalorder %s66, %s67
    %p76 = scmp.eq.s32.totalorder %s14, 0
    %p77 = por %p75, %p76
    %p78 = scmp.ne.s32.totalorder %s66, %s67
    %p79 = scmp.eq.s32.totalorder %s15, 1
    %p80 = por %p78, %p79
    %p82 = scmp.ne.s32.totalorder %s67, %s81
    %p83 = scmp.eq.s32.totalorder %s15, 0
    %p84 = por %p82, %p83
    %s85 = ssub.s32 %s9, %s16
    %p86 = scmp.eq.s32.totalorder %s85, 0
    %s88 = sadd.s32 %s87, 1
    %s89 = scalar_select %p86, %s87, %s88
    %p92 = pneg %p86
    %p93 = scmp.eq.s32.totalorder %s9, 1
    %p94 = por %p92, %p93
    %p95 = scmp.ne.s32.totalorder %s87, %s90
    %p96 = scmp.eq.s32.totalorder %s9, 0
    %p97 = por %p95, %p96
    %p98 = scmp.ne.s32.totalorder %s87, %s90
    %p99 = scmp.eq.s32.totalorder %s14, 1
    %p100 = por %p98, %p99
    %p101 = scmp.ne.s32.totalorder %s90, %s91
    %p102 = scmp.eq.s32.totalorder %s14, 0
    %p103 = por %p101, %p102
    %p104 = scmp.ne.s32.totalorder %s90, %s91
    %p105 = scmp.eq.s32.totalorder %s15, 1
    %p106 = por %p104, %p105
    %p108 = scmp.ne.s32.totalorder %s91, %s107
    %p109 = scmp.eq.s32.totalorder %s15, 0
    %p110 = por %p108, %p109
    %p111 = scmp.le.s32.totalorder 1, %s9
    %p112 = scmp.lt.s32.totalorder %s9, 3
    %p113 = pnand %p111, %p112
    %p114 = pneg %p113
    // Predicated region
    $region9: #{_lambda_.9} parent=5 // pred_check
      _
    $region10: #{_lambda_.9} parent=5 // pred_check_branch
      %116 = sbr.rel (%p113) target = $region12
    $region11: #{_lambda_.9} parent=5 // pred_region
      %s117 = ssub.s32 %s9, 1
      // Predicated region
      $region13: #{_lambda_.9} parent=11 // pred_check
        %p118 = pneg %p56
      $region14: #{_lambda_.9} parent=11 // pred_check_branch
        %120 = sbr.rel (%p118) target = $region16
      $region15: #{_lambda_.9} parent=11 // pred_region
        _
      $region16: #{_lambda_.9} parent=11 // pred_fallthru
        _
      // Predicated region
      $region17: #{_lambda_.9} parent=11 // pred_check
        %p121 = pneg %p77
      $region18: #{_lambda_.9} parent=11 // pred_check_branch
        %123 = sbr.rel (%p121) target = $region20
      $region19: #{_lambda_.9} parent=11 // pred_region
        _
      $region20: #{_lambda_.9} parent=11 // pred_fallthru
        _
    $region12: #{_lambda_.9} parent=5 // pred_fallthru
      _
    %p124 = scmp.lt.s32.totalorder %s9, 2
    // Predicated region
    $region21: #{_lambda_.9} parent=5 // pred_check
      %p125 = pneg %p124
    $region22: #{_lambda_.9} parent=5 // pred_check_branch
      %127 = sbr.rel (%p125) target = $region24
    $region23: #{_lambda_.9} parent=5 // pred_region
      // Predicated region
      $region25: #{_lambda_.9} parent=23 // pred_check
        %p128 = pneg %p29
      $region26: #{_lambda_.9} parent=23 // pred_check_branch
        %130 = sbr.rel (%p128) target = $region28
      $region27: #{_lambda_.9} parent=23 // pred_region
        %p131 = scmp.lt.s32.totalorder %s9, 1
        %s132 = scalar_select %p131, %s9, 1
        %s133 = smul.addr %s132, 2
        %s134 = smul.addr %s133, 8
        %s135 = scalar_lea.vmem %s0, %s134
      $region28: #{_lambda_.9} parent=23 // pred_fallthru
        _
    $region24: #{_lambda_.9} parent=5 // pred_fallthru
      _
    %p136 = scmp.le.s32.totalorder 1, %s9
    %p137 = scmp.lt.s32.totalorder %s9, 3
    %p138 = pnand %p136, %p137
    %p139 = pneg %p138
    // Predicated region
    $region29: #{_lambda_.9} parent=5 // pred_check
      _
    $region30: #{_lambda_.9} parent=5 // pred_check_branch
      %141 = sbr.rel (%p138) target = $region32
    $region31: #{_lambda_.9} parent=5 // pred_region
      %s142 = ssub.s32 %s9, 1
      %p143 = scmp.lt.s32.totalorder %s14, 1
      %s144 = scalar_select %p143, %s14, 1
      %s145 = smul.addr %s144, 2
      %s146 = smul.addr %s145, 8
      %s147 = scalar_lea.vmem %s0, %s146
      %p148 = pneg %p35
      %p149 = pneg %p32
      %p150 = pneg %p56
      %p151 = pneg %p53
      %p152 = pneg %p77
      %p153 = pneg %p74
      %p154 = pneg %p103
      %p155 = pneg %p100
      %p156 = scmp.lt.s32.totalorder %s14, 1
      %s157 = scalar_select %p156, %s14, 1
      %s158 = smul.addr %s157, 3
      %s159 = scalar_lea.vmem %s3, %s158
      %p160 = scmp.lt.s32.totalorder %s14, 1
      %s161 = scalar_select %p160, %s14, 1
      %s162 = smul.addr %s161, 2
      %s163 = smul.addr %s162, 8
      %s164 = scalar_lea.vmem %s0, %s163
      %p165 = scmp.lt.s32.totalorder %s14, 1
      %s166 = scalar_select %p165, %s14, 1
      %s167 = smul.addr %s166, 3
      %s168 = scalar_lea.vmem %s3, %s167
      %v170 = vld [vmem:[%s164] sm:$0xff]
      %v171 = vld [vmem:[%s164 + $0x8] sm:$0xff]
      %v172 = vpack.c.bf16 %v171, %v170
      %v173 = vld [vmem:[%s1] sm:$0xff]
      %v174 = vld [vmem:[%s1 + $0x8] sm:$0xf]
      %v175 = vld [vmem:[%s2] sm:$0x7]
      %v177 = vlaneseq
      %v178 = vshrl.u32 %v177, 7
      %v179 = vsub.s32 0, %v178
      %v180 = vrot.slane %v175, %v179
      %v181 = vlaneseq
      %v182 = vshrl.u32 %v181, 7
      %v183 = vsub.s32 1, %v182
      %v184 = vrot.slane %v175, %v183
      %v185 = vlaneseq
      %v186 = vshrl.u32 %v185, 7
      %v187 = vsub.s32 2, %v186
      %v188 = vrot.slane %v175, %v187
      %v194 = vunpack.c.l.b16 %v173
      %v195 = vunpack.c.h.b16 %v173
      %v196 = vunpack.c.l.b16 %v174
      %v197 = vpack.c.b16 %v194, %v194
      %v198 = vpack.c.b16 %v195, %v195
      %v199 = vpack.c.b16 %v196, %v196
      %vm200 = vcmask 64512
      %v202 = vsel %vm200, %v172, 0
      %vm204 = vcmask 1043456
      %v206 = vsel %vm204, %v197, 0
      %v209 = vsel %vm204, %v198, 0
      %v212 = vsel %vm204, %v199, 0
      %214 = vmatprep.subr.bf16.mxu0 %v209
      %215 = vmatpush1.bf16.msra.mxu0 %v206
      %216 = vmatprep.subr.bf16.mxu0 0
      %217 = vmatpush1.bf16.msra.mxu0 0
      %218 = vmatprep.subr.bf16.mxu0 0
      %219 = vmatpush1.bf16.msra.mxu0 0
      %220 = vmatprep.subr.bf16.mxu0 0
      %221 = vmatpush1.bf16.msra.mxu0 0
      %222 = vmatprep.subr.bf16.mxu0 0
      %223 = vmatpush1.bf16.msra.mxu0 0
      %224 = vmatprep.subr.bf16.mxu0 0
      %225 = vmatpush1.bf16.msra.mxu0 0
      %226 = vmatprep.subr.bf16.mxu0 0
      %227 = vmatpush1.bf16.msra.mxu0 0
      %228 = vmatprep.subr.bf16.mxu0 0
      %229 = vmatpush1.bf16.msra.mxu0 0
      %230 = vmatprep.subr.bf16.mxu0 0
      %231 = vmatpush1.bf16.msra.mxu0 0
      %232 = vmatprep.subr.bf16.mxu0 0
      %233 = vmatpush1.bf16.msra.mxu0 0
      %234 = vmatprep.subr.bf16.mxu0 0
      %235 = vmatpush1.bf16.msra.mxu0 0
      %236 = vmatprep.subr.bf16.mxu0 0
      %237 = vmatpush1.bf16.msra.mxu0 0
      %238 = vmatprep.subr.bf16.mxu0 0
      %239 = vmatpush1.bf16.msra.mxu0 0
      %240 = vmatprep.subr.bf16.mxu0 0
      %241 = vmatpush1.bf16.msra.mxu0 0
      %242 = vmatprep.subr.bf16.mxu0 0
      %243 = vmatpush1.bf16.msra.mxu0 0
      %244 = vmatprep.subr.bf16.mxu0 0
      %245 = vmatpush1.bf16.msra.mxu0 0
      %246 = vmatprep.mubr.bf16.mxu0 0
      %247 = vmatmul.mubr.bf16.gmra.mrb[0].mxu0 %v202
      %v248 = vpop.f32.mrb[0].mxu0
      %v249 = vadd.f32 %v180, %v248
      %v250 = vpop.f32.mrb[0].mxu0
      %v251 = vadd.f32 %v184, %v250
      %v252 = vpop.f32.mrb[0].mxu0
      %v253 = vadd.f32 %v180, %v252
      %v254 = vpop.f32.mrb[0].mxu0
      %v255 = vadd.f32 %v184, %v254
      %256 = vdwg.mxu0
      %257 = vmatprep.subr.bf16.mxu0 0
      %258 = vmatpush1.bf16.msra.mxu0 %v212
      %259 = vmatprep.subr.bf16.mxu0 0
      %260 = vmatpush1.bf16.msra.mxu0 0
      %261 = vmatprep.subr.bf16.mxu0 0
      %262 = vmatpush1.bf16.msra.mxu0 0
      %263 = vmatprep.subr.bf16.mxu0 0
      %264 = vmatpush1.bf16.msra.mxu0 0
      %265 = vmatprep.subr.bf16.mxu0 0
      %266 = vmatpush1.bf16.msra.mxu0 0
      %267 = vmatprep.subr.bf16.mxu0 0
      %268 = vmatpush1.bf16.msra.mxu0 0
      %269 = vmatprep.subr.bf16.mxu0 0
      %270 = vmatpush1.bf16.msra.mxu0 0
      %271 = vmatprep.subr.bf16.mxu0 0
      %272 = vmatpush1.bf16.msra.mxu0 0
      %273 = vmatprep.subr.bf16.mxu0 0
      %274 = vmatpush1.bf16.msra.mxu0 0
      %275 = vmatprep.subr.bf16.mxu0 0
      %276 = vmatpush1.bf16.msra.mxu0 0
      %277 = vmatprep.subr.bf16.mxu0 0
      %278 = vmatpush1.bf16.msra.mxu0 0
      %279 = vmatprep.subr.bf16.mxu0 0
      %280 = vmatpush1.bf16.msra.mxu0 0
      %281 = vmatprep.subr.bf16.mxu0 0
      %282 = vmatpush1.bf16.msra.mxu0 0
      %283 = vmatprep.subr.bf16.mxu0 0
      %284 = vmatpush1.bf16.msra.mxu0 0
      %285 = vmatprep.subr.bf16.mxu0 0
      %286 = vmatpush1.bf16.msra.mxu0 0
      %287 = vmatprep.subr.bf16.mxu0 0
      %288 = vmatpush1.bf16.msra.mxu0 0
      %289 = vmatprep.mubr.bf16.mxu0 0
      %290 = vmatmul.mubr.bf16.gmra.mrb[0].mxu0 %v202
      %v291 = vpop.f32.mrb[0].mxu0
      %v292 = vadd.f32 %v188, %v291
      %v293 = vpop.f32.mrb[0].mxu0
      %v294 = vpop.f32.mrb[0].mxu0
      %v295 = vadd.f32 %v188, %v294
      %v296 = vpop.f32.mrb[0].mxu0
      %297 = vdwg.mxu0
      %v298 = vxor.u32 %v249, 2147483648
      %v299 = vxor.u32 %v251, 2147483648
      %v300 = vxor.u32 %v292, 2147483648
      %v301 = vxor.u32 %v253, 2147483648
      %v302 = vxor.u32 %v255, 2147483648
      %v303 = vxor.u32 %v295, 2147483648
      %v304 = vmul.f32 %v298, 1.442695
      %v305 = vpow.pop %v304
      %v306 = vmul.f32 %v299, 1.442695
      %v307 = vpow.pop %v306
      %v308 = vmul.f32 %v300, 1.442695
      %v309 = vpow.pop %v308
      %v310 = vmul.f32 %v301, 1.442695
      %v311 = vpow.pop %v310
      %v312 = vmul.f32 %v302, 1.442695
      %v313 = vpow.pop %v312
      %v314 = vmul.f32 %v303, 1.442695
      %v315 = vpow.pop %v314
      %v316 = vadd.f32 %v305, 1.0
      %v317 = vadd.f32 %v307, 1.0
      %v318 = vadd.f32 %v309, 1.0
      %v319 = vadd.f32 %v311, 1.0
      %v320 = vadd.f32 %v313, 1.0
      %v321 = vadd.f32 %v315, 1.0
      %v322 = vrcp.pop %v316
      %v323 = vmul.f32 1.0, %v322
      %v324 = vrcp.pop %v317
      %v325 = vmul.f32 1.0, %v324
      %v326 = vrcp.pop %v318
      %v327 = vmul.f32 1.0, %v326
      %v328 = vrcp.pop %v319
      %v329 = vmul.f32 1.0, %v328
      %v330 = vrcp.pop %v320
      %v331 = vmul.f32 1.0, %v330
      %v332 = vrcp.pop %v321
      %v333 = vmul.f32 1.0, %v332
      %v334 = vmul.f32 %v249, %v323
      %v335 = vmul.f32 %v251, %v325
      %v336 = vmul.f32 %v292, %v327
      %v337 = vmul.f32 %v253, %v329
      %v338 = vmul.f32 %v255, %v331
      %v339 = vmul.f32 %v295, %v333
      %v340 = vadd.f32 %v334, %v337
      %v341 = vrot.slane %v340, 4
      %v342 = vadd.f32 %v340, %v341
      %v343 = vrot.slane %v342, 2
      %v344 = vadd.f32 %v342, %v343
      %v345 = vrot.slane %v344, 1
      %v346 = vadd.f32 %v344, %v345
      %v347 = vadd.f32 %v335, %v338
      %v348 = vrot.slane %v347, 4
      %v349 = vadd.f32 %v347, %v348
      %v350 = vrot.slane %v349, 2
      %v351 = vadd.f32 %v349, %v350
      %v352 = vrot.slane %v351, 1
      %v353 = vadd.f32 %v351, %v352
      %vm354 = vcmask 523264
      %v355 = vsel %vm354, %v336, 0.0
      %v356 = vsel %vm354, %v339, 0.0
      %v357 = vadd.f32 %v355, %v356
      %v358 = vrot.slane %v357, 4
      %v359 = vadd.f32 %v357, %v358
      %v360 = vrot.slane %v359, 2
      %v361 = vadd.f32 %v359, %v360
      %v362 = vrot.slane %v361, 1
      %v363 = vadd.f32 %v361, %v362
      %v364 = vmul.f32 %v346, 0.0625
      %v365 = vmul.f32 %v353, 0.0625
      %v366 = vmul.f32 %v363, 0.0625
      %v370 = vcombine.low %v364, %v365
      %v372 = vunpack.c.l.s4 1966171168
      %v373 = vunpack.c.0.s8 %v372
      %v374 = vlaneseq
      %v375 = vshrl.u32 %v374, 7
      %v376 = vsub.s32 %v373, %v375
      %v377 = vrot.slane %v370, %v376
      %v379 = vunpack.c.l.s4 1966171168
      %v380 = vunpack.c.0.s8 %v379
      %v381 = vlaneseq
      %v382 = vshrl.u32 %v381, 7
      %v383 = vsub.s32 %v380, %v382
      %v384 = vrot.slane %v366, %v383
      %v385 = vcombine.low %v377, %v384
      %v387 = vunpack.c.l.s4 1966171168
      %v388 = vunpack.c.0.s8 %v387
      %v389 = vlaneseq
      %v390 = vshrl.u32 %v389, 7
      %v391 = vsub.s32 %v388, %v390
      %v392 = vrot.slane %v385, %v391
      %v394 = vlaneseq
      %vm395 = vcmp.ge.s32.totalorder %v394, 0
      %vm396 = vcmp.lt.s32.totalorder %v394, 320
      %vm397 = vmand %vm395, %vm396
      %398 = vst.msk [vmem:[%s168] sm:$0x7] %vm397, %v392
      %p399 = scmp.lt.s32.totalorder %s14, 1
      %s400 = scalar_select %p399, %s14, 1
      %s401 = smul.addr %s400, 3
      %s402 = scalar_lea.vmem %s3, %s401
      // Predicated region
      $region33: #{_lambda_.9} parent=31 // pred_check
        %p403 = pneg %p100
      $region34: #{_lambda_.9} parent=31 // pred_check_branch
        %405 = sbr.rel (%p403) target = $region36
      $region35: #{_lambda_.9} parent=31 // pred_region
        _
      $region36: #{_lambda_.9} parent=31 // pred_fallthru
        _
    $region32: #{_lambda_.9} parent=5 // pred_fallthru
      _
    %p406 = scmp.le.s32.totalorder 2, %s9
    // Predicated region
    $region37: #{_lambda_.9} parent=5 // pred_check
      %p407 = pneg %p406
    $region38: #{_lambda_.9} parent=5 // pred_check_branch
      %409 = sbr.rel (%p407) target = $region40
    $region39: #{_lambda_.9} parent=5 // pred_region
      %s410 = ssub.s32 %s9, 2
      // Predicated region
      $region41: #{_lambda_.9} parent=39 // pred_check
        %p411 = pneg %p106
      $region42: #{_lambda_.9} parent=39 // pred_check_branch
        %413 = sbr.rel (%p411) target = $region44
      $region43: #{_lambda_.9} parent=39 // pred_region
        %p414 = scmp.lt.s32.totalorder %s15, 1
        %s415 = scalar_select %p414, %s15, 1
        %s416 = smul.addr %s415, 3
        %s417 = scalar_lea.vmem %s3, %s416
      $region44: #{_lambda_.9} parent=39 // pred_fallthru
        _
    $region40: #{_lambda_.9} parent=5 // pred_fallthru
      _
  $region6: #{_lambda_.9} parent=0 // loop_footer
    %s13 = sadd.s32 1, %s9
  $region7: #{_lambda_.9} parent=0 // loop_footer_branch
    %8 = sbr.rel target = $region3
  $region8: #{_lambda_.9} parent=0 // loop_exit
    _

</llo_original>
